<compile_context>
chip_gen: v7x
topology: tpu7x:2x2x1
jax: 0.10.0
libtpu: 0.0.40
codegen_flags: <defaults>
</compile_context>

<pallas_src>
import math

import jax
import jax.numpy as jnp
from jax.experimental import pallas as pl
from jax.experimental.pallas import tpu as pltpu


def _round_up(v, m):
    return ((v + m - 1) // m) * m


def _tpu_tile_config():
    """Per-generation (max batch tile, scoped VMEM limit)."""
    kind = ""
    try:
        kind = jax.devices()[0].device_kind.lower()
    except Exception:
        pass
    if ("v5" in kind) or ("v6" in kind):
        # 128 MiB VMEM, single TensorCore: go wide.
        return 256, 100 * 1024 * 1024
    # v7x (64 MiB VMEM, 2 TensorCores) and unknown chips: conservative cap.
    # Capping at 128 also keeps grid >= 2 for batches > 128 so both v7x cores
    # get work under dimension_semantics=("parallel",).
    return 128, 48 * 1024 * 1024


# ------------------------------ fused kernel ------------------------------- #

def _fused_net_kernel(x_ref, w1e_ref, w1o_ref, b1_ref,
                      w2e_ref, w2o_ref, b2_ref,
                      wfc1_ref, bfc1_ref, wfc2_ref, bfc2_ref,
                      out_ref,
                      xf_ref, acc1e_ref, acc1o_ref, p1_ref,
                      acc2e_ref, acc2o_ref, h_ref):
    TB = x_ref.shape[0]
    f32 = jnp.float32
    cdt = w1e_ref.dtype            # bf16 compute dtype for MXU operands

    # Stage the bf16 input tile to f32 once (aligned full-tile op) so the five
    # row-shifted LHS slices below never touch packed-sublane offsets.
    xf_ref[...] = x_ref[...].astype(f32)

    # conv1, with the stride-2 W-direction half of the 2x2 max-pool folded into
    # two column-compacted banded weight sets (even / odd output columns).
    # Accumulate over the 5 kernel rows directly in VMEM scratch; the bias is
    # added once after the pooling max.
    for kh in range(5):
        lhs = xf_ref[:, kh:kh + 24, :].reshape(TB * 24, 28).astype(cdt)
        pe = jnp.dot(lhs, w1e_ref[kh], preferred_element_type=f32)
        po = jnp.dot(lhs, w1o_ref[kh], preferred_element_type=f32)
        if kh == 0:
            acc1e_ref[...] = pe.reshape(TB, 24, 120)
            acc1o_ref[...] = po.reshape(TB, 24, 120)
        else:
            acc1e_ref[...] += pe.reshape(TB, 24, 120)
            acc1o_ref[...] += po.reshape(TB, 24, 120)

    # Remaining (H-direction) half of the 2x2 max-pool + bias + ReLU -> p1.
    for i in range(12):
        m = jnp.maximum(
            jnp.maximum(acc1e_ref[:, 2 * i, :], acc1o_ref[:, 2 * i, :]),
            jnp.maximum(acc1e_ref[:, 2 * i + 1, :], acc1o_ref[:, 2 * i + 1, :]))
        p1_ref[:, i, :] = jnp.maximum(m + b1_ref[...], 0.0)

    # conv2 (Dropout2d is identity in eval mode), same folded W-pool scheme.
    for kh in range(5):
        lhs = p1_ref[:, kh:kh + 8, :].reshape(TB * 8, 120).astype(cdt)
        pe = jnp.dot(lhs, w2e_ref[kh], preferred_element_type=f32)
        po = jnp.dot(lhs, w2o_ref[kh], preferred_element_type=f32)
        if kh == 0:
            acc2e_ref[...] = pe.reshape(TB, 8, 80)
            acc2o_ref[...] = po.reshape(TB, 8, 80)
        else:
            acc2e_ref[...] += pe.reshape(TB, 8, 80)
            acc2o_ref[...] += po.reshape(TB, 8, 80)

    # H-pool + bias + ReLU, with the NCHW flatten and fc1 folded in as four
    # partial (TB,80)@(80,50) dots accumulated in VMEM (no 320-wide flatten).
    for i in range(4):
        m = jnp.maximum(
            jnp.maximum(acc2e_ref[:, 2 * i, :], acc2o_ref[:, 2 * i, :]),
            jnp.maximum(acc2e_ref[:, 2 * i + 1, :], acc2o_ref[:, 2 * i + 1, :]))
        r = jnp.maximum(m + b2_ref[...], 0.0).astype(cdt)
        part = jnp.dot(r, wfc1_ref[i], preferred_element_type=f32)
        if i == 0:
            h_ref[...] = part
        else:
            h_ref[...] += part

    # fc1 ReLU -> (dropout: eval-mode identity) -> fc2 -> log_softmax (f32).
    # TODO(synk): training-mode Dropout / Dropout2d RNG masking not implemented.
    h = jnp.maximum(h_ref[...] + bfc1_ref[...], 0.0).astype(cdt)
    logits = jnp.dot(h, wfc2_ref[...], preferred_element_type=f32) + bfc2_ref[...]
    mx = jnp.max(logits, axis=1, keepdims=True)
    s = logits - mx
    lse = jnp.log(jnp.sum(jnp.exp(s), axis=1, keepdims=True))
    out_ref[...] = s - lse


# --------------------------- weight repacking -------------------------------- #

def _banded_pooled(w, w_in, ow_half, parity):
    """PyTorch conv weight (Cout,Cin,5,5) -> banded matmul weight (5, w_in*Cin,
    ow_half*Cout) for the row-banded conv, with the stride-2 W-direction pool
    column selection (parity 0 = even output cols, 1 = odd) folded in."""
    cout, cin = w.shape[0], w.shape[1]
    rel = jnp.arange(w_in)[:, None] - (2 * jnp.arange(ow_half)[None, :] + parity)
    valid = (rel >= 0) & (rel < 5)
    relc = jnp.clip(rel, 0, 4)
    g = w[:, :, :, relc]                              # (co, ci, kh, w, ow')
    g = jnp.where(valid[None, None, None], g, 0.0)
    g = jnp.transpose(g, (2, 3, 1, 4, 0))             # (kh, w, ci, ow', co)
    return g.reshape(5, w_in * cin, ow_half * cout)


def pack_params(params, compute_dtype=jnp.bfloat16):
    """Repack PyTorch-layout weights once (call outside the hot path)."""
    w1, b1 = params["w_conv1"], params["b_conv1"]      # (10,1,5,5), (10,)
    w2, b2 = params["w_conv2"], params["b_conv2"]      # (20,10,5,5), (20,)
    wf1, bf1 = params["w_fc1"], params["b_fc1"]        # (50,320), (50,)
    wf2, bf2 = params["w_fc2"], params["b_fc2"]        # (10,50), (10,)
    cd = compute_dtype

    W1e = _banded_pooled(w1, 28, 12, 0).astype(cd)     # (5, 28, 120)
    W1o = _banded_pooled(w1, 28, 12, 1).astype(cd)
    W2e = _banded_pooled(w2, 12, 4, 0).astype(cd)      # (5, 120, 80)
    W2o = _banded_pooled(w2, 12, 4, 1).astype(cd)
    b1t = jnp.tile(b1.astype(jnp.float32), 12).reshape(1, 120)
    b2t = jnp.tile(b2.astype(jnp.float32), 4).reshape(1, 80)

    # fc1 with the PyTorch NCHW-flatten permutation folded in, split into the
    # 4 pooled-row blocks used by the kernel.
    # kernel lane index l = j*20 + c  (j = pooled col, c = channel), row block i
    # corresponds to torch flat index c*16 + i*4 + j.
    i_idx = jnp.arange(4)[:, None]                     # (4,1)
    l_idx = jnp.arange(80)[None, :]                    # (1,80)
    tidx = (l_idx % 20) * 16 + i_idx * 4 + (l_idx // 20)
    Wfc1 = wf1.astype(jnp.float32).T[tidx].astype(cd)  # (4, 80, 50)
    bfc1 = bf1.reshape(1, 50).astype(jnp.float32)
    Wfc2 = wf2.T.astype(cd)                            # (50, 10)
    bfc2 = bf2.reshape(1, 10).astype(jnp.float32)
    return (W1e, W1o, b1t, W2e, W2o, b2t, Wfc1, bfc1, Wfc2, bfc2)


# ------------------------------- forward ------------------------------------ #

def net_forward_packed(x_nchw, packed):
    """x: (B, 1, 28, 28) float32 NCHW -> (B, 10) log-probabilities."""
    (W1e, W1o, b1t, W2e, W2o, b2t, Wfc1, bfc1, Wfc2, bfc2) = packed
    B = x_nchw.shape[0]
    x = x_nchw.reshape(B, 28, 28).astype(jnp.bfloat16)   # Cin == 1; halve HBM stream
    max_tile, vmem_limit = _tpu_tile_config()
    tile_b = min(max_tile, _round_up(B, 8))
    bpad = _round_up(B, tile_b)
    if bpad != B:
        x = jnp.pad(x, ((0, bpad - B), (0, 0), (0, 0)))

    c3 = lambda b: (0, 0, 0)
    c2 = lambda b: (0, 0)

    out = pl.pallas_call(
        _fused_net_kernel,
        out_shape=jax.ShapeDtypeStruct((bpad, 10), jnp.float32),
        grid=(bpad // tile_b,),
        in_specs=[
            pl.BlockSpec((tile_b, 28, 28), lambda b: (b, 0, 0)),   # x (bf16)
            pl.BlockSpec((5, 28, 120), c3),                        # conv1 even cols
            pl.BlockSpec((5, 28, 120), c3),                        # conv1 odd cols
            pl.BlockSpec((1, 120), c2),                            # conv1 bias row
            pl.BlockSpec((5, 120, 80), c3),                        # conv2 even cols
            pl.BlockSpec((5, 120, 80), c3),                        # conv2 odd cols
            pl.BlockSpec((1, 80), c2),                             # conv2 bias row
            pl.BlockSpec((4, 80, 50), c3),                         # fc1 (permuted, split)
            pl.BlockSpec((1, 50), c2),                             # fc1 bias
            pl.BlockSpec((50, 10), c2),                            # fc2
            pl.BlockSpec((1, 10), c2),                             # fc2 bias
        ],
        out_specs=pl.BlockSpec((tile_b, 10), lambda b: (b, 0)),
        scratch_shapes=[
            pltpu.VMEM((tile_b, 28, 28), jnp.float32),   # input staged to f32
            pltpu.VMEM((tile_b, 24, 120), jnp.float32),  # conv1 even-col accumulator
            pltpu.VMEM((tile_b, 24, 120), jnp.float32),  # conv1 odd-col accumulator
            pltpu.VMEM((tile_b, 12, 120), jnp.float32),  # pool1 output
            pltpu.VMEM((tile_b, 8, 80), jnp.float32),    # conv2 even-col accumulator
            pltpu.VMEM((tile_b, 8, 80), jnp.float32),    # conv2 odd-col accumulator
            pltpu.VMEM((tile_b, 50), jnp.float32),       # fc1 accumulator
        ],
        compiler_params=pltpu.CompilerParams(
            dimension_semantics=("parallel",),
            vmem_limit_bytes=vmem_limit),
    )(x, W1e, W1o, b1t, W2e, W2o, b2t, Wfc1, bfc1, Wfc2, bfc2)

    return out[:B]


def net_forward(x_nchw, params):
    """Convenience wrapper (re-packs weights every call; prefer pack_params +
    net_forward_packed in a hot loop)."""
    return net_forward_packed(x_nchw, pack_params(params))


# --------------------------- pure-JAX reference ------------------------------ #

def reference_forward(x, params):
    dn = ("NCHW", "OIHW", "NCHW")
    prec = jax.lax.Precision.HIGHEST
    y1 = jax.lax.conv_general_dilated(x, params["w_conv1"], (1, 1), "VALID",
                                      dimension_numbers=dn, precision=prec)
    y1 = y1 + params["b_conv1"][None, :, None, None]
    p1 = jnp.maximum(jax.lax.reduce_window(y1, -jnp.inf, jax.lax.max,
                                           (1, 1, 2, 2), (1, 1, 2, 2), "VALID"), 0.0)
    y2 = jax.lax.conv_general_dilated(p1, params["w_conv2"], (1, 1), "VALID",
                                      dimension_numbers=dn, precision=prec)
    y2 = y2 + params["b_conv2"][None, :, None, None]
    p2 = jnp.maximum(jax.lax.reduce_window(y2, -jnp.inf, jax.lax.max,
                                           (1, 1, 2, 2), (1, 1, 2, 2), "VALID"), 0.0)
    flat = p2.reshape(x.shape[0], 320)
    h = jnp.maximum(jnp.dot(flat, params["w_fc1"].T, precision=prec)
                    + params["b_fc1"], 0.0)
    logits = jnp.dot(h, params["w_fc2"].T, precision=prec) + params["b_fc2"]
    return jax.nn.log_softmax(logits, axis=1)


# --------------------------------- params ----------------------------------- #

def init_params(key):
    """Deterministic PyTorch-default-style init (uniform(-1/sqrt(fan_in), ...))."""
    ks = jax.random.split(key, 8)

    def uni(k, shape, fan_in):
        bound = 1.0 / math.sqrt(fan_in)
        return jax.random.uniform(k, shape, jnp.float32, -bound, bound)

    return {
        "w_conv1": uni(ks[0], (10, 1, 5, 5), 1 * 5 * 5),
        "b_conv1": uni(ks[1], (10,), 1 * 5 * 5),
        "w_conv2": uni(ks[2], (20, 10, 5, 5), 10 * 5 * 5),
        "b_conv2": uni(ks[3], (20,), 10 * 5 * 5),
        "w_fc1":   uni(ks[4], (50, 320), 320),   # PyTorch Linear stores (out, in)
        "b_fc1":   uni(ks[5], (50,), 320),
        "w_fc2":   uni(ks[6], (10, 50), 50),
        "b_fc2":   uni(ks[7], (10,), 50),
    }


if __name__ == "__main__":
    key = jax.random.PRNGKey(0)
    k_x, k_p = jax.random.split(key)

    # 28x28 single-channel images (20 * 4 * 4 == 320 after the two conv/pool stages).
    x = jax.random.normal(k_x, (2, 1, 28, 28), dtype=jnp.float32)
    params = init_params(k_p)

    packed = pack_params(params)          # hoisted: packed once, reused per call
    fwd = jax.jit(net_forward_packed)
    out = fwd(x, packed)
    jax.block_until_ready(out)

    assert out.shape == (2, 10)
    # log_softmax rows should sum to ~1 in prob space.
    assert bool(jnp.all(jnp.abs(jnp.sum(jnp.exp(out), axis=1) - 1.0) < 1e-4))
    # Cross-check the fused Pallas kernel against a pure-JAX f32 reference.
    ref = jax.jit(reference_forward)(x, params)
    jax.block_until_ready(ref)
    assert bool(jnp.allclose(out, ref, atol=1e-2, rtol=1e-2))
    print("KERNEL_OK")
</pallas_src>

<mosaic_0001>
module attributes {stable_mosaic.version = 11 : i64} {
  func.func @_fused_net_kernel(%arg0: i32, %arg1: memref<8x28x28xbf16, #tpu.memory_space<vmem>>, %arg2: memref<5x28x120xbf16, #tpu.memory_space<vmem>>, %arg3: memref<5x28x120xbf16, #tpu.memory_space<vmem>>, %arg4: memref<1x120xf32, #tpu.memory_space<vmem>>, %arg5: memref<5x120x80xbf16, #tpu.memory_space<vmem>>, %arg6: memref<5x120x80xbf16, #tpu.memory_space<vmem>>, %arg7: memref<1x80xf32, #tpu.memory_space<vmem>>, %arg8: memref<4x80x50xbf16, #tpu.memory_space<vmem>>, %arg9: memref<1x50xf32, #tpu.memory_space<vmem>>, %arg10: memref<50x10xbf16, #tpu.memory_space<vmem>>, %arg11: memref<1x10xf32, #tpu.memory_space<vmem>>, %arg12: memref<8x10xf32, #tpu.memory_space<vmem>>, %arg13: memref<8x28x28xf32, #tpu.memory_space<vmem>>, %arg14: memref<8x24x120xf32, #tpu.memory_space<vmem>>, %arg15: memref<8x24x120xf32, #tpu.memory_space<vmem>>, %arg16: memref<8x12x120xf32, #tpu.memory_space<vmem>>, %arg17: memref<8x8x80xf32, #tpu.memory_space<vmem>>, %arg18: memref<8x8x80xf32, #tpu.memory_space<vmem>>, %arg19: memref<8x50xf32, #tpu.memory_space<vmem>>) attributes {dimension_semantics = [#tpu.dimension_semantics<parallel>], iteration_bounds = array<i64: 1>, scalar_prefetch = 0 : i64, scratch_operands = 7 : i64, tpu.core_type = #tpu.core_type<tc>, window_params = [{transform_indices = @transform_0, window_bounds = array<i64: 8, 28, 28>}, {pipeline_mode = #tpu.pipeline_mode<synchronous>, transform_indices = @transform_1, window_bounds = array<i64: 5, 28, 120>}, {pipeline_mode = #tpu.pipeline_mode<synchronous>, transform_indices = @transform_2, window_bounds = array<i64: 5, 28, 120>}, {pipeline_mode = #tpu.pipeline_mode<synchronous>, transform_indices = @transform_3, window_bounds = array<i64: 1, 120>}, {pipeline_mode = #tpu.pipeline_mode<synchronous>, transform_indices = @transform_4, window_bounds = array<i64: 5, 120, 80>}, {pipeline_mode = #tpu.pipeline_mode<synchronous>, transform_indices = @transform_5, window_bounds = array<i64: 5, 120, 80>}, {pipeline_mode = #tpu.pipeline_mode<synchronous>, transform_indices = @transform_6, window_bounds = array<i64: 1, 80>}, {pipeline_mode = #tpu.pipeline_mode<synchronous>, transform_indices = @transform_7, window_bounds = array<i64: 4, 80, 50>}, {pipeline_mode = #tpu.pipeline_mode<synchronous>, transform_indices = @transform_8, window_bounds = array<i64: 1, 50>}, {pipeline_mode = #tpu.pipeline_mode<synchronous>, transform_indices = @transform_9, window_bounds = array<i64: 50, 10>}, {pipeline_mode = #tpu.pipeline_mode<synchronous>, transform_indices = @transform_10, window_bounds = array<i64: 1, 10>}, {transform_indices = @transform_11, window_bounds = array<i64: 8, 10>}]} {
    %c0 = arith.constant 0 : index
    %c0_0 = arith.constant 0 : index
    %c0_1 = arith.constant 0 : index
    %0 = vector.load %arg1[%c0, %c0_0, %c0_1] : memref<8x28x28xbf16, #tpu.memory_space<vmem>>, vector<8x28x28xbf16>
    %1 = arith.extf %0 : vector<8x28x28xbf16> to vector<8x28x28xf32>
    %c0_2 = arith.constant 0 : index
    %c0_3 = arith.constant 0 : index
    %c0_4 = arith.constant 0 : index
    %2 = vector.load %arg13[%c0_2, %c0_3, %c0_4] : memref<8x28x28xf32, #tpu.memory_space<vmem>>, vector<8x28x28xf32>
    tpu.vector_store %arg13[%c0_2, %c0_3, %c0_4], %1 {strides = array<i32>} : memref<8x28x28xf32, #tpu.memory_space<vmem>>, vector<8x28x28xf32>,
    %c0_5 = arith.constant 0 : index
    %c0_6 = arith.constant 0 : index
    %c0_7 = arith.constant 0 : index
    %3 = vector.load %arg13[%c0_5, %c0_6, %c0_7] : memref<8x28x28xf32, #tpu.memory_space<vmem>>, vector<8x24x28xf32>
    %4 = vector.shape_cast %3 : vector<8x24x28xf32> to vector<192x28xf32>
    %5 = arith.truncf %4 : vector<192x28xf32> to vector<192x28xbf16>
    %c0_8 = arith.constant 0 : index
    %c0_9 = arith.constant 0 : index
    %c0_10 = arith.constant 0 : index
    %6 = vector.load %arg2[%c0_8, %c0_9, %c0_10] : memref<5x28x120xbf16, #tpu.memory_space<vmem>>, vector<1x28x120xbf16>
    %7 = vector.shape_cast %6 : vector<1x28x120xbf16> to vector<28x120xbf16>
    %cst = arith.constant dense<0.000000e+00> : vector<192x120xf32>
    %8 = tpu.matmul %5, %7, %cst {dimension_numbers = #tpu.dot_dimension_numbers<[1], [0], [0], [1], [0, 0, 1, 1], [], []>} : vector<192x28xbf16>, vector<28x120xbf16>, vector<192x120xf32> -> vector<192x120xf32>
    %c0_11 = arith.constant 0 : index
    %c0_12 = arith.constant 0 : index
    %c0_13 = arith.constant 0 : index
    %9 = vector.load %arg3[%c0_11, %c0_12, %c0_13] : memref<5x28x120xbf16, #tpu.memory_space<vmem>>, vector<1x28x120xbf16>
    %10 = vector.shape_cast %9 : vector<1x28x120xbf16> to vector<28x120xbf16>
    %cst_14 = arith.constant dense<0.000000e+00> : vector<192x120xf32>
    %11 = tpu.matmul %5, %10, %cst_14 {dimension_numbers = #tpu.dot_dimension_numbers<[1], [0], [0], [1], [0, 0, 1, 1], [], []>} : vector<192x28xbf16>, vector<28x120xbf16>, vector<192x120xf32> -> vector<192x120xf32>
    %12 = vector.shape_cast %8 : vector<192x120xf32> to vector<8x24x120xf32>
    %c0_15 = arith.constant 0 : index
    %c0_16 = arith.constant 0 : index
    %c0_17 = arith.constant 0 : index
    %13 = vector.load %arg14[%c0_15, %c0_16, %c0_17] : memref<8x24x120xf32, #tpu.memory_space<vmem>>, vector<8x24x120xf32>
    tpu.vector_store %arg14[%c0_15, %c0_16, %c0_17], %12 {strides = array<i32>} : memref<8x24x120xf32, #tpu.memory_space<vmem>>, vector<8x24x120xf32>,
    %14 = vector.shape_cast %11 : vector<192x120xf32> to vector<8x24x120xf32>
    %c0_18 = arith.constant 0 : index
    %c0_19 = arith.constant 0 : index
    %c0_20 = arith.constant 0 : index
    %15 = vector.load %arg15[%c0_18, %c0_19, %c0_20] : memref<8x24x120xf32, #tpu.memory_space<vmem>>, vector<8x24x120xf32>
    tpu.vector_store %arg15[%c0_18, %c0_19, %c0_20], %14 {strides = array<i32>} : memref<8x24x120xf32, #tpu.memory_space<vmem>>, vector<8x24x120xf32>,
    %c0_21 = arith.constant 0 : index
    %c1 = arith.constant 1 : index
    %c0_22 = arith.constant 0 : index
    %16 = vector.load %arg13[%c0_21, %c1, %c0_22] : memref<8x28x28xf32, #tpu.memory_space<vmem>>, vector<8x24x28xf32>
    %17 = vector.shape_cast %16 : vector<8x24x28xf32> to vector<192x28xf32>
    %18 = arith.truncf %17 : vector<192x28xf32> to vector<192x28xbf16>
    %c1_23 = arith.constant 1 : index
    %c0_24 = arith.constant 0 : index
    %c0_25 = arith.constant 0 : index
    %19 = vector.load %arg2[%c1_23, %c0_24, %c0_25] : memref<5x28x120xbf16, #tpu.memory_space<vmem>>, vector<1x28x120xbf16>
    %20 = vector.shape_cast %19 : vector<1x28x120xbf16> to vector<28x120xbf16>
    %cst_26 = arith.constant dense<0.000000e+00> : vector<192x120xf32>
    %21 = tpu.matmul %18, %20, %cst_26 {dimension_numbers = #tpu.dot_dimension_numbers<[1], [0], [0], [1], [0, 0, 1, 1], [], []>} : vector<192x28xbf16>, vector<28x120xbf16>, vector<192x120xf32> -> vector<192x120xf32>
    %c1_27 = arith.constant 1 : index
    %c0_28 = arith.constant 0 : index
    %c0_29 = arith.constant 0 : index
    %22 = vector.load %arg3[%c1_27, %c0_28, %c0_29] : memref<5x28x120xbf16, #tpu.memory_space<vmem>>, vector<1x28x120xbf16>
    %23 = vector.shape_cast %22 : vector<1x28x120xbf16> to vector<28x120xbf16>
    %cst_30 = arith.constant dense<0.000000e+00> : vector<192x120xf32>
    %24 = tpu.matmul %18, %23, %cst_30 {dimension_numbers = #tpu.dot_dimension_numbers<[1], [0], [0], [1], [0, 0, 1, 1], [], []>} : vector<192x28xbf16>, vector<28x120xbf16>, vector<192x120xf32> -> vector<192x120xf32>
    %c0_31 = arith.constant 0 : index
    %c0_32 = arith.constant 0 : index
    %c0_33 = arith.constant 0 : index
    %25 = vector.load %arg14[%c0_31, %c0_32, %c0_33] : memref<8x24x120xf32, #tpu.memory_space<vmem>>, vector<8x24x120xf32>
    %26 = vector.shape_cast %21 : vector<192x120xf32> to vector<8x24x120xf32>
    %27 = arith.addf %25, %26 : vector<8x24x120xf32>
    %c0_34 = arith.constant 0 : index
    %c0_35 = arith.constant 0 : index
    %c0_36 = arith.constant 0 : index
    %28 = vector.load %arg14[%c0_34, %c0_35, %c0_36] : memref<8x24x120xf32, #tpu.memory_space<vmem>>, vector<8x24x120xf32>
    tpu.vector_store %arg14[%c0_34, %c0_35, %c0_36], %27 {strides = array<i32>} : memref<8x24x120xf32, #tpu.memory_space<vmem>>, vector<8x24x120xf32>,
    %c0_37 = arith.constant 0 : index
    %c0_38 = arith.constant 0 : index
    %c0_39 = arith.constant 0 : index
    %29 = vector.load %arg15[%c0_37, %c0_38, %c0_39] : memref<8x24x120xf32, #tpu.memory_space<vmem>>, vector<8x24x120xf32>
    %30 = vector.shape_cast %24 : vector<192x120xf32> to vector<8x24x120xf32>
    %31 = arith.addf %29, %30 : vector<8x24x120xf32>
    %c0_40 = arith.constant 0 : index
    %c0_41 = arith.constant 0 : index
    %c0_42 = arith.constant 0 : index
    %32 = vector.load %arg15[%c0_40, %c0_41, %c0_42] : memref<8x24x120xf32, #tpu.memory_space<vmem>>, vector<8x24x120xf32>
    tpu.vector_store %arg15[%c0_40, %c0_41, %c0_42], %31 {strides = array<i32>} : memref<8x24x120xf32, #tpu.memory_space<vmem>>, vector<8x24x120xf32>,
    %c0_43 = arith.constant 0 : index
    %c2 = arith.constant 2 : index
    %c0_44 = arith.constant 0 : index
    %33 = vector.load %arg13[%c0_43, %c2, %c0_44] : memref<8x28x28xf32, #tpu.memory_space<vmem>>, vector<8x24x28xf32>
    %34 = vector.shape_cast %33 : vector<8x24x28xf32> to vector<192x28xf32>
    %35 = arith.truncf %34 : vector<192x28xf32> to vector<192x28xbf16>
    %c2_45 = arith.constant 2 : index
    %c0_46 = arith.constant 0 : index
    %c0_47 = arith.constant 0 : index
    %36 = vector.load %arg2[%c2_45, %c0_46, %c0_47] : memref<5x28x120xbf16, #tpu.memory_space<vmem>>, vector<1x28x120xbf16>
    %37 = vector.shape_cast %36 : vector<1x28x120xbf16> to vector<28x120xbf16>
    %cst_48 = arith.constant dense<0.000000e+00> : vector<192x120xf32>
    %38 = tpu.matmul %35, %37, %cst_48 {dimension_numbers = #tpu.dot_dimension_numbers<[1], [0], [0], [1], [0, 0, 1, 1], [], []>} : vector<192x28xbf16>, vector<28x120xbf16>, vector<192x120xf32> -> vector<192x120xf32>
    %c2_49 = arith.constant 2 : index
    %c0_50 = arith.constant 0 : index
    %c0_51 = arith.constant 0 : index
    %39 = vector.load %arg3[%c2_49, %c0_50, %c0_51] : memref<5x28x120xbf16, #tpu.memory_space<vmem>>, vector<1x28x120xbf16>
    %40 = vector.shape_cast %39 : vector<1x28x120xbf16> to vector<28x120xbf16>
    %cst_52 = arith.constant dense<0.000000e+00> : vector<192x120xf32>
    %41 = tpu.matmul %35, %40, %cst_52 {dimension_numbers = #tpu.dot_dimension_numbers<[1], [0], [0], [1], [0, 0, 1, 1], [], []>} : vector<192x28xbf16>, vector<28x120xbf16>, vector<192x120xf32> -> vector<192x120xf32>
    %c0_53 = arith.constant 0 : index
    %c0_54 = arith.constant 0 : index
    %c0_55 = arith.constant 0 : index
    %42 = vector.load %arg14[%c0_53, %c0_54, %c0_55] : memref<8x24x120xf32, #tpu.memory_space<vmem>>, vector<8x24x120xf32>
    %43 = vector.shape_cast %38 : vector<192x120xf32> to vector<8x24x120xf32>
    %44 = arith.addf %42, %43 : vector<8x24x120xf32>
    %c0_56 = arith.constant 0 : index
    %c0_57 = arith.constant 0 : index
    %c0_58 = arith.constant 0 : index
    %45 = vector.load %arg14[%c0_56, %c0_57, %c0_58] : memref<8x24x120xf32, #tpu.memory_space<vmem>>, vector<8x24x120xf32>
    tpu.vector_store %arg14[%c0_56, %c0_57, %c0_58], %44 {strides = array<i32>} : memref<8x24x120xf32, #tpu.memory_space<vmem>>, vector<8x24x120xf32>,
    %c0_59 = arith.constant 0 : index
    %c0_60 = arith.constant 0 : index
    %c0_61 = arith.constant 0 : index
    %46 = vector.load %arg15[%c0_59, %c0_60, %c0_61] : memref<8x24x120xf32, #tpu.memory_space<vmem>>, vector<8x24x120xf32>
    %47 = vector.shape_cast %41 : vector<192x120xf32> to vector<8x24x120xf32>
    %48 = arith.addf %46, %47 : vector<8x24x120xf32>
    %c0_62 = arith.constant 0 : index
    %c0_63 = arith.constant 0 : index
    %c0_64 = arith.constant 0 : index
    %49 = vector.load %arg15[%c0_62, %c0_63, %c0_64] : memref<8x24x120xf32, #tpu.memory_space<vmem>>, vector<8x24x120xf32>
    tpu.vector_store %arg15[%c0_62, %c0_63, %c0_64], %48 {strides = array<i32>} : memref<8x24x120xf32, #tpu.memory_space<vmem>>, vector<8x24x120xf32>,
    %c0_65 = arith.constant 0 : index
    %c3 = arith.constant 3 : index
    %c0_66 = arith.constant 0 : index
    %50 = vector.load %arg13[%c0_65, %c3, %c0_66] : memref<8x28x28xf32, #tpu.memory_space<vmem>>, vector<8x24x28xf32>
    %51 = vector.shape_cast %50 : vector<8x24x28xf32> to vector<192x28xf32>
    %52 = arith.truncf %51 : vector<192x28xf32> to vector<192x28xbf16>
    %c3_67 = arith.constant 3 : index
    %c0_68 = arith.constant 0 : index
    %c0_69 = arith.constant 0 : index
    %53 = vector.load %arg2[%c3_67, %c0_68, %c0_69] : memref<5x28x120xbf16, #tpu.memory_space<vmem>>, vector<1x28x120xbf16>
    %54 = vector.shape_cast %53 : vector<1x28x120xbf16> to vector<28x120xbf16>
    %cst_70 = arith.constant dense<0.000000e+00> : vector<192x120xf32>
    %55 = tpu.matmul %52, %54, %cst_70 {dimension_numbers = #tpu.dot_dimension_numbers<[1], [0], [0], [1], [0, 0, 1, 1], [], []>} : vector<192x28xbf16>, vector<28x120xbf16>, vector<192x120xf32> -> vector<192x120xf32>
    %c3_71 = arith.constant 3 : index
    %c0_72 = arith.constant 0 : index
    %c0_73 = arith.constant 0 : index
    %56 = vector.load %arg3[%c3_71, %c0_72, %c0_73] : memref<5x28x120xbf16, #tpu.memory_space<vmem>>, vector<1x28x120xbf16>
    %57 = vector.shape_cast %56 : vector<1x28x120xbf16> to vector<28x120xbf16>
    %cst_74 = arith.constant dense<0.000000e+00> : vector<192x120xf32>
    %58 = tpu.matmul %52, %57, %cst_74 {dimension_numbers = #tpu.dot_dimension_numbers<[1], [0], [0], [1], [0, 0, 1, 1], [], []>} : vector<192x28xbf16>, vector<28x120xbf16>, vector<192x120xf32> -> vector<192x120xf32>
    %c0_75 = arith.constant 0 : index
    %c0_76 = arith.constant 0 : index
    %c0_77 = arith.constant 0 : index
    %59 = vector.load %arg14[%c0_75, %c0_76, %c0_77] : memref<8x24x120xf32, #tpu.memory_space<vmem>>, vector<8x24x120xf32>
    %60 = vector.shape_cast %55 : vector<192x120xf32> to vector<8x24x120xf32>
    %61 = arith.addf %59, %60 : vector<8x24x120xf32>
    %c0_78 = arith.constant 0 : index
    %c0_79 = arith.constant 0 : index
    %c0_80 = arith.constant 0 : index
    %62 = vector.load %arg14[%c0_78, %c0_79, %c0_80] : memref<8x24x120xf32, #tpu.memory_space<vmem>>, vector<8x24x120xf32>
    tpu.vector_store %arg14[%c0_78, %c0_79, %c0_80], %61 {strides = array<i32>} : memref<8x24x120xf32, #tpu.memory_space<vmem>>, vector<8x24x120xf32>,
    %c0_81 = arith.constant 0 : index
    %c0_82 = arith.constant 0 : index
    %c0_83 = arith.constant 0 : index
    %63 = vector.load %arg15[%c0_81, %c0_82, %c0_83] : memref<8x24x120xf32, #tpu.memory_space<vmem>>, vector<8x24x120xf32>
    %64 = vector.shape_cast %58 : vector<192x120xf32> to vector<8x24x120xf32>
    %65 = arith.addf %63, %64 : vector<8x24x120xf32>
    %c0_84 = arith.constant 0 : index
    %c0_85 = arith.constant 0 : index
    %c0_86 = arith.constant 0 : index
    %66 = vector.load %arg15[%c0_84, %c0_85, %c0_86] : memref<8x24x120xf32, #tpu.memory_space<vmem>>, vector<8x24x120xf32>
    tpu.vector_store %arg15[%c0_84, %c0_85, %c0_86], %65 {strides = array<i32>} : memref<8x24x120xf32, #tpu.memory_space<vmem>>, vector<8x24x120xf32>,
    %c0_87 = arith.constant 0 : index
    %c4 = arith.constant 4 : index
    %c0_88 = arith.constant 0 : index
    %67 = vector.load %arg13[%c0_87, %c4, %c0_88] : memref<8x28x28xf32, #tpu.memory_space<vmem>>, vector<8x24x28xf32>
    %68 = vector.shape_cast %67 : vector<8x24x28xf32> to vector<192x28xf32>
    %69 = arith.truncf %68 : vector<192x28xf32> to vector<192x28xbf16>
    %c4_89 = arith.constant 4 : index
    %c0_90 = arith.constant 0 : index
    %c0_91 = arith.constant 0 : index
    %70 = vector.load %arg2[%c4_89, %c0_90, %c0_91] : memref<5x28x120xbf16, #tpu.memory_space<vmem>>, vector<1x28x120xbf16>
    %71 = vector.shape_cast %70 : vector<1x28x120xbf16> to vector<28x120xbf16>
    %cst_92 = arith.constant dense<0.000000e+00> : vector<192x120xf32>
    %72 = tpu.matmul %69, %71, %cst_92 {dimension_numbers = #tpu.dot_dimension_numbers<[1], [0], [0], [1], [0, 0, 1, 1], [], []>} : vector<192x28xbf16>, vector<28x120xbf16>, vector<192x120xf32> -> vector<192x120xf32>
    %c4_93 = arith.constant 4 : index
    %c0_94 = arith.constant 0 : index
    %c0_95 = arith.constant 0 : index
    %73 = vector.load %arg3[%c4_93, %c0_94, %c0_95] : memref<5x28x120xbf16, #tpu.memory_space<vmem>>, vector<1x28x120xbf16>
    %74 = vector.shape_cast %73 : vector<1x28x120xbf16> to vector<28x120xbf16>
    %cst_96 = arith.constant dense<0.000000e+00> : vector<192x120xf32>
    %75 = tpu.matmul %69, %74, %cst_96 {dimension_numbers = #tpu.dot_dimension_numbers<[1], [0], [0], [1], [0, 0, 1, 1], [], []>} : vector<192x28xbf16>, vector<28x120xbf16>, vector<192x120xf32> -> vector<192x120xf32>
    %c0_97 = arith.constant 0 : index
    %c0_98 = arith.constant 0 : index
    %c0_99 = arith.constant 0 : index
    %76 = vector.load %arg14[%c0_97, %c0_98, %c0_99] : memref<8x24x120xf32, #tpu.memory_space<vmem>>, vector<8x24x120xf32>
    %77 = vector.shape_cast %72 : vector<192x120xf32> to vector<8x24x120xf32>
    %78 = arith.addf %76, %77 : vector<8x24x120xf32>
    %c0_100 = arith.constant 0 : index
    %c0_101 = arith.constant 0 : index
    %c0_102 = arith.constant 0 : index
    %79 = vector.load %arg14[%c0_100, %c0_101, %c0_102] : memref<8x24x120xf32, #tpu.memory_space<vmem>>, vector<8x24x120xf32>
    tpu.vector_store %arg14[%c0_100, %c0_101, %c0_102], %78 {strides = array<i32>} : memref<8x24x120xf32, #tpu.memory_space<vmem>>, vector<8x24x120xf32>,
    %c0_103 = arith.constant 0 : index
    %c0_104 = arith.constant 0 : index
    %c0_105 = arith.constant 0 : index
    %80 = vector.load %arg15[%c0_103, %c0_104, %c0_105] : memref<8x24x120xf32, #tpu.memory_space<vmem>>, vector<8x24x120xf32>
    %81 = vector.shape_cast %75 : vector<192x120xf32> to vector<8x24x120xf32>
    %82 = arith.addf %80, %81 : vector<8x24x120xf32>
    %c0_106 = arith.constant 0 : index
    %c0_107 = arith.constant 0 : index
    %c0_108 = arith.constant 0 : index
    %83 = vector.load %arg15[%c0_106, %c0_107, %c0_108] : memref<8x24x120xf32, #tpu.memory_space<vmem>>, vector<8x24x120xf32>
    tpu.vector_store %arg15[%c0_106, %c0_107, %c0_108], %82 {strides = array<i32>} : memref<8x24x120xf32, #tpu.memory_space<vmem>>, vector<8x24x120xf32>,
    %c0_109 = arith.constant 0 : index
    %c0_110 = arith.constant 0 : index
    %c0_111 = arith.constant 0 : index
    %84 = vector.load %arg14[%c0_109, %c0_110, %c0_111] : memref<8x24x120xf32, #tpu.memory_space<vmem>>, vector<8x1x120xf32>
    %85 = vector.shape_cast %84 : vector<8x1x120xf32> to vector<8x120xf32>
    %c0_112 = arith.constant 0 : index
    %c0_113 = arith.constant 0 : index
    %c0_114 = arith.constant 0 : index
    %86 = vector.load %arg15[%c0_112, %c0_113, %c0_114] : memref<8x24x120xf32, #tpu.memory_space<vmem>>, vector<8x1x120xf32>
    %87 = vector.shape_cast %86 : vector<8x1x120xf32> to vector<8x120xf32>
    %88 = arith.maximumf %85, %87 : vector<8x120xf32>
    %c0_115 = arith.constant 0 : index
    %c1_116 = arith.constant 1 : index
    %c0_117 = arith.constant 0 : index
    %89 = vector.load %arg14[%c0_115, %c1_116, %c0_117] : memref<8x24x120xf32, #tpu.memory_space<vmem>>, vector<8x1x120xf32>
    %90 = vector.shape_cast %89 : vector<8x1x120xf32> to vector<8x120xf32>
    %c0_118 = arith.constant 0 : index
    %c1_119 = arith.constant 1 : index
    %c0_120 = arith.constant 0 : index
    %91 = vector.load %arg15[%c0_118, %c1_119, %c0_120] : memref<8x24x120xf32, #tpu.memory_space<vmem>>, vector<8x1x120xf32>
    %92 = vector.shape_cast %91 : vector<8x1x120xf32> to vector<8x120xf32>
    %93 = arith.maximumf %90, %92 : vector<8x120xf32>
    %94 = arith.maximumf %88, %93 : vector<8x120xf32>
    %c0_121 = arith.constant 0 : index
    %c0_122 = arith.constant 0 : index
    %95 = vector.load %arg4[%c0_121, %c0_122] : memref<1x120xf32, #tpu.memory_space<vmem>>, vector<1x120xf32>
    %96 = vector.broadcast %95 : vector<1x120xf32> to vector<8x120xf32>
    %97 = arith.addf %94, %96 : vector<8x120xf32>
    %cst_123 = arith.constant 0.000000e+00 : f32
    %98 = vector.broadcast %cst_123 : f32 to vector<8x120xf32>
    %99 = arith.maximumf %97, %98 : vector<8x120xf32>
    %c0_124 = arith.constant 0 : index
    %c0_125 = arith.constant 0 : index
    %c0_126 = arith.constant 0 : index
    %100 = vector.load %arg16[%c0_124, %c0_125, %c0_126] : memref<8x12x120xf32, #tpu.memory_space<vmem>>, vector<8x1x120xf32>
    %101 = vector.shape_cast %100 : vector<8x1x120xf32> to vector<8x120xf32>
    %102 = vector.shape_cast %99 : vector<8x120xf32> to vector<8x1x120xf32>
    tpu.vector_store %arg16[%c0_124, %c0_125, %c0_126], %102 {strides = array<i32>} : memref<8x12x120xf32, #tpu.memory_space<vmem>>, vector<8x1x120xf32>,
    %c0_127 = arith.constant 0 : index
    %c2_128 = arith.constant 2 : index
    %c0_129 = arith.constant 0 : index
    %103 = vector.load %arg14[%c0_127, %c2_128, %c0_129] : memref<8x24x120xf32, #tpu.memory_space<vmem>>, vector<8x1x120xf32>
    %104 = vector.shape_cast %103 : vector<8x1x120xf32> to vector<8x120xf32>
    %c0_130 = arith.constant 0 : index
    %c2_131 = arith.constant 2 : index
    %c0_132 = arith.constant 0 : index
    %105 = vector.load %arg15[%c0_130, %c2_131, %c0_132] : memref<8x24x120xf32, #tpu.memory_space<vmem>>, vector<8x1x120xf32>
    %106 = vector.shape_cast %105 : vector<8x1x120xf32> to vector<8x120xf32>
    %107 = arith.maximumf %104, %106 : vector<8x120xf32>
    %c0_133 = arith.constant 0 : index
    %c3_134 = arith.constant 3 : index
    %c0_135 = arith.constant 0 : index
    %108 = vector.load %arg14[%c0_133, %c3_134, %c0_135] : memref<8x24x120xf32, #tpu.memory_space<vmem>>, vector<8x1x120xf32>
    %109 = vector.shape_cast %108 : vector<8x1x120xf32> to vector<8x120xf32>
    %c0_136 = arith.constant 0 : index
    %c3_137 = arith.constant 3 : index
    %c0_138 = arith.constant 0 : index
    %110 = vector.load %arg15[%c0_136, %c3_137, %c0_138] : memref<8x24x120xf32, #tpu.memory_space<vmem>>, vector<8x1x120xf32>
    %111 = vector.shape_cast %110 : vector<8x1x120xf32> to vector<8x120xf32>
    %112 = arith.maximumf %109, %111 : vector<8x120xf32>
    %113 = arith.maximumf %107, %112 : vector<8x120xf32>
    %c0_139 = arith.constant 0 : index
    %c0_140 = arith.constant 0 : index
    %114 = vector.load %arg4[%c0_139, %c0_140] : memref<1x120xf32, #tpu.memory_space<vmem>>, vector<1x120xf32>
    %115 = vector.broadcast %114 : vector<1x120xf32> to vector<8x120xf32>
    %116 = arith.addf %113, %115 : vector<8x120xf32>
    %cst_141 = arith.constant 0.000000e+00 : f32
    %117 = vector.broadcast %cst_141 : f32 to vector<8x120xf32>
    %118 = arith.maximumf %116, %117 : vector<8x120xf32>
    %c0_142 = arith.constant 0 : index
    %c1_143 = arith.constant 1 : index
    %c0_144 = arith.constant 0 : index
    %119 = vector.load %arg16[%c0_142, %c1_143, %c0_144] : memref<8x12x120xf32, #tpu.memory_space<vmem>>, vector<8x1x120xf32>
    %120 = vector.shape_cast %119 : vector<8x1x120xf32> to vector<8x120xf32>
    %121 = vector.shape_cast %118 : vector<8x120xf32> to vector<8x1x120xf32>
    tpu.vector_store %arg16[%c0_142, %c1_143, %c0_144], %121 {strides = array<i32>} : memref<8x12x120xf32, #tpu.memory_space<vmem>>, vector<8x1x120xf32>,
    %c0_145 = arith.constant 0 : index
    %c4_146 = arith.constant 4 : index
    %c0_147 = arith.constant 0 : index
    %122 = vector.load %arg14[%c0_145, %c4_146, %c0_147] : memref<8x24x120xf32, #tpu.memory_space<vmem>>, vector<8x1x120xf32>
    %123 = vector.shape_cast %122 : vector<8x1x120xf32> to vector<8x120xf32>
    %c0_148 = arith.constant 0 : index
    %c4_149 = arith.constant 4 : index
    %c0_150 = arith.constant 0 : index
    %124 = vector.load %arg15[%c0_148, %c4_149, %c0_150] : memref<8x24x120xf32, #tpu.memory_space<vmem>>, vector<8x1x120xf32>
    %125 = vector.shape_cast %124 : vector<8x1x120xf32> to vector<8x120xf32>
    %126 = arith.maximumf %123, %125 : vector<8x120xf32>
    %c0_151 = arith.constant 0 : index
    %c5 = arith.constant 5 : index
    %c0_152 = arith.constant 0 : index
    %127 = vector.load %arg14[%c0_151, %c5, %c0_152] : memref<8x24x120xf32, #tpu.memory_space<vmem>>, vector<8x1x120xf32>
    %128 = vector.shape_cast %127 : vector<8x1x120xf32> to vector<8x120xf32>
    %c0_153 = arith.constant 0 : index
    %c5_154 = arith.constant 5 : index
    %c0_155 = arith.constant 0 : index
    %129 = vector.load %arg15[%c0_153, %c5_154, %c0_155] : memref<8x24x120xf32, #tpu.memory_space<vmem>>, vector<8x1x120xf32>
    %130 = vector.shape_cast %129 : vector<8x1x120xf32> to vector<8x120xf32>
    %131 = arith.maximumf %128, %130 : vector<8x120xf32>
    %132 = arith.maximumf %126, %131 : vector<8x120xf32>
    %c0_156 = arith.constant 0 : index
    %c0_157 = arith.constant 0 : index
    %133 = vector.load %arg4[%c0_156, %c0_157] : memref<1x120xf32, #tpu.memory_space<vmem>>, vector<1x120xf32>
    %134 = vector.broadcast %133 : vector<1x120xf32> to vector<8x120xf32>
    %135 = arith.addf %132, %134 : vector<8x120xf32>
    %cst_158 = arith.constant 0.000000e+00 : f32
    %136 = vector.broadcast %cst_158 : f32 to vector<8x120xf32>
    %137 = arith.maximumf %135, %136 : vector<8x120xf32>
    %c0_159 = arith.constant 0 : index
    %c2_160 = arith.constant 2 : index
    %c0_161 = arith.constant 0 : index
    %138 = vector.load %arg16[%c0_159, %c2_160, %c0_161] : memref<8x12x120xf32, #tpu.memory_space<vmem>>, vector<8x1x120xf32>
    %139 = vector.shape_cast %138 : vector<8x1x120xf32> to vector<8x120xf32>
    %140 = vector.shape_cast %137 : vector<8x120xf32> to vector<8x1x120xf32>
    tpu.vector_store %arg16[%c0_159, %c2_160, %c0_161], %140 {strides = array<i32>} : memref<8x12x120xf32, #tpu.memory_space<vmem>>, vector<8x1x120xf32>,
    %c0_162 = arith.constant 0 : index
    %c6 = arith.constant 6 : index
    %c0_163 = arith.constant 0 : index
    %141 = vector.load %arg14[%c0_162, %c6, %c0_163] : memref<8x24x120xf32, #tpu.memory_space<vmem>>, vector<8x1x120xf32>
    %142 = vector.shape_cast %141 : vector<8x1x120xf32> to vector<8x120xf32>
    %c0_164 = arith.constant 0 : index
    %c6_165 = arith.constant 6 : index
    %c0_166 = arith.constant 0 : index
    %143 = vector.load %arg15[%c0_164, %c6_165, %c0_166] : memref<8x24x120xf32, #tpu.memory_space<vmem>>, vector<8x1x120xf32>
    %144 = vector.shape_cast %143 : vector<8x1x120xf32> to vector<8x120xf32>
    %145 = arith.maximumf %142, %144 : vector<8x120xf32>
    %c0_167 = arith.constant 0 : index
    %c7 = arith.constant 7 : index
    %c0_168 = arith.constant 0 : index
    %146 = vector.load %arg14[%c0_167, %c7, %c0_168] : memref<8x24x120xf32, #tpu.memory_space<vmem>>, vector<8x1x120xf32>
    %147 = vector.shape_cast %146 : vector<8x1x120xf32> to vector<8x120xf32>
    %c0_169 = arith.constant 0 : index
    %c7_170 = arith.constant 7 : index
    %c0_171 = arith.constant 0 : index
    %148 = vector.load %arg15[%c0_169, %c7_170, %c0_171] : memref<8x24x120xf32, #tpu.memory_space<vmem>>, vector<8x1x120xf32>
    %149 = vector.shape_cast %148 : vector<8x1x120xf32> to vector<8x120xf32>
    %150 = arith.maximumf %147, %149 : vector<8x120xf32>
    %151 = arith.maximumf %145, %150 : vector<8x120xf32>
    %c0_172 = arith.constant 0 : index
    %c0_173 = arith.constant 0 : index
    %152 = vector.load %arg4[%c0_172, %c0_173] : memref<1x120xf32, #tpu.memory_space<vmem>>, vector<1x120xf32>
    %153 = vector.broadcast %152 : vector<1x120xf32> to vector<8x120xf32>
    %154 = arith.addf %151, %153 : vector<8x120xf32>
    %cst_174 = arith.constant 0.000000e+00 : f32
    %155 = vector.broadcast %cst_174 : f32 to vector<8x120xf32>
    %156 = arith.maximumf %154, %155 : vector<8x120xf32>
    %c0_175 = arith.constant 0 : index
    %c3_176 = arith.constant 3 : index
    %c0_177 = arith.constant 0 : index
    %157 = vector.load %arg16[%c0_175, %c3_176, %c0_177] : memref<8x12x120xf32, #tpu.memory_space<vmem>>, vector<8x1x120xf32>
    %158 = vector.shape_cast %157 : vector<8x1x120xf32> to vector<8x120xf32>
    %159 = vector.shape_cast %156 : vector<8x120xf32> to vector<8x1x120xf32>
    tpu.vector_store %arg16[%c0_175, %c3_176, %c0_177], %159 {strides = array<i32>} : memref<8x12x120xf32, #tpu.memory_space<vmem>>, vector<8x1x120xf32>,
    %c0_178 = arith.constant 0 : index
    %c8 = arith.constant 8 : index
    %c0_179 = arith.constant 0 : index
    %160 = vector.load %arg14[%c0_178, %c8, %c0_179] : memref<8x24x120xf32, #tpu.memory_space<vmem>>, vector<8x1x120xf32>
    %161 = vector.shape_cast %160 : vector<8x1x120xf32> to vector<8x120xf32>
    %c0_180 = arith.constant 0 : index
    %c8_181 = arith.constant 8 : index
    %c0_182 = arith.constant 0 : index
    %162 = vector.load %arg15[%c0_180, %c8_181, %c0_182] : memref<8x24x120xf32, #tpu.memory_space<vmem>>, vector<8x1x120xf32>
    %163 = vector.shape_cast %162 : vector<8x1x120xf32> to vector<8x120xf32>
    %164 = arith.maximumf %161, %163 : vector<8x120xf32>
    %c0_183 = arith.constant 0 : index
    %c9 = arith.constant 9 : index
    %c0_184 = arith.constant 0 : index
    %165 = vector.load %arg14[%c0_183, %c9, %c0_184] : memref<8x24x120xf32, #tpu.memory_space<vmem>>, vector<8x1x120xf32>
    %166 = vector.shape_cast %165 : vector<8x1x120xf32> to vector<8x120xf32>
    %c0_185 = arith.constant 0 : index
    %c9_186 = arith.constant 9 : index
    %c0_187 = arith.constant 0 : index
    %167 = vector.load %arg15[%c0_185, %c9_186, %c0_187] : memref<8x24x120xf32, #tpu.memory_space<vmem>>, vector<8x1x120xf32>
    %168 = vector.shape_cast %167 : vector<8x1x120xf32> to vector<8x120xf32>
    %169 = arith.maximumf %166, %168 : vector<8x120xf32>
    %170 = arith.maximumf %164, %169 : vector<8x120xf32>
    %c0_188 = arith.constant 0 : index
    %c0_189 = arith.constant 0 : index
    %171 = vector.load %arg4[%c0_188, %c0_189] : memref<1x120xf32, #tpu.memory_space<vmem>>, vector<1x120xf32>
    %172 = vector.broadcast %171 : vector<1x120xf32> to vector<8x120xf32>
    %173 = arith.addf %170, %172 : vector<8x120xf32>
    %cst_190 = arith.constant 0.000000e+00 : f32
    %174 = vector.broadcast %cst_190 : f32 to vector<8x120xf32>
    %175 = arith.maximumf %173, %174 : vector<8x120xf32>
    %c0_191 = arith.constant 0 : index
    %c4_192 = arith.constant 4 : index
    %c0_193 = arith.constant 0 : index
    %176 = vector.load %arg16[%c0_191, %c4_192, %c0_193] : memref<8x12x120xf32, #tpu.memory_space<vmem>>, vector<8x1x120xf32>
    %177 = vector.shape_cast %176 : vector<8x1x120xf32> to vector<8x120xf32>
    %178 = vector.shape_cast %175 : vector<8x120xf32> to vector<8x1x120xf32>
    tpu.vector_store %arg16[%c0_191, %c4_192, %c0_193], %178 {strides = array<i32>} : memref<8x12x120xf32, #tpu.memory_space<vmem>>, vector<8x1x120xf32>,
    %c0_194 = arith.constant 0 : index
    %c10 = arith.constant 10 : index
    %c0_195 = arith.constant 0 : index
    %179 = vector.load %arg14[%c0_194, %c10, %c0_195] : memref<8x24x120xf32, #tpu.memory_space<vmem>>, vector<8x1x120xf32>
    %180 = vector.shape_cast %179 : vector<8x1x120xf32> to vector<8x120xf32>
    %c0_196 = arith.constant 0 : index
    %c10_197 = arith.constant 10 : index
    %c0_198 = arith.constant 0 : index
    %181 = vector.load %arg15[%c0_196, %c10_197, %c0_198] : memref<8x24x120xf32, #tpu.memory_space<vmem>>, vector<8x1x120xf32>
    %182 = vector.shape_cast %181 : vector<8x1x120xf32> to vector<8x120xf32>
    %183 = arith.maximumf %180, %182 : vector<8x120xf32>
    %c0_199 = arith.constant 0 : index
    %c11 = arith.constant 11 : index
    %c0_200 = arith.constant 0 : index
    %184 = vector.load %arg14[%c0_199, %c11, %c0_200] : memref<8x24x120xf32, #tpu.memory_space<vmem>>, vector<8x1x120xf32>
    %185 = vector.shape_cast %184 : vector<8x1x120xf32> to vector<8x120xf32>
    %c0_201 = arith.constant 0 : index
    %c11_202 = arith.constant 11 : index
    %c0_203 = arith.constant 0 : index
    %186 = vector.load %arg15[%c0_201, %c11_202, %c0_203] : memref<8x24x120xf32, #tpu.memory_space<vmem>>, vector<8x1x120xf32>
    %187 = vector.shape_cast %186 : vector<8x1x120xf32> to vector<8x120xf32>
    %188 = arith.maximumf %185, %187 : vector<8x120xf32>
    %189 = arith.maximumf %183, %188 : vector<8x120xf32>
    %c0_204 = arith.constant 0 : index
    %c0_205 = arith.constant 0 : index
    %190 = vector.load %arg4[%c0_204, %c0_205] : memref<1x120xf32, #tpu.memory_space<vmem>>, vector<1x120xf32>
    %191 = vector.broadcast %190 : vector<1x120xf32> to vector<8x120xf32>
    %192 = arith.addf %189, %191 : vector<8x120xf32>
    %cst_206 = arith.constant 0.000000e+00 : f32
    %193 = vector.broadcast %cst_206 : f32 to vector<8x120xf32>
    %194 = arith.maximumf %192, %193 : vector<8x120xf32>
    %c0_207 = arith.constant 0 : index
    %c5_208 = arith.constant 5 : index
    %c0_209 = arith.constant 0 : index
    %195 = vector.load %arg16[%c0_207, %c5_208, %c0_209] : memref<8x12x120xf32, #tpu.memory_space<vmem>>, vector<8x1x120xf32>
    %196 = vector.shape_cast %195 : vector<8x1x120xf32> to vector<8x120xf32>
    %197 = vector.shape_cast %194 : vector<8x120xf32> to vector<8x1x120xf32>
    tpu.vector_store %arg16[%c0_207, %c5_208, %c0_209], %197 {strides = array<i32>} : memref<8x12x120xf32, #tpu.memory_space<vmem>>, vector<8x1x120xf32>,
    %c0_210 = arith.constant 0 : index
    %c12 = arith.constant 12 : index
    %c0_211 = arith.constant 0 : index
    %198 = vector.load %arg14[%c0_210, %c12, %c0_211] : memref<8x24x120xf32, #tpu.memory_space<vmem>>, vector<8x1x120xf32>
    %199 = vector.shape_cast %198 : vector<8x1x120xf32> to vector<8x120xf32>
    %c0_212 = arith.constant 0 : index
    %c12_213 = arith.constant 12 : index
    %c0_214 = arith.constant 0 : index
    %200 = vector.load %arg15[%c0_212, %c12_213, %c0_214] : memref<8x24x120xf32, #tpu.memory_space<vmem>>, vector<8x1x120xf32>
    %201 = vector.shape_cast %200 : vector<8x1x120xf32> to vector<8x120xf32>
    %202 = arith.maximumf %199, %201 : vector<8x120xf32>
    %c0_215 = arith.constant 0 : index
    %c13 = arith.constant 13 : index
    %c0_216 = arith.constant 0 : index
    %203 = vector.load %arg14[%c0_215, %c13, %c0_216] : memref<8x24x120xf32, #tpu.memory_space<vmem>>, vector<8x1x120xf32>
    %204 = vector.shape_cast %203 : vector<8x1x120xf32> to vector<8x120xf32>
    %c0_217 = arith.constant 0 : index
    %c13_218 = arith.constant 13 : index
    %c0_219 = arith.constant 0 : index
    %205 = vector.load %arg15[%c0_217, %c13_218, %c0_219] : memref<8x24x120xf32, #tpu.memory_space<vmem>>, vector<8x1x120xf32>
    %206 = vector.shape_cast %205 : vector<8x1x120xf32> to vector<8x120xf32>
    %207 = arith.maximumf %204, %206 : vector<8x120xf32>
    %208 = arith.maximumf %202, %207 : vector<8x120xf32>
    %c0_220 = arith.constant 0 : index
    %c0_221 = arith.constant 0 : index
    %209 = vector.load %arg4[%c0_220, %c0_221] : memref<1x120xf32, #tpu.memory_space<vmem>>, vector<1x120xf32>
    %210 = vector.broadcast %209 : vector<1x120xf32> to vector<8x120xf32>
    %211 = arith.addf %208, %210 : vector<8x120xf32>
    %cst_222 = arith.constant 0.000000e+00 : f32
    %212 = vector.broadcast %cst_222 : f32 to vector<8x120xf32>
    %213 = arith.maximumf %211, %212 : vector<8x120xf32>
    %c0_223 = arith.constant 0 : index
    %c6_224 = arith.constant 6 : index
    %c0_225 = arith.constant 0 : index
    %214 = vector.load %arg16[%c0_223, %c6_224, %c0_225] : memref<8x12x120xf32, #tpu.memory_space<vmem>>, vector<8x1x120xf32>
    %215 = vector.shape_cast %214 : vector<8x1x120xf32> to vector<8x120xf32>
    %216 = vector.shape_cast %213 : vector<8x120xf32> to vector<8x1x120xf32>
    tpu.vector_store %arg16[%c0_223, %c6_224, %c0_225], %216 {strides = array<i32>} : memref<8x12x120xf32, #tpu.memory_space<vmem>>, vector<8x1x120xf32>,
    %c0_226 = arith.constant 0 : index
    %c14 = arith.constant 14 : index
    %c0_227 = arith.constant 0 : index
    %217 = vector.load %arg14[%c0_226, %c14, %c0_227] : memref<8x24x120xf32, #tpu.memory_space<vmem>>, vector<8x1x120xf32>
    %218 = vector.shape_cast %217 : vector<8x1x120xf32> to vector<8x120xf32>
    %c0_228 = arith.constant 0 : index
    %c14_229 = arith.constant 14 : index
    %c0_230 = arith.constant 0 : index
    %219 = vector.load %arg15[%c0_228, %c14_229, %c0_230] : memref<8x24x120xf32, #tpu.memory_space<vmem>>, vector<8x1x120xf32>
    %220 = vector.shape_cast %219 : vector<8x1x120xf32> to vector<8x120xf32>
    %221 = arith.maximumf %218, %220 : vector<8x120xf32>
    %c0_231 = arith.constant 0 : index
    %c15 = arith.constant 15 : index
    %c0_232 = arith.constant 0 : index
    %222 = vector.load %arg14[%c0_231, %c15, %c0_232] : memref<8x24x120xf32, #tpu.memory_space<vmem>>, vector<8x1x120xf32>
    %223 = vector.shape_cast %222 : vector<8x1x120xf32> to vector<8x120xf32>
    %c0_233 = arith.constant 0 : index
    %c15_234 = arith.constant 15 : index
    %c0_235 = arith.constant 0 : index
    %224 = vector.load %arg15[%c0_233, %c15_234, %c0_235] : memref<8x24x120xf32, #tpu.memory_space<vmem>>, vector<8x1x120xf32>
    %225 = vector.shape_cast %224 : vector<8x1x120xf32> to vector<8x120xf32>
    %226 = arith.maximumf %223, %225 : vector<8x120xf32>
    %227 = arith.maximumf %221, %226 : vector<8x120xf32>
    %c0_236 = arith.constant 0 : index
    %c0_237 = arith.constant 0 : index
    %228 = vector.load %arg4[%c0_236, %c0_237] : memref<1x120xf32, #tpu.memory_space<vmem>>, vector<1x120xf32>
    %229 = vector.broadcast %228 : vector<1x120xf32> to vector<8x120xf32>
    %230 = arith.addf %227, %229 : vector<8x120xf32>
    %cst_238 = arith.constant 0.000000e+00 : f32
    %231 = vector.broadcast %cst_238 : f32 to vector<8x120xf32>
    %232 = arith.maximumf %230, %231 : vector<8x120xf32>
    %c0_239 = arith.constant 0 : index
    %c7_240 = arith.constant 7 : index
    %c0_241 = arith.constant 0 : index
    %233 = vector.load %arg16[%c0_239, %c7_240, %c0_241] : memref<8x12x120xf32, #tpu.memory_space<vmem>>, vector<8x1x120xf32>
    %234 = vector.shape_cast %233 : vector<8x1x120xf32> to vector<8x120xf32>
    %235 = vector.shape_cast %232 : vector<8x120xf32> to vector<8x1x120xf32>
    tpu.vector_store %arg16[%c0_239, %c7_240, %c0_241], %235 {strides = array<i32>} : memref<8x12x120xf32, #tpu.memory_space<vmem>>, vector<8x1x120xf32>,
    %c0_242 = arith.constant 0 : index
    %c16 = arith.constant 16 : index
    %c0_243 = arith.constant 0 : index
    %236 = vector.load %arg14[%c0_242, %c16, %c0_243] : memref<8x24x120xf32, #tpu.memory_space<vmem>>, vector<8x1x120xf32>
    %237 = vector.shape_cast %236 : vector<8x1x120xf32> to vector<8x120xf32>
    %c0_244 = arith.constant 0 : index
    %c16_245 = arith.constant 16 : index
    %c0_246 = arith.constant 0 : index
    %238 = vector.load %arg15[%c0_244, %c16_245, %c0_246] : memref<8x24x120xf32, #tpu.memory_space<vmem>>, vector<8x1x120xf32>
    %239 = vector.shape_cast %238 : vector<8x1x120xf32> to vector<8x120xf32>
    %240 = arith.maximumf %237, %239 : vector<8x120xf32>
    %c0_247 = arith.constant 0 : index
    %c17 = arith.constant 17 : index
    %c0_248 = arith.constant 0 : index
    %241 = vector.load %arg14[%c0_247, %c17, %c0_248] : memref<8x24x120xf32, #tpu.memory_space<vmem>>, vector<8x1x120xf32>
    %242 = vector.shape_cast %241 : vector<8x1x120xf32> to vector<8x120xf32>
    %c0_249 = arith.constant 0 : index
    %c17_250 = arith.constant 17 : index
    %c0_251 = arith.constant 0 : index
    %243 = vector.load %arg15[%c0_249, %c17_250, %c0_251] : memref<8x24x120xf32, #tpu.memory_space<vmem>>, vector<8x1x120xf32>
    %244 = vector.shape_cast %243 : vector<8x1x120xf32> to vector<8x120xf32>
    %245 = arith.maximumf %242, %244 : vector<8x120xf32>
    %246 = arith.maximumf %240, %245 : vector<8x120xf32>
    %c0_252 = arith.constant 0 : index
    %c0_253 = arith.constant 0 : index
    %247 = vector.load %arg4[%c0_252, %c0_253] : memref<1x120xf32, #tpu.memory_space<vmem>>, vector<1x120xf32>
    %248 = vector.broadcast %247 : vector<1x120xf32> to vector<8x120xf32>
    %249 = arith.addf %246, %248 : vector<8x120xf32>
    %cst_254 = arith.constant 0.000000e+00 : f32
    %250 = vector.broadcast %cst_254 : f32 to vector<8x120xf32>
    %251 = arith.maximumf %249, %250 : vector<8x120xf32>
    %c0_255 = arith.constant 0 : index
    %c8_256 = arith.constant 8 : index
    %c0_257 = arith.constant 0 : index
    %252 = vector.load %arg16[%c0_255, %c8_256, %c0_257] : memref<8x12x120xf32, #tpu.memory_space<vmem>>, vector<8x1x120xf32>
    %253 = vector.shape_cast %252 : vector<8x1x120xf32> to vector<8x120xf32>
    %254 = vector.shape_cast %251 : vector<8x120xf32> to vector<8x1x120xf32>
    tpu.vector_store %arg16[%c0_255, %c8_256, %c0_257], %254 {strides = array<i32>} : memref<8x12x120xf32, #tpu.memory_space<vmem>>, vector<8x1x120xf32>,
    %c0_258 = arith.constant 0 : index
    %c18 = arith.constant 18 : index
    %c0_259 = arith.constant 0 : index
    %255 = vector.load %arg14[%c0_258, %c18, %c0_259] : memref<8x24x120xf32, #tpu.memory_space<vmem>>, vector<8x1x120xf32>
    %256 = vector.shape_cast %255 : vector<8x1x120xf32> to vector<8x120xf32>
    %c0_260 = arith.constant 0 : index
    %c18_261 = arith.constant 18 : index
    %c0_262 = arith.constant 0 : index
    %257 = vector.load %arg15[%c0_260, %c18_261, %c0_262] : memref<8x24x120xf32, #tpu.memory_space<vmem>>, vector<8x1x120xf32>
    %258 = vector.shape_cast %257 : vector<8x1x120xf32> to vector<8x120xf32>
    %259 = arith.maximumf %256, %258 : vector<8x120xf32>
    %c0_263 = arith.constant 0 : index
    %c19 = arith.constant 19 : index
    %c0_264 = arith.constant 0 : index
    %260 = vector.load %arg14[%c0_263, %c19, %c0_264] : memref<8x24x120xf32, #tpu.memory_space<vmem>>, vector<8x1x120xf32>
    %261 = vector.shape_cast %260 : vector<8x1x120xf32> to vector<8x120xf32>
    %c0_265 = arith.constant 0 : index
    %c19_266 = arith.constant 19 : index
    %c0_267 = arith.constant 0 : index
    %262 = vector.load %arg15[%c0_265, %c19_266, %c0_267] : memref<8x24x120xf32, #tpu.memory_space<vmem>>, vector<8x1x120xf32>
    %263 = vector.shape_cast %262 : vector<8x1x120xf32> to vector<8x120xf32>
    %264 = arith.maximumf %261, %263 : vector<8x120xf32>
    %265 = arith.maximumf %259, %264 : vector<8x120xf32>
    %c0_268 = arith.constant 0 : index
    %c0_269 = arith.constant 0 : index
    %266 = vector.load %arg4[%c0_268, %c0_269] : memref<1x120xf32, #tpu.memory_space<vmem>>, vector<1x120xf32>
    %267 = vector.broadcast %266 : vector<1x120xf32> to vector<8x120xf32>
    %268 = arith.addf %265, %267 : vector<8x120xf32>
    %cst_270 = arith.constant 0.000000e+00 : f32
    %269 = vector.broadcast %cst_270 : f32 to vector<8x120xf32>
    %270 = arith.maximumf %268, %269 : vector<8x120xf32>
    %c0_271 = arith.constant 0 : index
    %c9_272 = arith.constant 9 : index
    %c0_273 = arith.constant 0 : index
    %271 = vector.load %arg16[%c0_271, %c9_272, %c0_273] : memref<8x12x120xf32, #tpu.memory_space<vmem>>, vector<8x1x120xf32>
    %272 = vector.shape_cast %271 : vector<8x1x120xf32> to vector<8x120xf32>
    %273 = vector.shape_cast %270 : vector<8x120xf32> to vector<8x1x120xf32>
    tpu.vector_store %arg16[%c0_271, %c9_272, %c0_273], %273 {strides = array<i32>} : memref<8x12x120xf32, #tpu.memory_space<vmem>>, vector<8x1x120xf32>,
    %c0_274 = arith.constant 0 : index
    %c20 = arith.constant 20 : index
    %c0_275 = arith.constant 0 : index
    %274 = vector.load %arg14[%c0_274, %c20, %c0_275] : memref<8x24x120xf32, #tpu.memory_space<vmem>>, vector<8x1x120xf32>
    %275 = vector.shape_cast %274 : vector<8x1x120xf32> to vector<8x120xf32>
    %c0_276 = arith.constant 0 : index
    %c20_277 = arith.constant 20 : index
    %c0_278 = arith.constant 0 : index
    %276 = vector.load %arg15[%c0_276, %c20_277, %c0_278] : memref<8x24x120xf32, #tpu.memory_space<vmem>>, vector<8x1x120xf32>
    %277 = vector.shape_cast %276 : vector<8x1x120xf32> to vector<8x120xf32>
    %278 = arith.maximumf %275, %277 : vector<8x120xf32>
    %c0_279 = arith.constant 0 : index
    %c21 = arith.constant 21 : index
    %c0_280 = arith.constant 0 : index
    %279 = vector.load %arg14[%c0_279, %c21, %c0_280] : memref<8x24x120xf32, #tpu.memory_space<vmem>>, vector<8x1x120xf32>
    %280 = vector.shape_cast %279 : vector<8x1x120xf32> to vector<8x120xf32>
    %c0_281 = arith.constant 0 : index
    %c21_282 = arith.constant 21 : index
    %c0_283 = arith.constant 0 : index
    %281 = vector.load %arg15[%c0_281, %c21_282, %c0_283] : memref<8x24x120xf32, #tpu.memory_space<vmem>>, vector<8x1x120xf32>
    %282 = vector.shape_cast %281 : vector<8x1x120xf32> to vector<8x120xf32>
    %283 = arith.maximumf %280, %282 : vector<8x120xf32>
    %284 = arith.maximumf %278, %283 : vector<8x120xf32>
    %c0_284 = arith.constant 0 : index
    %c0_285 = arith.constant 0 : index
    %285 = vector.load %arg4[%c0_284, %c0_285] : memref<1x120xf32, #tpu.memory_space<vmem>>, vector<1x120xf32>
    %286 = vector.broadcast %285 : vector<1x120xf32> to vector<8x120xf32>
    %287 = arith.addf %284, %286 : vector<8x120xf32>
    %cst_286 = arith.constant 0.000000e+00 : f32
    %288 = vector.broadcast %cst_286 : f32 to vector<8x120xf32>
    %289 = arith.maximumf %287, %288 : vector<8x120xf32>
    %c0_287 = arith.constant 0 : index
    %c10_288 = arith.constant 10 : index
    %c0_289 = arith.constant 0 : index
    %290 = vector.load %arg16[%c0_287, %c10_288, %c0_289] : memref<8x12x120xf32, #tpu.memory_space<vmem>>, vector<8x1x120xf32>
    %291 = vector.shape_cast %290 : vector<8x1x120xf32> to vector<8x120xf32>
    %292 = vector.shape_cast %289 : vector<8x120xf32> to vector<8x1x120xf32>
    tpu.vector_store %arg16[%c0_287, %c10_288, %c0_289], %292 {strides = array<i32>} : memref<8x12x120xf32, #tpu.memory_space<vmem>>, vector<8x1x120xf32>,
    %c0_290 = arith.constant 0 : index
    %c22 = arith.constant 22 : index
    %c0_291 = arith.constant 0 : index
    %293 = vector.load %arg14[%c0_290, %c22, %c0_291] : memref<8x24x120xf32, #tpu.memory_space<vmem>>, vector<8x1x120xf32>
    %294 = vector.shape_cast %293 : vector<8x1x120xf32> to vector<8x120xf32>
    %c0_292 = arith.constant 0 : index
    %c22_293 = arith.constant 22 : index
    %c0_294 = arith.constant 0 : index
    %295 = vector.load %arg15[%c0_292, %c22_293, %c0_294] : memref<8x24x120xf32, #tpu.memory_space<vmem>>, vector<8x1x120xf32>
    %296 = vector.shape_cast %295 : vector<8x1x120xf32> to vector<8x120xf32>
    %297 = arith.maximumf %294, %296 : vector<8x120xf32>
    %c0_295 = arith.constant 0 : index
    %c23 = arith.constant 23 : index
    %c0_296 = arith.constant 0 : index
    %298 = vector.load %arg14[%c0_295, %c23, %c0_296] : memref<8x24x120xf32, #tpu.memory_space<vmem>>, vector<8x1x120xf32>
    %299 = vector.shape_cast %298 : vector<8x1x120xf32> to vector<8x120xf32>
    %c0_297 = arith.constant 0 : index
    %c23_298 = arith.constant 23 : index
    %c0_299 = arith.constant 0 : index
    %300 = vector.load %arg15[%c0_297, %c23_298, %c0_299] : memref<8x24x120xf32, #tpu.memory_space<vmem>>, vector<8x1x120xf32>
    %301 = vector.shape_cast %300 : vector<8x1x120xf32> to vector<8x120xf32>
    %302 = arith.maximumf %299, %301 : vector<8x120xf32>
    %303 = arith.maximumf %297, %302 : vector<8x120xf32>
    %c0_300 = arith.constant 0 : index
    %c0_301 = arith.constant 0 : index
    %304 = vector.load %arg4[%c0_300, %c0_301] : memref<1x120xf32, #tpu.memory_space<vmem>>, vector<1x120xf32>
    %305 = vector.broadcast %304 : vector<1x120xf32> to vector<8x120xf32>
    %306 = arith.addf %303, %305 : vector<8x120xf32>
    %cst_302 = arith.constant 0.000000e+00 : f32
    %307 = vector.broadcast %cst_302 : f32 to vector<8x120xf32>
    %308 = arith.maximumf %306, %307 : vector<8x120xf32>
    %c0_303 = arith.constant 0 : index
    %c11_304 = arith.constant 11 : index
    %c0_305 = arith.constant 0 : index
    %309 = vector.load %arg16[%c0_303, %c11_304, %c0_305] : memref<8x12x120xf32, #tpu.memory_space<vmem>>, vector<8x1x120xf32>
    %310 = vector.shape_cast %309 : vector<8x1x120xf32> to vector<8x120xf32>
    %311 = vector.shape_cast %308 : vector<8x120xf32> to vector<8x1x120xf32>
    tpu.vector_store %arg16[%c0_303, %c11_304, %c0_305], %311 {strides = array<i32>} : memref<8x12x120xf32, #tpu.memory_space<vmem>>, vector<8x1x120xf32>,
    %c0_306 = arith.constant 0 : index
    %c0_307 = arith.constant 0 : index
    %c0_308 = arith.constant 0 : index
    %312 = vector.load %arg16[%c0_306, %c0_307, %c0_308] : memref<8x12x120xf32, #tpu.memory_space<vmem>>, vector<8x8x120xf32>
    %313 = vector.shape_cast %312 : vector<8x8x120xf32> to vector<64x120xf32>
    %314 = arith.truncf %313 : vector<64x120xf32> to vector<64x120xbf16>
    %c0_309 = arith.constant 0 : index
    %c0_310 = arith.constant 0 : index
    %c0_311 = arith.constant 0 : index
    %315 = vector.load %arg5[%c0_309, %c0_310, %c0_311] : memref<5x120x80xbf16, #tpu.memory_space<vmem>>, vector<1x120x80xbf16>
    %316 = vector.shape_cast %315 : vector<1x120x80xbf16> to vector<120x80xbf16>
    %cst_312 = arith.constant dense<0.000000e+00> : vector<64x80xf32>
    %317 = tpu.matmul %314, %316, %cst_312 {dimension_numbers = #tpu.dot_dimension_numbers<[1], [0], [0], [1], [0, 0, 1, 1], [], []>} : vector<64x120xbf16>, vector<120x80xbf16>, vector<64x80xf32> -> vector<64x80xf32>
    %c0_313 = arith.constant 0 : index
    %c0_314 = arith.constant 0 : index
    %c0_315 = arith.constant 0 : index
    %318 = vector.load %arg6[%c0_313, %c0_314, %c0_315] : memref<5x120x80xbf16, #tpu.memory_space<vmem>>, vector<1x120x80xbf16>
    %319 = vector.shape_cast %318 : vector<1x120x80xbf16> to vector<120x80xbf16>
    %cst_316 = arith.constant dense<0.000000e+00> : vector<64x80xf32>
    %320 = tpu.matmul %314, %319, %cst_316 {dimension_numbers = #tpu.dot_dimension_numbers<[1], [0], [0], [1], [0, 0, 1, 1], [], []>} : vector<64x120xbf16>, vector<120x80xbf16>, vector<64x80xf32> -> vector<64x80xf32>
    %321 = vector.shape_cast %317 : vector<64x80xf32> to vector<8x8x80xf32>
    %c0_317 = arith.constant 0 : index
    %c0_318 = arith.constant 0 : index
    %c0_319 = arith.constant 0 : index
    %322 = vector.load %arg17[%c0_317, %c0_318, %c0_319] : memref<8x8x80xf32, #tpu.memory_space<vmem>>, vector<8x8x80xf32>
    tpu.vector_store %arg17[%c0_317, %c0_318, %c0_319], %321 {strides = array<i32>} : memref<8x8x80xf32, #tpu.memory_space<vmem>>, vector<8x8x80xf32>,
    %323 = vector.shape_cast %320 : vector<64x80xf32> to vector<8x8x80xf32>
    %c0_320 = arith.constant 0 : index
    %c0_321 = arith.constant 0 : index
    %c0_322 = arith.constant 0 : index
    %324 = vector.load %arg18[%c0_320, %c0_321, %c0_322] : memref<8x8x80xf32, #tpu.memory_space<vmem>>, vector<8x8x80xf32>
    tpu.vector_store %arg18[%c0_320, %c0_321, %c0_322], %323 {strides = array<i32>} : memref<8x8x80xf32, #tpu.memory_space<vmem>>, vector<8x8x80xf32>,
    %c0_323 = arith.constant 0 : index
    %c1_324 = arith.constant 1 : index
    %c0_325 = arith.constant 0 : index
    %325 = vector.load %arg16[%c0_323, %c1_324, %c0_325] : memref<8x12x120xf32, #tpu.memory_space<vmem>>, vector<8x8x120xf32>
    %326 = vector.shape_cast %325 : vector<8x8x120xf32> to vector<64x120xf32>
    %327 = arith.truncf %326 : vector<64x120xf32> to vector<64x120xbf16>
    %c1_326 = arith.constant 1 : index
    %c0_327 = arith.constant 0 : index
    %c0_328 = arith.constant 0 : index
    %328 = vector.load %arg5[%c1_326, %c0_327, %c0_328] : memref<5x120x80xbf16, #tpu.memory_space<vmem>>, vector<1x120x80xbf16>
    %329 = vector.shape_cast %328 : vector<1x120x80xbf16> to vector<120x80xbf16>
    %cst_329 = arith.constant dense<0.000000e+00> : vector<64x80xf32>
    %330 = tpu.matmul %327, %329, %cst_329 {dimension_numbers = #tpu.dot_dimension_numbers<[1], [0], [0], [1], [0, 0, 1, 1], [], []>} : vector<64x120xbf16>, vector<120x80xbf16>, vector<64x80xf32> -> vector<64x80xf32>
    %c1_330 = arith.constant 1 : index
    %c0_331 = arith.constant 0 : index
    %c0_332 = arith.constant 0 : index
    %331 = vector.load %arg6[%c1_330, %c0_331, %c0_332] : memref<5x120x80xbf16, #tpu.memory_space<vmem>>, vector<1x120x80xbf16>
    %332 = vector.shape_cast %331 : vector<1x120x80xbf16> to vector<120x80xbf16>
    %cst_333 = arith.constant dense<0.000000e+00> : vector<64x80xf32>
    %333 = tpu.matmul %327, %332, %cst_333 {dimension_numbers = #tpu.dot_dimension_numbers<[1], [0], [0], [1], [0, 0, 1, 1], [], []>} : vector<64x120xbf16>, vector<120x80xbf16>, vector<64x80xf32> -> vector<64x80xf32>
    %c0_334 = arith.constant 0 : index
    %c0_335 = arith.constant 0 : index
    %c0_336 = arith.constant 0 : index
    %334 = vector.load %arg17[%c0_334, %c0_335, %c0_336] : memref<8x8x80xf32, #tpu.memory_space<vmem>>, vector<8x8x80xf32>
    %335 = vector.shape_cast %330 : vector<64x80xf32> to vector<8x8x80xf32>
    %336 = arith.addf %334, %335 : vector<8x8x80xf32>
    %c0_337 = arith.constant 0 : index
    %c0_338 = arith.constant 0 : index
    %c0_339 = arith.constant 0 : index
    %337 = vector.load %arg17[%c0_337, %c0_338, %c0_339] : memref<8x8x80xf32, #tpu.memory_space<vmem>>, vector<8x8x80xf32>
    tpu.vector_store %arg17[%c0_337, %c0_338, %c0_339], %336 {strides = array<i32>} : memref<8x8x80xf32, #tpu.memory_space<vmem>>, vector<8x8x80xf32>,
    %c0_340 = arith.constant 0 : index
    %c0_341 = arith.constant 0 : index
    %c0_342 = arith.constant 0 : index
    %338 = vector.load %arg18[%c0_340, %c0_341, %c0_342] : memref<8x8x80xf32, #tpu.memory_space<vmem>>, vector<8x8x80xf32>
    %339 = vector.shape_cast %333 : vector<64x80xf32> to vector<8x8x80xf32>
    %340 = arith.addf %338, %339 : vector<8x8x80xf32>
    %c0_343 = arith.constant 0 : index
    %c0_344 = arith.constant 0 : index
    %c0_345 = arith.constant 0 : index
    %341 = vector.load %arg18[%c0_343, %c0_344, %c0_345] : memref<8x8x80xf32, #tpu.memory_space<vmem>>, vector<8x8x80xf32>
    tpu.vector_store %arg18[%c0_343, %c0_344, %c0_345], %340 {strides = array<i32>} : memref<8x8x80xf32, #tpu.memory_space<vmem>>, vector<8x8x80xf32>,
    %c0_346 = arith.constant 0 : index
    %c2_347 = arith.constant 2 : index
    %c0_348 = arith.constant 0 : index
    %342 = vector.load %arg16[%c0_346, %c2_347, %c0_348] : memref<8x12x120xf32, #tpu.memory_space<vmem>>, vector<8x8x120xf32>
    %343 = vector.shape_cast %342 : vector<8x8x120xf32> to vector<64x120xf32>
    %344 = arith.truncf %343 : vector<64x120xf32> to vector<64x120xbf16>
    %c2_349 = arith.constant 2 : index
    %c0_350 = arith.constant 0 : index
    %c0_351 = arith.constant 0 : index
    %345 = vector.load %arg5[%c2_349, %c0_350, %c0_351] : memref<5x120x80xbf16, #tpu.memory_space<vmem>>, vector<1x120x80xbf16>
    %346 = vector.shape_cast %345 : vector<1x120x80xbf16> to vector<120x80xbf16>
    %cst_352 = arith.constant dense<0.000000e+00> : vector<64x80xf32>
    %347 = tpu.matmul %344, %346, %cst_352 {dimension_numbers = #tpu.dot_dimension_numbers<[1], [0], [0], [1], [0, 0, 1, 1], [], []>} : vector<64x120xbf16>, vector<120x80xbf16>, vector<64x80xf32> -> vector<64x80xf32>
    %c2_353 = arith.constant 2 : index
    %c0_354 = arith.constant 0 : index
    %c0_355 = arith.constant 0 : index
    %348 = vector.load %arg6[%c2_353, %c0_354, %c0_355] : memref<5x120x80xbf16, #tpu.memory_space<vmem>>, vector<1x120x80xbf16>
    %349 = vector.shape_cast %348 : vector<1x120x80xbf16> to vector<120x80xbf16>
    %cst_356 = arith.constant dense<0.000000e+00> : vector<64x80xf32>
    %350 = tpu.matmul %344, %349, %cst_356 {dimension_numbers = #tpu.dot_dimension_numbers<[1], [0], [0], [1], [0, 0, 1, 1], [], []>} : vector<64x120xbf16>, vector<120x80xbf16>, vector<64x80xf32> -> vector<64x80xf32>
    %c0_357 = arith.constant 0 : index
    %c0_358 = arith.constant 0 : index
    %c0_359 = arith.constant 0 : index
    %351 = vector.load %arg17[%c0_357, %c0_358, %c0_359] : memref<8x8x80xf32, #tpu.memory_space<vmem>>, vector<8x8x80xf32>
    %352 = vector.shape_cast %347 : vector<64x80xf32> to vector<8x8x80xf32>
    %353 = arith.addf %351, %352 : vector<8x8x80xf32>
    %c0_360 = arith.constant 0 : index
    %c0_361 = arith.constant 0 : index
    %c0_362 = arith.constant 0 : index
    %354 = vector.load %arg17[%c0_360, %c0_361, %c0_362] : memref<8x8x80xf32, #tpu.memory_space<vmem>>, vector<8x8x80xf32>
    tpu.vector_store %arg17[%c0_360, %c0_361, %c0_362], %353 {strides = array<i32>} : memref<8x8x80xf32, #tpu.memory_space<vmem>>, vector<8x8x80xf32>,
    %c0_363 = arith.constant 0 : index
    %c0_364 = arith.constant 0 : index
    %c0_365 = arith.constant 0 : index
    %355 = vector.load %arg18[%c0_363, %c0_364, %c0_365] : memref<8x8x80xf32, #tpu.memory_space<vmem>>, vector<8x8x80xf32>
    %356 = vector.shape_cast %350 : vector<64x80xf32> to vector<8x8x80xf32>
    %357 = arith.addf %355, %356 : vector<8x8x80xf32>
    %c0_366 = arith.constant 0 : index
    %c0_367 = arith.constant 0 : index
    %c0_368 = arith.constant 0 : index
    %358 = vector.load %arg18[%c0_366, %c0_367, %c0_368] : memref<8x8x80xf32, #tpu.memory_space<vmem>>, vector<8x8x80xf32>
    tpu.vector_store %arg18[%c0_366, %c0_367, %c0_368], %357 {strides = array<i32>} : memref<8x8x80xf32, #tpu.memory_space<vmem>>, vector<8x8x80xf32>,
    %c0_369 = arith.constant 0 : index
    %c3_370 = arith.constant 3 : index
    %c0_371 = arith.constant 0 : index
    %359 = vector.load %arg16[%c0_369, %c3_370, %c0_371] : memref<8x12x120xf32, #tpu.memory_space<vmem>>, vector<8x8x120xf32>
    %360 = vector.shape_cast %359 : vector<8x8x120xf32> to vector<64x120xf32>
    %361 = arith.truncf %360 : vector<64x120xf32> to vector<64x120xbf16>
    %c3_372 = arith.constant 3 : index
    %c0_373 = arith.constant 0 : index
    %c0_374 = arith.constant 0 : index
    %362 = vector.load %arg5[%c3_372, %c0_373, %c0_374] : memref<5x120x80xbf16, #tpu.memory_space<vmem>>, vector<1x120x80xbf16>
    %363 = vector.shape_cast %362 : vector<1x120x80xbf16> to vector<120x80xbf16>
    %cst_375 = arith.constant dense<0.000000e+00> : vector<64x80xf32>
    %364 = tpu.matmul %361, %363, %cst_375 {dimension_numbers = #tpu.dot_dimension_numbers<[1], [0], [0], [1], [0, 0, 1, 1], [], []>} : vector<64x120xbf16>, vector<120x80xbf16>, vector<64x80xf32> -> vector<64x80xf32>
    %c3_376 = arith.constant 3 : index
    %c0_377 = arith.constant 0 : index
    %c0_378 = arith.constant 0 : index
    %365 = vector.load %arg6[%c3_376, %c0_377, %c0_378] : memref<5x120x80xbf16, #tpu.memory_space<vmem>>, vector<1x120x80xbf16>
    %366 = vector.shape_cast %365 : vector<1x120x80xbf16> to vector<120x80xbf16>
    %cst_379 = arith.constant dense<0.000000e+00> : vector<64x80xf32>
    %367 = tpu.matmul %361, %366, %cst_379 {dimension_numbers = #tpu.dot_dimension_numbers<[1], [0], [0], [1], [0, 0, 1, 1], [], []>} : vector<64x120xbf16>, vector<120x80xbf16>, vector<64x80xf32> -> vector<64x80xf32>
    %c0_380 = arith.constant 0 : index
    %c0_381 = arith.constant 0 : index
    %c0_382 = arith.constant 0 : index
    %368 = vector.load %arg17[%c0_380, %c0_381, %c0_382] : memref<8x8x80xf32, #tpu.memory_space<vmem>>, vector<8x8x80xf32>
    %369 = vector.shape_cast %364 : vector<64x80xf32> to vector<8x8x80xf32>
    %370 = arith.addf %368, %369 : vector<8x8x80xf32>
    %c0_383 = arith.constant 0 : index
    %c0_384 = arith.constant 0 : index
    %c0_385 = arith.constant 0 : index
    %371 = vector.load %arg17[%c0_383, %c0_384, %c0_385] : memref<8x8x80xf32, #tpu.memory_space<vmem>>, vector<8x8x80xf32>
    tpu.vector_store %arg17[%c0_383, %c0_384, %c0_385], %370 {strides = array<i32>} : memref<8x8x80xf32, #tpu.memory_space<vmem>>, vector<8x8x80xf32>,
    %c0_386 = arith.constant 0 : index
    %c0_387 = arith.constant 0 : index
    %c0_388 = arith.constant 0 : index
    %372 = vector.load %arg18[%c0_386, %c0_387, %c0_388] : memref<8x8x80xf32, #tpu.memory_space<vmem>>, vector<8x8x80xf32>
    %373 = vector.shape_cast %367 : vector<64x80xf32> to vector<8x8x80xf32>
    %374 = arith.addf %372, %373 : vector<8x8x80xf32>
    %c0_389 = arith.constant 0 : index
    %c0_390 = arith.constant 0 : index
    %c0_391 = arith.constant 0 : index
    %375 = vector.load %arg18[%c0_389, %c0_390, %c0_391] : memref<8x8x80xf32, #tpu.memory_space<vmem>>, vector<8x8x80xf32>
    tpu.vector_store %arg18[%c0_389, %c0_390, %c0_391], %374 {strides = array<i32>} : memref<8x8x80xf32, #tpu.memory_space<vmem>>, vector<8x8x80xf32>,
    %c0_392 = arith.constant 0 : index
    %c4_393 = arith.constant 4 : index
    %c0_394 = arith.constant 0 : index
    %376 = vector.load %arg16[%c0_392, %c4_393, %c0_394] : memref<8x12x120xf32, #tpu.memory_space<vmem>>, vector<8x8x120xf32>
    %377 = vector.shape_cast %376 : vector<8x8x120xf32> to vector<64x120xf32>
    %378 = arith.truncf %377 : vector<64x120xf32> to vector<64x120xbf16>
    %c4_395 = arith.constant 4 : index
    %c0_396 = arith.constant 0 : index
    %c0_397 = arith.constant 0 : index
    %379 = vector.load %arg5[%c4_395, %c0_396, %c0_397] : memref<5x120x80xbf16, #tpu.memory_space<vmem>>, vector<1x120x80xbf16>
    %380 = vector.shape_cast %379 : vector<1x120x80xbf16> to vector<120x80xbf16>
    %cst_398 = arith.constant dense<0.000000e+00> : vector<64x80xf32>
    %381 = tpu.matmul %378, %380, %cst_398 {dimension_numbers = #tpu.dot_dimension_numbers<[1], [0], [0], [1], [0, 0, 1, 1], [], []>} : vector<64x120xbf16>, vector<120x80xbf16>, vector<64x80xf32> -> vector<64x80xf32>
    %c4_399 = arith.constant 4 : index
    %c0_400 = arith.constant 0 : index
    %c0_401 = arith.constant 0 : index
    %382 = vector.load %arg6[%c4_399, %c0_400, %c0_401] : memref<5x120x80xbf16, #tpu.memory_space<vmem>>, vector<1x120x80xbf16>
    %383 = vector.shape_cast %382 : vector<1x120x80xbf16> to vector<120x80xbf16>
    %cst_402 = arith.constant dense<0.000000e+00> : vector<64x80xf32>
    %384 = tpu.matmul %378, %383, %cst_402 {dimension_numbers = #tpu.dot_dimension_numbers<[1], [0], [0], [1], [0, 0, 1, 1], [], []>} : vector<64x120xbf16>, vector<120x80xbf16>, vector<64x80xf32> -> vector<64x80xf32>
    %c0_403 = arith.constant 0 : index
    %c0_404 = arith.constant 0 : index
    %c0_405 = arith.constant 0 : index
    %385 = vector.load %arg17[%c0_403, %c0_404, %c0_405] : memref<8x8x80xf32, #tpu.memory_space<vmem>>, vector<8x8x80xf32>
    %386 = vector.shape_cast %381 : vector<64x80xf32> to vector<8x8x80xf32>
    %387 = arith.addf %385, %386 : vector<8x8x80xf32>
    %c0_406 = arith.constant 0 : index
    %c0_407 = arith.constant 0 : index
    %c0_408 = arith.constant 0 : index
    %388 = vector.load %arg17[%c0_406, %c0_407, %c0_408] : memref<8x8x80xf32, #tpu.memory_space<vmem>>, vector<8x8x80xf32>
    tpu.vector_store %arg17[%c0_406, %c0_407, %c0_408], %387 {strides = array<i32>} : memref<8x8x80xf32, #tpu.memory_space<vmem>>, vector<8x8x80xf32>,
    %c0_409 = arith.constant 0 : index
    %c0_410 = arith.constant 0 : index
    %c0_411 = arith.constant 0 : index
    %389 = vector.load %arg18[%c0_409, %c0_410, %c0_411] : memref<8x8x80xf32, #tpu.memory_space<vmem>>, vector<8x8x80xf32>
    %390 = vector.shape_cast %384 : vector<64x80xf32> to vector<8x8x80xf32>
    %391 = arith.addf %389, %390 : vector<8x8x80xf32>
    %c0_412 = arith.constant 0 : index
    %c0_413 = arith.constant 0 : index
    %c0_414 = arith.constant 0 : index
    %392 = vector.load %arg18[%c0_412, %c0_413, %c0_414] : memref<8x8x80xf32, #tpu.memory_space<vmem>>, vector<8x8x80xf32>
    tpu.vector_store %arg18[%c0_412, %c0_413, %c0_414], %391 {strides = array<i32>} : memref<8x8x80xf32, #tpu.memory_space<vmem>>, vector<8x8x80xf32>,
    %c0_415 = arith.constant 0 : index
    %c0_416 = arith.constant 0 : index
    %c0_417 = arith.constant 0 : index
    %393 = vector.load %arg17[%c0_415, %c0_416, %c0_417] : memref<8x8x80xf32, #tpu.memory_space<vmem>>, vector<8x1x80xf32>
    %394 = vector.shape_cast %393 : vector<8x1x80xf32> to vector<8x80xf32>
    %c0_418 = arith.constant 0 : index
    %c0_419 = arith.constant 0 : index
    %c0_420 = arith.constant 0 : index
    %395 = vector.load %arg18[%c0_418, %c0_419, %c0_420] : memref<8x8x80xf32, #tpu.memory_space<vmem>>, vector<8x1x80xf32>
    %396 = vector.shape_cast %395 : vector<8x1x80xf32> to vector<8x80xf32>
    %397 = arith.maximumf %394, %396 : vector<8x80xf32>
    %c0_421 = arith.constant 0 : index
    %c1_422 = arith.constant 1 : index
    %c0_423 = arith.constant 0 : index
    %398 = vector.load %arg17[%c0_421, %c1_422, %c0_423] : memref<8x8x80xf32, #tpu.memory_space<vmem>>, vector<8x1x80xf32>
    %399 = vector.shape_cast %398 : vector<8x1x80xf32> to vector<8x80xf32>
    %c0_424 = arith.constant 0 : index
    %c1_425 = arith.constant 1 : index
    %c0_426 = arith.constant 0 : index
    %400 = vector.load %arg18[%c0_424, %c1_425, %c0_426] : memref<8x8x80xf32, #tpu.memory_space<vmem>>, vector<8x1x80xf32>
    %401 = vector.shape_cast %400 : vector<8x1x80xf32> to vector<8x80xf32>
    %402 = arith.maximumf %399, %401 : vector<8x80xf32>
    %403 = arith.maximumf %397, %402 : vector<8x80xf32>
    %c0_427 = arith.constant 0 : index
    %c0_428 = arith.constant 0 : index
    %404 = vector.load %arg7[%c0_427, %c0_428] : memref<1x80xf32, #tpu.memory_space<vmem>>, vector<1x80xf32>
    %405 = vector.broadcast %404 : vector<1x80xf32> to vector<8x80xf32>
    %406 = arith.addf %403, %405 : vector<8x80xf32>
    %cst_429 = arith.constant 0.000000e+00 : f32
    %407 = vector.broadcast %cst_429 : f32 to vector<8x80xf32>
    %408 = arith.maximumf %406, %407 : vector<8x80xf32>
    %409 = arith.truncf %408 : vector<8x80xf32> to vector<8x80xbf16>
    %c0_430 = arith.constant 0 : index
    %c0_431 = arith.constant 0 : index
    %c0_432 = arith.constant 0 : index
    %410 = vector.load %arg8[%c0_430, %c0_431, %c0_432] : memref<4x80x50xbf16, #tpu.memory_space<vmem>>, vector<1x80x50xbf16>
    %411 = vector.shape_cast %410 : vector<1x80x50xbf16> to vector<80x50xbf16>
    %cst_433 = arith.constant dense<0.000000e+00> : vector<8x50xf32>
    %412 = tpu.matmul %409, %411, %cst_433 {dimension_numbers = #tpu.dot_dimension_numbers<[1], [0], [0], [1], [0, 0, 1, 1], [], []>} : vector<8x80xbf16>, vector<80x50xbf16>, vector<8x50xf32> -> vector<8x50xf32>
    %c0_434 = arith.constant 0 : index
    %c0_435 = arith.constant 0 : index
    %413 = vector.load %arg19[%c0_434, %c0_435] : memref<8x50xf32, #tpu.memory_space<vmem>>, vector<8x50xf32>
    tpu.vector_store %arg19[%c0_434, %c0_435], %412 {strides = array<i32>} : memref<8x50xf32, #tpu.memory_space<vmem>>, vector<8x50xf32>,
    %c0_436 = arith.constant 0 : index
    %c2_437 = arith.constant 2 : index
    %c0_438 = arith.constant 0 : index
    %414 = vector.load %arg17[%c0_436, %c2_437, %c0_438] : memref<8x8x80xf32, #tpu.memory_space<vmem>>, vector<8x1x80xf32>
    %415 = vector.shape_cast %414 : vector<8x1x80xf32> to vector<8x80xf32>
    %c0_439 = arith.constant 0 : index
    %c2_440 = arith.constant 2 : index
    %c0_441 = arith.constant 0 : index
    %416 = vector.load %arg18[%c0_439, %c2_440, %c0_441] : memref<8x8x80xf32, #tpu.memory_space<vmem>>, vector<8x1x80xf32>
    %417 = vector.shape_cast %416 : vector<8x1x80xf32> to vector<8x80xf32>
    %418 = arith.maximumf %415, %417 : vector<8x80xf32>
    %c0_442 = arith.constant 0 : index
    %c3_443 = arith.constant 3 : index
    %c0_444 = arith.constant 0 : index
    %419 = vector.load %arg17[%c0_442, %c3_443, %c0_444] : memref<8x8x80xf32, #tpu.memory_space<vmem>>, vector<8x1x80xf32>
    %420 = vector.shape_cast %419 : vector<8x1x80xf32> to vector<8x80xf32>
    %c0_445 = arith.constant 0 : index
    %c3_446 = arith.constant 3 : index
    %c0_447 = arith.constant 0 : index
    %421 = vector.load %arg18[%c0_445, %c3_446, %c0_447] : memref<8x8x80xf32, #tpu.memory_space<vmem>>, vector<8x1x80xf32>
    %422 = vector.shape_cast %421 : vector<8x1x80xf32> to vector<8x80xf32>
    %423 = arith.maximumf %420, %422 : vector<8x80xf32>
    %424 = arith.maximumf %418, %423 : vector<8x80xf32>
    %c0_448 = arith.constant 0 : index
    %c0_449 = arith.constant 0 : index
    %425 = vector.load %arg7[%c0_448, %c0_449] : memref<1x80xf32, #tpu.memory_space<vmem>>, vector<1x80xf32>
    %426 = vector.broadcast %425 : vector<1x80xf32> to vector<8x80xf32>
    %427 = arith.addf %424, %426 : vector<8x80xf32>
    %cst_450 = arith.constant 0.000000e+00 : f32
    %428 = vector.broadcast %cst_450 : f32 to vector<8x80xf32>
    %429 = arith.maximumf %427, %428 : vector<8x80xf32>
    %430 = arith.truncf %429 : vector<8x80xf32> to vector<8x80xbf16>
    %c1_451 = arith.constant 1 : index
    %c0_452 = arith.constant 0 : index
    %c0_453 = arith.constant 0 : index
    %431 = vector.load %arg8[%c1_451, %c0_452, %c0_453] : memref<4x80x50xbf16, #tpu.memory_space<vmem>>, vector<1x80x50xbf16>
    %432 = vector.shape_cast %431 : vector<1x80x50xbf16> to vector<80x50xbf16>
    %cst_454 = arith.constant dense<0.000000e+00> : vector<8x50xf32>
    %433 = tpu.matmul %430, %432, %cst_454 {dimension_numbers = #tpu.dot_dimension_numbers<[1], [0], [0], [1], [0, 0, 1, 1], [], []>} : vector<8x80xbf16>, vector<80x50xbf16>, vector<8x50xf32> -> vector<8x50xf32>
    %c0_455 = arith.constant 0 : index
    %c0_456 = arith.constant 0 : index
    %434 = vector.load %arg19[%c0_455, %c0_456] : memref<8x50xf32, #tpu.memory_space<vmem>>, vector<8x50xf32>
    %435 = arith.addf %434, %433 : vector<8x50xf32>
    %c0_457 = arith.constant 0 : index
    %c0_458 = arith.constant 0 : index
    %436 = vector.load %arg19[%c0_457, %c0_458] : memref<8x50xf32, #tpu.memory_space<vmem>>, vector<8x50xf32>
    tpu.vector_store %arg19[%c0_457, %c0_458], %435 {strides = array<i32>} : memref<8x50xf32, #tpu.memory_space<vmem>>, vector<8x50xf32>,
    %c0_459 = arith.constant 0 : index
    %c4_460 = arith.constant 4 : index
    %c0_461 = arith.constant 0 : index
    %437 = vector.load %arg17[%c0_459, %c4_460, %c0_461] : memref<8x8x80xf32, #tpu.memory_space<vmem>>, vector<8x1x80xf32>
    %438 = vector.shape_cast %437 : vector<8x1x80xf32> to vector<8x80xf32>
    %c0_462 = arith.constant 0 : index
    %c4_463 = arith.constant 4 : index
    %c0_464 = arith.constant 0 : index
    %439 = vector.load %arg18[%c0_462, %c4_463, %c0_464] : memref<8x8x80xf32, #tpu.memory_space<vmem>>, vector<8x1x80xf32>
    %440 = vector.shape_cast %439 : vector<8x1x80xf32> to vector<8x80xf32>
    %441 = arith.maximumf %438, %440 : vector<8x80xf32>
    %c0_465 = arith.constant 0 : index
    %c5_466 = arith.constant 5 : index
    %c0_467 = arith.constant 0 : index
    %442 = vector.load %arg17[%c0_465, %c5_466, %c0_467] : memref<8x8x80xf32, #tpu.memory_space<vmem>>, vector<8x1x80xf32>
    %443 = vector.shape_cast %442 : vector<8x1x80xf32> to vector<8x80xf32>
    %c0_468 = arith.constant 0 : index
    %c5_469 = arith.constant 5 : index
    %c0_470 = arith.constant 0 : index
    %444 = vector.load %arg18[%c0_468, %c5_469, %c0_470] : memref<8x8x80xf32, #tpu.memory_space<vmem>>, vector<8x1x80xf32>
    %445 = vector.shape_cast %444 : vector<8x1x80xf32> to vector<8x80xf32>
    %446 = arith.maximumf %443, %445 : vector<8x80xf32>
    %447 = arith.maximumf %441, %446 : vector<8x80xf32>
    %c0_471 = arith.constant 0 : index
    %c0_472 = arith.constant 0 : index
    %448 = vector.load %arg7[%c0_471, %c0_472] : memref<1x80xf32, #tpu.memory_space<vmem>>, vector<1x80xf32>
    %449 = vector.broadcast %448 : vector<1x80xf32> to vector<8x80xf32>
    %450 = arith.addf %447, %449 : vector<8x80xf32>
    %cst_473 = arith.constant 0.000000e+00 : f32
    %451 = vector.broadcast %cst_473 : f32 to vector<8x80xf32>
    %452 = arith.maximumf %450, %451 : vector<8x80xf32>
    %453 = arith.truncf %452 : vector<8x80xf32> to vector<8x80xbf16>
    %c2_474 = arith.constant 2 : index
    %c0_475 = arith.constant 0 : index
    %c0_476 = arith.constant 0 : index
    %454 = vector.load %arg8[%c2_474, %c0_475, %c0_476] : memref<4x80x50xbf16, #tpu.memory_space<vmem>>, vector<1x80x50xbf16>
    %455 = vector.shape_cast %454 : vector<1x80x50xbf16> to vector<80x50xbf16>
    %cst_477 = arith.constant dense<0.000000e+00> : vector<8x50xf32>
    %456 = tpu.matmul %453, %455, %cst_477 {dimension_numbers = #tpu.dot_dimension_numbers<[1], [0], [0], [1], [0, 0, 1, 1], [], []>} : vector<8x80xbf16>, vector<80x50xbf16>, vector<8x50xf32> -> vector<8x50xf32>
    %c0_478 = arith.constant 0 : index
    %c0_479 = arith.constant 0 : index
    %457 = vector.load %arg19[%c0_478, %c0_479] : memref<8x50xf32, #tpu.memory_space<vmem>>, vector<8x50xf32>
    %458 = arith.addf %457, %456 : vector<8x50xf32>
    %c0_480 = arith.constant 0 : index
    %c0_481 = arith.constant 0 : index
    %459 = vector.load %arg19[%c0_480, %c0_481] : memref<8x50xf32, #tpu.memory_space<vmem>>, vector<8x50xf32>
    tpu.vector_store %arg19[%c0_480, %c0_481], %458 {strides = array<i32>} : memref<8x50xf32, #tpu.memory_space<vmem>>, vector<8x50xf32>,
    %c0_482 = arith.constant 0 : index
    %c6_483 = arith.constant 6 : index
    %c0_484 = arith.constant 0 : index
    %460 = vector.load %arg17[%c0_482, %c6_483, %c0_484] : memref<8x8x80xf32, #tpu.memory_space<vmem>>, vector<8x1x80xf32>
    %461 = vector.shape_cast %460 : vector<8x1x80xf32> to vector<8x80xf32>
    %c0_485 = arith.constant 0 : index
    %c6_486 = arith.constant 6 : index
    %c0_487 = arith.constant 0 : index
    %462 = vector.load %arg18[%c0_485, %c6_486, %c0_487] : memref<8x8x80xf32, #tpu.memory_space<vmem>>, vector<8x1x80xf32>
    %463 = vector.shape_cast %462 : vector<8x1x80xf32> to vector<8x80xf32>
    %464 = arith.maximumf %461, %463 : vector<8x80xf32>
    %c0_488 = arith.constant 0 : index
    %c7_489 = arith.constant 7 : index
    %c0_490 = arith.constant 0 : index
    %465 = vector.load %arg17[%c0_488, %c7_489, %c0_490] : memref<8x8x80xf32, #tpu.memory_space<vmem>>, vector<8x1x80xf32>
    %466 = vector.shape_cast %465 : vector<8x1x80xf32> to vector<8x80xf32>
    %c0_491 = arith.constant 0 : index
    %c7_492 = arith.constant 7 : index
    %c0_493 = arith.constant 0 : index
    %467 = vector.load %arg18[%c0_491, %c7_492, %c0_493] : memref<8x8x80xf32, #tpu.memory_space<vmem>>, vector<8x1x80xf32>
    %468 = vector.shape_cast %467 : vector<8x1x80xf32> to vector<8x80xf32>
    %469 = arith.maximumf %466, %468 : vector<8x80xf32>
    %470 = arith.maximumf %464, %469 : vector<8x80xf32>
    %c0_494 = arith.constant 0 : index
    %c0_495 = arith.constant 0 : index
    %471 = vector.load %arg7[%c0_494, %c0_495] : memref<1x80xf32, #tpu.memory_space<vmem>>, vector<1x80xf32>
    %472 = vector.broadcast %471 : vector<1x80xf32> to vector<8x80xf32>
    %473 = arith.addf %470, %472 : vector<8x80xf32>
    %cst_496 = arith.constant 0.000000e+00 : f32
    %474 = vector.broadcast %cst_496 : f32 to vector<8x80xf32>
    %475 = arith.maximumf %473, %474 : vector<8x80xf32>
    %476 = arith.truncf %475 : vector<8x80xf32> to vector<8x80xbf16>
    %c3_497 = arith.constant 3 : index
    %c0_498 = arith.constant 0 : index
    %c0_499 = arith.constant 0 : index
    %477 = vector.load %arg8[%c3_497, %c0_498, %c0_499] : memref<4x80x50xbf16, #tpu.memory_space<vmem>>, vector<1x80x50xbf16>
    %478 = vector.shape_cast %477 : vector<1x80x50xbf16> to vector<80x50xbf16>
    %cst_500 = arith.constant dense<0.000000e+00> : vector<8x50xf32>
    %479 = tpu.matmul %476, %478, %cst_500 {dimension_numbers = #tpu.dot_dimension_numbers<[1], [0], [0], [1], [0, 0, 1, 1], [], []>} : vector<8x80xbf16>, vector<80x50xbf16>, vector<8x50xf32> -> vector<8x50xf32>
    %c0_501 = arith.constant 0 : index
    %c0_502 = arith.constant 0 : index
    %480 = vector.load %arg19[%c0_501, %c0_502] : memref<8x50xf32, #tpu.memory_space<vmem>>, vector<8x50xf32>
    %481 = arith.addf %480, %479 : vector<8x50xf32>
    %c0_503 = arith.constant 0 : index
    %c0_504 = arith.constant 0 : index
    %482 = vector.load %arg19[%c0_503, %c0_504] : memref<8x50xf32, #tpu.memory_space<vmem>>, vector<8x50xf32>
    tpu.vector_store %arg19[%c0_503, %c0_504], %481 {strides = array<i32>} : memref<8x50xf32, #tpu.memory_space<vmem>>, vector<8x50xf32>,
    %c0_505 = arith.constant 0 : index
    %c0_506 = arith.constant 0 : index
    %483 = vector.load %arg19[%c0_505, %c0_506] : memref<8x50xf32, #tpu.memory_space<vmem>>, vector<8x50xf32>
    %c0_507 = arith.constant 0 : index
    %c0_508 = arith.constant 0 : index
    %484 = vector.load %arg9[%c0_507, %c0_508] : memref<1x50xf32, #tpu.memory_space<vmem>>, vector<1x50xf32>
    %485 = vector.broadcast %484 : vector<1x50xf32> to vector<8x50xf32>
    %486 = arith.addf %483, %485 : vector<8x50xf32>
    %cst_509 = arith.constant 0.000000e+00 : f32
    %487 = vector.broadcast %cst_509 : f32 to vector<8x50xf32>
    %488 = arith.maximumf %486, %487 : vector<8x50xf32>
    %489 = arith.truncf %488 : vector<8x50xf32> to vector<8x50xbf16>
    %c0_510 = arith.constant 0 : index
    %c0_511 = arith.constant 0 : index
    %490 = vector.load %arg10[%c0_510, %c0_511] : memref<50x10xbf16, #tpu.memory_space<vmem>>, vector<50x10xbf16>
    %cst_512 = arith.constant dense<0.000000e+00> : vector<8x10xf32>
    %491 = tpu.matmul %489, %490, %cst_512 {dimension_numbers = #tpu.dot_dimension_numbers<[1], [0], [0], [1], [0, 0, 1, 1], [], []>} : vector<8x50xbf16>, vector<50x10xbf16>, vector<8x10xf32> -> vector<8x10xf32>
    %c0_513 = arith.constant 0 : index
    %c0_514 = arith.constant 0 : index
    %492 = vector.load %arg11[%c0_513, %c0_514] : memref<1x10xf32, #tpu.memory_space<vmem>>, vector<1x10xf32>
    %493 = vector.broadcast %492 : vector<1x10xf32> to vector<8x10xf32>
    %494 = arith.addf %491, %493 : vector<8x10xf32>
    %cst_515 = arith.constant dense<0xFF800000> : vector<8xf32>
    %495 = vector.multi_reduction <maximumf>, %494, %cst_515 [1] : vector<8x10xf32> to vector<8xf32>
    %496 = vector.shape_cast %495 : vector<8xf32> to vector<8x1xf32>
    %497 = vector.broadcast %496 : vector<8x1xf32> to vector<8x10xf32>
    %498 = arith.subf %494, %497 : vector<8x10xf32>
    %499 = math.exp %498 : vector<8x10xf32>
    %cst_516 = arith.constant dense<0.000000e+00> : vector<8xf32>
    %500 = vector.multi_reduction <add>, %499, %cst_516 [1] : vector<8x10xf32> to vector<8xf32>
    %501 = vector.shape_cast %500 : vector<8xf32> to vector<8x1xf32>
    %502 = math.log %501 : vector<8x1xf32>
    %503 = vector.broadcast %502 : vector<8x1xf32> to vector<8x10xf32>
    %504 = arith.subf %498, %503 : vector<8x10xf32>
    %c0_517 = arith.constant 0 : index
    %c0_518 = arith.constant 0 : index
    %505 = vector.load %arg12[%c0_517, %c0_518] : memref<8x10xf32, #tpu.memory_space<vmem>>, vector<8x10xf32>
    tpu.vector_store %arg12[%c0_517, %c0_518], %504 {strides = array<i32>} : memref<8x10xf32, #tpu.memory_space<vmem>>, vector<8x10xf32>,
    return
  }
  func.func @transform_0(%arg0: i32) -> (i32, i32, i32) {
    %c0_i32 = arith.constant 0 : i32
    %c0_i32_0 = arith.constant 0 : i32
    %c0_i32_1 = arith.constant 0 : i32
    return %arg0, %c0_i32, %c0_i32_0 : i32, i32, i32
  }
  func.func @transform_1(%arg0: i32) -> (i32, i32, i32) {
    %c0_i32 = arith.constant 0 : i32
    %c0_i32_0 = arith.constant 0 : i32
    %c0_i32_1 = arith.constant 0 : i32
    %c0_i32_2 = arith.constant 0 : i32
    return %c0_i32, %c0_i32_0, %c0_i32_1 : i32, i32, i32
  }
  func.func @transform_2(%arg0: i32) -> (i32, i32, i32) {
    %c0_i32 = arith.constant 0 : i32
    %c0_i32_0 = arith.constant 0 : i32
    %c0_i32_1 = arith.constant 0 : i32
    %c0_i32_2 = arith.constant 0 : i32
    return %c0_i32, %c0_i32_0, %c0_i32_1 : i32, i32, i32
  }
  func.func @transform_3(%arg0: i32) -> (i32, i32) {
    %c0_i32 = arith.constant 0 : i32
    %c0_i32_0 = arith.constant 0 : i32
    %c0_i32_1 = arith.constant 0 : i32
    return %c0_i32, %c0_i32_0 : i32, i32
  }
  func.func @transform_4(%arg0: i32) -> (i32, i32, i32) {
    %c0_i32 = arith.constant 0 : i32
    %c0_i32_0 = arith.constant 0 : i32
    %c0_i32_1 = arith.constant 0 : i32
    %c0_i32_2 = arith.constant 0 : i32
    return %c0_i32, %c0_i32_0, %c0_i32_1 : i32, i32, i32
  }
  func.func @transform_5(%arg0: i32) -> (i32, i32, i32) {
    %c0_i32 = arith.constant 0 : i32
    %c0_i32_0 = arith.constant 0 : i32
    %c0_i32_1 = arith.constant 0 : i32
    %c0_i32_2 = arith.constant 0 : i32
    return %c0_i32, %c0_i32_0, %c0_i32_1 : i32, i32, i32
  }
  func.func @transform_6(%arg0: i32) -> (i32, i32) {
    %c0_i32 = arith.constant 0 : i32
    %c0_i32_0 = arith.constant 0 : i32
    %c0_i32_1 = arith.constant 0 : i32
    return %c0_i32, %c0_i32_0 : i32, i32
  }
  func.func @transform_7(%arg0: i32) -> (i32, i32, i32) {
    %c0_i32 = arith.constant 0 : i32
    %c0_i32_0 = arith.constant 0 : i32
    %c0_i32_1 = arith.constant 0 : i32
    %c0_i32_2 = arith.constant 0 : i32
    return %c0_i32, %c0_i32_0, %c0_i32_1 : i32, i32, i32
  }
  func.func @transform_8(%arg0: i32) -> (i32, i32) {
    %c0_i32 = arith.constant 0 : i32
    %c0_i32_0 = arith.constant 0 : i32
    %c0_i32_1 = arith.constant 0 : i32
    return %c0_i32, %c0_i32_0 : i32, i32
  }
  func.func @transform_9(%arg0: i32) -> (i32, i32) {
    %c0_i32 = arith.constant 0 : i32
    %c0_i32_0 = arith.constant 0 : i32
    %c0_i32_1 = arith.constant 0 : i32
    return %c0_i32, %c0_i32_0 : i32, i32
  }
  func.func @transform_10(%arg0: i32) -> (i32, i32) {
    %c0_i32 = arith.constant 0 : i32
    %c0_i32_0 = arith.constant 0 : i32
    %c0_i32_1 = arith.constant 0 : i32
    return %c0_i32, %c0_i32_0 : i32, i32
  }
  func.func @transform_11(%arg0: i32) -> (i32, i32) {
    %c0_i32 = arith.constant 0 : i32
    %c0_i32_0 = arith.constant 0 : i32
    return %arg0, %c0_i32 : i32, i32
  }
}

</mosaic_0001>

<llo_original>
// kernel: net_forward_packed.1
$region0: #{net_forward_packed.1}
  #allocation0 [shape = 'u32[]', space=smem, size = 0x4, offset = 0x4, fixed_abs, tag = 'smem constant byte address 0x4 - core index']
  #allocation1 [shape = 'u32[144,128]{1,0:T(1,128)}', space=vmem, size = 0x12000, scoped, tag = 'internal scratch']
  #allocation2 [shape = 'f32[8,28,28]{2,1,0:T(8,128)}', space=vmem, size = 0x20000, scoped, tag = 'scratch operand']
  #allocation3 [shape = 'f32[8,24,120]{2,1,0:T(8,128)}', space=vmem, size = 0x18000, scoped, tag = 'scratch operand']
  #allocation4 [shape = 'f32[8,24,120]{2,1,0:T(8,128)}', space=vmem, size = 0x18000, scoped, tag = 'scratch operand']
  #allocation5 [shape = 'f32[8,12,120]{2,1,0:T(8,128)}', space=vmem, size = 0x10000, scoped, tag = 'scratch operand']
  #allocation6 [shape = 'f32[8,8,80]{2,1,0:T(8,128)}', space=vmem, size = 0x8000, scoped, tag = 'scratch operand']
  #allocation7 [shape = 'f32[8,8,80]{2,1,0:T(8,128)}', space=vmem, size = 0x8000, scoped, tag = 'scratch operand']
  #allocation8 [shape = 'f32[8,50]{1,0:T(8,128)}', space=vmem, size = 0x1000, scoped, tag = 'scratch operand']
  %s0 = inlined_call_operand.vmem [shape: bf16[8,28,28], index: 0, kind: input, shape index: {}]
  %s1 = inlined_call_operand.vmem [shape: bf16[5,28,120], index: 1, kind: input, shape index: {}]
  %s2 = inlined_call_operand.vmem [shape: bf16[5,28,120], index: 2, kind: input, shape index: {}]
  %s3 = inlined_call_operand.vmem [shape: f32[1,120], index: 3, kind: input, shape index: {}]
  %s4 = inlined_call_operand.vmem [shape: bf16[5,120,80], index: 4, kind: input, shape index: {}]
  %s5 = inlined_call_operand.vmem [shape: bf16[5,120,80], index: 5, kind: input, shape index: {}]
  %s6 = inlined_call_operand.vmem [shape: f32[1,80], index: 6, kind: input, shape index: {}]
  %s7 = inlined_call_operand.vmem [shape: bf16[4,80,50], index: 7, kind: input, shape index: {}]
  %s8 = inlined_call_operand.vmem [shape: f32[1,50], index: 8, kind: input, shape index: {}]
  %s9 = inlined_call_operand.vmem [shape: bf16[50,10], index: 9, kind: input, shape index: {}]
  %s10 = inlined_call_operand.vmem [shape: f32[1,10], index: 10, kind: input, shape index: {}]
  %s11 = inlined_call_operand.vmem [shape: f32[8,10], index: 11, kind: output, shape index: {}]
  %s12 = sld [smem:[#allocation0]]
  $region54: #{net_forward_packed.1} parent=0
    _
  %s14 = ssub.s32 1, %s12
  %s15 = scalar_select 0, %s14, %s12
  // Predicated region
  $region2: #{net_forward_packed.1} parent=0 // pred_check
    _
  $region3: #{net_forward_packed.1} parent=0 // pred_check_branch
    %17 = sbr.rel (0) target = $region5
  $region4: #{net_forward_packed.1} parent=0 // pred_region
    _
  $region5: #{net_forward_packed.1} parent=0 // pred_fallthru
    _
  // Predicated region
  $region6: #{net_forward_packed.1} parent=0 // pred_check
    _
  $region7: #{net_forward_packed.1} parent=0 // pred_check_branch
    %19 = sbr.rel (0) target = $region9
  $region8: #{net_forward_packed.1} parent=0 // pred_region
    _
  $region9: #{net_forward_packed.1} parent=0 // pred_fallthru
    _
  // Predicated region
  $region10: #{net_forward_packed.1} parent=0 // pred_check
    _
  $region11: #{net_forward_packed.1} parent=0 // pred_check_branch
    %21 = sbr.rel (0) target = $region13
  $region12: #{net_forward_packed.1} parent=0 // pred_region
    _
  $region13: #{net_forward_packed.1} parent=0 // pred_fallthru
    _
  // Predicated region
  $region14: #{net_forward_packed.1} parent=0 // pred_check
    _
  $region15: #{net_forward_packed.1} parent=0 // pred_check_branch
    %23 = sbr.rel (0) target = $region17
  $region16: #{net_forward_packed.1} parent=0 // pred_region
    _
  $region17: #{net_forward_packed.1} parent=0 // pred_fallthru
    _
  // Predicated region
  $region18: #{net_forward_packed.1} parent=0 // pred_check
    _
  $region19: #{net_forward_packed.1} parent=0 // pred_check_branch
    %25 = sbr.rel (0) target = $region21
  $region20: #{net_forward_packed.1} parent=0 // pred_region
    _
  $region21: #{net_forward_packed.1} parent=0 // pred_fallthru
    _
  // Predicated region
  $region22: #{net_forward_packed.1} parent=0 // pred_check
    _
  $region23: #{net_forward_packed.1} parent=0 // pred_check_branch
    %27 = sbr.rel (0) target = $region25
  $region24: #{net_forward_packed.1} parent=0 // pred_region
    _
  $region25: #{net_forward_packed.1} parent=0 // pred_fallthru
    _
  // Predicated region
  $region26: #{net_forward_packed.1} parent=0 // pred_check
    _
  $region27: #{net_forward_packed.1} parent=0 // pred_check_branch
    %29 = sbr.rel (0) target = $region29
  $region28: #{net_forward_packed.1} parent=0 // pred_region
    _
  $region29: #{net_forward_packed.1} parent=0 // pred_fallthru
    _
  // Predicated region
  $region30: #{net_forward_packed.1} parent=0 // pred_check
    _
  $region31: #{net_forward_packed.1} parent=0 // pred_check_branch
    %31 = sbr.rel (0) target = $region33
  $region32: #{net_forward_packed.1} parent=0 // pred_region
    _
  $region33: #{net_forward_packed.1} parent=0 // pred_fallthru
    _
  // Predicated region
  $region34: #{net_forward_packed.1} parent=0 // pred_check
    _
  $region35: #{net_forward_packed.1} parent=0 // pred_check_branch
    %33 = sbr.rel (0) target = $region37
  $region36: #{net_forward_packed.1} parent=0 // pred_region
    _
  $region37: #{net_forward_packed.1} parent=0 // pred_fallthru
    _
  // Predicated region
  $region38: #{net_forward_packed.1} parent=0 // pred_check
    _
  $region39: #{net_forward_packed.1} parent=0 // pred_check_branch
    %35 = sbr.rel (0) target = $region41
  $region40: #{net_forward_packed.1} parent=0 // pred_region
    _
  $region41: #{net_forward_packed.1} parent=0 // pred_fallthru
    _
  // Predicated region
  $region42: #{net_forward_packed.1} parent=0 // pred_check
    _
  $region43: #{net_forward_packed.1} parent=0 // pred_check_branch
    %37 = sbr.rel (0) target = $region45
  $region44: #{net_forward_packed.1} parent=0 // pred_region
    _
  $region45: #{net_forward_packed.1} parent=0 // pred_fallthru
    _
  %v39 = vld [vmem:[%s0] sm:$0xf]
  %v40 = vld [vmem:[%s0 + $0x4] sm:$0xf]
  %v41 = vld [vmem:[%s0 + $0x8] sm:$0xf]
  %v42 = vld [vmem:[%s0 + $0xc] sm:$0x3]
  %v43 = vld [vmem:[%s0 + $0x10] sm:$0xf]
  %v44 = vld [vmem:[%s0 + $0x14] sm:$0xf]
  %v45 = vld [vmem:[%s0 + $0x18] sm:$0xf]
  %v46 = vld [vmem:[%s0 + $0x1c] sm:$0x3]
  %v47 = vld [vmem:[%s0 + $0x20] sm:$0xf]
  %v48 = vld [vmem:[%s0 + $0x24] sm:$0xf]
  %v49 = vld [vmem:[%s0 + $0x28] sm:$0xf]
  %v50 = vld [vmem:[%s0 + $0x2c] sm:$0x3]
  %v51 = vld [vmem:[%s0 + $0x30] sm:$0xf]
  %v52 = vld [vmem:[%s0 + $0x34] sm:$0xf]
  %v53 = vld [vmem:[%s0 + $0x38] sm:$0xf]
  %v54 = vld [vmem:[%s0 + $0x3c] sm:$0x3]
  %v55 = vld [vmem:[%s0 + $0x40] sm:$0xf]
  %v56 = vld [vmem:[%s0 + $0x44] sm:$0xf]
  %v57 = vld [vmem:[%s0 + $0x48] sm:$0xf]
  %v58 = vld [vmem:[%s0 + $0x4c] sm:$0x3]
  %v59 = vld [vmem:[%s0 + $0x50] sm:$0xf]
  %v60 = vld [vmem:[%s0 + $0x54] sm:$0xf]
  %v61 = vld [vmem:[%s0 + $0x58] sm:$0xf]
  %v62 = vld [vmem:[%s0 + $0x5c] sm:$0x3]
  %v63 = vld [vmem:[%s0 + $0x60] sm:$0xf]
  %v64 = vld [vmem:[%s0 + $0x64] sm:$0xf]
  %v65 = vld [vmem:[%s0 + $0x68] sm:$0xf]
  %v66 = vld [vmem:[%s0 + $0x6c] sm:$0x3]
  %v67 = vld [vmem:[%s0 + $0x70] sm:$0xf]
  %v68 = vld [vmem:[%s0 + $0x74] sm:$0xf]
  %v69 = vld [vmem:[%s0 + $0x78] sm:$0xf]
  %v70 = vld [vmem:[%s0 + $0x7c] sm:$0x3]
  %v71 = vunpack.c.l.bf16 %v39
  %v72 = vunpack.c.l.bf16 %v40
  %v73 = vunpack.c.l.bf16 %v41
  %v74 = vunpack.c.l.bf16 %v42
  %v75 = vunpack.c.l.bf16 %v43
  %v76 = vunpack.c.l.bf16 %v44
  %v77 = vunpack.c.l.bf16 %v45
  %v78 = vunpack.c.l.bf16 %v46
  %v79 = vunpack.c.l.bf16 %v47
  %v80 = vunpack.c.l.bf16 %v48
  %v81 = vunpack.c.l.bf16 %v49
  %v82 = vunpack.c.l.bf16 %v50
  %v83 = vunpack.c.l.bf16 %v51
  %v84 = vunpack.c.l.bf16 %v52
  %v85 = vunpack.c.l.bf16 %v53
  %v86 = vunpack.c.l.bf16 %v54
  %v87 = vunpack.c.l.bf16 %v55
  %v88 = vunpack.c.l.bf16 %v56
  %v89 = vunpack.c.l.bf16 %v57
  %v90 = vunpack.c.l.bf16 %v58
  %v91 = vunpack.c.l.bf16 %v59
  %v92 = vunpack.c.l.bf16 %v60
  %v93 = vunpack.c.l.bf16 %v61
  %v94 = vunpack.c.l.bf16 %v62
  %v95 = vunpack.c.l.bf16 %v63
  %v96 = vunpack.c.l.bf16 %v64
  %v97 = vunpack.c.l.bf16 %v65
  %v98 = vunpack.c.l.bf16 %v66
  %v99 = vunpack.c.l.bf16 %v67
  %v100 = vunpack.c.l.bf16 %v68
  %v101 = vunpack.c.l.bf16 %v69
  %v102 = vunpack.c.l.bf16 %v70
  %vm103 = vcmask 228352
  %104 = vst.msk [vmem:[#allocation2] sm:$0xff] %vm103, %v71
  %105 = vst.msk [vmem:[#allocation2 + $0x8] sm:$0xff] %vm103, %v72
  %106 = vst.msk [vmem:[#allocation2 + $0x10] sm:$0xff] %vm103, %v73
  %vm107 = vcmask 224256
  %108 = vst.msk [vmem:[#allocation2 + $0x18] sm:$0xf] %vm107, %v74
  %109 = vst.msk [vmem:[#allocation2 + $0x20] sm:$0xff] %vm103, %v75
  %110 = vst.msk [vmem:[#allocation2 + $0x28] sm:$0xff] %vm103, %v76
  %111 = vst.msk [vmem:[#allocation2 + $0x30] sm:$0xff] %vm103, %v77
  %112 = vst.msk [vmem:[#allocation2 + $0x38] sm:$0xf] %vm107, %v78
  %113 = vst.msk [vmem:[#allocation2 + $0x40] sm:$0xff] %vm103, %v79
  %114 = vst.msk [vmem:[#allocation2 + $0x48] sm:$0xff] %vm103, %v80
  %115 = vst.msk [vmem:[#allocation2 + $0x50] sm:$0xff] %vm103, %v81
  %116 = vst.msk [vmem:[#allocation2 + $0x58] sm:$0xf] %vm107, %v82
  %117 = vst.msk [vmem:[#allocation2 + $0x60] sm:$0xff] %vm103, %v83
  %118 = vst.msk [vmem:[#allocation2 + $0x68] sm:$0xff] %vm103, %v84
  %119 = vst.msk [vmem:[#allocation2 + $0x70] sm:$0xff] %vm103, %v85
  %120 = vst.msk [vmem:[#allocation2 + $0x78] sm:$0xf] %vm107, %v86
  %121 = vst.msk [vmem:[#allocation2 + $0x80] sm:$0xff] %vm103, %v87
  %122 = vst.msk [vmem:[#allocation2 + $0x88] sm:$0xff] %vm103, %v88
  %123 = vst.msk [vmem:[#allocation2 + $0x90] sm:$0xff] %vm103, %v89
  %124 = vst.msk [vmem:[#allocation2 + $0x98] sm:$0xf] %vm107, %v90
  %125 = vst.msk [vmem:[#allocation2 + $0xa0] sm:$0xff] %vm103, %v91
  %126 = vst.msk [vmem:[#allocation2 + $0xa8] sm:$0xff] %vm103, %v92
  %127 = vst.msk [vmem:[#allocation2 + $0xb0] sm:$0xff] %vm103, %v93
  %128 = vst.msk [vmem:[#allocation2 + $0xb8] sm:$0xf] %vm107, %v94
  %129 = vst.msk [vmem:[#allocation2 + $0xc0] sm:$0xff] %vm103, %v95
  %130 = vst.msk [vmem:[#allocation2 + $0xc8] sm:$0xff] %vm103, %v96
  %131 = vst.msk [vmem:[#allocation2 + $0xd0] sm:$0xff] %vm103, %v97
  %132 = vst.msk [vmem:[#allocation2 + $0xd8] sm:$0xf] %vm107, %v98
  %133 = vst.msk [vmem:[#allocation2 + $0xe0] sm:$0xff] %vm103, %v99
  %134 = vst.msk [vmem:[#allocation2 + $0xe8] sm:$0xff] %vm103, %v100
  %135 = vst.msk [vmem:[#allocation2 + $0xf0] sm:$0xff] %vm103, %v101
  %136 = vst.msk [vmem:[#allocation2 + $0xf8] sm:$0xf] %vm107, %v102
  %v137 = vld [vmem:[#allocation2] sm:$0xff]
  %v138 = vld [vmem:[#allocation2 + $0x8] sm:$0xff]
  %v139 = vld [vmem:[#allocation2 + $0x10] sm:$0xff]
  %v140 = vld [vmem:[#allocation2 + $0x20] sm:$0xff]
  %v141 = vld [vmem:[#allocation2 + $0x28] sm:$0xff]
  %v142 = vld [vmem:[#allocation2 + $0x30] sm:$0xff]
  %v143 = vld [vmem:[#allocation2 + $0x40] sm:$0xff]
  %v144 = vld [vmem:[#allocation2 + $0x48] sm:$0xff]
  %v145 = vld [vmem:[#allocation2 + $0x50] sm:$0xff]
  %v146 = vld [vmem:[#allocation2 + $0x60] sm:$0xff]
  %v147 = vld [vmem:[#allocation2 + $0x68] sm:$0xff]
  %v148 = vld [vmem:[#allocation2 + $0x70] sm:$0xff]
  %v149 = vld [vmem:[#allocation2 + $0x80] sm:$0xff]
  %v150 = vld [vmem:[#allocation2 + $0x88] sm:$0xff]
  %v151 = vld [vmem:[#allocation2 + $0x90] sm:$0xff]
  %v152 = vld [vmem:[#allocation2 + $0xa0] sm:$0xff]
  %v153 = vld [vmem:[#allocation2 + $0xa8] sm:$0xff]
  %v154 = vld [vmem:[#allocation2 + $0xb0] sm:$0xff]
  %v155 = vld [vmem:[#allocation2 + $0xc0] sm:$0xff]
  %v156 = vld [vmem:[#allocation2 + $0xc8] sm:$0xff]
  %v157 = vld [vmem:[#allocation2 + $0xd0] sm:$0xff]
  %v158 = vld [vmem:[#allocation2 + $0xe0] sm:$0xff]
  %v159 = vld [vmem:[#allocation2 + $0xe8] sm:$0xff]
  %v160 = vld [vmem:[#allocation2 + $0xf0] sm:$0xff]
  %v161 = vpack.c.bf16 %v138, %v137
  %v162 = vpack.c.bf16 %v140, %v139
  %v163 = vpack.c.bf16 %v142, %v141
  %v164 = vpack.c.bf16 %v144, %v143
  %v165 = vpack.c.bf16 %v146, %v145
  %v166 = vpack.c.bf16 %v148, %v147
  %v167 = vpack.c.bf16 %v150, %v149
  %v168 = vpack.c.bf16 %v152, %v151
  %v169 = vpack.c.bf16 %v154, %v153
  %v170 = vpack.c.bf16 %v156, %v155
  %v171 = vpack.c.bf16 %v158, %v157
  %v172 = vpack.c.bf16 %v160, %v159
  %v173 = vld [vmem:[%s1] sm:$0xf]
  %v174 = vld [vmem:[%s1 + $0x4] sm:$0xf]
  %v175 = vld [vmem:[%s1 + $0x8] sm:$0xf]
  %v176 = vld [vmem:[%s1 + $0xc] sm:$0x3]
  %v181 = vunpack.c.l.b16 %v173
  %v182 = vunpack.c.l.b16 %v174
  %v183 = vunpack.c.l.b16 %v175
  %v184 = vunpack.c.l.b16 %v176
  %v185 = vpack.c.b16 %v182, %v181
  %v186 = vpack.c.b16 %v184, %v183
  %v189 = vsel %vm103, %v161, 0
  %v192 = vsel %vm103, %v162, 0
  %v195 = vsel %vm103, %v163, 0
  %v198 = vsel %vm103, %v164, 0
  %v201 = vsel %vm103, %v165, 0
  %v204 = vsel %vm103, %v166, 0
  %v207 = vsel %vm103, %v167, 0
  %v210 = vsel %vm103, %v168, 0
  %v213 = vsel %vm103, %v169, 0
  %v216 = vsel %vm103, %v170, 0
  %v219 = vsel %vm103, %v171, 0
  %v222 = vsel %vm103, %v172, 0
  %vm224 = vcmask 1045504
  %v226 = vsel %vm224, %v186, 0
  %228 = vmatprep.subr.bf16.mxu0 0
  %229 = vmatpush1.bf16.msra.mxu0 %v185
  %230 = vmatprep.subr.bf16.mxu0 0
  %231 = vmatpush1.bf16.msra.mxu0 %v226
  %232 = vmatprep.subr.bf16.mxu0 0
  %233 = vmatpush1.bf16.msra.mxu0 0
  %234 = vmatprep.subr.bf16.mxu0 0
  %235 = vmatpush1.bf16.msra.mxu0 0
  %236 = vmatprep.subr.bf16.mxu0 0
  %237 = vmatpush1.bf16.msra.mxu0 0
  %238 = vmatprep.subr.bf16.mxu0 0
  %239 = vmatpush1.bf16.msra.mxu0 0
  %240 = vmatprep.subr.bf16.mxu0 0
  %241 = vmatpush1.bf16.msra.mxu0 0
  %242 = vmatprep.subr.bf16.mxu0 0
  %243 = vmatpush1.bf16.msra.mxu0 0
  %244 = vmatprep.subr.bf16.mxu0 0
  %245 = vmatpush1.bf16.msra.mxu0 0
  %246 = vmatprep.subr.bf16.mxu0 0
  %247 = vmatpush1.bf16.msra.mxu0 0
  %248 = vmatprep.subr.bf16.mxu0 0
  %249 = vmatpush1.bf16.msra.mxu0 0
  %250 = vmatprep.subr.bf16.mxu0 0
  %251 = vmatpush1.bf16.msra.mxu0 0
  %252 = vmatprep.subr.bf16.mxu0 0
  %253 = vmatpush1.bf16.msra.mxu0 0
  %254 = vmatprep.subr.bf16.mxu0 0
  %255 = vmatpush1.bf16.msra.mxu0 0
  %256 = vmatprep.subr.bf16.mxu0 0
  %257 = vmatpush1.bf16.msra.mxu0 0
  %258 = vmatprep.subr.bf16.mxu0 0
  %259 = vmatpush1.bf16.msra.mxu0 0
  %260 = vmatprep.mubr.bf16.mxu0 0
  %261 = vmatmul.mubr.bf16.gmra.mrb[0].mxu0 %v189
  %v262 = vpop.f32.mrb[0].mxu0
  %v263 = vadd.f32 0.0, %v262
  %v264 = vpop.f32.mrb[0].mxu0
  %v265 = vpop.f32.mrb[0].mxu0
  %v266 = vadd.f32 0.0, %v265
  %v267 = vpop.f32.mrb[0].mxu0
  %268 = vmatprep.mubr.bf16.mxu0 0
  %269 = vmatmul.mubr.bf16.gmra.mrb[0].mxu0 %v192
  %v270 = vpop.f32.mrb[0].mxu0
  %v271 = vadd.f32 0.0, %v270
  %v272 = vpop.f32.mrb[0].mxu0
  %v273 = vpop.f32.mrb[0].mxu0
  %v274 = vadd.f32 0.0, %v273
  %v275 = vpop.f32.mrb[0].mxu0
  %276 = vmatprep.mubr.bf16.mxu0 0
  %277 = vmatmul.mubr.bf16.gmra.mrb[0].mxu0 %v195
  %v278 = vpop.f32.mrb[0].mxu0
  %v279 = vadd.f32 0.0, %v278
  %v280 = vpop.f32.mrb[0].mxu0
  %v281 = vpop.f32.mrb[0].mxu0
  %v282 = vadd.f32 0.0, %v281
  %v283 = vpop.f32.mrb[0].mxu0
  %284 = vmatprep.mubr.bf16.mxu0 0
  %285 = vmatmul.mubr.bf16.gmra.mrb[0].mxu0 %v198
  %v286 = vpop.f32.mrb[0].mxu0
  %v287 = vadd.f32 0.0, %v286
  %v288 = vpop.f32.mrb[0].mxu0
  %v289 = vpop.f32.mrb[0].mxu0
  %v290 = vadd.f32 0.0, %v289
  %v291 = vpop.f32.mrb[0].mxu0
  %292 = vmatprep.mubr.bf16.mxu0 0
  %293 = vmatmul.mubr.bf16.gmra.mrb[0].mxu0 %v201
  %v294 = vpop.f32.mrb[0].mxu0
  %v295 = vadd.f32 0.0, %v294
  %v296 = vpop.f32.mrb[0].mxu0
  %v297 = vpop.f32.mrb[0].mxu0
  %v298 = vadd.f32 0.0, %v297
  %v299 = vpop.f32.mrb[0].mxu0
  %300 = vmatprep.mubr.bf16.mxu0 0
  %301 = vmatmul.mubr.bf16.gmra.mrb[0].mxu0 %v204
  %v302 = vpop.f32.mrb[0].mxu0
  %v303 = vadd.f32 0.0, %v302
  %v304 = vpop.f32.mrb[0].mxu0
  %v305 = vpop.f32.mrb[0].mxu0
  %v306 = vadd.f32 0.0, %v305
  %v307 = vpop.f32.mrb[0].mxu0
  %308 = vmatprep.mubr.bf16.mxu0 0
  %309 = vmatmul.mubr.bf16.gmra.mrb[0].mxu0 %v207
  %v310 = vpop.f32.mrb[0].mxu0
  %v311 = vadd.f32 0.0, %v310
  %v312 = vpop.f32.mrb[0].mxu0
  %v313 = vpop.f32.mrb[0].mxu0
  %v314 = vadd.f32 0.0, %v313
  %v315 = vpop.f32.mrb[0].mxu0
  %316 = vmatprep.mubr.bf16.mxu0 0
  %317 = vmatmul.mubr.bf16.gmra.mrb[0].mxu0 %v210
  %v318 = vpop.f32.mrb[0].mxu0
  %v319 = vadd.f32 0.0, %v318
  %v320 = vpop.f32.mrb[0].mxu0
  %v321 = vpop.f32.mrb[0].mxu0
  %v322 = vadd.f32 0.0, %v321
  %v323 = vpop.f32.mrb[0].mxu0
  %324 = vmatprep.mubr.bf16.mxu0 0
  %325 = vmatmul.mubr.bf16.gmra.mrb[0].mxu0 %v213
  %v326 = vpop.f32.mrb[0].mxu0
  %v327 = vadd.f32 0.0, %v326
  %v328 = vpop.f32.mrb[0].mxu0
  %v329 = vpop.f32.mrb[0].mxu0
  %v330 = vadd.f32 0.0, %v329
  %v331 = vpop.f32.mrb[0].mxu0
  %332 = vmatprep.mubr.bf16.mxu0 0
  %333 = vmatmul.mubr.bf16.gmra.mrb[0].mxu0 %v216
  %v334 = vpop.f32.mrb[0].mxu0
  %v335 = vadd.f32 0.0, %v334
  %v336 = vpop.f32.mrb[0].mxu0
  %v337 = vpop.f32.mrb[0].mxu0
  %v338 = vadd.f32 0.0, %v337
  %v339 = vpop.f32.mrb[0].mxu0
  %340 = vmatprep.mubr.bf16.mxu0 0
  %341 = vmatmul.mubr.bf16.gmra.mrb[0].mxu0 %v219
  %v342 = vpop.f32.mrb[0].mxu0
  %v343 = vadd.f32 0.0, %v342
  %v344 = vpop.f32.mrb[0].mxu0
  %v345 = vpop.f32.mrb[0].mxu0
  %v346 = vadd.f32 0.0, %v345
  %v347 = vpop.f32.mrb[0].mxu0
  %348 = vmatprep.mubr.bf16.mxu0 0
  %349 = vmatmul.mubr.bf16.gmra.mrb[0].mxu0 %v222
  %v350 = vpop.f32.mrb[0].mxu0
  %v351 = vadd.f32 0.0, %v350
  %v352 = vpop.f32.mrb[0].mxu0
  %v353 = vpop.f32.mrb[0].mxu0
  %v354 = vadd.f32 0.0, %v353
  %v355 = vpop.f32.mrb[0].mxu0
  %356 = vdwg.mxu0
  %v357 = vld [vmem:[%s2] sm:$0xf]
  %v358 = vld [vmem:[%s2 + $0x4] sm:$0xf]
  %v359 = vld [vmem:[%s2 + $0x8] sm:$0xf]
  %v360 = vld [vmem:[%s2 + $0xc] sm:$0x3]
  %v365 = vunpack.c.l.b16 %v357
  %v366 = vunpack.c.l.b16 %v358
  %v367 = vunpack.c.l.b16 %v359
  %v368 = vunpack.c.l.b16 %v360
  %v369 = vpack.c.b16 %v366, %v365
  %v370 = vpack.c.b16 %v368, %v367
  %v373 = vsel %vm224, %v370, 0
  %375 = vmatprep.subr.bf16.mxu0 0
  %376 = vmatpush1.bf16.msra.mxu0 %v369
  %377 = vmatprep.subr.bf16.mxu0 0
  %378 = vmatpush1.bf16.msra.mxu0 %v373
  %379 = vmatprep.subr.bf16.mxu0 0
  %380 = vmatpush1.bf16.msra.mxu0 0
  %381 = vmatprep.subr.bf16.mxu0 0
  %382 = vmatpush1.bf16.msra.mxu0 0
  %383 = vmatprep.subr.bf16.mxu0 0
  %384 = vmatpush1.bf16.msra.mxu0 0
  %385 = vmatprep.subr.bf16.mxu0 0
  %386 = vmatpush1.bf16.msra.mxu0 0
  %387 = vmatprep.subr.bf16.mxu0 0
  %388 = vmatpush1.bf16.msra.mxu0 0
  %389 = vmatprep.subr.bf16.mxu0 0
  %390 = vmatpush1.bf16.msra.mxu0 0
  %391 = vmatprep.subr.bf16.mxu0 0
  %392 = vmatpush1.bf16.msra.mxu0 0
  %393 = vmatprep.subr.bf16.mxu0 0
  %394 = vmatpush1.bf16.msra.mxu0 0
  %395 = vmatprep.subr.bf16.mxu0 0
  %396 = vmatpush1.bf16.msra.mxu0 0
  %397 = vmatprep.subr.bf16.mxu0 0
  %398 = vmatpush1.bf16.msra.mxu0 0
  %399 = vmatprep.subr.bf16.mxu0 0
  %400 = vmatpush1.bf16.msra.mxu0 0
  %401 = vmatprep.subr.bf16.mxu0 0
  %402 = vmatpush1.bf16.msra.mxu0 0
  %403 = vmatprep.subr.bf16.mxu0 0
  %404 = vmatpush1.bf16.msra.mxu0 0
  %405 = vmatprep.subr.bf16.mxu0 0
  %406 = vmatpush1.bf16.msra.mxu0 0
  %407 = vmatprep.mubr.bf16.mxu0 0
  %408 = vmatmul.mubr.bf16.gmra.mrb[0].mxu0 %v189
  %v409 = vpop.f32.mrb[0].mxu0
  %v410 = vadd.f32 0.0, %v409
  %v411 = vpop.f32.mrb[0].mxu0
  %v412 = vpop.f32.mrb[0].mxu0
  %v413 = vadd.f32 0.0, %v412
  %v414 = vpop.f32.mrb[0].mxu0
  %415 = vmatprep.mubr.bf16.mxu0 0
  %416 = vmatmul.mubr.bf16.gmra.mrb[0].mxu0 %v192
  %v417 = vpop.f32.mrb[0].mxu0
  %v418 = vadd.f32 0.0, %v417
  %v419 = vpop.f32.mrb[0].mxu0
  %v420 = vpop.f32.mrb[0].mxu0
  %v421 = vadd.f32 0.0, %v420
  %v422 = vpop.f32.mrb[0].mxu0
  %423 = vmatprep.mubr.bf16.mxu0 0
  %424 = vmatmul.mubr.bf16.gmra.mrb[0].mxu0 %v195
  %v425 = vpop.f32.mrb[0].mxu0
  %v426 = vadd.f32 0.0, %v425
  %v427 = vpop.f32.mrb[0].mxu0
  %v428 = vpop.f32.mrb[0].mxu0
  %v429 = vadd.f32 0.0, %v428
  %v430 = vpop.f32.mrb[0].mxu0
  %431 = vmatprep.mubr.bf16.mxu0 0
  %432 = vmatmul.mubr.bf16.gmra.mrb[0].mxu0 %v198
  %v433 = vpop.f32.mrb[0].mxu0
  %v434 = vadd.f32 0.0, %v433
  %v435 = vpop.f32.mrb[0].mxu0
  %v436 = vpop.f32.mrb[0].mxu0
  %v437 = vadd.f32 0.0, %v436
  %v438 = vpop.f32.mrb[0].mxu0
  %439 = vmatprep.mubr.bf16.mxu0 0
  %440 = vmatmul.mubr.bf16.gmra.mrb[0].mxu0 %v201
  %v441 = vpop.f32.mrb[0].mxu0
  %v442 = vadd.f32 0.0, %v441
  %v443 = vpop.f32.mrb[0].mxu0
  %v444 = vpop.f32.mrb[0].mxu0
  %v445 = vadd.f32 0.0, %v444
  %v446 = vpop.f32.mrb[0].mxu0
  %447 = vmatprep.mubr.bf16.mxu0 0
  %448 = vmatmul.mubr.bf16.gmra.mrb[0].mxu0 %v204
  %v449 = vpop.f32.mrb[0].mxu0
  %v450 = vadd.f32 0.0, %v449
  %v451 = vpop.f32.mrb[0].mxu0
  %v452 = vpop.f32.mrb[0].mxu0
  %v453 = vadd.f32 0.0, %v452
  %v454 = vpop.f32.mrb[0].mxu0
  %455 = vmatprep.mubr.bf16.mxu0 0
  %456 = vmatmul.mubr.bf16.gmra.mrb[0].mxu0 %v207
  %v457 = vpop.f32.mrb[0].mxu0
  %v458 = vadd.f32 0.0, %v457
  %v459 = vpop.f32.mrb[0].mxu0
  %v460 = vpop.f32.mrb[0].mxu0
  %v461 = vadd.f32 0.0, %v460
  %v462 = vpop.f32.mrb[0].mxu0
  %463 = vmatprep.mubr.bf16.mxu0 0
  %464 = vmatmul.mubr.bf16.gmra.mrb[0].mxu0 %v210
  %v465 = vpop.f32.mrb[0].mxu0
  %v466 = vadd.f32 0.0, %v465
  %v467 = vpop.f32.mrb[0].mxu0
  %v468 = vpop.f32.mrb[0].mxu0
  %v469 = vadd.f32 0.0, %v468
  %v470 = vpop.f32.mrb[0].mxu0
  %471 = vmatprep.mubr.bf16.mxu0 0
  %472 = vmatmul.mubr.bf16.gmra.mrb[0].mxu0 %v213
  %v473 = vpop.f32.mrb[0].mxu0
  %v474 = vadd.f32 0.0, %v473
  %v475 = vpop.f32.mrb[0].mxu0
  %v476 = vpop.f32.mrb[0].mxu0
  %v477 = vadd.f32 0.0, %v476
  %v478 = vpop.f32.mrb[0].mxu0
  %479 = vmatprep.mubr.bf16.mxu0 0
  %480 = vmatmul.mubr.bf16.gmra.mrb[0].mxu0 %v216
  %v481 = vpop.f32.mrb[0].mxu0
  %v482 = vadd.f32 0.0, %v481
  %v483 = vpop.f32.mrb[0].mxu0
  %v484 = vpop.f32.mrb[0].mxu0
  %v485 = vadd.f32 0.0, %v484
  %v486 = vpop.f32.mrb[0].mxu0
  %487 = vmatprep.mubr.bf16.mxu0 0
  %488 = vmatmul.mubr.bf16.gmra.mrb[0].mxu0 %v219
  %v489 = vpop.f32.mrb[0].mxu0
  %v490 = vadd.f32 0.0, %v489
  %v491 = vpop.f32.mrb[0].mxu0
  %v492 = vpop.f32.mrb[0].mxu0
  %v493 = vadd.f32 0.0, %v492
  %v494 = vpop.f32.mrb[0].mxu0
  %495 = vmatprep.mubr.bf16.mxu0 0
  %496 = vmatmul.mubr.bf16.gmra.mrb[0].mxu0 %v222
  %v497 = vpop.f32.mrb[0].mxu0
  %v498 = vadd.f32 0.0, %v497
  %v499 = vpop.f32.mrb[0].mxu0
  %v500 = vpop.f32.mrb[0].mxu0
  %v501 = vadd.f32 0.0, %v500
  %v502 = vpop.f32.mrb[0].mxu0
  %503 = vdwg.mxu0
  %vm504 = vcmask 982016
  %505 = vst.msk [vmem:[#allocation3] sm:$0xff] %vm504, %v263
  %506 = vst.msk [vmem:[#allocation3 + $0x8] sm:$0xff] %vm504, %v266
  %507 = vst.msk [vmem:[#allocation3 + $0x10] sm:$0xff] %vm504, %v271
  %508 = vst.msk [vmem:[#allocation3 + $0x18] sm:$0xff] %vm504, %v274
  %509 = vst.msk [vmem:[#allocation3 + $0x20] sm:$0xff] %vm504, %v279
  %510 = vst.msk [vmem:[#allocation3 + $0x28] sm:$0xff] %vm504, %v282
  %511 = vst.msk [vmem:[#allocation3 + $0x30] sm:$0xff] %vm504, %v287
  %512 = vst.msk [vmem:[#allocation3 + $0x38] sm:$0xff] %vm504, %v290
  %513 = vst.msk [vmem:[#allocation3 + $0x40] sm:$0xff] %vm504, %v295
  %514 = vst.msk [vmem:[#allocation3 + $0x48] sm:$0xff] %vm504, %v298
  %515 = vst.msk [vmem:[#allocation3 + $0x50] sm:$0xff] %vm504, %v303
  %516 = vst.msk [vmem:[#allocation3 + $0x58] sm:$0xff] %vm504, %v306
  %517 = vst.msk [vmem:[#allocation3 + $0x60] sm:$0xff] %vm504, %v311
  %518 = vst.msk [vmem:[#allocation3 + $0x68] sm:$0xff] %vm504, %v314
  %519 = vst.msk [vmem:[#allocation3 + $0x70] sm:$0xff] %vm504, %v319
  %520 = vst.msk [vmem:[#allocation3 + $0x78] sm:$0xff] %vm504, %v322
  %521 = vst.msk [vmem:[#allocation3 + $0x80] sm:$0xff] %vm504, %v327
  %522 = vst.msk [vmem:[#allocation3 + $0x88] sm:$0xff] %vm504, %v330
  %523 = vst.msk [vmem:[#allocation3 + $0x90] sm:$0xff] %vm504, %v335
  %524 = vst.msk [vmem:[#allocation3 + $0x98] sm:$0xff] %vm504, %v338
  %525 = vst.msk [vmem:[#allocation3 + $0xa0] sm:$0xff] %vm504, %v343
  %526 = vst.msk [vmem:[#allocation3 + $0xa8] sm:$0xff] %vm504, %v346
  %527 = vst.msk [vmem:[#allocation3 + $0xb0] sm:$0xff] %vm504, %v351
  %528 = vst.msk [vmem:[#allocation3 + $0xb8] sm:$0xff] %vm504, %v354
  %529 = vst.msk [vmem:[#allocation4] sm:$0xff] %vm504, %v410
  %530 = vst.msk [vmem:[#allocation4 + $0x8] sm:$0xff] %vm504, %v413
  %531 = vst.msk [vmem:[#allocation4 + $0x10] sm:$0xff] %vm504, %v418
  %532 = vst.msk [vmem:[#allocation4 + $0x18] sm:$0xff] %vm504, %v421
  %533 = vst.msk [vmem:[#allocation4 + $0x20] sm:$0xff] %vm504, %v426
  %534 = vst.msk [vmem:[#allocation4 + $0x28] sm:$0xff] %vm504, %v429
  %535 = vst.msk [vmem:[#allocation4 + $0x30] sm:$0xff] %vm504, %v434
  %536 = vst.msk [vmem:[#allocation4 + $0x38] sm:$0xff] %vm504, %v437
  %537 = vst.msk [vmem:[#allocation4 + $0x40] sm:$0xff] %vm504, %v442
  %538 = vst.msk [vmem:[#allocation4 + $0x48] sm:$0xff] %vm504, %v445
  %539 = vst.msk [vmem:[#allocation4 + $0x50] sm:$0xff] %vm504, %v450
  %540 = vst.msk [vmem:[#allocation4 + $0x58] sm:$0xff] %vm504, %v453
  %541 = vst.msk [vmem:[#allocation4 + $0x60] sm:$0xff] %vm504, %v458
  %542 = vst.msk [vmem:[#allocation4 + $0x68] sm:$0xff] %vm504, %v461
  %543 = vst.msk [vmem:[#allocation4 + $0x70] sm:$0xff] %vm504, %v466
  %544 = vst.msk [vmem:[#allocation4 + $0x78] sm:$0xff] %vm504, %v469
  %545 = vst.msk [vmem:[#allocation4 + $0x80] sm:$0xff] %vm504, %v474
  %546 = vst.msk [vmem:[#allocation4 + $0x88] sm:$0xff] %vm504, %v477
  %547 = vst.msk [vmem:[#allocation4 + $0x90] sm:$0xff] %vm504, %v482
  %548 = vst.msk [vmem:[#allocation4 + $0x98] sm:$0xff] %vm504, %v485
  %549 = vst.msk [vmem:[#allocation4 + $0xa0] sm:$0xff] %vm504, %v490
  %550 = vst.msk [vmem:[#allocation4 + $0xa8] sm:$0xff] %vm504, %v493
  %551 = vst.msk [vmem:[#allocation4 + $0xb0] sm:$0xff] %vm504, %v498
  %552 = vst.msk [vmem:[#allocation4 + $0xb8] sm:$0xff] %vm504, %v501
  %v553 = vld [vmem:[#allocation2 + $0x1] sm:$0xff]
  %v554 = vld [vmem:[#allocation2 + $0x9] sm:$0xff]
  %v555 = vld [vmem:[#allocation2 + $0x11] sm:$0xff]
  %v556 = vld [vmem:[#allocation2 + $0x21] sm:$0xff]
  %v557 = vld [vmem:[#allocation2 + $0x29] sm:$0xff]
  %v558 = vld [vmem:[#allocation2 + $0x31] sm:$0xff]
  %v559 = vld [vmem:[#allocation2 + $0x41] sm:$0xff]
  %v560 = vld [vmem:[#allocation2 + $0x49] sm:$0xff]
  %v561 = vld [vmem:[#allocation2 + $0x51] sm:$0xff]
  %v562 = vld [vmem:[#allocation2 + $0x61] sm:$0xff]
  %v563 = vld [vmem:[#allocation2 + $0x69] sm:$0xff]
  %v564 = vld [vmem:[#allocation2 + $0x71] sm:$0xff]
  %v565 = vld [vmem:[#allocation2 + $0x81] sm:$0xff]
  %v566 = vld [vmem:[#allocation2 + $0x89] sm:$0xff]
  %v567 = vld [vmem:[#allocation2 + $0x91] sm:$0xff]
  %v568 = vld [vmem:[#allocation2 + $0xa1] sm:$0xff]
  %v569 = vld [vmem:[#allocation2 + $0xa9] sm:$0xff]
  %v570 = vld [vmem:[#allocation2 + $0xb1] sm:$0xff]
  %v571 = vld [vmem:[#allocation2 + $0xc1] sm:$0xff]
  %v572 = vld [vmem:[#allocation2 + $0xc9] sm:$0xff]
  %v573 = vld [vmem:[#allocation2 + $0xd1] sm:$0xff]
  %v574 = vld [vmem:[#allocation2 + $0xe1] sm:$0xff]
  %v575 = vld [vmem:[#allocation2 + $0xe9] sm:$0xff]
  %v576 = vld [vmem:[#allocation2 + $0xf1] sm:$0xff]
  %v577 = vpack.c.bf16 %v554, %v553
  %v578 = vpack.c.bf16 %v556, %v555
  %v579 = vpack.c.bf16 %v558, %v557
  %v580 = vpack.c.bf16 %v560, %v559
  %v581 = vpack.c.bf16 %v562, %v561
  %v582 = vpack.c.bf16 %v564, %v563
  %v583 = vpack.c.bf16 %v566, %v565
  %v584 = vpack.c.bf16 %v568, %v567
  %v585 = vpack.c.bf16 %v570, %v569
  %v586 = vpack.c.bf16 %v572, %v571
  %v587 = vpack.c.bf16 %v574, %v573
  %v588 = vpack.c.bf16 %v576, %v575
  %s589 = scalar_lea.vmem %s1, 16
  %v590 = vld [vmem:[%s589] sm:$0xf]
  %v591 = vld [vmem:[%s589 + $0x4] sm:$0xf]
  %v592 = vld [vmem:[%s589 + $0x8] sm:$0xf]
  %v593 = vld [vmem:[%s589 + $0xc] sm:$0x3]
  %v598 = vunpack.c.l.b16 %v590
  %v599 = vunpack.c.l.b16 %v591
  %v600 = vunpack.c.l.b16 %v592
  %v601 = vunpack.c.l.b16 %v593
  %v602 = vpack.c.b16 %v599, %v598
  %v603 = vpack.c.b16 %v601, %v600
  %v606 = vsel %vm103, %v577, 0
  %v609 = vsel %vm103, %v578, 0
  %v612 = vsel %vm103, %v579, 0
  %v615 = vsel %vm103, %v580, 0
  %v618 = vsel %vm103, %v581, 0
  %v621 = vsel %vm103, %v582, 0
  %v624 = vsel %vm103, %v583, 0
  %v627 = vsel %vm103, %v584, 0
  %v630 = vsel %vm103, %v585, 0
  %v633 = vsel %vm103, %v586, 0
  %v636 = vsel %vm103, %v587, 0
  %v639 = vsel %vm103, %v588, 0
  %v642 = vsel %vm224, %v603, 0
  %644 = vmatprep.subr.bf16.mxu0 0
  %645 = vmatpush1.bf16.msra.mxu0 %v602
  %646 = vmatprep.subr.bf16.mxu0 0
  %647 = vmatpush1.bf16.msra.mxu0 %v642
  %648 = vmatprep.subr.bf16.mxu0 0
  %649 = vmatpush1.bf16.msra.mxu0 0
  %650 = vmatprep.subr.bf16.mxu0 0
  %651 = vmatpush1.bf16.msra.mxu0 0
  %652 = vmatprep.subr.bf16.mxu0 0
  %653 = vmatpush1.bf16.msra.mxu0 0
  %654 = vmatprep.subr.bf16.mxu0 0
  %655 = vmatpush1.bf16.msra.mxu0 0
  %656 = vmatprep.subr.bf16.mxu0 0
  %657 = vmatpush1.bf16.msra.mxu0 0
  %658 = vmatprep.subr.bf16.mxu0 0
  %659 = vmatpush1.bf16.msra.mxu0 0
  %660 = vmatprep.subr.bf16.mxu0 0
  %661 = vmatpush1.bf16.msra.mxu0 0
  %662 = vmatprep.subr.bf16.mxu0 0
  %663 = vmatpush1.bf16.msra.mxu0 0
  %664 = vmatprep.subr.bf16.mxu0 0
  %665 = vmatpush1.bf16.msra.mxu0 0
  %666 = vmatprep.subr.bf16.mxu0 0
  %667 = vmatpush1.bf16.msra.mxu0 0
  %668 = vmatprep.subr.bf16.mxu0 0
  %669 = vmatpush1.bf16.msra.mxu0 0
  %670 = vmatprep.subr.bf16.mxu0 0
  %671 = vmatpush1.bf16.msra.mxu0 0
  %672 = vmatprep.subr.bf16.mxu0 0
  %673 = vmatpush1.bf16.msra.mxu0 0
  %674 = vmatprep.subr.bf16.mxu0 0
  %675 = vmatpush1.bf16.msra.mxu0 0
  %676 = vmatprep.mubr.bf16.mxu0 0
  %677 = vmatmul.mubr.bf16.gmra.mrb[0].mxu0 %v606
  %v678 = vpop.f32.mrb[0].mxu0
  %v679 = vadd.f32 0.0, %v678
  %v680 = vpop.f32.mrb[0].mxu0
  %v681 = vpop.f32.mrb[0].mxu0
  %v682 = vadd.f32 0.0, %v681
  %v683 = vpop.f32.mrb[0].mxu0
  %684 = vmatprep.mubr.bf16.mxu0 0
  %685 = vmatmul.mubr.bf16.gmra.mrb[0].mxu0 %v609
  %v686 = vpop.f32.mrb[0].mxu0
  %v687 = vadd.f32 0.0, %v686
  %v688 = vpop.f32.mrb[0].mxu0
  %v689 = vpop.f32.mrb[0].mxu0
  %v690 = vadd.f32 0.0, %v689
  %v691 = vpop.f32.mrb[0].mxu0
  %692 = vmatprep.mubr.bf16.mxu0 0
  %693 = vmatmul.mubr.bf16.gmra.mrb[0].mxu0 %v612
  %v694 = vpop.f32.mrb[0].mxu0
  %v695 = vadd.f32 0.0, %v694
  %v696 = vpop.f32.mrb[0].mxu0
  %v697 = vpop.f32.mrb[0].mxu0
  %v698 = vadd.f32 0.0, %v697
  %v699 = vpop.f32.mrb[0].mxu0
  %700 = vmatprep.mubr.bf16.mxu0 0
  %701 = vmatmul.mubr.bf16.gmra.mrb[0].mxu0 %v615
  %v702 = vpop.f32.mrb[0].mxu0
  %v703 = vadd.f32 0.0, %v702
  %v704 = vpop.f32.mrb[0].mxu0
  %v705 = vpop.f32.mrb[0].mxu0
  %v706 = vadd.f32 0.0, %v705
  %v707 = vpop.f32.mrb[0].mxu0
  %708 = vmatprep.mubr.bf16.mxu0 0
  %709 = vmatmul.mubr.bf16.gmra.mrb[0].mxu0 %v618
  %v710 = vpop.f32.mrb[0].mxu0
  %v711 = vadd.f32 0.0, %v710
  %v712 = vpop.f32.mrb[0].mxu0
  %v713 = vpop.f32.mrb[0].mxu0
  %v714 = vadd.f32 0.0, %v713
  %v715 = vpop.f32.mrb[0].mxu0
  %716 = vmatprep.mubr.bf16.mxu0 0
  %717 = vmatmul.mubr.bf16.gmra.mrb[0].mxu0 %v621
  %v718 = vpop.f32.mrb[0].mxu0
  %v719 = vadd.f32 0.0, %v718
  %v720 = vpop.f32.mrb[0].mxu0
  %v721 = vpop.f32.mrb[0].mxu0
  %v722 = vadd.f32 0.0, %v721
  %v723 = vpop.f32.mrb[0].mxu0
  %724 = vmatprep.mubr.bf16.mxu0 0
  %725 = vmatmul.mubr.bf16.gmra.mrb[0].mxu0 %v624
  %v726 = vpop.f32.mrb[0].mxu0
  %v727 = vadd.f32 0.0, %v726
  %v728 = vpop.f32.mrb[0].mxu0
  %v729 = vpop.f32.mrb[0].mxu0
  %v730 = vadd.f32 0.0, %v729
  %v731 = vpop.f32.mrb[0].mxu0
  %732 = vmatprep.mubr.bf16.mxu0 0
  %733 = vmatmul.mubr.bf16.gmra.mrb[0].mxu0 %v627
  %v734 = vpop.f32.mrb[0].mxu0
  %v735 = vadd.f32 0.0, %v734
  %v736 = vpop.f32.mrb[0].mxu0
  %v737 = vpop.f32.mrb[0].mxu0
  %v738 = vadd.f32 0.0, %v737
  %v739 = vpop.f32.mrb[0].mxu0
  %740 = vmatprep.mubr.bf16.mxu0 0
  %741 = vmatmul.mubr.bf16.gmra.mrb[0].mxu0 %v630
  %v742 = vpop.f32.mrb[0].mxu0
  %v743 = vadd.f32 0.0, %v742
  %v744 = vpop.f32.mrb[0].mxu0
  %v745 = vpop.f32.mrb[0].mxu0
  %v746 = vadd.f32 0.0, %v745
  %v747 = vpop.f32.mrb[0].mxu0
  %748 = vmatprep.mubr.bf16.mxu0 0
  %749 = vmatmul.mubr.bf16.gmra.mrb[0].mxu0 %v633
  %v750 = vpop.f32.mrb[0].mxu0
  %v751 = vadd.f32 0.0, %v750
  %v752 = vpop.f32.mrb[0].mxu0
  %v753 = vpop.f32.mrb[0].mxu0
  %v754 = vadd.f32 0.0, %v753
  %v755 = vpop.f32.mrb[0].mxu0
  %756 = vmatprep.mubr.bf16.mxu0 0
  %757 = vmatmul.mubr.bf16.gmra.mrb[0].mxu0 %v636
  %v758 = vpop.f32.mrb[0].mxu0
  %v759 = vadd.f32 0.0, %v758
  %v760 = vpop.f32.mrb[0].mxu0
  %v761 = vpop.f32.mrb[0].mxu0
  %v762 = vadd.f32 0.0, %v761
  %v763 = vpop.f32.mrb[0].mxu0
  %764 = vmatprep.mubr.bf16.mxu0 0
  %765 = vmatmul.mubr.bf16.gmra.mrb[0].mxu0 %v639
  %v766 = vpop.f32.mrb[0].mxu0
  %v767 = vadd.f32 0.0, %v766
  %v768 = vpop.f32.mrb[0].mxu0
  %v769 = vpop.f32.mrb[0].mxu0
  %v770 = vadd.f32 0.0, %v769
  %v771 = vpop.f32.mrb[0].mxu0
  %772 = vdwg.mxu0
  %s773 = scalar_lea.vmem %s2, 16
  %v774 = vld [vmem:[%s773] sm:$0xf]
  %v775 = vld [vmem:[%s773 + $0x4] sm:$0xf]
  %v776 = vld [vmem:[%s773 + $0x8] sm:$0xf]
  %v777 = vld [vmem:[%s773 + $0xc] sm:$0x3]
  %v782 = vunpack.c.l.b16 %v774
  %v783 = vunpack.c.l.b16 %v775
  %v784 = vunpack.c.l.b16 %v776
  %v785 = vunpack.c.l.b16 %v777
  %v786 = vpack.c.b16 %v783, %v782
  %v787 = vpack.c.b16 %v785, %v784
  %v790 = vsel %vm224, %v787, 0
  %792 = vmatprep.subr.bf16.mxu0 0
  %793 = vmatpush1.bf16.msra.mxu0 %v786
  %794 = vmatprep.subr.bf16.mxu0 0
  %795 = vmatpush1.bf16.msra.mxu0 %v790
  %796 = vmatprep.subr.bf16.mxu0 0
  %797 = vmatpush1.bf16.msra.mxu0 0
  %798 = vmatprep.subr.bf16.mxu0 0
  %799 = vmatpush1.bf16.msra.mxu0 0
  %800 = vmatprep.subr.bf16.mxu0 0
  %801 = vmatpush1.bf16.msra.mxu0 0
  %802 = vmatprep.subr.bf16.mxu0 0
  %803 = vmatpush1.bf16.msra.mxu0 0
  %804 = vmatprep.subr.bf16.mxu0 0
  %805 = vmatpush1.bf16.msra.mxu0 0
  %806 = vmatprep.subr.bf16.mxu0 0
  %807 = vmatpush1.bf16.msra.mxu0 0
  %808 = vmatprep.subr.bf16.mxu0 0
  %809 = vmatpush1.bf16.msra.mxu0 0
  %810 = vmatprep.subr.bf16.mxu0 0
  %811 = vmatpush1.bf16.msra.mxu0 0
  %812 = vmatprep.subr.bf16.mxu0 0
  %813 = vmatpush1.bf16.msra.mxu0 0
  %814 = vmatprep.subr.bf16.mxu0 0
  %815 = vmatpush1.bf16.msra.mxu0 0
  %816 = vmatprep.subr.bf16.mxu0 0
  %817 = vmatpush1.bf16.msra.mxu0 0
  %818 = vmatprep.subr.bf16.mxu0 0
  %819 = vmatpush1.bf16.msra.mxu0 0
  %820 = vmatprep.subr.bf16.mxu0 0
  %821 = vmatpush1.bf16.msra.mxu0 0
  %822 = vmatprep.subr.bf16.mxu0 0
  %823 = vmatpush1.bf16.msra.mxu0 0
  %824 = vmatprep.mubr.bf16.mxu0 0
  %825 = vmatmul.mubr.bf16.gmra.mrb[0].mxu0 %v606
  %v826 = vpop.f32.mrb[0].mxu0
  %v827 = vadd.f32 0.0, %v826
  %v828 = vpop.f32.mrb[0].mxu0
  %v829 = vpop.f32.mrb[0].mxu0
  %v830 = vadd.f32 0.0, %v829
  %v831 = vpop.f32.mrb[0].mxu0
  %832 = vmatprep.mubr.bf16.mxu0 0
  %833 = vmatmul.mubr.bf16.gmra.mrb[0].mxu0 %v609
  %v834 = vpop.f32.mrb[0].mxu0
  %v835 = vadd.f32 0.0, %v834
  %v836 = vpop.f32.mrb[0].mxu0
  %v837 = vpop.f32.mrb[0].mxu0
  %v838 = vadd.f32 0.0, %v837
  %v839 = vpop.f32.mrb[0].mxu0
  %840 = vmatprep.mubr.bf16.mxu0 0
  %841 = vmatmul.mubr.bf16.gmra.mrb[0].mxu0 %v612
  %v842 = vpop.f32.mrb[0].mxu0
  %v843 = vadd.f32 0.0, %v842
  %v844 = vpop.f32.mrb[0].mxu0
  %v845 = vpop.f32.mrb[0].mxu0
  %v846 = vadd.f32 0.0, %v845
  %v847 = vpop.f32.mrb[0].mxu0
  %848 = vmatprep.mubr.bf16.mxu0 0
  %849 = vmatmul.mubr.bf16.gmra.mrb[0].mxu0 %v615
  %v850 = vpop.f32.mrb[0].mxu0
  %v851 = vadd.f32 0.0, %v850
  %v852 = vpop.f32.mrb[0].mxu0
  %v853 = vpop.f32.mrb[0].mxu0
  %v854 = vadd.f32 0.0, %v853
  %v855 = vpop.f32.mrb[0].mxu0
  %856 = vmatprep.mubr.bf16.mxu0 0
  %857 = vmatmul.mubr.bf16.gmra.mrb[0].mxu0 %v618
  %v858 = vpop.f32.mrb[0].mxu0
  %v859 = vadd.f32 0.0, %v858
  %v860 = vpop.f32.mrb[0].mxu0
  %v861 = vpop.f32.mrb[0].mxu0
  %v862 = vadd.f32 0.0, %v861
  %v863 = vpop.f32.mrb[0].mxu0
  %864 = vmatprep.mubr.bf16.mxu0 0
  %865 = vmatmul.mubr.bf16.gmra.mrb[0].mxu0 %v621
  %v866 = vpop.f32.mrb[0].mxu0
  %v867 = vadd.f32 0.0, %v866
  %v868 = vpop.f32.mrb[0].mxu0
  %v869 = vpop.f32.mrb[0].mxu0
  %v870 = vadd.f32 0.0, %v869
  %v871 = vpop.f32.mrb[0].mxu0
  %872 = vmatprep.mubr.bf16.mxu0 0
  %873 = vmatmul.mubr.bf16.gmra.mrb[0].mxu0 %v624
  %v874 = vpop.f32.mrb[0].mxu0
  %v875 = vadd.f32 0.0, %v874
  %v876 = vpop.f32.mrb[0].mxu0
  %v877 = vpop.f32.mrb[0].mxu0
  %v878 = vadd.f32 0.0, %v877
  %v879 = vpop.f32.mrb[0].mxu0
  %880 = vmatprep.mubr.bf16.mxu0 0
  %881 = vmatmul.mubr.bf16.gmra.mrb[0].mxu0 %v627
  %v882 = vpop.f32.mrb[0].mxu0
  %v883 = vadd.f32 0.0, %v882
  %v884 = vpop.f32.mrb[0].mxu0
  %v885 = vpop.f32.mrb[0].mxu0
  %v886 = vadd.f32 0.0, %v885
  %v887 = vpop.f32.mrb[0].mxu0
  %888 = vmatprep.mubr.bf16.mxu0 0
  %889 = vmatmul.mubr.bf16.gmra.mrb[0].mxu0 %v630
  %v890 = vpop.f32.mrb[0].mxu0
  %v891 = vadd.f32 0.0, %v890
  %v892 = vpop.f32.mrb[0].mxu0
  %v893 = vpop.f32.mrb[0].mxu0
  %v894 = vadd.f32 0.0, %v893
  %v895 = vpop.f32.mrb[0].mxu0
  %896 = vmatprep.mubr.bf16.mxu0 0
  %897 = vmatmul.mubr.bf16.gmra.mrb[0].mxu0 %v633
  %v898 = vpop.f32.mrb[0].mxu0
  %v899 = vadd.f32 0.0, %v898
  %v900 = vpop.f32.mrb[0].mxu0
  %v901 = vpop.f32.mrb[0].mxu0
  %v902 = vadd.f32 0.0, %v901
  %v903 = vpop.f32.mrb[0].mxu0
  %904 = vmatprep.mubr.bf16.mxu0 0
  %905 = vmatmul.mubr.bf16.gmra.mrb[0].mxu0 %v636
  %v906 = vpop.f32.mrb[0].mxu0
  %v907 = vadd.f32 0.0, %v906
  %v908 = vpop.f32.mrb[0].mxu0
  %v909 = vpop.f32.mrb[0].mxu0
  %v910 = vadd.f32 0.0, %v909
  %v911 = vpop.f32.mrb[0].mxu0
  %912 = vmatprep.mubr.bf16.mxu0 0
  %913 = vmatmul.mubr.bf16.gmra.mrb[0].mxu0 %v639
  %v914 = vpop.f32.mrb[0].mxu0
  %v915 = vadd.f32 0.0, %v914
  %v916 = vpop.f32.mrb[0].mxu0
  %v917 = vpop.f32.mrb[0].mxu0
  %v918 = vadd.f32 0.0, %v917
  %v919 = vpop.f32.mrb[0].mxu0
  %920 = vdwg.mxu0
  %v921 = vld [vmem:[#allocation3] sm:$0xff]
  %v922 = vld [vmem:[#allocation3 + $0x8] sm:$0xff]
  %v923 = vld [vmem:[#allocation3 + $0x10] sm:$0xff]
  %v924 = vld [vmem:[#allocation3 + $0x18] sm:$0xff]
  %v925 = vld [vmem:[#allocation3 + $0x20] sm:$0xff]
  %v926 = vld [vmem:[#allocation3 + $0x28] sm:$0xff]
  %v927 = vld [vmem:[#allocation3 + $0x30] sm:$0xff]
  %v928 = vld [vmem:[#allocation3 + $0x38] sm:$0xff]
  %v929 = vld [vmem:[#allocation3 + $0x40] sm:$0xff]
  %v930 = vld [vmem:[#allocation3 + $0x48] sm:$0xff]
  %v931 = vld [vmem:[#allocation3 + $0x50] sm:$0xff]
  %v932 = vld [vmem:[#allocation3 + $0x58] sm:$0xff]
  %v933 = vld [vmem:[#allocation3 + $0x60] sm:$0xff]
  %v934 = vld [vmem:[#allocation3 + $0x68] sm:$0xff]
  %v935 = vld [vmem:[#allocation3 + $0x70] sm:$0xff]
  %v936 = vld [vmem:[#allocation3 + $0x78] sm:$0xff]
  %v937 = vld [vmem:[#allocation3 + $0x80] sm:$0xff]
  %v938 = vld [vmem:[#allocation3 + $0x88] sm:$0xff]
  %v939 = vld [vmem:[#allocation3 + $0x90] sm:$0xff]
  %v940 = vld [vmem:[#allocation3 + $0x98] sm:$0xff]
  %v941 = vld [vmem:[#allocation3 + $0xa0] sm:$0xff]
  %v942 = vld [vmem:[#allocation3 + $0xa8] sm:$0xff]
  %v943 = vld [vmem:[#allocation3 + $0xb0] sm:$0xff]
  %v944 = vld [vmem:[#allocation3 + $0xb8] sm:$0xff]
  %v945 = vadd.f32 %v921, %v679
  %v946 = vadd.f32 %v922, %v682
  %v947 = vadd.f32 %v923, %v687
  %v948 = vadd.f32 %v924, %v690
  %v949 = vadd.f32 %v925, %v695
  %v950 = vadd.f32 %v926, %v698
  %v951 = vadd.f32 %v927, %v703
  %v952 = vadd.f32 %v928, %v706
  %v953 = vadd.f32 %v929, %v711
  %v954 = vadd.f32 %v930, %v714
  %v955 = vadd.f32 %v931, %v719
  %v956 = vadd.f32 %v932, %v722
  %v957 = vadd.f32 %v933, %v727
  %v958 = vadd.f32 %v934, %v730
  %v959 = vadd.f32 %v935, %v735
  %v960 = vadd.f32 %v936, %v738
  %v961 = vadd.f32 %v937, %v743
  %v962 = vadd.f32 %v938, %v746
  %v963 = vadd.f32 %v939, %v751
  %v964 = vadd.f32 %v940, %v754
  %v965 = vadd.f32 %v941, %v759
  %v966 = vadd.f32 %v942, %v762
  %v967 = vadd.f32 %v943, %v767
  %v968 = vadd.f32 %v944, %v770
  %969 = vst.msk [vmem:[#allocation3] sm:$0xff] %vm504, %v945
  %970 = vst.msk [vmem:[#allocation3 + $0x8] sm:$0xff] %vm504, %v946
  %971 = vst.msk [vmem:[#allocation3 + $0x10] sm:$0xff] %vm504, %v947
  %972 = vst.msk [vmem:[#allocation3 + $0x18] sm:$0xff] %vm504, %v948
  %973 = vst.msk [vmem:[#allocation3 + $0x20] sm:$0xff] %vm504, %v949
  %974 = vst.msk [vmem:[#allocation3 + $0x28] sm:$0xff] %vm504, %v950
  %975 = vst.msk [vmem:[#allocation3 + $0x30] sm:$0xff] %vm504, %v951
  %976 = vst.msk [vmem:[#allocation3 + $0x38] sm:$0xff] %vm504, %v952
  %977 = vst.msk [vmem:[#allocation3 + $0x40] sm:$0xff] %vm504, %v953
  %978 = vst.msk [vmem:[#allocation3 + $0x48] sm:$0xff] %vm504, %v954
  %979 = vst.msk [vmem:[#allocation3 + $0x50] sm:$0xff] %vm504, %v955
  %980 = vst.msk [vmem:[#allocation3 + $0x58] sm:$0xff] %vm504, %v956
  %981 = vst.msk [vmem:[#allocation3 + $0x60] sm:$0xff] %vm504, %v957
  %982 = vst.msk [vmem:[#allocation3 + $0x68] sm:$0xff] %vm504, %v958
  %983 = vst.msk [vmem:[#allocation3 + $0x70] sm:$0xff] %vm504, %v959
  %984 = vst.msk [vmem:[#allocation3 + $0x78] sm:$0xff] %vm504, %v960
  %985 = vst.msk [vmem:[#allocation3 + $0x80] sm:$0xff] %vm504, %v961
  %986 = vst.msk [vmem:[#allocation3 + $0x88] sm:$0xff] %vm504, %v962
  %987 = vst.msk [vmem:[#allocation3 + $0x90] sm:$0xff] %vm504, %v963
  %988 = vst.msk [vmem:[#allocation3 + $0x98] sm:$0xff] %vm504, %v964
  %989 = vst.msk [vmem:[#allocation3 + $0xa0] sm:$0xff] %vm504, %v965
  %990 = vst.msk [vmem:[#allocation3 + $0xa8] sm:$0xff] %vm504, %v966
  %991 = vst.msk [vmem:[#allocation3 + $0xb0] sm:$0xff] %vm504, %v967
  %992 = vst.msk [vmem:[#allocation3 + $0xb8] sm:$0xff] %vm504, %v968
  %v993 = vld [vmem:[#allocation4] sm:$0xff]
  %v994 = vld [vmem:[#allocation4 + $0x8] sm:$0xff]
  %v995 = vld [vmem:[#allocation4 + $0x10] sm:$0xff]
  %v996 = vld [vmem:[#allocation4 + $0x18] sm:$0xff]
  %v997 = vld [vmem:[#allocation4 + $0x20] sm:$0xff]
  %v998 = vld [vmem:[#allocation4 + $0x28] sm:$0xff]
  %v999 = vld [vmem:[#allocation4 + $0x30] sm:$0xff]
  %v1000 = vld [vmem:[#allocation4 + $0x38] sm:$0xff]
  %v1001 = vld [vmem:[#allocation4 + $0x40] sm:$0xff]
  %v1002 = vld [vmem:[#allocation4 + $0x48] sm:$0xff]
  %v1003 = vld [vmem:[#allocation4 + $0x50] sm:$0xff]
  %v1004 = vld [vmem:[#allocation4 + $0x58] sm:$0xff]
  %v1005 = vld [vmem:[#allocation4 + $0x60] sm:$0xff]
  %v1006 = vld [vmem:[#allocation4 + $0x68] sm:$0xff]
  %v1007 = vld [vmem:[#allocation4 + $0x70] sm:$0xff]
  %v1008 = vld [vmem:[#allocation4 + $0x78] sm:$0xff]
  %v1009 = vld [vmem:[#allocation4 + $0x80] sm:$0xff]
  %v1010 = vld [vmem:[#allocation4 + $0x88] sm:$0xff]
  %v1011 = vld [vmem:[#allocation4 + $0x90] sm:$0xff]
  %v1012 = vld [vmem:[#allocation4 + $0x98] sm:$0xff]
  %v1013 = vld [vmem:[#allocation4 + $0xa0] sm:$0xff]
  %v1014 = vld [vmem:[#allocation4 + $0xa8] sm:$0xff]
  %v1015 = vld [vmem:[#allocation4 + $0xb0] sm:$0xff]
  %v1016 = vld [vmem:[#allocation4 + $0xb8] sm:$0xff]
  %v1017 = vadd.f32 %v993, %v827
  %v1018 = vadd.f32 %v994, %v830
  %v1019 = vadd.f32 %v995, %v835
  %v1020 = vadd.f32 %v996, %v838
  %v1021 = vadd.f32 %v997, %v843
  %v1022 = vadd.f32 %v998, %v846
  %v1023 = vadd.f32 %v999, %v851
  %v1024 = vadd.f32 %v1000, %v854
  %v1025 = vadd.f32 %v1001, %v859
  %v1026 = vadd.f32 %v1002, %v862
  %v1027 = vadd.f32 %v1003, %v867
  %v1028 = vadd.f32 %v1004, %v870
  %v1029 = vadd.f32 %v1005, %v875
  %v1030 = vadd.f32 %v1006, %v878
  %v1031 = vadd.f32 %v1007, %v883
  %v1032 = vadd.f32 %v1008, %v886
  %v1033 = vadd.f32 %v1009, %v891
  %v1034 = vadd.f32 %v1010, %v894
  %v1035 = vadd.f32 %v1011, %v899
  %v1036 = vadd.f32 %v1012, %v902
  %v1037 = vadd.f32 %v1013, %v907
  %v1038 = vadd.f32 %v1014, %v910
  %v1039 = vadd.f32 %v1015, %v915
  %v1040 = vadd.f32 %v1016, %v918
  %1041 = vst.msk [vmem:[#allocation4] sm:$0xff] %vm504, %v1017
  %1042 = vst.msk [vmem:[#allocation4 + $0x8] sm:$0xff] %vm504, %v1018
  %1043 = vst.msk [vmem:[#allocation4 + $0x10] sm:$0xff] %vm504, %v1019
  %1044 = vst.msk [vmem:[#allocation4 + $0x18] sm:$0xff] %vm504, %v1020
  %1045 = vst.msk [vmem:[#allocation4 + $0x20] sm:$0xff] %vm504, %v1021
  %1046 = vst.msk [vmem:[#allocation4 + $0x28] sm:$0xff] %vm504, %v1022
  %1047 = vst.msk [vmem:[#allocation4 + $0x30] sm:$0xff] %vm504, %v1023
  %1048 = vst.msk [vmem:[#allocation4 + $0x38] sm:$0xff] %vm504, %v1024
  %1049 = vst.msk [vmem:[#allocation4 + $0x40] sm:$0xff] %vm504, %v1025
  %1050 = vst.msk [vmem:[#allocation4 + $0x48] sm:$0xff] %vm504, %v1026
  %1051 = vst.msk [vmem:[#allocation4 + $0x50] sm:$0xff] %vm504, %v1027
  %1052 = vst.msk [vmem:[#allocation4 + $0x58] sm:$0xff] %vm504, %v1028
  %1053 = vst.msk [vmem:[#allocation4 + $0x60] sm:$0xff] %vm504, %v1029
  %1054 = vst.msk [vmem:[#allocation4 + $0x68] sm:$0xff] %vm504, %v1030
  %1055 = vst.msk [vmem:[#allocation4 + $0x70] sm:$0xff] %vm504, %v1031
  %1056 = vst.msk [vmem:[#allocation4 + $0x78] sm:$0xff] %vm504, %v1032
  %1057 = vst.msk [vmem:[#allocation4 + $0x80] sm:$0xff] %vm504, %v1033
  %1058 = vst.msk [vmem:[#allocation4 + $0x88] sm:$0xff] %vm504, %v1034
  %1059 = vst.msk [vmem:[#allocation4 + $0x90] sm:$0xff] %vm504, %v1035
  %1060 = vst.msk [vmem:[#allocation4 + $0x98] sm:$0xff] %vm504, %v1036
  %1061 = vst.msk [vmem:[#allocation4 + $0xa0] sm:$0xff] %vm504, %v1037
  %1062 = vst.msk [vmem:[#allocation4 + $0xa8] sm:$0xff] %vm504, %v1038
  %1063 = vst.msk [vmem:[#allocation4 + $0xb0] sm:$0xff] %vm504, %v1039
  %1064 = vst.msk [vmem:[#allocation4 + $0xb8] sm:$0xff] %vm504, %v1040
  %v1065 = vld [vmem:[#allocation2 + $0x2] sm:$0xff]
  %v1066 = vld [vmem:[#allocation2 + $0xa] sm:$0xff]
  %v1067 = vld [vmem:[#allocation2 + $0x12] sm:$0xff]
  %v1068 = vld [vmem:[#allocation2 + $0x22] sm:$0xff]
  %v1069 = vld [vmem:[#allocation2 + $0x2a] sm:$0xff]
  %v1070 = vld [vmem:[#allocation2 + $0x32] sm:$0xff]
  %v1071 = vld [vmem:[#allocation2 + $0x42] sm:$0xff]
  %v1072 = vld [vmem:[#allocation2 + $0x4a] sm:$0xff]
  %v1073 = vld [vmem:[#allocation2 + $0x52] sm:$0xff]
  %v1074 = vld [vmem:[#allocation2 + $0x62] sm:$0xff]
  %v1075 = vld [vmem:[#allocation2 + $0x6a] sm:$0xff]
  %v1076 = vld [vmem:[#allocation2 + $0x72] sm:$0xff]
  %v1077 = vld [vmem:[#allocation2 + $0x82] sm:$0xff]
  %v1078 = vld [vmem:[#allocation2 + $0x8a] sm:$0xff]
  %v1079 = vld [vmem:[#allocation2 + $0x92] sm:$0xff]
  %v1080 = vld [vmem:[#allocation2 + $0xa2] sm:$0xff]
  %v1081 = vld [vmem:[#allocation2 + $0xaa] sm:$0xff]
  %v1082 = vld [vmem:[#allocation2 + $0xb2] sm:$0xff]
  %v1083 = vld [vmem:[#allocation2 + $0xc2] sm:$0xff]
  %v1084 = vld [vmem:[#allocation2 + $0xca] sm:$0xff]
  %v1085 = vld [vmem:[#allocation2 + $0xd2] sm:$0xff]
  %v1086 = vld [vmem:[#allocation2 + $0xe2] sm:$0xff]
  %v1087 = vld [vmem:[#allocation2 + $0xea] sm:$0xff]
  %v1088 = vld [vmem:[#allocation2 + $0xf2] sm:$0xff]
  %v1089 = vpack.c.bf16 %v1066, %v1065
  %v1090 = vpack.c.bf16 %v1068, %v1067
  %v1091 = vpack.c.bf16 %v1070, %v1069
  %v1092 = vpack.c.bf16 %v1072, %v1071
  %v1093 = vpack.c.bf16 %v1074, %v1073
  %v1094 = vpack.c.bf16 %v1076, %v1075
  %v1095 = vpack.c.bf16 %v1078, %v1077
  %v1096 = vpack.c.bf16 %v1080, %v1079
  %v1097 = vpack.c.bf16 %v1082, %v1081
  %v1098 = vpack.c.bf16 %v1084, %v1083
  %v1099 = vpack.c.bf16 %v1086, %v1085
  %v1100 = vpack.c.bf16 %v1088, %v1087
  %s1101 = scalar_lea.vmem %s1, 32
  %v1102 = vld [vmem:[%s1101] sm:$0xf]
  %v1103 = vld [vmem:[%s1101 + $0x4] sm:$0xf]
  %v1104 = vld [vmem:[%s1101 + $0x8] sm:$0xf]
  %v1105 = vld [vmem:[%s1101 + $0xc] sm:$0x3]
  %v1110 = vunpack.c.l.b16 %v1102
  %v1111 = vunpack.c.l.b16 %v1103
  %v1112 = vunpack.c.l.b16 %v1104
  %v1113 = vunpack.c.l.b16 %v1105
  %v1114 = vpack.c.b16 %v1111, %v1110
  %v1115 = vpack.c.b16 %v1113, %v1112
  %v1118 = vsel %vm103, %v1089, 0
  %v1121 = vsel %vm103, %v1090, 0
  %v1124 = vsel %vm103, %v1091, 0
  %v1127 = vsel %vm103, %v1092, 0
  %v1130 = vsel %vm103, %v1093, 0
  %v1133 = vsel %vm103, %v1094, 0
  %v1136 = vsel %vm103, %v1095, 0
  %v1139 = vsel %vm103, %v1096, 0
  %v1142 = vsel %vm103, %v1097, 0
  %v1145 = vsel %vm103, %v1098, 0
  %v1148 = vsel %vm103, %v1099, 0
  %v1151 = vsel %vm103, %v1100, 0
  %v1154 = vsel %vm224, %v1115, 0
  %1156 = vmatprep.subr.bf16.mxu0 0
  %1157 = vmatpush1.bf16.msra.mxu0 %v1114
  %1158 = vmatprep.subr.bf16.mxu0 0
  %1159 = vmatpush1.bf16.msra.mxu0 %v1154
  %1160 = vmatprep.subr.bf16.mxu0 0
  %1161 = vmatpush1.bf16.msra.mxu0 0
  %1162 = vmatprep.subr.bf16.mxu0 0
  %1163 = vmatpush1.bf16.msra.mxu0 0
  %1164 = vmatprep.subr.bf16.mxu0 0
  %1165 = vmatpush1.bf16.msra.mxu0 0
  %1166 = vmatprep.subr.bf16.mxu0 0
  %1167 = vmatpush1.bf16.msra.mxu0 0
  %1168 = vmatprep.subr.bf16.mxu0 0
  %1169 = vmatpush1.bf16.msra.mxu0 0
  %1170 = vmatprep.subr.bf16.mxu0 0
  %1171 = vmatpush1.bf16.msra.mxu0 0
  %1172 = vmatprep.subr.bf16.mxu0 0
  %1173 = vmatpush1.bf16.msra.mxu0 0
  %1174 = vmatprep.subr.bf16.mxu0 0
  %1175 = vmatpush1.bf16.msra.mxu0 0
  %1176 = vmatprep.subr.bf16.mxu0 0
  %1177 = vmatpush1.bf16.msra.mxu0 0
  %1178 = vmatprep.subr.bf16.mxu0 0
  %1179 = vmatpush1.bf16.msra.mxu0 0
  %1180 = vmatprep.subr.bf16.mxu0 0
  %1181 = vmatpush1.bf16.msra.mxu0 0
  %1182 = vmatprep.subr.bf16.mxu0 0
  %1183 = vmatpush1.bf16.msra.mxu0 0
  %1184 = vmatprep.subr.bf16.mxu0 0
  %1185 = vmatpush1.bf16.msra.mxu0 0
  %1186 = vmatprep.subr.bf16.mxu0 0
  %1187 = vmatpush1.bf16.msra.mxu0 0
  %1188 = vmatprep.mubr.bf16.mxu0 0
  %1189 = vmatmul.mubr.bf16.gmra.mrb[0].mxu0 %v1118
  %v1190 = vpop.f32.mrb[0].mxu0
  %v1191 = vadd.f32 0.0, %v1190
  %v1192 = vpop.f32.mrb[0].mxu0
  %v1193 = vpop.f32.mrb[0].mxu0
  %v1194 = vadd.f32 0.0, %v1193
  %v1195 = vpop.f32.mrb[0].mxu0
  %1196 = vmatprep.mubr.bf16.mxu0 0
  %1197 = vmatmul.mubr.bf16.gmra.mrb[0].mxu0 %v1121
  %v1198 = vpop.f32.mrb[0].mxu0
  %v1199 = vadd.f32 0.0, %v1198
  %v1200 = vpop.f32.mrb[0].mxu0
  %v1201 = vpop.f32.mrb[0].mxu0
  %v1202 = vadd.f32 0.0, %v1201
  %v1203 = vpop.f32.mrb[0].mxu0
  %1204 = vmatprep.mubr.bf16.mxu0 0
  %1205 = vmatmul.mubr.bf16.gmra.mrb[0].mxu0 %v1124
  %v1206 = vpop.f32.mrb[0].mxu0
  %v1207 = vadd.f32 0.0, %v1206
  %v1208 = vpop.f32.mrb[0].mxu0
  %v1209 = vpop.f32.mrb[0].mxu0
  %v1210 = vadd.f32 0.0, %v1209
  %v1211 = vpop.f32.mrb[0].mxu0
  %1212 = vmatprep.mubr.bf16.mxu0 0
  %1213 = vmatmul.mubr.bf16.gmra.mrb[0].mxu0 %v1127
  %v1214 = vpop.f32.mrb[0].mxu0
  %v1215 = vadd.f32 0.0, %v1214
  %v1216 = vpop.f32.mrb[0].mxu0
  %v1217 = vpop.f32.mrb[0].mxu0
  %v1218 = vadd.f32 0.0, %v1217
  %v1219 = vpop.f32.mrb[0].mxu0
  %1220 = vmatprep.mubr.bf16.mxu0 0
  %1221 = vmatmul.mubr.bf16.gmra.mrb[0].mxu0 %v1130
  %v1222 = vpop.f32.mrb[0].mxu0
  %v1223 = vadd.f32 0.0, %v1222
  %v1224 = vpop.f32.mrb[0].mxu0
  %v1225 = vpop.f32.mrb[0].mxu0
  %v1226 = vadd.f32 0.0, %v1225
  %v1227 = vpop.f32.mrb[0].mxu0
  %1228 = vmatprep.mubr.bf16.mxu0 0
  %1229 = vmatmul.mubr.bf16.gmra.mrb[0].mxu0 %v1133
  %v1230 = vpop.f32.mrb[0].mxu0
  %v1231 = vadd.f32 0.0, %v1230
  %v1232 = vpop.f32.mrb[0].mxu0
  %v1233 = vpop.f32.mrb[0].mxu0
  %v1234 = vadd.f32 0.0, %v1233
  %v1235 = vpop.f32.mrb[0].mxu0
  %1236 = vmatprep.mubr.bf16.mxu0 0
  %1237 = vmatmul.mubr.bf16.gmra.mrb[0].mxu0 %v1136
  %v1238 = vpop.f32.mrb[0].mxu0
  %v1239 = vadd.f32 0.0, %v1238
  %v1240 = vpop.f32.mrb[0].mxu0
  %v1241 = vpop.f32.mrb[0].mxu0
  %v1242 = vadd.f32 0.0, %v1241
  %v1243 = vpop.f32.mrb[0].mxu0
  %1244 = vmatprep.mubr.bf16.mxu0 0
  %1245 = vmatmul.mubr.bf16.gmra.mrb[0].mxu0 %v1139
  %v1246 = vpop.f32.mrb[0].mxu0
  %v1247 = vadd.f32 0.0, %v1246
  %v1248 = vpop.f32.mrb[0].mxu0
  %v1249 = vpop.f32.mrb[0].mxu0
  %v1250 = vadd.f32 0.0, %v1249
  %v1251 = vpop.f32.mrb[0].mxu0
  %1252 = vmatprep.mubr.bf16.mxu0 0
  %1253 = vmatmul.mubr.bf16.gmra.mrb[0].mxu0 %v1142
  %v1254 = vpop.f32.mrb[0].mxu0
  %v1255 = vadd.f32 0.0, %v1254
  %v1256 = vpop.f32.mrb[0].mxu0
  %v1257 = vpop.f32.mrb[0].mxu0
  %v1258 = vadd.f32 0.0, %v1257
  %v1259 = vpop.f32.mrb[0].mxu0
  %1260 = vmatprep.mubr.bf16.mxu0 0
  %1261 = vmatmul.mubr.bf16.gmra.mrb[0].mxu0 %v1145
  %v1262 = vpop.f32.mrb[0].mxu0
  %v1263 = vadd.f32 0.0, %v1262
  %v1264 = vpop.f32.mrb[0].mxu0
  %v1265 = vpop.f32.mrb[0].mxu0
  %v1266 = vadd.f32 0.0, %v1265
  %v1267 = vpop.f32.mrb[0].mxu0
  %1268 = vmatprep.mubr.bf16.mxu0 0
  %1269 = vmatmul.mubr.bf16.gmra.mrb[0].mxu0 %v1148
  %v1270 = vpop.f32.mrb[0].mxu0
  %v1271 = vadd.f32 0.0, %v1270
  %v1272 = vpop.f32.mrb[0].mxu0
  %v1273 = vpop.f32.mrb[0].mxu0
  %v1274 = vadd.f32 0.0, %v1273
  %v1275 = vpop.f32.mrb[0].mxu0
  %1276 = vmatprep.mubr.bf16.mxu0 0
  %1277 = vmatmul.mubr.bf16.gmra.mrb[0].mxu0 %v1151
  %v1278 = vpop.f32.mrb[0].mxu0
  %v1279 = vadd.f32 0.0, %v1278
  %v1280 = vpop.f32.mrb[0].mxu0
  %v1281 = vpop.f32.mrb[0].mxu0
  %v1282 = vadd.f32 0.0, %v1281
  %v1283 = vpop.f32.mrb[0].mxu0
  %1284 = vdwg.mxu0
  %s1285 = scalar_lea.vmem %s2, 32
  %v1286 = vld [vmem:[%s1285] sm:$0xf]
  %v1287 = vld [vmem:[%s1285 + $0x4] sm:$0xf]
  %v1288 = vld [vmem:[%s1285 + $0x8] sm:$0xf]
  %v1289 = vld [vmem:[%s1285 + $0xc] sm:$0x3]
  %v1294 = vunpack.c.l.b16 %v1286
  %v1295 = vunpack.c.l.b16 %v1287
  %v1296 = vunpack.c.l.b16 %v1288
  %v1297 = vunpack.c.l.b16 %v1289
  %v1298 = vpack.c.b16 %v1295, %v1294
  %v1299 = vpack.c.b16 %v1297, %v1296
  %v1302 = vsel %vm224, %v1299, 0
  %1304 = vmatprep.subr.bf16.mxu0 0
  %1305 = vmatpush1.bf16.msra.mxu0 %v1298
  %1306 = vmatprep.subr.bf16.mxu0 0
  %1307 = vmatpush1.bf16.msra.mxu0 %v1302
  %1308 = vmatprep.subr.bf16.mxu0 0
  %1309 = vmatpush1.bf16.msra.mxu0 0
  %1310 = vmatprep.subr.bf16.mxu0 0
  %1311 = vmatpush1.bf16.msra.mxu0 0
  %1312 = vmatprep.subr.bf16.mxu0 0
  %1313 = vmatpush1.bf16.msra.mxu0 0
  %1314 = vmatprep.subr.bf16.mxu0 0
  %1315 = vmatpush1.bf16.msra.mxu0 0
  %1316 = vmatprep.subr.bf16.mxu0 0
  %1317 = vmatpush1.bf16.msra.mxu0 0
  %1318 = vmatprep.subr.bf16.mxu0 0
  %1319 = vmatpush1.bf16.msra.mxu0 0
  %1320 = vmatprep.subr.bf16.mxu0 0
  %1321 = vmatpush1.bf16.msra.mxu0 0
  %1322 = vmatprep.subr.bf16.mxu0 0
  %1323 = vmatpush1.bf16.msra.mxu0 0
  %1324 = vmatprep.subr.bf16.mxu0 0
  %1325 = vmatpush1.bf16.msra.mxu0 0
  %1326 = vmatprep.subr.bf16.mxu0 0
  %1327 = vmatpush1.bf16.msra.mxu0 0
  %1328 = vmatprep.subr.bf16.mxu0 0
  %1329 = vmatpush1.bf16.msra.mxu0 0
  %1330 = vmatprep.subr.bf16.mxu0 0
  %1331 = vmatpush1.bf16.msra.mxu0 0
  %1332 = vmatprep.subr.bf16.mxu0 0
  %1333 = vmatpush1.bf16.msra.mxu0 0
  %1334 = vmatprep.subr.bf16.mxu0 0
  %1335 = vmatpush1.bf16.msra.mxu0 0
  %1336 = vmatprep.mubr.bf16.mxu0 0
  %1337 = vmatmul.mubr.bf16.gmra.mrb[0].mxu0 %v1118
  %v1338 = vpop.f32.mrb[0].mxu0
  %v1339 = vadd.f32 0.0, %v1338
  %v1340 = vpop.f32.mrb[0].mxu0
  %v1341 = vpop.f32.mrb[0].mxu0
  %v1342 = vadd.f32 0.0, %v1341
  %v1343 = vpop.f32.mrb[0].mxu0
  %1344 = vmatprep.mubr.bf16.mxu0 0
  %1345 = vmatmul.mubr.bf16.gmra.mrb[0].mxu0 %v1121
  %v1346 = vpop.f32.mrb[0].mxu0
  %v1347 = vadd.f32 0.0, %v1346
  %v1348 = vpop.f32.mrb[0].mxu0
  %v1349 = vpop.f32.mrb[0].mxu0
  %v1350 = vadd.f32 0.0, %v1349
  %v1351 = vpop.f32.mrb[0].mxu0
  %1352 = vmatprep.mubr.bf16.mxu0 0
  %1353 = vmatmul.mubr.bf16.gmra.mrb[0].mxu0 %v1124
  %v1354 = vpop.f32.mrb[0].mxu0
  %v1355 = vadd.f32 0.0, %v1354
  %v1356 = vpop.f32.mrb[0].mxu0
  %v1357 = vpop.f32.mrb[0].mxu0
  %v1358 = vadd.f32 0.0, %v1357
  %v1359 = vpop.f32.mrb[0].mxu0
  %1360 = vmatprep.mubr.bf16.mxu0 0
  %1361 = vmatmul.mubr.bf16.gmra.mrb[0].mxu0 %v1127
  %v1362 = vpop.f32.mrb[0].mxu0
  %v1363 = vadd.f32 0.0, %v1362
  %v1364 = vpop.f32.mrb[0].mxu0
  %v1365 = vpop.f32.mrb[0].mxu0
  %v1366 = vadd.f32 0.0, %v1365
  %v1367 = vpop.f32.mrb[0].mxu0
  %1368 = vmatprep.mubr.bf16.mxu0 0
  %1369 = vmatmul.mubr.bf16.gmra.mrb[0].mxu0 %v1130
  %v1370 = vpop.f32.mrb[0].mxu0
  %v1371 = vadd.f32 0.0, %v1370
  %v1372 = vpop.f32.mrb[0].mxu0
  %v1373 = vpop.f32.mrb[0].mxu0
  %v1374 = vadd.f32 0.0, %v1373
  %v1375 = vpop.f32.mrb[0].mxu0
  %1376 = vmatprep.mubr.bf16.mxu0 0
  %1377 = vmatmul.mubr.bf16.gmra.mrb[0].mxu0 %v1133
  %v1378 = vpop.f32.mrb[0].mxu0
  %v1379 = vadd.f32 0.0, %v1378
  %v1380 = vpop.f32.mrb[0].mxu0
  %v1381 = vpop.f32.mrb[0].mxu0
  %v1382 = vadd.f32 0.0, %v1381
  %v1383 = vpop.f32.mrb[0].mxu0
  %1384 = vmatprep.mubr.bf16.mxu0 0
  %1385 = vmatmul.mubr.bf16.gmra.mrb[0].mxu0 %v1136
  %v1386 = vpop.f32.mrb[0].mxu0
  %v1387 = vadd.f32 0.0, %v1386
  %v1388 = vpop.f32.mrb[0].mxu0
  %v1389 = vpop.f32.mrb[0].mxu0
  %v1390 = vadd.f32 0.0, %v1389
  %v1391 = vpop.f32.mrb[0].mxu0
  %1392 = vmatprep.mubr.bf16.mxu0 0
  %1393 = vmatmul.mubr.bf16.gmra.mrb[0].mxu0 %v1139
  %v1394 = vpop.f32.mrb[0].mxu0
  %v1395 = vadd.f32 0.0, %v1394
  %v1396 = vpop.f32.mrb[0].mxu0
  %v1397 = vpop.f32.mrb[0].mxu0
  %v1398 = vadd.f32 0.0, %v1397
  %v1399 = vpop.f32.mrb[0].mxu0
  %1400 = vmatprep.mubr.bf16.mxu0 0
  %1401 = vmatmul.mubr.bf16.gmra.mrb[0].mxu0 %v1142
  %v1402 = vpop.f32.mrb[0].mxu0
  %v1403 = vadd.f32 0.0, %v1402
  %v1404 = vpop.f32.mrb[0].mxu0
  %v1405 = vpop.f32.mrb[0].mxu0
  %v1406 = vadd.f32 0.0, %v1405
  %v1407 = vpop.f32.mrb[0].mxu0
  %1408 = vmatprep.mubr.bf16.mxu0 0
  %1409 = vmatmul.mubr.bf16.gmra.mrb[0].mxu0 %v1145
  %v1410 = vpop.f32.mrb[0].mxu0
  %v1411 = vadd.f32 0.0, %v1410
  %v1412 = vpop.f32.mrb[0].mxu0
  %v1413 = vpop.f32.mrb[0].mxu0
  %v1414 = vadd.f32 0.0, %v1413
  %v1415 = vpop.f32.mrb[0].mxu0
  %1416 = vmatprep.mubr.bf16.mxu0 0
  %1417 = vmatmul.mubr.bf16.gmra.mrb[0].mxu0 %v1148
  %v1418 = vpop.f32.mrb[0].mxu0
  %v1419 = vadd.f32 0.0, %v1418
  %v1420 = vpop.f32.mrb[0].mxu0
  %v1421 = vpop.f32.mrb[0].mxu0
  %v1422 = vadd.f32 0.0, %v1421
  %v1423 = vpop.f32.mrb[0].mxu0
  %1424 = vmatprep.mubr.bf16.mxu0 0
  %1425 = vmatmul.mubr.bf16.gmra.mrb[0].mxu0 %v1151
  %v1426 = vpop.f32.mrb[0].mxu0
  %v1427 = vadd.f32 0.0, %v1426
  %v1428 = vpop.f32.mrb[0].mxu0
  %v1429 = vpop.f32.mrb[0].mxu0
  %v1430 = vadd.f32 0.0, %v1429
  %v1431 = vpop.f32.mrb[0].mxu0
  %1432 = vdwg.mxu0
  %v1433 = vld [vmem:[#allocation3] sm:$0xff]
  %v1434 = vld [vmem:[#allocation3 + $0x8] sm:$0xff]
  %v1435 = vld [vmem:[#allocation3 + $0x10] sm:$0xff]
  %v1436 = vld [vmem:[#allocation3 + $0x18] sm:$0xff]
  %v1437 = vld [vmem:[#allocation3 + $0x20] sm:$0xff]
  %v1438 = vld [vmem:[#allocation3 + $0x28] sm:$0xff]
  %v1439 = vld [vmem:[#allocation3 + $0x30] sm:$0xff]
  %v1440 = vld [vmem:[#allocation3 + $0x38] sm:$0xff]
  %v1441 = vld [vmem:[#allocation3 + $0x40] sm:$0xff]
  %v1442 = vld [vmem:[#allocation3 + $0x48] sm:$0xff]
  %v1443 = vld [vmem:[#allocation3 + $0x50] sm:$0xff]
  %v1444 = vld [vmem:[#allocation3 + $0x58] sm:$0xff]
  %v1445 = vld [vmem:[#allocation3 + $0x60] sm:$0xff]
  %v1446 = vld [vmem:[#allocation3 + $0x68] sm:$0xff]
  %v1447 = vld [vmem:[#allocation3 + $0x70] sm:$0xff]
  %v1448 = vld [vmem:[#allocation3 + $0x78] sm:$0xff]
  %v1449 = vld [vmem:[#allocation3 + $0x80] sm:$0xff]
  %v1450 = vld [vmem:[#allocation3 + $0x88] sm:$0xff]
  %v1451 = vld [vmem:[#allocation3 + $0x90] sm:$0xff]
  %v1452 = vld [vmem:[#allocation3 + $0x98] sm:$0xff]
  %v1453 = vld [vmem:[#allocation3 + $0xa0] sm:$0xff]
  %v1454 = vld [vmem:[#allocation3 + $0xa8] sm:$0xff]
  %v1455 = vld [vmem:[#allocation3 + $0xb0] sm:$0xff]
  %v1456 = vld [vmem:[#allocation3 + $0xb8] sm:$0xff]
  %v1457 = vadd.f32 %v1433, %v1191
  %v1458 = vadd.f32 %v1434, %v1194
  %v1459 = vadd.f32 %v1435, %v1199
  %v1460 = vadd.f32 %v1436, %v1202
  %v1461 = vadd.f32 %v1437, %v1207
  %v1462 = vadd.f32 %v1438, %v1210
  %v1463 = vadd.f32 %v1439, %v1215
  %v1464 = vadd.f32 %v1440, %v1218
  %v1465 = vadd.f32 %v1441, %v1223
  %v1466 = vadd.f32 %v1442, %v1226
  %v1467 = vadd.f32 %v1443, %v1231
  %v1468 = vadd.f32 %v1444, %v1234
  %v1469 = vadd.f32 %v1445, %v1239
  %v1470 = vadd.f32 %v1446, %v1242
  %v1471 = vadd.f32 %v1447, %v1247
  %v1472 = vadd.f32 %v1448, %v1250
  %v1473 = vadd.f32 %v1449, %v1255
  %v1474 = vadd.f32 %v1450, %v1258
  %v1475 = vadd.f32 %v1451, %v1263
  %v1476 = vadd.f32 %v1452, %v1266
  %v1477 = vadd.f32 %v1453, %v1271
  %v1478 = vadd.f32 %v1454, %v1274
  %v1479 = vadd.f32 %v1455, %v1279
  %v1480 = vadd.f32 %v1456, %v1282
  %1481 = vst.msk [vmem:[#allocation3] sm:$0xff] %vm504, %v1457
  %1482 = vst.msk [vmem:[#allocation3 + $0x8] sm:$0xff] %vm504, %v1458
  %1483 = vst.msk [vmem:[#allocation3 + $0x10] sm:$0xff] %vm504, %v1459
  %1484 = vst.msk [vmem:[#allocation3 + $0x18] sm:$0xff] %vm504, %v1460
  %1485 = vst.msk [vmem:[#allocation3 + $0x20] sm:$0xff] %vm504, %v1461
  %1486 = vst.msk [vmem:[#allocation3 + $0x28] sm:$0xff] %vm504, %v1462
  %1487 = vst.msk [vmem:[#allocation3 + $0x30] sm:$0xff] %vm504, %v1463
  %1488 = vst.msk [vmem:[#allocation3 + $0x38] sm:$0xff] %vm504, %v1464
  %1489 = vst.msk [vmem:[#allocation3 + $0x40] sm:$0xff] %vm504, %v1465
  %1490 = vst.msk [vmem:[#allocation3 + $0x48] sm:$0xff] %vm504, %v1466
  %1491 = vst.msk [vmem:[#allocation3 + $0x50] sm:$0xff] %vm504, %v1467
  %1492 = vst.msk [vmem:[#allocation3 + $0x58] sm:$0xff] %vm504, %v1468
  %1493 = vst.msk [vmem:[#allocation3 + $0x60] sm:$0xff] %vm504, %v1469
  %1494 = vst.msk [vmem:[#allocation3 + $0x68] sm:$0xff] %vm504, %v1470
  %1495 = vst.msk [vmem:[#allocation3 + $0x70] sm:$0xff] %vm504, %v1471
  %1496 = vst.msk [vmem:[#allocation3 + $0x78] sm:$0xff] %vm504, %v1472
  %1497 = vst.msk [vmem:[#allocation3 + $0x80] sm:$0xff] %vm504, %v1473
  %1498 = vst.msk [vmem:[#allocation3 + $0x88] sm:$0xff] %vm504, %v1474
  %1499 = vst.msk [vmem:[#allocation3 + $0x90] sm:$0xff] %vm504, %v1475
  %1500 = vst.msk [vmem:[#allocation3 + $0x98] sm:$0xff] %vm504, %v1476
  %1501 = vst.msk [vmem:[#allocation3 + $0xa0] sm:$0xff] %vm504, %v1477
  %1502 = vst.msk [vmem:[#allocation3 + $0xa8] sm:$0xff] %vm504, %v1478
  %1503 = vst.msk [vmem:[#allocation3 + $0xb0] sm:$0xff] %vm504, %v1479
  %1504 = vst.msk [vmem:[#allocation3 + $0xb8] sm:$0xff] %vm504, %v1480
  %v1505 = vld [vmem:[#allocation4] sm:$0xff]
  %v1506 = vld [vmem:[#allocation4 + $0x8] sm:$0xff]
  %v1507 = vld [vmem:[#allocation4 + $0x10] sm:$0xff]
  %v1508 = vld [vmem:[#allocation4 + $0x18] sm:$0xff]
  %v1509 = vld [vmem:[#allocation4 + $0x20] sm:$0xff]
  %v1510 = vld [vmem:[#allocation4 + $0x28] sm:$0xff]
  %v1511 = vld [vmem:[#allocation4 + $0x30] sm:$0xff]
  %v1512 = vld [vmem:[#allocation4 + $0x38] sm:$0xff]
  %v1513 = vld [vmem:[#allocation4 + $0x40] sm:$0xff]
  %v1514 = vld [vmem:[#allocation4 + $0x48] sm:$0xff]
  %v1515 = vld [vmem:[#allocation4 + $0x50] sm:$0xff]
  %v1516 = vld [vmem:[#allocation4 + $0x58] sm:$0xff]
  %v1517 = vld [vmem:[#allocation4 + $0x60] sm:$0xff]
  %v1518 = vld [vmem:[#allocation4 + $0x68] sm:$0xff]
  %v1519 = vld [vmem:[#allocation4 + $0x70] sm:$0xff]
  %v1520 = vld [vmem:[#allocation4 + $0x78] sm:$0xff]
  %v1521 = vld [vmem:[#allocation4 + $0x80] sm:$0xff]
  %v1522 = vld [vmem:[#allocation4 + $0x88] sm:$0xff]
  %v1523 = vld [vmem:[#allocation4 + $0x90] sm:$0xff]
  %v1524 = vld [vmem:[#allocation4 + $0x98] sm:$0xff]
  %v1525 = vld [vmem:[#allocation4 + $0xa0] sm:$0xff]
  %v1526 = vld [vmem:[#allocation4 + $0xa8] sm:$0xff]
  %v1527 = vld [vmem:[#allocation4 + $0xb0] sm:$0xff]
  %v1528 = vld [vmem:[#allocation4 + $0xb8] sm:$0xff]
  %v1529 = vadd.f32 %v1505, %v1339
  %v1530 = vadd.f32 %v1506, %v1342
  %v1531 = vadd.f32 %v1507, %v1347
  %v1532 = vadd.f32 %v1508, %v1350
  %v1533 = vadd.f32 %v1509, %v1355
  %v1534 = vadd.f32 %v1510, %v1358
  %v1535 = vadd.f32 %v1511, %v1363
  %v1536 = vadd.f32 %v1512, %v1366
  %v1537 = vadd.f32 %v1513, %v1371
  %v1538 = vadd.f32 %v1514, %v1374
  %v1539 = vadd.f32 %v1515, %v1379
  %v1540 = vadd.f32 %v1516, %v1382
  %v1541 = vadd.f32 %v1517, %v1387
  %v1542 = vadd.f32 %v1518, %v1390
  %v1543 = vadd.f32 %v1519, %v1395
  %v1544 = vadd.f32 %v1520, %v1398
  %v1545 = vadd.f32 %v1521, %v1403
  %v1546 = vadd.f32 %v1522, %v1406
  %v1547 = vadd.f32 %v1523, %v1411
  %v1548 = vadd.f32 %v1524, %v1414
  %v1549 = vadd.f32 %v1525, %v1419
  %v1550 = vadd.f32 %v1526, %v1422
  %v1551 = vadd.f32 %v1527, %v1427
  %v1552 = vadd.f32 %v1528, %v1430
  %1553 = vst.msk [vmem:[#allocation4] sm:$0xff] %vm504, %v1529
  %1554 = vst.msk [vmem:[#allocation4 + $0x8] sm:$0xff] %vm504, %v1530
  %1555 = vst.msk [vmem:[#allocation4 + $0x10] sm:$0xff] %vm504, %v1531
  %1556 = vst.msk [vmem:[#allocation4 + $0x18] sm:$0xff] %vm504, %v1532
  %1557 = vst.msk [vmem:[#allocation4 + $0x20] sm:$0xff] %vm504, %v1533
  %1558 = vst.msk [vmem:[#allocation4 + $0x28] sm:$0xff] %vm504, %v1534
  %1559 = vst.msk [vmem:[#allocation4 + $0x30] sm:$0xff] %vm504, %v1535
  %1560 = vst.msk [vmem:[#allocation4 + $0x38] sm:$0xff] %vm504, %v1536
  %1561 = vst.msk [vmem:[#allocation4 + $0x40] sm:$0xff] %vm504, %v1537
  %1562 = vst.msk [vmem:[#allocation4 + $0x48] sm:$0xff] %vm504, %v1538
  %1563 = vst.msk [vmem:[#allocation4 + $0x50] sm:$0xff] %vm504, %v1539
  %1564 = vst.msk [vmem:[#allocation4 + $0x58] sm:$0xff] %vm504, %v1540
  %1565 = vst.msk [vmem:[#allocation4 + $0x60] sm:$0xff] %vm504, %v1541
  %1566 = vst.msk [vmem:[#allocation4 + $0x68] sm:$0xff] %vm504, %v1542
  %1567 = vst.msk [vmem:[#allocation4 + $0x70] sm:$0xff] %vm504, %v1543
  %1568 = vst.msk [vmem:[#allocation4 + $0x78] sm:$0xff] %vm504, %v1544
  %1569 = vst.msk [vmem:[#allocation4 + $0x80] sm:$0xff] %vm504, %v1545
  %1570 = vst.msk [vmem:[#allocation4 + $0x88] sm:$0xff] %vm504, %v1546
  %1571 = vst.msk [vmem:[#allocation4 + $0x90] sm:$0xff] %vm504, %v1547
  %1572 = vst.msk [vmem:[#allocation4 + $0x98] sm:$0xff] %vm504, %v1548
  %1573 = vst.msk [vmem:[#allocation4 + $0xa0] sm:$0xff] %vm504, %v1549
  %1574 = vst.msk [vmem:[#allocation4 + $0xa8] sm:$0xff] %vm504, %v1550
  %1575 = vst.msk [vmem:[#allocation4 + $0xb0] sm:$0xff] %vm504, %v1551
  %1576 = vst.msk [vmem:[#allocation4 + $0xb8] sm:$0xff] %vm504, %v1552
  %v1577 = vld [vmem:[#allocation2 + $0x3] sm:$0xff]
  %v1578 = vld [vmem:[#allocation2 + $0xb] sm:$0xff]
  %v1579 = vld [vmem:[#allocation2 + $0x13] sm:$0xff]
  %v1580 = vld [vmem:[#allocation2 + $0x23] sm:$0xff]
  %v1581 = vld [vmem:[#allocation2 + $0x2b] sm:$0xff]
  %v1582 = vld [vmem:[#allocation2 + $0x33] sm:$0xff]
  %v1583 = vld [vmem:[#allocation2 + $0x43] sm:$0xff]
  %v1584 = vld [vmem:[#allocation2 + $0x4b] sm:$0xff]
  %v1585 = vld [vmem:[#allocation2 + $0x53] sm:$0xff]
  %v1586 = vld [vmem:[#allocation2 + $0x63] sm:$0xff]
  %v1587 = vld [vmem:[#allocation2 + $0x6b] sm:$0xff]
  %v1588 = vld [vmem:[#allocation2 + $0x73] sm:$0xff]
  %v1589 = vld [vmem:[#allocation2 + $0x83] sm:$0xff]
  %v1590 = vld [vmem:[#allocation2 + $0x8b] sm:$0xff]
  %v1591 = vld [vmem:[#allocation2 + $0x93] sm:$0xff]
  %v1592 = vld [vmem:[#allocation2 + $0xa3] sm:$0xff]
  %v1593 = vld [vmem:[#allocation2 + $0xab] sm:$0xff]
  %v1594 = vld [vmem:[#allocation2 + $0xb3] sm:$0xff]
  %v1595 = vld [vmem:[#allocation2 + $0xc3] sm:$0xff]
  %v1596 = vld [vmem:[#allocation2 + $0xcb] sm:$0xff]
  %v1597 = vld [vmem:[#allocation2 + $0xd3] sm:$0xff]
  %v1598 = vld [vmem:[#allocation2 + $0xe3] sm:$0xff]
  %v1599 = vld [vmem:[#allocation2 + $0xeb] sm:$0xff]
  %v1600 = vld [vmem:[#allocation2 + $0xf3] sm:$0xff]
  %v1601 = vpack.c.bf16 %v1578, %v1577
  %v1602 = vpack.c.bf16 %v1580, %v1579
  %v1603 = vpack.c.bf16 %v1582, %v1581
  %v1604 = vpack.c.bf16 %v1584, %v1583
  %v1605 = vpack.c.bf16 %v1586, %v1585
  %v1606 = vpack.c.bf16 %v1588, %v1587
  %v1607 = vpack.c.bf16 %v1590, %v1589
  %v1608 = vpack.c.bf16 %v1592, %v1591
  %v1609 = vpack.c.bf16 %v1594, %v1593
  %v1610 = vpack.c.bf16 %v1596, %v1595
  %v1611 = vpack.c.bf16 %v1598, %v1597
  %v1612 = vpack.c.bf16 %v1600, %v1599
  %s1613 = scalar_lea.vmem %s1, 48
  %v1614 = vld [vmem:[%s1613] sm:$0xf]
  %v1615 = vld [vmem:[%s1613 + $0x4] sm:$0xf]
  %v1616 = vld [vmem:[%s1613 + $0x8] sm:$0xf]
  %v1617 = vld [vmem:[%s1613 + $0xc] sm:$0x3]
  %v1622 = vunpack.c.l.b16 %v1614
  %v1623 = vunpack.c.l.b16 %v1615
  %v1624 = vunpack.c.l.b16 %v1616
  %v1625 = vunpack.c.l.b16 %v1617
  %v1626 = vpack.c.b16 %v1623, %v1622
  %v1627 = vpack.c.b16 %v1625, %v1624
  %v1630 = vsel %vm103, %v1601, 0
  %v1633 = vsel %vm103, %v1602, 0
  %v1636 = vsel %vm103, %v1603, 0
  %v1639 = vsel %vm103, %v1604, 0
  %v1642 = vsel %vm103, %v1605, 0
  %v1645 = vsel %vm103, %v1606, 0
  %v1648 = vsel %vm103, %v1607, 0
  %v1651 = vsel %vm103, %v1608, 0
  %v1654 = vsel %vm103, %v1609, 0
  %v1657 = vsel %vm103, %v1610, 0
  %v1660 = vsel %vm103, %v1611, 0
  %v1663 = vsel %vm103, %v1612, 0
  %v1666 = vsel %vm224, %v1627, 0
  %1668 = vmatprep.subr.bf16.mxu0 0
  %1669 = vmatpush1.bf16.msra.mxu0 %v1626
  %1670 = vmatprep.subr.bf16.mxu0 0
  %1671 = vmatpush1.bf16.msra.mxu0 %v1666
  %1672 = vmatprep.subr.bf16.mxu0 0
  %1673 = vmatpush1.bf16.msra.mxu0 0
  %1674 = vmatprep.subr.bf16.mxu0 0
  %1675 = vmatpush1.bf16.msra.mxu0 0
  %1676 = vmatprep.subr.bf16.mxu0 0
  %1677 = vmatpush1.bf16.msra.mxu0 0
  %1678 = vmatprep.subr.bf16.mxu0 0
  %1679 = vmatpush1.bf16.msra.mxu0 0
  %1680 = vmatprep.subr.bf16.mxu0 0
  %1681 = vmatpush1.bf16.msra.mxu0 0
  %1682 = vmatprep.subr.bf16.mxu0 0
  %1683 = vmatpush1.bf16.msra.mxu0 0
  %1684 = vmatprep.subr.bf16.mxu0 0
  %1685 = vmatpush1.bf16.msra.mxu0 0
  %1686 = vmatprep.subr.bf16.mxu0 0
  %1687 = vmatpush1.bf16.msra.mxu0 0
  %1688 = vmatprep.subr.bf16.mxu0 0
  %1689 = vmatpush1.bf16.msra.mxu0 0
  %1690 = vmatprep.subr.bf16.mxu0 0
  %1691 = vmatpush1.bf16.msra.mxu0 0
  %1692 = vmatprep.subr.bf16.mxu0 0
  %1693 = vmatpush1.bf16.msra.mxu0 0
  %1694 = vmatprep.subr.bf16.mxu0 0
  %1695 = vmatpush1.bf16.msra.mxu0 0
  %1696 = vmatprep.subr.bf16.mxu0 0
  %1697 = vmatpush1.bf16.msra.mxu0 0
  %1698 = vmatprep.subr.bf16.mxu0 0
  %1699 = vmatpush1.bf16.msra.mxu0 0
  %1700 = vmatprep.mubr.bf16.mxu0 0
  %1701 = vmatmul.mubr.bf16.gmra.mrb[0].mxu0 %v1630
  %v1702 = vpop.f32.mrb[0].mxu0
  %v1703 = vadd.f32 0.0, %v1702
  %v1704 = vpop.f32.mrb[0].mxu0
  %v1705 = vpop.f32.mrb[0].mxu0
  %v1706 = vadd.f32 0.0, %v1705
  %v1707 = vpop.f32.mrb[0].mxu0
  %1708 = vmatprep.mubr.bf16.mxu0 0
  %1709 = vmatmul.mubr.bf16.gmra.mrb[0].mxu0 %v1633
  %v1710 = vpop.f32.mrb[0].mxu0
  %v1711 = vadd.f32 0.0, %v1710
  %v1712 = vpop.f32.mrb[0].mxu0
  %v1713 = vpop.f32.mrb[0].mxu0
  %v1714 = vadd.f32 0.0, %v1713
  %v1715 = vpop.f32.mrb[0].mxu0
  %1716 = vmatprep.mubr.bf16.mxu0 0
  %1717 = vmatmul.mubr.bf16.gmra.mrb[0].mxu0 %v1636
  %v1718 = vpop.f32.mrb[0].mxu0
  %v1719 = vadd.f32 0.0, %v1718
  %v1720 = vpop.f32.mrb[0].mxu0
  %v1721 = vpop.f32.mrb[0].mxu0
  %v1722 = vadd.f32 0.0, %v1721
  %v1723 = vpop.f32.mrb[0].mxu0
  %1724 = vmatprep.mubr.bf16.mxu0 0
  %1725 = vmatmul.mubr.bf16.gmra.mrb[0].mxu0 %v1639
  %v1726 = vpop.f32.mrb[0].mxu0
  %v1727 = vadd.f32 0.0, %v1726
  %v1728 = vpop.f32.mrb[0].mxu0
  %v1729 = vpop.f32.mrb[0].mxu0
  %v1730 = vadd.f32 0.0, %v1729
  %v1731 = vpop.f32.mrb[0].mxu0
  %1732 = vmatprep.mubr.bf16.mxu0 0
  %1733 = vmatmul.mubr.bf16.gmra.mrb[0].mxu0 %v1642
  %v1734 = vpop.f32.mrb[0].mxu0
  %v1735 = vadd.f32 0.0, %v1734
  %v1736 = vpop.f32.mrb[0].mxu0
  %v1737 = vpop.f32.mrb[0].mxu0
  %v1738 = vadd.f32 0.0, %v1737
  %v1739 = vpop.f32.mrb[0].mxu0
  %1740 = vmatprep.mubr.bf16.mxu0 0
  %1741 = vmatmul.mubr.bf16.gmra.mrb[0].mxu0 %v1645
  %v1742 = vpop.f32.mrb[0].mxu0
  %v1743 = vadd.f32 0.0, %v1742
  %v1744 = vpop.f32.mrb[0].mxu0
  %v1745 = vpop.f32.mrb[0].mxu0
  %v1746 = vadd.f32 0.0, %v1745
  %v1747 = vpop.f32.mrb[0].mxu0
  %1748 = vmatprep.mubr.bf16.mxu0 0
  %1749 = vmatmul.mubr.bf16.gmra.mrb[0].mxu0 %v1648
  %v1750 = vpop.f32.mrb[0].mxu0
  %v1751 = vadd.f32 0.0, %v1750
  %v1752 = vpop.f32.mrb[0].mxu0
  %v1753 = vpop.f32.mrb[0].mxu0
  %v1754 = vadd.f32 0.0, %v1753
  %v1755 = vpop.f32.mrb[0].mxu0
  %1756 = vmatprep.mubr.bf16.mxu0 0
  %1757 = vmatmul.mubr.bf16.gmra.mrb[0].mxu0 %v1651
  %v1758 = vpop.f32.mrb[0].mxu0
  %v1759 = vadd.f32 0.0, %v1758
  %v1760 = vpop.f32.mrb[0].mxu0
  %v1761 = vpop.f32.mrb[0].mxu0
  %v1762 = vadd.f32 0.0, %v1761
  %v1763 = vpop.f32.mrb[0].mxu0
  %1764 = vmatprep.mubr.bf16.mxu0 0
  %1765 = vmatmul.mubr.bf16.gmra.mrb[0].mxu0 %v1654
  %v1766 = vpop.f32.mrb[0].mxu0
  %v1767 = vadd.f32 0.0, %v1766
  %v1768 = vpop.f32.mrb[0].mxu0
  %v1769 = vpop.f32.mrb[0].mxu0
  %v1770 = vadd.f32 0.0, %v1769
  %v1771 = vpop.f32.mrb[0].mxu0
  %1772 = vmatprep.mubr.bf16.mxu0 0
  %1773 = vmatmul.mubr.bf16.gmra.mrb[0].mxu0 %v1657
  %v1774 = vpop.f32.mrb[0].mxu0
  %v1775 = vadd.f32 0.0, %v1774
  %v1776 = vpop.f32.mrb[0].mxu0
  %v1777 = vpop.f32.mrb[0].mxu0
  %v1778 = vadd.f32 0.0, %v1777
  %v1779 = vpop.f32.mrb[0].mxu0
  %1780 = vmatprep.mubr.bf16.mxu0 0
  %1781 = vmatmul.mubr.bf16.gmra.mrb[0].mxu0 %v1660
  %v1782 = vpop.f32.mrb[0].mxu0
  %v1783 = vadd.f32 0.0, %v1782
  %v1784 = vpop.f32.mrb[0].mxu0
  %v1785 = vpop.f32.mrb[0].mxu0
  %v1786 = vadd.f32 0.0, %v1785
  %v1787 = vpop.f32.mrb[0].mxu0
  %1788 = vmatprep.mubr.bf16.mxu0 0
  %1789 = vmatmul.mubr.bf16.gmra.mrb[0].mxu0 %v1663
  %v1790 = vpop.f32.mrb[0].mxu0
  %v1791 = vadd.f32 0.0, %v1790
  %v1792 = vpop.f32.mrb[0].mxu0
  %v1793 = vpop.f32.mrb[0].mxu0
  %v1794 = vadd.f32 0.0, %v1793
  %v1795 = vpop.f32.mrb[0].mxu0
  %1796 = vdwg.mxu0
  %s1797 = scalar_lea.vmem %s2, 48
  %v1798 = vld [vmem:[%s1797] sm:$0xf]
  %v1799 = vld [vmem:[%s1797 + $0x4] sm:$0xf]
  %v1800 = vld [vmem:[%s1797 + $0x8] sm:$0xf]
  %v1801 = vld [vmem:[%s1797 + $0xc] sm:$0x3]
  %v1806 = vunpack.c.l.b16 %v1798
  %v1807 = vunpack.c.l.b16 %v1799
  %v1808 = vunpack.c.l.b16 %v1800
  %v1809 = vunpack.c.l.b16 %v1801
  %v1810 = vpack.c.b16 %v1807, %v1806
  %v1811 = vpack.c.b16 %v1809, %v1808
  %v1814 = vsel %vm224, %v1811, 0
  %1816 = vmatprep.subr.bf16.mxu0 0
  %1817 = vmatpush1.bf16.msra.mxu0 %v1810
  %1818 = vmatprep.subr.bf16.mxu0 0
  %1819 = vmatpush1.bf16.msra.mxu0 %v1814
  %1820 = vmatprep.subr.bf16.mxu0 0
  %1821 = vmatpush1.bf16.msra.mxu0 0
  %1822 = vmatprep.subr.bf16.mxu0 0
  %1823 = vmatpush1.bf16.msra.mxu0 0
  %1824 = vmatprep.subr.bf16.mxu0 0
  %1825 = vmatpush1.bf16.msra.mxu0 0
  %1826 = vmatprep.subr.bf16.mxu0 0
  %1827 = vmatpush1.bf16.msra.mxu0 0
  %1828 = vmatprep.subr.bf16.mxu0 0
  %1829 = vmatpush1.bf16.msra.mxu0 0
  %1830 = vmatprep.subr.bf16.mxu0 0
  %1831 = vmatpush1.bf16.msra.mxu0 0
  %1832 = vmatprep.subr.bf16.mxu0 0
  %1833 = vmatpush1.bf16.msra.mxu0 0
  %1834 = vmatprep.subr.bf16.mxu0 0
  %1835 = vmatpush1.bf16.msra.mxu0 0
  %1836 = vmatprep.subr.bf16.mxu0 0
  %1837 = vmatpush1.bf16.msra.mxu0 0
  %1838 = vmatprep.subr.bf16.mxu0 0
  %1839 = vmatpush1.bf16.msra.mxu0 0
  %1840 = vmatprep.subr.bf16.mxu0 0
  %1841 = vmatpush1.bf16.msra.mxu0 0
  %1842 = vmatprep.subr.bf16.mxu0 0
  %1843 = vmatpush1.bf16.msra.mxu0 0
  %1844 = vmatprep.subr.bf16.mxu0 0
  %1845 = vmatpush1.bf16.msra.mxu0 0
  %1846 = vmatprep.subr.bf16.mxu0 0
  %1847 = vmatpush1.bf16.msra.mxu0 0
  %1848 = vmatprep.mubr.bf16.mxu0 0
  %1849 = vmatmul.mubr.bf16.gmra.mrb[0].mxu0 %v1630
  %v1850 = vpop.f32.mrb[0].mxu0
  %v1851 = vadd.f32 0.0, %v1850
  %v1852 = vpop.f32.mrb[0].mxu0
  %v1853 = vpop.f32.mrb[0].mxu0
  %v1854 = vadd.f32 0.0, %v1853
  %v1855 = vpop.f32.mrb[0].mxu0
  %1856 = vmatprep.mubr.bf16.mxu0 0
  %1857 = vmatmul.mubr.bf16.gmra.mrb[0].mxu0 %v1633
  %v1858 = vpop.f32.mrb[0].mxu0
  %v1859 = vadd.f32 0.0, %v1858
  %v1860 = vpop.f32.mrb[0].mxu0
  %v1861 = vpop.f32.mrb[0].mxu0
  %v1862 = vadd.f32 0.0, %v1861
  %v1863 = vpop.f32.mrb[0].mxu0
  %1864 = vmatprep.mubr.bf16.mxu0 0
  %1865 = vmatmul.mubr.bf16.gmra.mrb[0].mxu0 %v1636
  %v1866 = vpop.f32.mrb[0].mxu0
  %v1867 = vadd.f32 0.0, %v1866
  %v1868 = vpop.f32.mrb[0].mxu0
  %v1869 = vpop.f32.mrb[0].mxu0
  %v1870 = vadd.f32 0.0, %v1869
  %v1871 = vpop.f32.mrb[0].mxu0
  %1872 = vmatprep.mubr.bf16.mxu0 0
  %1873 = vmatmul.mubr.bf16.gmra.mrb[0].mxu0 %v1639
  %v1874 = vpop.f32.mrb[0].mxu0
  %v1875 = vadd.f32 0.0, %v1874
  %v1876 = vpop.f32.mrb[0].mxu0
  %v1877 = vpop.f32.mrb[0].mxu0
  %v1878 = vadd.f32 0.0, %v1877
  %v1879 = vpop.f32.mrb[0].mxu0
  %1880 = vmatprep.mubr.bf16.mxu0 0
  %1881 = vmatmul.mubr.bf16.gmra.mrb[0].mxu0 %v1642
  %v1882 = vpop.f32.mrb[0].mxu0
  %v1883 = vadd.f32 0.0, %v1882
  %v1884 = vpop.f32.mrb[0].mxu0
  %v1885 = vpop.f32.mrb[0].mxu0
  %v1886 = vadd.f32 0.0, %v1885
  %v1887 = vpop.f32.mrb[0].mxu0
  %1888 = vmatprep.mubr.bf16.mxu0 0
  %1889 = vmatmul.mubr.bf16.gmra.mrb[0].mxu0 %v1645
  %v1890 = vpop.f32.mrb[0].mxu0
  %v1891 = vadd.f32 0.0, %v1890
  %v1892 = vpop.f32.mrb[0].mxu0
  %v1893 = vpop.f32.mrb[0].mxu0
  %v1894 = vadd.f32 0.0, %v1893
  %v1895 = vpop.f32.mrb[0].mxu0
  %1896 = vmatprep.mubr.bf16.mxu0 0
  %1897 = vmatmul.mubr.bf16.gmra.mrb[0].mxu0 %v1648
  %v1898 = vpop.f32.mrb[0].mxu0
  %v1899 = vadd.f32 0.0, %v1898
  %v1900 = vpop.f32.mrb[0].mxu0
  %v1901 = vpop.f32.mrb[0].mxu0
  %v1902 = vadd.f32 0.0, %v1901
  %v1903 = vpop.f32.mrb[0].mxu0
  %1904 = vmatprep.mubr.bf16.mxu0 0
  %1905 = vmatmul.mubr.bf16.gmra.mrb[0].mxu0 %v1651
  %v1906 = vpop.f32.mrb[0].mxu0
  %v1907 = vadd.f32 0.0, %v1906
  %v1908 = vpop.f32.mrb[0].mxu0
  %v1909 = vpop.f32.mrb[0].mxu0
  %v1910 = vadd.f32 0.0, %v1909
  %v1911 = vpop.f32.mrb[0].mxu0
  %1912 = vmatprep.mubr.bf16.mxu0 0
  %1913 = vmatmul.mubr.bf16.gmra.mrb[0].mxu0 %v1654
  %v1914 = vpop.f32.mrb[0].mxu0
  %v1915 = vadd.f32 0.0, %v1914
  %v1916 = vpop.f32.mrb[0].mxu0
  %v1917 = vpop.f32.mrb[0].mxu0
  %v1918 = vadd.f32 0.0, %v1917
  %v1919 = vpop.f32.mrb[0].mxu0
  %1920 = vmatprep.mubr.bf16.mxu0 0
  %1921 = vmatmul.mubr.bf16.gmra.mrb[0].mxu0 %v1657
  %v1922 = vpop.f32.mrb[0].mxu0
  %v1923 = vadd.f32 0.0, %v1922
  %v1924 = vpop.f32.mrb[0].mxu0
  %v1925 = vpop.f32.mrb[0].mxu0
  %v1926 = vadd.f32 0.0, %v1925
  %v1927 = vpop.f32.mrb[0].mxu0
  %1928 = vmatprep.mubr.bf16.mxu0 0
  %1929 = vmatmul.mubr.bf16.gmra.mrb[0].mxu0 %v1660
  %v1930 = vpop.f32.mrb[0].mxu0
  %v1931 = vadd.f32 0.0, %v1930
  %v1932 = vpop.f32.mrb[0].mxu0
  %v1933 = vpop.f32.mrb[0].mxu0
  %v1934 = vadd.f32 0.0, %v1933
  %v1935 = vpop.f32.mrb[0].mxu0
  %1936 = vmatprep.mubr.bf16.mxu0 0
  %1937 = vmatmul.mubr.bf16.gmra.mrb[0].mxu0 %v1663
  %v1938 = vpop.f32.mrb[0].mxu0
  %v1939 = vadd.f32 0.0, %v1938
  %v1940 = vpop.f32.mrb[0].mxu0
  %v1941 = vpop.f32.mrb[0].mxu0
  %v1942 = vadd.f32 0.0, %v1941
  %v1943 = vpop.f32.mrb[0].mxu0
  %1944 = vdwg.mxu0
  %v1945 = vld [vmem:[#allocation3] sm:$0xff]
  %v1946 = vld [vmem:[#allocation3 + $0x8] sm:$0xff]
  %v1947 = vld [vmem:[#allocation3 + $0x10] sm:$0xff]
  %v1948 = vld [vmem:[#allocation3 + $0x18] sm:$0xff]
  %v1949 = vld [vmem:[#allocation3 + $0x20] sm:$0xff]
  %v1950 = vld [vmem:[#allocation3 + $0x28] sm:$0xff]
  %v1951 = vld [vmem:[#allocation3 + $0x30] sm:$0xff]
  %v1952 = vld [vmem:[#allocation3 + $0x38] sm:$0xff]
  %v1953 = vld [vmem:[#allocation3 + $0x40] sm:$0xff]
  %v1954 = vld [vmem:[#allocation3 + $0x48] sm:$0xff]
  %v1955 = vld [vmem:[#allocation3 + $0x50] sm:$0xff]
  %v1956 = vld [vmem:[#allocation3 + $0x58] sm:$0xff]
  %v1957 = vld [vmem:[#allocation3 + $0x60] sm:$0xff]
  %v1958 = vld [vmem:[#allocation3 + $0x68] sm:$0xff]
  %v1959 = vld [vmem:[#allocation3 + $0x70] sm:$0xff]
  %v1960 = vld [vmem:[#allocation3 + $0x78] sm:$0xff]
  %v1961 = vld [vmem:[#allocation3 + $0x80] sm:$0xff]
  %v1962 = vld [vmem:[#allocation3 + $0x88] sm:$0xff]
  %v1963 = vld [vmem:[#allocation3 + $0x90] sm:$0xff]
  %v1964 = vld [vmem:[#allocation3 + $0x98] sm:$0xff]
  %v1965 = vld [vmem:[#allocation3 + $0xa0] sm:$0xff]
  %v1966 = vld [vmem:[#allocation3 + $0xa8] sm:$0xff]
  %v1967 = vld [vmem:[#allocation3 + $0xb0] sm:$0xff]
  %v1968 = vld [vmem:[#allocation3 + $0xb8] sm:$0xff]
  %v1969 = vadd.f32 %v1945, %v1703
  %v1970 = vadd.f32 %v1946, %v1706
  %v1971 = vadd.f32 %v1947, %v1711
  %v1972 = vadd.f32 %v1948, %v1714
  %v1973 = vadd.f32 %v1949, %v1719
  %v1974 = vadd.f32 %v1950, %v1722
  %v1975 = vadd.f32 %v1951, %v1727
  %v1976 = vadd.f32 %v1952, %v1730
  %v1977 = vadd.f32 %v1953, %v1735
  %v1978 = vadd.f32 %v1954, %v1738
  %v1979 = vadd.f32 %v1955, %v1743
  %v1980 = vadd.f32 %v1956, %v1746
  %v1981 = vadd.f32 %v1957, %v1751
  %v1982 = vadd.f32 %v1958, %v1754
  %v1983 = vadd.f32 %v1959, %v1759
  %v1984 = vadd.f32 %v1960, %v1762
  %v1985 = vadd.f32 %v1961, %v1767
  %v1986 = vadd.f32 %v1962, %v1770
  %v1987 = vadd.f32 %v1963, %v1775
  %v1988 = vadd.f32 %v1964, %v1778
  %v1989 = vadd.f32 %v1965, %v1783
  %v1990 = vadd.f32 %v1966, %v1786
  %v1991 = vadd.f32 %v1967, %v1791
  %v1992 = vadd.f32 %v1968, %v1794
  %1993 = vst.msk [vmem:[#allocation3] sm:$0xff] %vm504, %v1969
  %1994 = vst.msk [vmem:[#allocation3 + $0x8] sm:$0xff] %vm504, %v1970
  %1995 = vst.msk [vmem:[#allocation3 + $0x10] sm:$0xff] %vm504, %v1971
  %1996 = vst.msk [vmem:[#allocation3 + $0x18] sm:$0xff] %vm504, %v1972
  %1997 = vst.msk [vmem:[#allocation3 + $0x20] sm:$0xff] %vm504, %v1973
  %1998 = vst.msk [vmem:[#allocation3 + $0x28] sm:$0xff] %vm504, %v1974
  %1999 = vst.msk [vmem:[#allocation3 + $0x30] sm:$0xff] %vm504, %v1975
  %2000 = vst.msk [vmem:[#allocation3 + $0x38] sm:$0xff] %vm504, %v1976
  %2001 = vst.msk [vmem:[#allocation3 + $0x40] sm:$0xff] %vm504, %v1977
  %2002 = vst.msk [vmem:[#allocation3 + $0x48] sm:$0xff] %vm504, %v1978
  %2003 = vst.msk [vmem:[#allocation3 + $0x50] sm:$0xff] %vm504, %v1979
  %2004 = vst.msk [vmem:[#allocation3 + $0x58] sm:$0xff] %vm504, %v1980
  %2005 = vst.msk [vmem:[#allocation3 + $0x60] sm:$0xff] %vm504, %v1981
  %2006 = vst.msk [vmem:[#allocation3 + $0x68] sm:$0xff] %vm504, %v1982
  %2007 = vst.msk [vmem:[#allocation3 + $0x70] sm:$0xff] %vm504, %v1983
  %2008 = vst.msk [vmem:[#allocation3 + $0x78] sm:$0xff] %vm504, %v1984
  %2009 = vst.msk [vmem:[#allocation3 + $0x80] sm:$0xff] %vm504, %v1985
  %2010 = vst.msk [vmem:[#allocation3 + $0x88] sm:$0xff] %vm504, %v1986
  %2011 = vst.msk [vmem:[#allocation3 + $0x90] sm:$0xff] %vm504, %v1987
  %2012 = vst.msk [vmem:[#allocation3 + $0x98] sm:$0xff] %vm504, %v1988
  %2013 = vst.msk [vmem:[#allocation3 + $0xa0] sm:$0xff] %vm504, %v1989
  %2014 = vst.msk [vmem:[#allocation3 + $0xa8] sm:$0xff] %vm504, %v1990
  %2015 = vst.msk [vmem:[#allocation3 + $0xb0] sm:$0xff] %vm504, %v1991
  %2016 = vst.msk [vmem:[#allocation3 + $0xb8] sm:$0xff] %vm504, %v1992
  %v2017 = vld [vmem:[#allocation4] sm:$0xff]
  %v2018 = vld [vmem:[#allocation4 + $0x8] sm:$0xff]
  %v2019 = vld [vmem:[#allocation4 + $0x10] sm:$0xff]
  %v2020 = vld [vmem:[#allocation4 + $0x18] sm:$0xff]
  %v2021 = vld [vmem:[#allocation4 + $0x20] sm:$0xff]
  %v2022 = vld [vmem:[#allocation4 + $0x28] sm:$0xff]
  %v2023 = vld [vmem:[#allocation4 + $0x30] sm:$0xff]
  %v2024 = vld [vmem:[#allocation4 + $0x38] sm:$0xff]
  %v2025 = vld [vmem:[#allocation4 + $0x40] sm:$0xff]
  %v2026 = vld [vmem:[#allocation4 + $0x48] sm:$0xff]
  %v2027 = vld [vmem:[#allocation4 + $0x50] sm:$0xff]
  %v2028 = vld [vmem:[#allocation4 + $0x58] sm:$0xff]
  %v2029 = vld [vmem:[#allocation4 + $0x60] sm:$0xff]
  %v2030 = vld [vmem:[#allocation4 + $0x68] sm:$0xff]
  %v2031 = vld [vmem:[#allocation4 + $0x70] sm:$0xff]
  %v2032 = vld [vmem:[#allocation4 + $0x78] sm:$0xff]
  %v2033 = vld [vmem:[#allocation4 + $0x80] sm:$0xff]
  %v2034 = vld [vmem:[#allocation4 + $0x88] sm:$0xff]
  %v2035 = vld [vmem:[#allocation4 + $0x90] sm:$0xff]
  %v2036 = vld [vmem:[#allocation4 + $0x98] sm:$0xff]
  %v2037 = vld [vmem:[#allocation4 + $0xa0] sm:$0xff]
  %v2038 = vld [vmem:[#allocation4 + $0xa8] sm:$0xff]
  %v2039 = vld [vmem:[#allocation4 + $0xb0] sm:$0xff]
  %v2040 = vld [vmem:[#allocation4 + $0xb8] sm:$0xff]
  %v2041 = vadd.f32 %v2017, %v1851
  %v2042 = vadd.f32 %v2018, %v1854
  %v2043 = vadd.f32 %v2019, %v1859
  %v2044 = vadd.f32 %v2020, %v1862
  %v2045 = vadd.f32 %v2021, %v1867
  %v2046 = vadd.f32 %v2022, %v1870
  %v2047 = vadd.f32 %v2023, %v1875
  %v2048 = vadd.f32 %v2024, %v1878
  %v2049 = vadd.f32 %v2025, %v1883
  %v2050 = vadd.f32 %v2026, %v1886
  %v2051 = vadd.f32 %v2027, %v1891
  %v2052 = vadd.f32 %v2028, %v1894
  %v2053 = vadd.f32 %v2029, %v1899
  %v2054 = vadd.f32 %v2030, %v1902
  %v2055 = vadd.f32 %v2031, %v1907
  %v2056 = vadd.f32 %v2032, %v1910
  %v2057 = vadd.f32 %v2033, %v1915
  %v2058 = vadd.f32 %v2034, %v1918
  %v2059 = vadd.f32 %v2035, %v1923
  %v2060 = vadd.f32 %v2036, %v1926
  %v2061 = vadd.f32 %v2037, %v1931
  %v2062 = vadd.f32 %v2038, %v1934
  %v2063 = vadd.f32 %v2039, %v1939
  %v2064 = vadd.f32 %v2040, %v1942
  %2065 = vst.msk [vmem:[#allocation4] sm:$0xff] %vm504, %v2041
  %2066 = vst.msk [vmem:[#allocation4 + $0x8] sm:$0xff] %vm504, %v2042
  %2067 = vst.msk [vmem:[#allocation4 + $0x10] sm:$0xff] %vm504, %v2043
  %2068 = vst.msk [vmem:[#allocation4 + $0x18] sm:$0xff] %vm504, %v2044
  %2069 = vst.msk [vmem:[#allocation4 + $0x20] sm:$0xff] %vm504, %v2045
  %2070 = vst.msk [vmem:[#allocation4 + $0x28] sm:$0xff] %vm504, %v2046
  %2071 = vst.msk [vmem:[#allocation4 + $0x30] sm:$0xff] %vm504, %v2047
  %2072 = vst.msk [vmem:[#allocation4 + $0x38] sm:$0xff] %vm504, %v2048
  %2073 = vst.msk [vmem:[#allocation4 + $0x40] sm:$0xff] %vm504, %v2049
  %2074 = vst.msk [vmem:[#allocation4 + $0x48] sm:$0xff] %vm504, %v2050
  %2075 = vst.msk [vmem:[#allocation4 + $0x50] sm:$0xff] %vm504, %v2051
  %2076 = vst.msk [vmem:[#allocation4 + $0x58] sm:$0xff] %vm504, %v2052
  %2077 = vst.msk [vmem:[#allocation4 + $0x60] sm:$0xff] %vm504, %v2053
  %2078 = vst.msk [vmem:[#allocation4 + $0x68] sm:$0xff] %vm504, %v2054
  %2079 = vst.msk [vmem:[#allocation4 + $0x70] sm:$0xff] %vm504, %v2055
  %2080 = vst.msk [vmem:[#allocation4 + $0x78] sm:$0xff] %vm504, %v2056
  %2081 = vst.msk [vmem:[#allocation4 + $0x80] sm:$0xff] %vm504, %v2057
  %2082 = vst.msk [vmem:[#allocation4 + $0x88] sm:$0xff] %vm504, %v2058
  %2083 = vst.msk [vmem:[#allocation4 + $0x90] sm:$0xff] %vm504, %v2059
  %2084 = vst.msk [vmem:[#allocation4 + $0x98] sm:$0xff] %vm504, %v2060
  %2085 = vst.msk [vmem:[#allocation4 + $0xa0] sm:$0xff] %vm504, %v2061
  %2086 = vst.msk [vmem:[#allocation4 + $0xa8] sm:$0xff] %vm504, %v2062
  %2087 = vst.msk [vmem:[#allocation4 + $0xb0] sm:$0xff] %vm504, %v2063
  %2088 = vst.msk [vmem:[#allocation4 + $0xb8] sm:$0xff] %vm504, %v2064
  %v2089 = vld [vmem:[#allocation2 + $0x4] sm:$0xff]
  %v2090 = vld [vmem:[#allocation2 + $0xc] sm:$0xff]
  %v2091 = vld [vmem:[#allocation2 + $0x14] sm:$0xff]
  %v2092 = vld [vmem:[#allocation2 + $0x24] sm:$0xff]
  %v2093 = vld [vmem:[#allocation2 + $0x2c] sm:$0xff]
  %v2094 = vld [vmem:[#allocation2 + $0x34] sm:$0xff]
  %v2095 = vld [vmem:[#allocation2 + $0x44] sm:$0xff]
  %v2096 = vld [vmem:[#allocation2 + $0x4c] sm:$0xff]
  %v2097 = vld [vmem:[#allocation2 + $0x54] sm:$0xff]
  %v2098 = vld [vmem:[#allocation2 + $0x64] sm:$0xff]
  %v2099 = vld [vmem:[#allocation2 + $0x6c] sm:$0xff]
  %v2100 = vld [vmem:[#allocation2 + $0x74] sm:$0xff]
  %v2101 = vld [vmem:[#allocation2 + $0x84] sm:$0xff]
  %v2102 = vld [vmem:[#allocation2 + $0x8c] sm:$0xff]
  %v2103 = vld [vmem:[#allocation2 + $0x94] sm:$0xff]
  %v2104 = vld [vmem:[#allocation2 + $0xa4] sm:$0xff]
  %v2105 = vld [vmem:[#allocation2 + $0xac] sm:$0xff]
  %v2106 = vld [vmem:[#allocation2 + $0xb4] sm:$0xff]
  %v2107 = vld [vmem:[#allocation2 + $0xc4] sm:$0xff]
  %v2108 = vld [vmem:[#allocation2 + $0xcc] sm:$0xff]
  %v2109 = vld [vmem:[#allocation2 + $0xd4] sm:$0xff]
  %v2110 = vld [vmem:[#allocation2 + $0xe4] sm:$0xff]
  %v2111 = vld [vmem:[#allocation2 + $0xec] sm:$0xff]
  %v2112 = vld [vmem:[#allocation2 + $0xf4] sm:$0xff]
  %v2113 = vpack.c.bf16 %v2090, %v2089
  %v2114 = vpack.c.bf16 %v2092, %v2091
  %v2115 = vpack.c.bf16 %v2094, %v2093
  %v2116 = vpack.c.bf16 %v2096, %v2095
  %v2117 = vpack.c.bf16 %v2098, %v2097
  %v2118 = vpack.c.bf16 %v2100, %v2099
  %v2119 = vpack.c.bf16 %v2102, %v2101
  %v2120 = vpack.c.bf16 %v2104, %v2103
  %v2121 = vpack.c.bf16 %v2106, %v2105
  %v2122 = vpack.c.bf16 %v2108, %v2107
  %v2123 = vpack.c.bf16 %v2110, %v2109
  %v2124 = vpack.c.bf16 %v2112, %v2111
  %s2125 = scalar_lea.vmem %s1, 64
  %v2126 = vld [vmem:[%s2125] sm:$0xf]
  %v2127 = vld [vmem:[%s2125 + $0x4] sm:$0xf]
  %v2128 = vld [vmem:[%s2125 + $0x8] sm:$0xf]
  %v2129 = vld [vmem:[%s2125 + $0xc] sm:$0x3]
  %v2134 = vunpack.c.l.b16 %v2126
  %v2135 = vunpack.c.l.b16 %v2127
  %v2136 = vunpack.c.l.b16 %v2128
  %v2137 = vunpack.c.l.b16 %v2129
  %v2138 = vpack.c.b16 %v2135, %v2134
  %v2139 = vpack.c.b16 %v2137, %v2136
  %v2142 = vsel %vm103, %v2113, 0
  %v2145 = vsel %vm103, %v2114, 0
  %v2148 = vsel %vm103, %v2115, 0
  %v2151 = vsel %vm103, %v2116, 0
  %v2154 = vsel %vm103, %v2117, 0
  %v2157 = vsel %vm103, %v2118, 0
  %v2160 = vsel %vm103, %v2119, 0
  %v2163 = vsel %vm103, %v2120, 0
  %v2166 = vsel %vm103, %v2121, 0
  %v2169 = vsel %vm103, %v2122, 0
  %v2172 = vsel %vm103, %v2123, 0
  %v2175 = vsel %vm103, %v2124, 0
  %v2178 = vsel %vm224, %v2139, 0
  %2180 = vmatprep.subr.bf16.mxu0 0
  %2181 = vmatpush1.bf16.msra.mxu0 %v2138
  %2182 = vmatprep.subr.bf16.mxu0 0
  %2183 = vmatpush1.bf16.msra.mxu0 %v2178
  %2184 = vmatprep.subr.bf16.mxu0 0
  %2185 = vmatpush1.bf16.msra.mxu0 0
  %2186 = vmatprep.subr.bf16.mxu0 0
  %2187 = vmatpush1.bf16.msra.mxu0 0
  %2188 = vmatprep.subr.bf16.mxu0 0
  %2189 = vmatpush1.bf16.msra.mxu0 0
  %2190 = vmatprep.subr.bf16.mxu0 0
  %2191 = vmatpush1.bf16.msra.mxu0 0
  %2192 = vmatprep.subr.bf16.mxu0 0
  %2193 = vmatpush1.bf16.msra.mxu0 0
  %2194 = vmatprep.subr.bf16.mxu0 0
  %2195 = vmatpush1.bf16.msra.mxu0 0
  %2196 = vmatprep.subr.bf16.mxu0 0
  %2197 = vmatpush1.bf16.msra.mxu0 0
  %2198 = vmatprep.subr.bf16.mxu0 0
  %2199 = vmatpush1.bf16.msra.mxu0 0
  %2200 = vmatprep.subr.bf16.mxu0 0
  %2201 = vmatpush1.bf16.msra.mxu0 0
  %2202 = vmatprep.subr.bf16.mxu0 0
  %2203 = vmatpush1.bf16.msra.mxu0 0
  %2204 = vmatprep.subr.bf16.mxu0 0
  %2205 = vmatpush1.bf16.msra.mxu0 0
  %2206 = vmatprep.subr.bf16.mxu0 0
  %2207 = vmatpush1.bf16.msra.mxu0 0
  %2208 = vmatprep.subr.bf16.mxu0 0
  %2209 = vmatpush1.bf16.msra.mxu0 0
  %2210 = vmatprep.subr.bf16.mxu0 0
  %2211 = vmatpush1.bf16.msra.mxu0 0
  %2212 = vmatprep.mubr.bf16.mxu0 0
  %2213 = vmatmul.mubr.bf16.gmra.mrb[0].mxu0 %v2142
  %v2214 = vpop.f32.mrb[0].mxu0
  %v2215 = vadd.f32 0.0, %v2214
  %v2216 = vpop.f32.mrb[0].mxu0
  %v2217 = vpop.f32.mrb[0].mxu0
  %v2218 = vadd.f32 0.0, %v2217
  %v2219 = vpop.f32.mrb[0].mxu0
  %2220 = vmatprep.mubr.bf16.mxu0 0
  %2221 = vmatmul.mubr.bf16.gmra.mrb[0].mxu0 %v2145
  %v2222 = vpop.f32.mrb[0].mxu0
  %v2223 = vadd.f32 0.0, %v2222
  %v2224 = vpop.f32.mrb[0].mxu0
  %v2225 = vpop.f32.mrb[0].mxu0
  %v2226 = vadd.f32 0.0, %v2225
  %v2227 = vpop.f32.mrb[0].mxu0
  %2228 = vmatprep.mubr.bf16.mxu0 0
  %2229 = vmatmul.mubr.bf16.gmra.mrb[0].mxu0 %v2148
  %v2230 = vpop.f32.mrb[0].mxu0
  %v2231 = vadd.f32 0.0, %v2230
  %v2232 = vpop.f32.mrb[0].mxu0
  %v2233 = vpop.f32.mrb[0].mxu0
  %v2234 = vadd.f32 0.0, %v2233
  %v2235 = vpop.f32.mrb[0].mxu0
  %2236 = vmatprep.mubr.bf16.mxu0 0
  %2237 = vmatmul.mubr.bf16.gmra.mrb[0].mxu0 %v2151
  %v2238 = vpop.f32.mrb[0].mxu0
  %v2239 = vadd.f32 0.0, %v2238
  %v2240 = vpop.f32.mrb[0].mxu0
  %v2241 = vpop.f32.mrb[0].mxu0
  %v2242 = vadd.f32 0.0, %v2241
  %v2243 = vpop.f32.mrb[0].mxu0
  %2244 = vmatprep.mubr.bf16.mxu0 0
  %2245 = vmatmul.mubr.bf16.gmra.mrb[0].mxu0 %v2154
  %v2246 = vpop.f32.mrb[0].mxu0
  %v2247 = vadd.f32 0.0, %v2246
  %v2248 = vpop.f32.mrb[0].mxu0
  %v2249 = vpop.f32.mrb[0].mxu0
  %v2250 = vadd.f32 0.0, %v2249
  %v2251 = vpop.f32.mrb[0].mxu0
  %2252 = vmatprep.mubr.bf16.mxu0 0
  %2253 = vmatmul.mubr.bf16.gmra.mrb[0].mxu0 %v2157
  %v2254 = vpop.f32.mrb[0].mxu0
  %v2255 = vadd.f32 0.0, %v2254
  %v2256 = vpop.f32.mrb[0].mxu0
  %v2257 = vpop.f32.mrb[0].mxu0
  %v2258 = vadd.f32 0.0, %v2257
  %v2259 = vpop.f32.mrb[0].mxu0
  %2260 = vmatprep.mubr.bf16.mxu0 0
  %2261 = vmatmul.mubr.bf16.gmra.mrb[0].mxu0 %v2160
  %v2262 = vpop.f32.mrb[0].mxu0
  %v2263 = vadd.f32 0.0, %v2262
  %v2264 = vpop.f32.mrb[0].mxu0
  %v2265 = vpop.f32.mrb[0].mxu0
  %v2266 = vadd.f32 0.0, %v2265
  %v2267 = vpop.f32.mrb[0].mxu0
  %2268 = vmatprep.mubr.bf16.mxu0 0
  %2269 = vmatmul.mubr.bf16.gmra.mrb[0].mxu0 %v2163
  %v2270 = vpop.f32.mrb[0].mxu0
  %v2271 = vadd.f32 0.0, %v2270
  %v2272 = vpop.f32.mrb[0].mxu0
  %v2273 = vpop.f32.mrb[0].mxu0
  %v2274 = vadd.f32 0.0, %v2273
  %v2275 = vpop.f32.mrb[0].mxu0
  %2276 = vmatprep.mubr.bf16.mxu0 0
  %2277 = vmatmul.mubr.bf16.gmra.mrb[0].mxu0 %v2166
  %v2278 = vpop.f32.mrb[0].mxu0
  %v2279 = vadd.f32 0.0, %v2278
  %v2280 = vpop.f32.mrb[0].mxu0
  %v2281 = vpop.f32.mrb[0].mxu0
  %v2282 = vadd.f32 0.0, %v2281
  %v2283 = vpop.f32.mrb[0].mxu0
  %2284 = vmatprep.mubr.bf16.mxu0 0
  %2285 = vmatmul.mubr.bf16.gmra.mrb[0].mxu0 %v2169
  %v2286 = vpop.f32.mrb[0].mxu0
  %v2287 = vadd.f32 0.0, %v2286
  %v2288 = vpop.f32.mrb[0].mxu0
  %v2289 = vpop.f32.mrb[0].mxu0
  %v2290 = vadd.f32 0.0, %v2289
  %v2291 = vpop.f32.mrb[0].mxu0
  %2292 = vmatprep.mubr.bf16.mxu0 0
  %2293 = vmatmul.mubr.bf16.gmra.mrb[0].mxu0 %v2172
  %v2294 = vpop.f32.mrb[0].mxu0
  %v2295 = vadd.f32 0.0, %v2294
  %v2296 = vpop.f32.mrb[0].mxu0
  %v2297 = vpop.f32.mrb[0].mxu0
  %v2298 = vadd.f32 0.0, %v2297
  %v2299 = vpop.f32.mrb[0].mxu0
  %2300 = vmatprep.mubr.bf16.mxu0 0
  %2301 = vmatmul.mubr.bf16.gmra.mrb[0].mxu0 %v2175
  %v2302 = vpop.f32.mrb[0].mxu0
  %v2303 = vadd.f32 0.0, %v2302
  %v2304 = vpop.f32.mrb[0].mxu0
  %v2305 = vpop.f32.mrb[0].mxu0
  %v2306 = vadd.f32 0.0, %v2305
  %v2307 = vpop.f32.mrb[0].mxu0
  %2308 = vdwg.mxu0
  %s2309 = scalar_lea.vmem %s2, 64
  %v2310 = vld [vmem:[%s2309] sm:$0xf]
  %v2311 = vld [vmem:[%s2309 + $0x4] sm:$0xf]
  %v2312 = vld [vmem:[%s2309 + $0x8] sm:$0xf]
  %v2313 = vld [vmem:[%s2309 + $0xc] sm:$0x3]
  %v2318 = vunpack.c.l.b16 %v2310
  %v2319 = vunpack.c.l.b16 %v2311
  %v2320 = vunpack.c.l.b16 %v2312
  %v2321 = vunpack.c.l.b16 %v2313
  %v2322 = vpack.c.b16 %v2319, %v2318
  %v2323 = vpack.c.b16 %v2321, %v2320
  %v2326 = vsel %vm224, %v2323, 0
  %2328 = vmatprep.subr.bf16.mxu0 0
  %2329 = vmatpush1.bf16.msra.mxu0 %v2322
  %2330 = vmatprep.subr.bf16.mxu0 0
  %2331 = vmatpush1.bf16.msra.mxu0 %v2326
  %2332 = vmatprep.subr.bf16.mxu0 0
  %2333 = vmatpush1.bf16.msra.mxu0 0
  %2334 = vmatprep.subr.bf16.mxu0 0
  %2335 = vmatpush1.bf16.msra.mxu0 0
  %2336 = vmatprep.subr.bf16.mxu0 0
  %2337 = vmatpush1.bf16.msra.mxu0 0
  %2338 = vmatprep.subr.bf16.mxu0 0
  %2339 = vmatpush1.bf16.msra.mxu0 0
  %2340 = vmatprep.subr.bf16.mxu0 0
  %2341 = vmatpush1.bf16.msra.mxu0 0
  %2342 = vmatprep.subr.bf16.mxu0 0
  %2343 = vmatpush1.bf16.msra.mxu0 0
  %2344 = vmatprep.subr.bf16.mxu0 0
  %2345 = vmatpush1.bf16.msra.mxu0 0
  %2346 = vmatprep.subr.bf16.mxu0 0
  %2347 = vmatpush1.bf16.msra.mxu0 0
  %2348 = vmatprep.subr.bf16.mxu0 0
  %2349 = vmatpush1.bf16.msra.mxu0 0
  %2350 = vmatprep.subr.bf16.mxu0 0
  %2351 = vmatpush1.bf16.msra.mxu0 0
  %2352 = vmatprep.subr.bf16.mxu0 0
  %2353 = vmatpush1.bf16.msra.mxu0 0
  %2354 = vmatprep.subr.bf16.mxu0 0
  %2355 = vmatpush1.bf16.msra.mxu0 0
  %2356 = vmatprep.subr.bf16.mxu0 0
  %2357 = vmatpush1.bf16.msra.mxu0 0
  %2358 = vmatprep.subr.bf16.mxu0 0
  %2359 = vmatpush1.bf16.msra.mxu0 0
  %2360 = vmatprep.mubr.bf16.mxu0 0
  %2361 = vmatmul.mubr.bf16.gmra.mrb[0].mxu0 %v2142
  %v2362 = vpop.f32.mrb[0].mxu0
  %v2363 = vadd.f32 0.0, %v2362
  %v2364 = vpop.f32.mrb[0].mxu0
  %v2365 = vpop.f32.mrb[0].mxu0
  %v2366 = vadd.f32 0.0, %v2365
  %v2367 = vpop.f32.mrb[0].mxu0
  %2368 = vmatprep.mubr.bf16.mxu0 0
  %2369 = vmatmul.mubr.bf16.gmra.mrb[0].mxu0 %v2145
  %v2370 = vpop.f32.mrb[0].mxu0
  %v2371 = vadd.f32 0.0, %v2370
  %v2372 = vpop.f32.mrb[0].mxu0
  %v2373 = vpop.f32.mrb[0].mxu0
  %v2374 = vadd.f32 0.0, %v2373
  %v2375 = vpop.f32.mrb[0].mxu0
  %2376 = vmatprep.mubr.bf16.mxu0 0
  %2377 = vmatmul.mubr.bf16.gmra.mrb[0].mxu0 %v2148
  %v2378 = vpop.f32.mrb[0].mxu0
  %v2379 = vadd.f32 0.0, %v2378
  %v2380 = vpop.f32.mrb[0].mxu0
  %v2381 = vpop.f32.mrb[0].mxu0
  %v2382 = vadd.f32 0.0, %v2381
  %v2383 = vpop.f32.mrb[0].mxu0
  %2384 = vmatprep.mubr.bf16.mxu0 0
  %2385 = vmatmul.mubr.bf16.gmra.mrb[0].mxu0 %v2151
  %v2386 = vpop.f32.mrb[0].mxu0
  %v2387 = vadd.f32 0.0, %v2386
  %v2388 = vpop.f32.mrb[0].mxu0
  %v2389 = vpop.f32.mrb[0].mxu0
  %v2390 = vadd.f32 0.0, %v2389
  %v2391 = vpop.f32.mrb[0].mxu0
  %2392 = vmatprep.mubr.bf16.mxu0 0
  %2393 = vmatmul.mubr.bf16.gmra.mrb[0].mxu0 %v2154
  %v2394 = vpop.f32.mrb[0].mxu0
  %v2395 = vadd.f32 0.0, %v2394
  %v2396 = vpop.f32.mrb[0].mxu0
  %v2397 = vpop.f32.mrb[0].mxu0
  %v2398 = vadd.f32 0.0, %v2397
  %v2399 = vpop.f32.mrb[0].mxu0
  %2400 = vmatprep.mubr.bf16.mxu0 0
  %2401 = vmatmul.mubr.bf16.gmra.mrb[0].mxu0 %v2157
  %v2402 = vpop.f32.mrb[0].mxu0
  %v2403 = vadd.f32 0.0, %v2402
  %v2404 = vpop.f32.mrb[0].mxu0
  %v2405 = vpop.f32.mrb[0].mxu0
  %v2406 = vadd.f32 0.0, %v2405
  %v2407 = vpop.f32.mrb[0].mxu0
  %2408 = vmatprep.mubr.bf16.mxu0 0
  %2409 = vmatmul.mubr.bf16.gmra.mrb[0].mxu0 %v2160
  %v2410 = vpop.f32.mrb[0].mxu0
  %v2411 = vadd.f32 0.0, %v2410
  %v2412 = vpop.f32.mrb[0].mxu0
  %v2413 = vpop.f32.mrb[0].mxu0
  %v2414 = vadd.f32 0.0, %v2413
  %v2415 = vpop.f32.mrb[0].mxu0
  %2416 = vmatprep.mubr.bf16.mxu0 0
  %2417 = vmatmul.mubr.bf16.gmra.mrb[0].mxu0 %v2163
  %v2418 = vpop.f32.mrb[0].mxu0
  %v2419 = vadd.f32 0.0, %v2418
  %v2420 = vpop.f32.mrb[0].mxu0
  %v2421 = vpop.f32.mrb[0].mxu0
  %v2422 = vadd.f32 0.0, %v2421
  %v2423 = vpop.f32.mrb[0].mxu0
  %2424 = vmatprep.mubr.bf16.mxu0 0
  %2425 = vmatmul.mubr.bf16.gmra.mrb[0].mxu0 %v2166
  %v2426 = vpop.f32.mrb[0].mxu0
  %v2427 = vadd.f32 0.0, %v2426
  %v2428 = vpop.f32.mrb[0].mxu0
  %v2429 = vpop.f32.mrb[0].mxu0
  %v2430 = vadd.f32 0.0, %v2429
  %v2431 = vpop.f32.mrb[0].mxu0
  %2432 = vmatprep.mubr.bf16.mxu0 0
  %2433 = vmatmul.mubr.bf16.gmra.mrb[0].mxu0 %v2169
  %v2434 = vpop.f32.mrb[0].mxu0
  %v2435 = vadd.f32 0.0, %v2434
  %v2436 = vpop.f32.mrb[0].mxu0
  %v2437 = vpop.f32.mrb[0].mxu0
  %v2438 = vadd.f32 0.0, %v2437
  %v2439 = vpop.f32.mrb[0].mxu0
  %2440 = vmatprep.mubr.bf16.mxu0 0
  %2441 = vmatmul.mubr.bf16.gmra.mrb[0].mxu0 %v2172
  %v2442 = vpop.f32.mrb[0].mxu0
  %v2443 = vadd.f32 0.0, %v2442
  %v2444 = vpop.f32.mrb[0].mxu0
  %v2445 = vpop.f32.mrb[0].mxu0
  %v2446 = vadd.f32 0.0, %v2445
  %v2447 = vpop.f32.mrb[0].mxu0
  %2448 = vmatprep.mubr.bf16.mxu0 0
  %2449 = vmatmul.mubr.bf16.gmra.mrb[0].mxu0 %v2175
  %v2450 = vpop.f32.mrb[0].mxu0
  %v2451 = vadd.f32 0.0, %v2450
  %v2452 = vpop.f32.mrb[0].mxu0
  %v2453 = vpop.f32.mrb[0].mxu0
  %v2454 = vadd.f32 0.0, %v2453
  %v2455 = vpop.f32.mrb[0].mxu0
  %2456 = vdwg.mxu0
  %v2457 = vld [vmem:[#allocation3] sm:$0xff]
  %v2458 = vld [vmem:[#allocation3 + $0x8] sm:$0xff]
  %v2459 = vld [vmem:[#allocation3 + $0x10] sm:$0xff]
  %v2460 = vld [vmem:[#allocation3 + $0x18] sm:$0xff]
  %v2461 = vld [vmem:[#allocation3 + $0x20] sm:$0xff]
  %v2462 = vld [vmem:[#allocation3 + $0x28] sm:$0xff]
  %v2463 = vld [vmem:[#allocation3 + $0x30] sm:$0xff]
  %v2464 = vld [vmem:[#allocation3 + $0x38] sm:$0xff]
  %v2465 = vld [vmem:[#allocation3 + $0x40] sm:$0xff]
  %v2466 = vld [vmem:[#allocation3 + $0x48] sm:$0xff]
  %v2467 = vld [vmem:[#allocation3 + $0x50] sm:$0xff]
  %v2468 = vld [vmem:[#allocation3 + $0x58] sm:$0xff]
  %v2469 = vld [vmem:[#allocation3 + $0x60] sm:$0xff]
  %v2470 = vld [vmem:[#allocation3 + $0x68] sm:$0xff]
  %v2471 = vld [vmem:[#allocation3 + $0x70] sm:$0xff]
  %v2472 = vld [vmem:[#allocation3 + $0x78] sm:$0xff]
  %v2473 = vld [vmem:[#allocation3 + $0x80] sm:$0xff]
  %v2474 = vld [vmem:[#allocation3 + $0x88] sm:$0xff]
  %v2475 = vld [vmem:[#allocation3 + $0x90] sm:$0xff]
  %v2476 = vld [vmem:[#allocation3 + $0x98] sm:$0xff]
  %v2477 = vld [vmem:[#allocation3 + $0xa0] sm:$0xff]
  %v2478 = vld [vmem:[#allocation3 + $0xa8] sm:$0xff]
  %v2479 = vld [vmem:[#allocation3 + $0xb0] sm:$0xff]
  %v2480 = vld [vmem:[#allocation3 + $0xb8] sm:$0xff]
  %v2481 = vadd.f32 %v2457, %v2215
  %v2482 = vadd.f32 %v2458, %v2218
  %v2483 = vadd.f32 %v2459, %v2223
  %v2484 = vadd.f32 %v2460, %v2226
  %v2485 = vadd.f32 %v2461, %v2231
  %v2486 = vadd.f32 %v2462, %v2234
  %v2487 = vadd.f32 %v2463, %v2239
  %v2488 = vadd.f32 %v2464, %v2242
  %v2489 = vadd.f32 %v2465, %v2247
  %v2490 = vadd.f32 %v2466, %v2250
  %v2491 = vadd.f32 %v2467, %v2255
  %v2492 = vadd.f32 %v2468, %v2258
  %v2493 = vadd.f32 %v2469, %v2263
  %v2494 = vadd.f32 %v2470, %v2266
  %v2495 = vadd.f32 %v2471, %v2271
  %v2496 = vadd.f32 %v2472, %v2274
  %v2497 = vadd.f32 %v2473, %v2279
  %v2498 = vadd.f32 %v2474, %v2282
  %v2499 = vadd.f32 %v2475, %v2287
  %v2500 = vadd.f32 %v2476, %v2290
  %v2501 = vadd.f32 %v2477, %v2295
  %v2502 = vadd.f32 %v2478, %v2298
  %v2503 = vadd.f32 %v2479, %v2303
  %v2504 = vadd.f32 %v2480, %v2306
  %2505 = vst.msk [vmem:[#allocation3] sm:$0xff] %vm504, %v2481
  %2506 = vst.msk [vmem:[#allocation3 + $0x8] sm:$0xff] %vm504, %v2482
  %2507 = vst.msk [vmem:[#allocation3 + $0x10] sm:$0xff] %vm504, %v2483
  %2508 = vst.msk [vmem:[#allocation3 + $0x18] sm:$0xff] %vm504, %v2484
  %2509 = vst.msk [vmem:[#allocation3 + $0x20] sm:$0xff] %vm504, %v2485
  %2510 = vst.msk [vmem:[#allocation3 + $0x28] sm:$0xff] %vm504, %v2486
  %2511 = vst.msk [vmem:[#allocation3 + $0x30] sm:$0xff] %vm504, %v2487
  %2512 = vst.msk [vmem:[#allocation3 + $0x38] sm:$0xff] %vm504, %v2488
  %2513 = vst.msk [vmem:[#allocation3 + $0x40] sm:$0xff] %vm504, %v2489
  %2514 = vst.msk [vmem:[#allocation3 + $0x48] sm:$0xff] %vm504, %v2490
  %2515 = vst.msk [vmem:[#allocation3 + $0x50] sm:$0xff] %vm504, %v2491
  %2516 = vst.msk [vmem:[#allocation3 + $0x58] sm:$0xff] %vm504, %v2492
  %2517 = vst.msk [vmem:[#allocation3 + $0x60] sm:$0xff] %vm504, %v2493
  %2518 = vst.msk [vmem:[#allocation3 + $0x68] sm:$0xff] %vm504, %v2494
  %2519 = vst.msk [vmem:[#allocation3 + $0x70] sm:$0xff] %vm504, %v2495
  %2520 = vst.msk [vmem:[#allocation3 + $0x78] sm:$0xff] %vm504, %v2496
  %2521 = vst.msk [vmem:[#allocation3 + $0x80] sm:$0xff] %vm504, %v2497
  %2522 = vst.msk [vmem:[#allocation3 + $0x88] sm:$0xff] %vm504, %v2498
  %2523 = vst.msk [vmem:[#allocation3 + $0x90] sm:$0xff] %vm504, %v2499
  %2524 = vst.msk [vmem:[#allocation3 + $0x98] sm:$0xff] %vm504, %v2500
  %2525 = vst.msk [vmem:[#allocation3 + $0xa0] sm:$0xff] %vm504, %v2501
  %2526 = vst.msk [vmem:[#allocation3 + $0xa8] sm:$0xff] %vm504, %v2502
  %2527 = vst.msk [vmem:[#allocation3 + $0xb0] sm:$0xff] %vm504, %v2503
  %2528 = vst.msk [vmem:[#allocation3 + $0xb8] sm:$0xff] %vm504, %v2504
  %v2529 = vld [vmem:[#allocation4] sm:$0xff]
  %v2530 = vld [vmem:[#allocation4 + $0x8] sm:$0xff]
  %v2531 = vld [vmem:[#allocation4 + $0x10] sm:$0xff]
  %v2532 = vld [vmem:[#allocation4 + $0x18] sm:$0xff]
  %v2533 = vld [vmem:[#allocation4 + $0x20] sm:$0xff]
  %v2534 = vld [vmem:[#allocation4 + $0x28] sm:$0xff]
  %v2535 = vld [vmem:[#allocation4 + $0x30] sm:$0xff]
  %v2536 = vld [vmem:[#allocation4 + $0x38] sm:$0xff]
  %v2537 = vld [vmem:[#allocation4 + $0x40] sm:$0xff]
  %v2538 = vld [vmem:[#allocation4 + $0x48] sm:$0xff]
  %v2539 = vld [vmem:[#allocation4 + $0x50] sm:$0xff]
  %v2540 = vld [vmem:[#allocation4 + $0x58] sm:$0xff]
  %v2541 = vld [vmem:[#allocation4 + $0x60] sm:$0xff]
  %v2542 = vld [vmem:[#allocation4 + $0x68] sm:$0xff]
  %v2543 = vld [vmem:[#allocation4 + $0x70] sm:$0xff]
  %v2544 = vld [vmem:[#allocation4 + $0x78] sm:$0xff]
  %v2545 = vld [vmem:[#allocation4 + $0x80] sm:$0xff]
  %v2546 = vld [vmem:[#allocation4 + $0x88] sm:$0xff]
  %v2547 = vld [vmem:[#allocation4 + $0x90] sm:$0xff]
  %v2548 = vld [vmem:[#allocation4 + $0x98] sm:$0xff]
  %v2549 = vld [vmem:[#allocation4 + $0xa0] sm:$0xff]
  %v2550 = vld [vmem:[#allocation4 + $0xa8] sm:$0xff]
  %v2551 = vld [vmem:[#allocation4 + $0xb0] sm:$0xff]
  %v2552 = vld [vmem:[#allocation4 + $0xb8] sm:$0xff]
  %v2553 = vadd.f32 %v2529, %v2363
  %v2554 = vadd.f32 %v2530, %v2366
  %v2555 = vadd.f32 %v2531, %v2371
  %v2556 = vadd.f32 %v2532, %v2374
  %v2557 = vadd.f32 %v2533, %v2379
  %v2558 = vadd.f32 %v2534, %v2382
  %v2559 = vadd.f32 %v2535, %v2387
  %v2560 = vadd.f32 %v2536, %v2390
  %v2561 = vadd.f32 %v2537, %v2395
  %v2562 = vadd.f32 %v2538, %v2398
  %v2563 = vadd.f32 %v2539, %v2403
  %v2564 = vadd.f32 %v2540, %v2406
  %v2565 = vadd.f32 %v2541, %v2411
  %v2566 = vadd.f32 %v2542, %v2414
  %v2567 = vadd.f32 %v2543, %v2419
  %v2568 = vadd.f32 %v2544, %v2422
  %v2569 = vadd.f32 %v2545, %v2427
  %v2570 = vadd.f32 %v2546, %v2430
  %v2571 = vadd.f32 %v2547, %v2435
  %v2572 = vadd.f32 %v2548, %v2438
  %v2573 = vadd.f32 %v2549, %v2443
  %v2574 = vadd.f32 %v2550, %v2446
  %v2575 = vadd.f32 %v2551, %v2451
  %v2576 = vadd.f32 %v2552, %v2454
  %2577 = vst.msk [vmem:[#allocation4] sm:$0xff] %vm504, %v2553
  %2578 = vst.msk [vmem:[#allocation4 + $0x8] sm:$0xff] %vm504, %v2554
  %2579 = vst.msk [vmem:[#allocation4 + $0x10] sm:$0xff] %vm504, %v2555
  %2580 = vst.msk [vmem:[#allocation4 + $0x18] sm:$0xff] %vm504, %v2556
  %2581 = vst.msk [vmem:[#allocation4 + $0x20] sm:$0xff] %vm504, %v2557
  %2582 = vst.msk [vmem:[#allocation4 + $0x28] sm:$0xff] %vm504, %v2558
  %2583 = vst.msk [vmem:[#allocation4 + $0x30] sm:$0xff] %vm504, %v2559
  %2584 = vst.msk [vmem:[#allocation4 + $0x38] sm:$0xff] %vm504, %v2560
  %2585 = vst.msk [vmem:[#allocation4 + $0x40] sm:$0xff] %vm504, %v2561
  %2586 = vst.msk [vmem:[#allocation4 + $0x48] sm:$0xff] %vm504, %v2562
  %2587 = vst.msk [vmem:[#allocation4 + $0x50] sm:$0xff] %vm504, %v2563
  %2588 = vst.msk [vmem:[#allocation4 + $0x58] sm:$0xff] %vm504, %v2564
  %2589 = vst.msk [vmem:[#allocation4 + $0x60] sm:$0xff] %vm504, %v2565
  %2590 = vst.msk [vmem:[#allocation4 + $0x68] sm:$0xff] %vm504, %v2566
  %2591 = vst.msk [vmem:[#allocation4 + $0x70] sm:$0xff] %vm504, %v2567
  %2592 = vst.msk [vmem:[#allocation4 + $0x78] sm:$0xff] %vm504, %v2568
  %2593 = vst.msk [vmem:[#allocation4 + $0x80] sm:$0xff] %vm504, %v2569
  %2594 = vst.msk [vmem:[#allocation4 + $0x88] sm:$0xff] %vm504, %v2570
  %2595 = vst.msk [vmem:[#allocation4 + $0x90] sm:$0xff] %vm504, %v2571
  %2596 = vst.msk [vmem:[#allocation4 + $0x98] sm:$0xff] %vm504, %v2572
  %2597 = vst.msk [vmem:[#allocation4 + $0xa0] sm:$0xff] %vm504, %v2573
  %2598 = vst.msk [vmem:[#allocation4 + $0xa8] sm:$0xff] %vm504, %v2574
  %2599 = vst.msk [vmem:[#allocation4 + $0xb0] sm:$0xff] %vm504, %v2575
  %2600 = vst.msk [vmem:[#allocation4 + $0xb8] sm:$0xff] %vm504, %v2576
  %v2601 = vld [vmem:[#allocation3] sm:$0x1]
  %v2602 = vld [vmem:[#allocation3 + $0x18] sm:$0x1]
  %v2603 = vld [vmem:[#allocation3 + $0x30] sm:$0x1]
  %v2604 = vld [vmem:[#allocation3 + $0x48] sm:$0x1]
  %v2605 = vld [vmem:[#allocation3 + $0x60] sm:$0x1]
  %v2606 = vld [vmem:[#allocation3 + $0x78] sm:$0x1]
  %v2607 = vld [vmem:[#allocation3 + $0x90] sm:$0x1]
  %v2608 = vld [vmem:[#allocation3 + $0xa8] sm:$0x1]
  %v2609 = vld [vmem:[#allocation4] sm:$0x1]
  %v2610 = vld [vmem:[#allocation4 + $0x18] sm:$0x1]
  %v2611 = vld [vmem:[#allocation4 + $0x30] sm:$0x1]
  %v2612 = vld [vmem:[#allocation4 + $0x48] sm:$0x1]
  %v2613 = vld [vmem:[#allocation4 + $0x60] sm:$0x1]
  %v2614 = vld [vmem:[#allocation4 + $0x78] sm:$0x1]
  %v2615 = vld [vmem:[#allocation4 + $0x90] sm:$0x1]
  %v2616 = vld [vmem:[#allocation4 + $0xa8] sm:$0x1]
  %v2617 = vmax.f32 %v2601, %v2609
  %v2618 = vmax.f32 %v2602, %v2610
  %v2619 = vmax.f32 %v2603, %v2611
  %v2620 = vmax.f32 %v2604, %v2612
  %v2621 = vmax.f32 %v2605, %v2613
  %v2622 = vmax.f32 %v2606, %v2614
  %v2623 = vmax.f32 %v2607, %v2615
  %v2624 = vmax.f32 %v2608, %v2616
  %v2625 = vld [vmem:[#allocation3 + $0x1] sm:$0x1]
  %v2626 = vld [vmem:[#allocation3 + $0x19] sm:$0x1]
  %v2627 = vld [vmem:[#allocation3 + $0x31] sm:$0x1]
  %v2628 = vld [vmem:[#allocation3 + $0x49] sm:$0x1]
  %v2629 = vld [vmem:[#allocation3 + $0x61] sm:$0x1]
  %v2630 = vld [vmem:[#allocation3 + $0x79] sm:$0x1]
  %v2631 = vld [vmem:[#allocation3 + $0x91] sm:$0x1]
  %v2632 = vld [vmem:[#allocation3 + $0xa9] sm:$0x1]
  %v2633 = vld [vmem:[#allocation4 + $0x1] sm:$0x1]
  %v2634 = vld [vmem:[#allocation4 + $0x19] sm:$0x1]
  %v2635 = vld [vmem:[#allocation4 + $0x31] sm:$0x1]
  %v2636 = vld [vmem:[#allocation4 + $0x49] sm:$0x1]
  %v2637 = vld [vmem:[#allocation4 + $0x61] sm:$0x1]
  %v2638 = vld [vmem:[#allocation4 + $0x79] sm:$0x1]
  %v2639 = vld [vmem:[#allocation4 + $0x91] sm:$0x1]
  %v2640 = vld [vmem:[#allocation4 + $0xa9] sm:$0x1]
  %v2641 = vmax.f32 %v2625, %v2633
  %v2642 = vmax.f32 %v2626, %v2634
  %v2643 = vmax.f32 %v2627, %v2635
  %v2644 = vmax.f32 %v2628, %v2636
  %v2645 = vmax.f32 %v2629, %v2637
  %v2646 = vmax.f32 %v2630, %v2638
  %v2647 = vmax.f32 %v2631, %v2639
  %v2648 = vmax.f32 %v2632, %v2640
  %v2649 = vmax.f32 %v2617, %v2641
  %v2650 = vmax.f32 %v2618, %v2642
  %v2651 = vmax.f32 %v2619, %v2643
  %v2652 = vmax.f32 %v2620, %v2644
  %v2653 = vmax.f32 %v2621, %v2645
  %v2654 = vmax.f32 %v2622, %v2646
  %v2655 = vmax.f32 %v2623, %v2647
  %v2656 = vmax.f32 %v2624, %v2648
  %v2657 = vld [vmem:[%s3] sm:$0x1]
  %v2659 = vlaneseq
  %v2660 = vshrl.u32 %v2659, 7
  %v2661 = vsub.s32 0, %v2660
  %v2662 = vrot.slane %v2657, %v2661
  %v2664 = vadd.f32 %v2649, %v2662
  %v2665 = vadd.f32 %v2650, %v2662
  %v2666 = vadd.f32 %v2651, %v2662
  %v2667 = vadd.f32 %v2652, %v2662
  %v2668 = vadd.f32 %v2653, %v2662
  %v2669 = vadd.f32 %v2654, %v2662
  %v2670 = vadd.f32 %v2655, %v2662
  %v2671 = vadd.f32 %v2656, %v2662
  %v2672 = vmax.f32 %v2664, 0.0
  %v2673 = vmax.f32 %v2665, 0.0
  %v2674 = vmax.f32 %v2666, 0.0
  %v2675 = vmax.f32 %v2667, 0.0
  %v2676 = vmax.f32 %v2668, 0.0
  %v2677 = vmax.f32 %v2669, 0.0
  %v2678 = vmax.f32 %v2670, 0.0
  %v2679 = vmax.f32 %v2671, 0.0
  %vm2680 = vcmask 974848
  %2681 = vst.msk [vmem:[#allocation5] sm:$0x1] %vm2680, %v2672
  %2682 = vst.msk [vmem:[#allocation5 + $0x10] sm:$0x1] %vm2680, %v2673
  %2683 = vst.msk [vmem:[#allocation5 + $0x20] sm:$0x1] %vm2680, %v2674
  %2684 = vst.msk [vmem:[#allocation5 + $0x30] sm:$0x1] %vm2680, %v2675
  %2685 = vst.msk [vmem:[#allocation5 + $0x40] sm:$0x1] %vm2680, %v2676
  %2686 = vst.msk [vmem:[#allocation5 + $0x50] sm:$0x1] %vm2680, %v2677
  %2687 = vst.msk [vmem:[#allocation5 + $0x60] sm:$0x1] %vm2680, %v2678
  %2688 = vst.msk [vmem:[#allocation5 + $0x70] sm:$0x1] %vm2680, %v2679
  %v2689 = vld [vmem:[#allocation3 + $0x2] sm:$0x1]
  %v2690 = vld [vmem:[#allocation3 + $0x1a] sm:$0x1]
  %v2691 = vld [vmem:[#allocation3 + $0x32] sm:$0x1]
  %v2692 = vld [vmem:[#allocation3 + $0x4a] sm:$0x1]
  %v2693 = vld [vmem:[#allocation3 + $0x62] sm:$0x1]
  %v2694 = vld [vmem:[#allocation3 + $0x7a] sm:$0x1]
  %v2695 = vld [vmem:[#allocation3 + $0x92] sm:$0x1]
  %v2696 = vld [vmem:[#allocation3 + $0xaa] sm:$0x1]
  %v2697 = vld [vmem:[#allocation4 + $0x2] sm:$0x1]
  %v2698 = vld [vmem:[#allocation4 + $0x1a] sm:$0x1]
  %v2699 = vld [vmem:[#allocation4 + $0x32] sm:$0x1]
  %v2700 = vld [vmem:[#allocation4 + $0x4a] sm:$0x1]
  %v2701 = vld [vmem:[#allocation4 + $0x62] sm:$0x1]
  %v2702 = vld [vmem:[#allocation4 + $0x7a] sm:$0x1]
  %v2703 = vld [vmem:[#allocation4 + $0x92] sm:$0x1]
  %v2704 = vld [vmem:[#allocation4 + $0xaa] sm:$0x1]
  %v2705 = vmax.f32 %v2689, %v2697
  %v2706 = vmax.f32 %v2690, %v2698
  %v2707 = vmax.f32 %v2691, %v2699
  %v2708 = vmax.f32 %v2692, %v2700
  %v2709 = vmax.f32 %v2693, %v2701
  %v2710 = vmax.f32 %v2694, %v2702
  %v2711 = vmax.f32 %v2695, %v2703
  %v2712 = vmax.f32 %v2696, %v2704
  %v2713 = vld [vmem:[#allocation3 + $0x3] sm:$0x1]
  %v2714 = vld [vmem:[#allocation3 + $0x1b] sm:$0x1]
  %v2715 = vld [vmem:[#allocation3 + $0x33] sm:$0x1]
  %v2716 = vld [vmem:[#allocation3 + $0x4b] sm:$0x1]
  %v2717 = vld [vmem:[#allocation3 + $0x63] sm:$0x1]
  %v2718 = vld [vmem:[#allocation3 + $0x7b] sm:$0x1]
  %v2719 = vld [vmem:[#allocation3 + $0x93] sm:$0x1]
  %v2720 = vld [vmem:[#allocation3 + $0xab] sm:$0x1]
  %v2721 = vld [vmem:[#allocation4 + $0x3] sm:$0x1]
  %v2722 = vld [vmem:[#allocation4 + $0x1b] sm:$0x1]
  %v2723 = vld [vmem:[#allocation4 + $0x33] sm:$0x1]
  %v2724 = vld [vmem:[#allocation4 + $0x4b] sm:$0x1]
  %v2725 = vld [vmem:[#allocation4 + $0x63] sm:$0x1]
  %v2726 = vld [vmem:[#allocation4 + $0x7b] sm:$0x1]
  %v2727 = vld [vmem:[#allocation4 + $0x93] sm:$0x1]
  %v2728 = vld [vmem:[#allocation4 + $0xab] sm:$0x1]
  %v2729 = vmax.f32 %v2713, %v2721
  %v2730 = vmax.f32 %v2714, %v2722
  %v2731 = vmax.f32 %v2715, %v2723
  %v2732 = vmax.f32 %v2716, %v2724
  %v2733 = vmax.f32 %v2717, %v2725
  %v2734 = vmax.f32 %v2718, %v2726
  %v2735 = vmax.f32 %v2719, %v2727
  %v2736 = vmax.f32 %v2720, %v2728
  %v2737 = vmax.f32 %v2705, %v2729
  %v2738 = vmax.f32 %v2706, %v2730
  %v2739 = vmax.f32 %v2707, %v2731
  %v2740 = vmax.f32 %v2708, %v2732
  %v2741 = vmax.f32 %v2709, %v2733
  %v2742 = vmax.f32 %v2710, %v2734
  %v2743 = vmax.f32 %v2711, %v2735
  %v2744 = vmax.f32 %v2712, %v2736
  %v2745 = vld [vmem:[%s3] sm:$0x1]
  %v2747 = vlaneseq
  %v2748 = vshrl.u32 %v2747, 7
  %v2749 = vsub.s32 0, %v2748
  %v2750 = vrot.slane %v2745, %v2749
  %v2752 = vadd.f32 %v2737, %v2750
  %v2753 = vadd.f32 %v2738, %v2750
  %v2754 = vadd.f32 %v2739, %v2750
  %v2755 = vadd.f32 %v2740, %v2750
  %v2756 = vadd.f32 %v2741, %v2750
  %v2757 = vadd.f32 %v2742, %v2750
  %v2758 = vadd.f32 %v2743, %v2750
  %v2759 = vadd.f32 %v2744, %v2750
  %v2760 = vmax.f32 %v2752, 0.0
  %v2761 = vmax.f32 %v2753, 0.0
  %v2762 = vmax.f32 %v2754, 0.0
  %v2763 = vmax.f32 %v2755, 0.0
  %v2764 = vmax.f32 %v2756, 0.0
  %v2765 = vmax.f32 %v2757, 0.0
  %v2766 = vmax.f32 %v2758, 0.0
  %v2767 = vmax.f32 %v2759, 0.0
  %2768 = vst.msk [vmem:[#allocation5 + $0x1] sm:$0x1] %vm2680, %v2760
  %2769 = vst.msk [vmem:[#allocation5 + $0x11] sm:$0x1] %vm2680, %v2761
  %2770 = vst.msk [vmem:[#allocation5 + $0x21] sm:$0x1] %vm2680, %v2762
  %2771 = vst.msk [vmem:[#allocation5 + $0x31] sm:$0x1] %vm2680, %v2763
  %2772 = vst.msk [vmem:[#allocation5 + $0x41] sm:$0x1] %vm2680, %v2764
  %2773 = vst.msk [vmem:[#allocation5 + $0x51] sm:$0x1] %vm2680, %v2765
  %2774 = vst.msk [vmem:[#allocation5 + $0x61] sm:$0x1] %vm2680, %v2766
  %2775 = vst.msk [vmem:[#allocation5 + $0x71] sm:$0x1] %vm2680, %v2767
  %v2776 = vld [vmem:[#allocation3 + $0x4] sm:$0x1]
  %v2777 = vld [vmem:[#allocation3 + $0x1c] sm:$0x1]
  %v2778 = vld [vmem:[#allocation3 + $0x34] sm:$0x1]
  %v2779 = vld [vmem:[#allocation3 + $0x4c] sm:$0x1]
  %v2780 = vld [vmem:[#allocation3 + $0x64] sm:$0x1]
  %v2781 = vld [vmem:[#allocation3 + $0x7c] sm:$0x1]
  %v2782 = vld [vmem:[#allocation3 + $0x94] sm:$0x1]
  %v2783 = vld [vmem:[#allocation3 + $0xac] sm:$0x1]
  %v2784 = vld [vmem:[#allocation4 + $0x4] sm:$0x1]
  %v2785 = vld [vmem:[#allocation4 + $0x1c] sm:$0x1]
  %v2786 = vld [vmem:[#allocation4 + $0x34] sm:$0x1]
  %v2787 = vld [vmem:[#allocation4 + $0x4c] sm:$0x1]
  %v2788 = vld [vmem:[#allocation4 + $0x64] sm:$0x1]
  %v2789 = vld [vmem:[#allocation4 + $0x7c] sm:$0x1]
  %v2790 = vld [vmem:[#allocation4 + $0x94] sm:$0x1]
  %v2791 = vld [vmem:[#allocation4 + $0xac] sm:$0x1]
  %v2792 = vmax.f32 %v2776, %v2784
  %v2793 = vmax.f32 %v2777, %v2785
  %v2794 = vmax.f32 %v2778, %v2786
  %v2795 = vmax.f32 %v2779, %v2787
  %v2796 = vmax.f32 %v2780, %v2788
  %v2797 = vmax.f32 %v2781, %v2789
  %v2798 = vmax.f32 %v2782, %v2790
  %v2799 = vmax.f32 %v2783, %v2791
  %v2800 = vld [vmem:[#allocation3 + $0x5] sm:$0x1]
  %v2801 = vld [vmem:[#allocation3 + $0x1d] sm:$0x1]
  %v2802 = vld [vmem:[#allocation3 + $0x35] sm:$0x1]
  %v2803 = vld [vmem:[#allocation3 + $0x4d] sm:$0x1]
  %v2804 = vld [vmem:[#allocation3 + $0x65] sm:$0x1]
  %v2805 = vld [vmem:[#allocation3 + $0x7d] sm:$0x1]
  %v2806 = vld [vmem:[#allocation3 + $0x95] sm:$0x1]
  %v2807 = vld [vmem:[#allocation3 + $0xad] sm:$0x1]
  %v2808 = vld [vmem:[#allocation4 + $0x5] sm:$0x1]
  %v2809 = vld [vmem:[#allocation4 + $0x1d] sm:$0x1]
  %v2810 = vld [vmem:[#allocation4 + $0x35] sm:$0x1]
  %v2811 = vld [vmem:[#allocation4 + $0x4d] sm:$0x1]
  %v2812 = vld [vmem:[#allocation4 + $0x65] sm:$0x1]
  %v2813 = vld [vmem:[#allocation4 + $0x7d] sm:$0x1]
  %v2814 = vld [vmem:[#allocation4 + $0x95] sm:$0x1]
  %v2815 = vld [vmem:[#allocation4 + $0xad] sm:$0x1]
  %v2816 = vmax.f32 %v2800, %v2808
  %v2817 = vmax.f32 %v2801, %v2809
  %v2818 = vmax.f32 %v2802, %v2810
  %v2819 = vmax.f32 %v2803, %v2811
  %v2820 = vmax.f32 %v2804, %v2812
  %v2821 = vmax.f32 %v2805, %v2813
  %v2822 = vmax.f32 %v2806, %v2814
  %v2823 = vmax.f32 %v2807, %v2815
  %v2824 = vmax.f32 %v2792, %v2816
  %v2825 = vmax.f32 %v2793, %v2817
  %v2826 = vmax.f32 %v2794, %v2818
  %v2827 = vmax.f32 %v2795, %v2819
  %v2828 = vmax.f32 %v2796, %v2820
  %v2829 = vmax.f32 %v2797, %v2821
  %v2830 = vmax.f32 %v2798, %v2822
  %v2831 = vmax.f32 %v2799, %v2823
  %v2832 = vld [vmem:[%s3] sm:$0x1]
  %v2834 = vlaneseq
  %v2835 = vshrl.u32 %v2834, 7
  %v2836 = vsub.s32 0, %v2835
  %v2837 = vrot.slane %v2832, %v2836
  %v2839 = vadd.f32 %v2824, %v2837
  %v2840 = vadd.f32 %v2825, %v2837
  %v2841 = vadd.f32 %v2826, %v2837
  %v2842 = vadd.f32 %v2827, %v2837
  %v2843 = vadd.f32 %v2828, %v2837
  %v2844 = vadd.f32 %v2829, %v2837
  %v2845 = vadd.f32 %v2830, %v2837
  %v2846 = vadd.f32 %v2831, %v2837
  %v2847 = vmax.f32 %v2839, 0.0
  %v2848 = vmax.f32 %v2840, 0.0
  %v2849 = vmax.f32 %v2841, 0.0
  %v2850 = vmax.f32 %v2842, 0.0
  %v2851 = vmax.f32 %v2843, 0.0
  %v2852 = vmax.f32 %v2844, 0.0
  %v2853 = vmax.f32 %v2845, 0.0
  %v2854 = vmax.f32 %v2846, 0.0
  %2855 = vst.msk [vmem:[#allocation5 + $0x2] sm:$0x1] %vm2680, %v2847
  %2856 = vst.msk [vmem:[#allocation5 + $0x12] sm:$0x1] %vm2680, %v2848
  %2857 = vst.msk [vmem:[#allocation5 + $0x22] sm:$0x1] %vm2680, %v2849
  %2858 = vst.msk [vmem:[#allocation5 + $0x32] sm:$0x1] %vm2680, %v2850
  %2859 = vst.msk [vmem:[#allocation5 + $0x42] sm:$0x1] %vm2680, %v2851
  %2860 = vst.msk [vmem:[#allocation5 + $0x52] sm:$0x1] %vm2680, %v2852
  %2861 = vst.msk [vmem:[#allocation5 + $0x62] sm:$0x1] %vm2680, %v2853
  %2862 = vst.msk [vmem:[#allocation5 + $0x72] sm:$0x1] %vm2680, %v2854
  %v2863 = vld [vmem:[#allocation3 + $0x6] sm:$0x1]
  %v2864 = vld [vmem:[#allocation3 + $0x1e] sm:$0x1]
  %v2865 = vld [vmem:[#allocation3 + $0x36] sm:$0x1]
  %v2866 = vld [vmem:[#allocation3 + $0x4e] sm:$0x1]
  %v2867 = vld [vmem:[#allocation3 + $0x66] sm:$0x1]
  %v2868 = vld [vmem:[#allocation3 + $0x7e] sm:$0x1]
  %v2869 = vld [vmem:[#allocation3 + $0x96] sm:$0x1]
  %v2870 = vld [vmem:[#allocation3 + $0xae] sm:$0x1]
  %v2871 = vld [vmem:[#allocation4 + $0x6] sm:$0x1]
  %v2872 = vld [vmem:[#allocation4 + $0x1e] sm:$0x1]
  %v2873 = vld [vmem:[#allocation4 + $0x36] sm:$0x1]
  %v2874 = vld [vmem:[#allocation4 + $0x4e] sm:$0x1]
  %v2875 = vld [vmem:[#allocation4 + $0x66] sm:$0x1]
  %v2876 = vld [vmem:[#allocation4 + $0x7e] sm:$0x1]
  %v2877 = vld [vmem:[#allocation4 + $0x96] sm:$0x1]
  %v2878 = vld [vmem:[#allocation4 + $0xae] sm:$0x1]
  %v2879 = vmax.f32 %v2863, %v2871
  %v2880 = vmax.f32 %v2864, %v2872
  %v2881 = vmax.f32 %v2865, %v2873
  %v2882 = vmax.f32 %v2866, %v2874
  %v2883 = vmax.f32 %v2867, %v2875
  %v2884 = vmax.f32 %v2868, %v2876
  %v2885 = vmax.f32 %v2869, %v2877
  %v2886 = vmax.f32 %v2870, %v2878
  %v2887 = vld [vmem:[#allocation3 + $0x7] sm:$0x1]
  %v2888 = vld [vmem:[#allocation3 + $0x1f] sm:$0x1]
  %v2889 = vld [vmem:[#allocation3 + $0x37] sm:$0x1]
  %v2890 = vld [vmem:[#allocation3 + $0x4f] sm:$0x1]
  %v2891 = vld [vmem:[#allocation3 + $0x67] sm:$0x1]
  %v2892 = vld [vmem:[#allocation3 + $0x7f] sm:$0x1]
  %v2893 = vld [vmem:[#allocation3 + $0x97] sm:$0x1]
  %v2894 = vld [vmem:[#allocation3 + $0xaf] sm:$0x1]
  %v2895 = vld [vmem:[#allocation4 + $0x7] sm:$0x1]
  %v2896 = vld [vmem:[#allocation4 + $0x1f] sm:$0x1]
  %v2897 = vld [vmem:[#allocation4 + $0x37] sm:$0x1]
  %v2898 = vld [vmem:[#allocation4 + $0x4f] sm:$0x1]
  %v2899 = vld [vmem:[#allocation4 + $0x67] sm:$0x1]
  %v2900 = vld [vmem:[#allocation4 + $0x7f] sm:$0x1]
  %v2901 = vld [vmem:[#allocation4 + $0x97] sm:$0x1]
  %v2902 = vld [vmem:[#allocation4 + $0xaf] sm:$0x1]
  %v2903 = vmax.f32 %v2887, %v2895
  %v2904 = vmax.f32 %v2888, %v2896
  %v2905 = vmax.f32 %v2889, %v2897
  %v2906 = vmax.f32 %v2890, %v2898
  %v2907 = vmax.f32 %v2891, %v2899
  %v2908 = vmax.f32 %v2892, %v2900
  %v2909 = vmax.f32 %v2893, %v2901
  %v2910 = vmax.f32 %v2894, %v2902
  %v2911 = vmax.f32 %v2879, %v2903
  %v2912 = vmax.f32 %v2880, %v2904
  %v2913 = vmax.f32 %v2881, %v2905
  %v2914 = vmax.f32 %v2882, %v2906
  %v2915 = vmax.f32 %v2883, %v2907
  %v2916 = vmax.f32 %v2884, %v2908
  %v2917 = vmax.f32 %v2885, %v2909
  %v2918 = vmax.f32 %v2886, %v2910
  %v2919 = vld [vmem:[%s3] sm:$0x1]
  %v2921 = vlaneseq
  %v2922 = vshrl.u32 %v2921, 7
  %v2923 = vsub.s32 0, %v2922
  %v2924 = vrot.slane %v2919, %v2923
  %v2926 = vadd.f32 %v2911, %v2924
  %v2927 = vadd.f32 %v2912, %v2924
  %v2928 = vadd.f32 %v2913, %v2924
  %v2929 = vadd.f32 %v2914, %v2924
  %v2930 = vadd.f32 %v2915, %v2924
  %v2931 = vadd.f32 %v2916, %v2924
  %v2932 = vadd.f32 %v2917, %v2924
  %v2933 = vadd.f32 %v2918, %v2924
  %v2934 = vmax.f32 %v2926, 0.0
  %v2935 = vmax.f32 %v2927, 0.0
  %v2936 = vmax.f32 %v2928, 0.0
  %v2937 = vmax.f32 %v2929, 0.0
  %v2938 = vmax.f32 %v2930, 0.0
  %v2939 = vmax.f32 %v2931, 0.0
  %v2940 = vmax.f32 %v2932, 0.0
  %v2941 = vmax.f32 %v2933, 0.0
  %2942 = vst.msk [vmem:[#allocation5 + $0x3] sm:$0x1] %vm2680, %v2934
  %2943 = vst.msk [vmem:[#allocation5 + $0x13] sm:$0x1] %vm2680, %v2935
  %2944 = vst.msk [vmem:[#allocation5 + $0x23] sm:$0x1] %vm2680, %v2936
  %2945 = vst.msk [vmem:[#allocation5 + $0x33] sm:$0x1] %vm2680, %v2937
  %2946 = vst.msk [vmem:[#allocation5 + $0x43] sm:$0x1] %vm2680, %v2938
  %2947 = vst.msk [vmem:[#allocation5 + $0x53] sm:$0x1] %vm2680, %v2939
  %2948 = vst.msk [vmem:[#allocation5 + $0x63] sm:$0x1] %vm2680, %v2940
  %2949 = vst.msk [vmem:[#allocation5 + $0x73] sm:$0x1] %vm2680, %v2941
  %v2950 = vld [vmem:[#allocation3 + $0x8] sm:$0x1]
  %v2951 = vld [vmem:[#allocation3 + $0x20] sm:$0x1]
  %v2952 = vld [vmem:[#allocation3 + $0x38] sm:$0x1]
  %v2953 = vld [vmem:[#allocation3 + $0x50] sm:$0x1]
  %v2954 = vld [vmem:[#allocation3 + $0x68] sm:$0x1]
  %v2955 = vld [vmem:[#allocation3 + $0x80] sm:$0x1]
  %v2956 = vld [vmem:[#allocation3 + $0x98] sm:$0x1]
  %v2957 = vld [vmem:[#allocation3 + $0xb0] sm:$0x1]
  %v2958 = vld [vmem:[#allocation4 + $0x8] sm:$0x1]
  %v2959 = vld [vmem:[#allocation4 + $0x20] sm:$0x1]
  %v2960 = vld [vmem:[#allocation4 + $0x38] sm:$0x1]
  %v2961 = vld [vmem:[#allocation4 + $0x50] sm:$0x1]
  %v2962 = vld [vmem:[#allocation4 + $0x68] sm:$0x1]
  %v2963 = vld [vmem:[#allocation4 + $0x80] sm:$0x1]
  %v2964 = vld [vmem:[#allocation4 + $0x98] sm:$0x1]
  %v2965 = vld [vmem:[#allocation4 + $0xb0] sm:$0x1]
  %v2966 = vmax.f32 %v2950, %v2958
  %v2967 = vmax.f32 %v2951, %v2959
  %v2968 = vmax.f32 %v2952, %v2960
  %v2969 = vmax.f32 %v2953, %v2961
  %v2970 = vmax.f32 %v2954, %v2962
  %v2971 = vmax.f32 %v2955, %v2963
  %v2972 = vmax.f32 %v2956, %v2964
  %v2973 = vmax.f32 %v2957, %v2965
  %v2974 = vld [vmem:[#allocation3 + $0x9] sm:$0x1]
  %v2975 = vld [vmem:[#allocation3 + $0x21] sm:$0x1]
  %v2976 = vld [vmem:[#allocation3 + $0x39] sm:$0x1]
  %v2977 = vld [vmem:[#allocation3 + $0x51] sm:$0x1]
  %v2978 = vld [vmem:[#allocation3 + $0x69] sm:$0x1]
  %v2979 = vld [vmem:[#allocation3 + $0x81] sm:$0x1]
  %v2980 = vld [vmem:[#allocation3 + $0x99] sm:$0x1]
  %v2981 = vld [vmem:[#allocation3 + $0xb1] sm:$0x1]
  %v2982 = vld [vmem:[#allocation4 + $0x9] sm:$0x1]
  %v2983 = vld [vmem:[#allocation4 + $0x21] sm:$0x1]
  %v2984 = vld [vmem:[#allocation4 + $0x39] sm:$0x1]
  %v2985 = vld [vmem:[#allocation4 + $0x51] sm:$0x1]
  %v2986 = vld [vmem:[#allocation4 + $0x69] sm:$0x1]
  %v2987 = vld [vmem:[#allocation4 + $0x81] sm:$0x1]
  %v2988 = vld [vmem:[#allocation4 + $0x99] sm:$0x1]
  %v2989 = vld [vmem:[#allocation4 + $0xb1] sm:$0x1]
  %v2990 = vmax.f32 %v2974, %v2982
  %v2991 = vmax.f32 %v2975, %v2983
  %v2992 = vmax.f32 %v2976, %v2984
  %v2993 = vmax.f32 %v2977, %v2985
  %v2994 = vmax.f32 %v2978, %v2986
  %v2995 = vmax.f32 %v2979, %v2987
  %v2996 = vmax.f32 %v2980, %v2988
  %v2997 = vmax.f32 %v2981, %v2989
  %v2998 = vmax.f32 %v2966, %v2990
  %v2999 = vmax.f32 %v2967, %v2991
  %v3000 = vmax.f32 %v2968, %v2992
  %v3001 = vmax.f32 %v2969, %v2993
  %v3002 = vmax.f32 %v2970, %v2994
  %v3003 = vmax.f32 %v2971, %v2995
  %v3004 = vmax.f32 %v2972, %v2996
  %v3005 = vmax.f32 %v2973, %v2997
  %v3006 = vld [vmem:[%s3] sm:$0x1]
  %v3008 = vlaneseq
  %v3009 = vshrl.u32 %v3008, 7
  %v3010 = vsub.s32 0, %v3009
  %v3011 = vrot.slane %v3006, %v3010
  %v3013 = vadd.f32 %v2998, %v3011
  %v3014 = vadd.f32 %v2999, %v3011
  %v3015 = vadd.f32 %v3000, %v3011
  %v3016 = vadd.f32 %v3001, %v3011
  %v3017 = vadd.f32 %v3002, %v3011
  %v3018 = vadd.f32 %v3003, %v3011
  %v3019 = vadd.f32 %v3004, %v3011
  %v3020 = vadd.f32 %v3005, %v3011
  %v3021 = vmax.f32 %v3013, 0.0
  %v3022 = vmax.f32 %v3014, 0.0
  %v3023 = vmax.f32 %v3015, 0.0
  %v3024 = vmax.f32 %v3016, 0.0
  %v3025 = vmax.f32 %v3017, 0.0
  %v3026 = vmax.f32 %v3018, 0.0
  %v3027 = vmax.f32 %v3019, 0.0
  %v3028 = vmax.f32 %v3020, 0.0
  %3029 = vst.msk [vmem:[#allocation5 + $0x4] sm:$0x1] %vm2680, %v3021
  %3030 = vst.msk [vmem:[#allocation5 + $0x14] sm:$0x1] %vm2680, %v3022
  %3031 = vst.msk [vmem:[#allocation5 + $0x24] sm:$0x1] %vm2680, %v3023
  %3032 = vst.msk [vmem:[#allocation5 + $0x34] sm:$0x1] %vm2680, %v3024
  %3033 = vst.msk [vmem:[#allocation5 + $0x44] sm:$0x1] %vm2680, %v3025
  %3034 = vst.msk [vmem:[#allocation5 + $0x54] sm:$0x1] %vm2680, %v3026
  %3035 = vst.msk [vmem:[#allocation5 + $0x64] sm:$0x1] %vm2680, %v3027
  %3036 = vst.msk [vmem:[#allocation5 + $0x74] sm:$0x1] %vm2680, %v3028
  %v3037 = vld [vmem:[#allocation3 + $0xa] sm:$0x1]
  %v3038 = vld [vmem:[#allocation3 + $0x22] sm:$0x1]
  %v3039 = vld [vmem:[#allocation3 + $0x3a] sm:$0x1]
  %v3040 = vld [vmem:[#allocation3 + $0x52] sm:$0x1]
  %v3041 = vld [vmem:[#allocation3 + $0x6a] sm:$0x1]
  %v3042 = vld [vmem:[#allocation3 + $0x82] sm:$0x1]
  %v3043 = vld [vmem:[#allocation3 + $0x9a] sm:$0x1]
  %v3044 = vld [vmem:[#allocation3 + $0xb2] sm:$0x1]
  %v3045 = vld [vmem:[#allocation4 + $0xa] sm:$0x1]
  %v3046 = vld [vmem:[#allocation4 + $0x22] sm:$0x1]
  %v3047 = vld [vmem:[#allocation4 + $0x3a] sm:$0x1]
  %v3048 = vld [vmem:[#allocation4 + $0x52] sm:$0x1]
  %v3049 = vld [vmem:[#allocation4 + $0x6a] sm:$0x1]
  %v3050 = vld [vmem:[#allocation4 + $0x82] sm:$0x1]
  %v3051 = vld [vmem:[#allocation4 + $0x9a] sm:$0x1]
  %v3052 = vld [vmem:[#allocation4 + $0xb2] sm:$0x1]
  %v3053 = vmax.f32 %v3037, %v3045
  %v3054 = vmax.f32 %v3038, %v3046
  %v3055 = vmax.f32 %v3039, %v3047
  %v3056 = vmax.f32 %v3040, %v3048
  %v3057 = vmax.f32 %v3041, %v3049
  %v3058 = vmax.f32 %v3042, %v3050
  %v3059 = vmax.f32 %v3043, %v3051
  %v3060 = vmax.f32 %v3044, %v3052
  %v3061 = vld [vmem:[#allocation3 + $0xb] sm:$0x1]
  %v3062 = vld [vmem:[#allocation3 + $0x23] sm:$0x1]
  %v3063 = vld [vmem:[#allocation3 + $0x3b] sm:$0x1]
  %v3064 = vld [vmem:[#allocation3 + $0x53] sm:$0x1]
  %v3065 = vld [vmem:[#allocation3 + $0x6b] sm:$0x1]
  %v3066 = vld [vmem:[#allocation3 + $0x83] sm:$0x1]
  %v3067 = vld [vmem:[#allocation3 + $0x9b] sm:$0x1]
  %v3068 = vld [vmem:[#allocation3 + $0xb3] sm:$0x1]
  %v3069 = vld [vmem:[#allocation4 + $0xb] sm:$0x1]
  %v3070 = vld [vmem:[#allocation4 + $0x23] sm:$0x1]
  %v3071 = vld [vmem:[#allocation4 + $0x3b] sm:$0x1]
  %v3072 = vld [vmem:[#allocation4 + $0x53] sm:$0x1]
  %v3073 = vld [vmem:[#allocation4 + $0x6b] sm:$0x1]
  %v3074 = vld [vmem:[#allocation4 + $0x83] sm:$0x1]
  %v3075 = vld [vmem:[#allocation4 + $0x9b] sm:$0x1]
  %v3076 = vld [vmem:[#allocation4 + $0xb3] sm:$0x1]
  %v3077 = vmax.f32 %v3061, %v3069
  %v3078 = vmax.f32 %v3062, %v3070
  %v3079 = vmax.f32 %v3063, %v3071
  %v3080 = vmax.f32 %v3064, %v3072
  %v3081 = vmax.f32 %v3065, %v3073
  %v3082 = vmax.f32 %v3066, %v3074
  %v3083 = vmax.f32 %v3067, %v3075
  %v3084 = vmax.f32 %v3068, %v3076
  %v3085 = vmax.f32 %v3053, %v3077
  %v3086 = vmax.f32 %v3054, %v3078
  %v3087 = vmax.f32 %v3055, %v3079
  %v3088 = vmax.f32 %v3056, %v3080
  %v3089 = vmax.f32 %v3057, %v3081
  %v3090 = vmax.f32 %v3058, %v3082
  %v3091 = vmax.f32 %v3059, %v3083
  %v3092 = vmax.f32 %v3060, %v3084
  %v3093 = vld [vmem:[%s3] sm:$0x1]
  %v3095 = vlaneseq
  %v3096 = vshrl.u32 %v3095, 7
  %v3097 = vsub.s32 0, %v3096
  %v3098 = vrot.slane %v3093, %v3097
  %v3100 = vadd.f32 %v3085, %v3098
  %v3101 = vadd.f32 %v3086, %v3098
  %v3102 = vadd.f32 %v3087, %v3098
  %v3103 = vadd.f32 %v3088, %v3098
  %v3104 = vadd.f32 %v3089, %v3098
  %v3105 = vadd.f32 %v3090, %v3098
  %v3106 = vadd.f32 %v3091, %v3098
  %v3107 = vadd.f32 %v3092, %v3098
  %v3108 = vmax.f32 %v3100, 0.0
  %v3109 = vmax.f32 %v3101, 0.0
  %v3110 = vmax.f32 %v3102, 0.0
  %v3111 = vmax.f32 %v3103, 0.0
  %v3112 = vmax.f32 %v3104, 0.0
  %v3113 = vmax.f32 %v3105, 0.0
  %v3114 = vmax.f32 %v3106, 0.0
  %v3115 = vmax.f32 %v3107, 0.0
  %3116 = vst.msk [vmem:[#allocation5 + $0x5] sm:$0x1] %vm2680, %v3108
  %3117 = vst.msk [vmem:[#allocation5 + $0x15] sm:$0x1] %vm2680, %v3109
  %3118 = vst.msk [vmem:[#allocation5 + $0x25] sm:$0x1] %vm2680, %v3110
  %3119 = vst.msk [vmem:[#allocation5 + $0x35] sm:$0x1] %vm2680, %v3111
  %3120 = vst.msk [vmem:[#allocation5 + $0x45] sm:$0x1] %vm2680, %v3112
  %3121 = vst.msk [vmem:[#allocation5 + $0x55] sm:$0x1] %vm2680, %v3113
  %3122 = vst.msk [vmem:[#allocation5 + $0x65] sm:$0x1] %vm2680, %v3114
  %3123 = vst.msk [vmem:[#allocation5 + $0x75] sm:$0x1] %vm2680, %v3115
  %v3124 = vld [vmem:[#allocation3 + $0xc] sm:$0x1]
  %v3125 = vld [vmem:[#allocation3 + $0x24] sm:$0x1]
  %v3126 = vld [vmem:[#allocation3 + $0x3c] sm:$0x1]
  %v3127 = vld [vmem:[#allocation3 + $0x54] sm:$0x1]
  %v3128 = vld [vmem:[#allocation3 + $0x6c] sm:$0x1]
  %v3129 = vld [vmem:[#allocation3 + $0x84] sm:$0x1]
  %v3130 = vld [vmem:[#allocation3 + $0x9c] sm:$0x1]
  %v3131 = vld [vmem:[#allocation3 + $0xb4] sm:$0x1]
  %v3132 = vld [vmem:[#allocation4 + $0xc] sm:$0x1]
  %v3133 = vld [vmem:[#allocation4 + $0x24] sm:$0x1]
  %v3134 = vld [vmem:[#allocation4 + $0x3c] sm:$0x1]
  %v3135 = vld [vmem:[#allocation4 + $0x54] sm:$0x1]
  %v3136 = vld [vmem:[#allocation4 + $0x6c] sm:$0x1]
  %v3137 = vld [vmem:[#allocation4 + $0x84] sm:$0x1]
  %v3138 = vld [vmem:[#allocation4 + $0x9c] sm:$0x1]
  %v3139 = vld [vmem:[#allocation4 + $0xb4] sm:$0x1]
  %v3140 = vmax.f32 %v3124, %v3132
  %v3141 = vmax.f32 %v3125, %v3133
  %v3142 = vmax.f32 %v3126, %v3134
  %v3143 = vmax.f32 %v3127, %v3135
  %v3144 = vmax.f32 %v3128, %v3136
  %v3145 = vmax.f32 %v3129, %v3137
  %v3146 = vmax.f32 %v3130, %v3138
  %v3147 = vmax.f32 %v3131, %v3139
  %v3148 = vld [vmem:[#allocation3 + $0xd] sm:$0x1]
  %v3149 = vld [vmem:[#allocation3 + $0x25] sm:$0x1]
  %v3150 = vld [vmem:[#allocation3 + $0x3d] sm:$0x1]
  %v3151 = vld [vmem:[#allocation3 + $0x55] sm:$0x1]
  %v3152 = vld [vmem:[#allocation3 + $0x6d] sm:$0x1]
  %v3153 = vld [vmem:[#allocation3 + $0x85] sm:$0x1]
  %v3154 = vld [vmem:[#allocation3 + $0x9d] sm:$0x1]
  %v3155 = vld [vmem:[#allocation3 + $0xb5] sm:$0x1]
  %v3156 = vld [vmem:[#allocation4 + $0xd] sm:$0x1]
  %v3157 = vld [vmem:[#allocation4 + $0x25] sm:$0x1]
  %v3158 = vld [vmem:[#allocation4 + $0x3d] sm:$0x1]
  %v3159 = vld [vmem:[#allocation4 + $0x55] sm:$0x1]
  %v3160 = vld [vmem:[#allocation4 + $0x6d] sm:$0x1]
  %v3161 = vld [vmem:[#allocation4 + $0x85] sm:$0x1]
  %v3162 = vld [vmem:[#allocation4 + $0x9d] sm:$0x1]
  %v3163 = vld [vmem:[#allocation4 + $0xb5] sm:$0x1]
  %v3164 = vmax.f32 %v3148, %v3156
  %v3165 = vmax.f32 %v3149, %v3157
  %v3166 = vmax.f32 %v3150, %v3158
  %v3167 = vmax.f32 %v3151, %v3159
  %v3168 = vmax.f32 %v3152, %v3160
  %v3169 = vmax.f32 %v3153, %v3161
  %v3170 = vmax.f32 %v3154, %v3162
  %v3171 = vmax.f32 %v3155, %v3163
  %v3172 = vmax.f32 %v3140, %v3164
  %v3173 = vmax.f32 %v3141, %v3165
  %v3174 = vmax.f32 %v3142, %v3166
  %v3175 = vmax.f32 %v3143, %v3167
  %v3176 = vmax.f32 %v3144, %v3168
  %v3177 = vmax.f32 %v3145, %v3169
  %v3178 = vmax.f32 %v3146, %v3170
  %v3179 = vmax.f32 %v3147, %v3171
  %v3180 = vld [vmem:[%s3] sm:$0x1]
  %v3182 = vlaneseq
  %v3183 = vshrl.u32 %v3182, 7
  %v3184 = vsub.s32 0, %v3183
  %v3185 = vrot.slane %v3180, %v3184
  %v3187 = vadd.f32 %v3172, %v3185
  %v3188 = vadd.f32 %v3173, %v3185
  %v3189 = vadd.f32 %v3174, %v3185
  %v3190 = vadd.f32 %v3175, %v3185
  %v3191 = vadd.f32 %v3176, %v3185
  %v3192 = vadd.f32 %v3177, %v3185
  %v3193 = vadd.f32 %v3178, %v3185
  %v3194 = vadd.f32 %v3179, %v3185
  %v3195 = vmax.f32 %v3187, 0.0
  %v3196 = vmax.f32 %v3188, 0.0
  %v3197 = vmax.f32 %v3189, 0.0
  %v3198 = vmax.f32 %v3190, 0.0
  %v3199 = vmax.f32 %v3191, 0.0
  %v3200 = vmax.f32 %v3192, 0.0
  %v3201 = vmax.f32 %v3193, 0.0
  %v3202 = vmax.f32 %v3194, 0.0
  %3203 = vst.msk [vmem:[#allocation5 + $0x6] sm:$0x1] %vm2680, %v3195
  %3204 = vst.msk [vmem:[#allocation5 + $0x16] sm:$0x1] %vm2680, %v3196
  %3205 = vst.msk [vmem:[#allocation5 + $0x26] sm:$0x1] %vm2680, %v3197
  %3206 = vst.msk [vmem:[#allocation5 + $0x36] sm:$0x1] %vm2680, %v3198
  %3207 = vst.msk [vmem:[#allocation5 + $0x46] sm:$0x1] %vm2680, %v3199
  %3208 = vst.msk [vmem:[#allocation5 + $0x56] sm:$0x1] %vm2680, %v3200
  %3209 = vst.msk [vmem:[#allocation5 + $0x66] sm:$0x1] %vm2680, %v3201
  %3210 = vst.msk [vmem:[#allocation5 + $0x76] sm:$0x1] %vm2680, %v3202
  %v3211 = vld [vmem:[#allocation3 + $0xe] sm:$0x1]
  %v3212 = vld [vmem:[#allocation3 + $0x26] sm:$0x1]
  %v3213 = vld [vmem:[#allocation3 + $0x3e] sm:$0x1]
  %v3214 = vld [vmem:[#allocation3 + $0x56] sm:$0x1]
  %v3215 = vld [vmem:[#allocation3 + $0x6e] sm:$0x1]
  %v3216 = vld [vmem:[#allocation3 + $0x86] sm:$0x1]
  %v3217 = vld [vmem:[#allocation3 + $0x9e] sm:$0x1]
  %v3218 = vld [vmem:[#allocation3 + $0xb6] sm:$0x1]
  %v3219 = vld [vmem:[#allocation4 + $0xe] sm:$0x1]
  %v3220 = vld [vmem:[#allocation4 + $0x26] sm:$0x1]
  %v3221 = vld [vmem:[#allocation4 + $0x3e] sm:$0x1]
  %v3222 = vld [vmem:[#allocation4 + $0x56] sm:$0x1]
  %v3223 = vld [vmem:[#allocation4 + $0x6e] sm:$0x1]
  %v3224 = vld [vmem:[#allocation4 + $0x86] sm:$0x1]
  %v3225 = vld [vmem:[#allocation4 + $0x9e] sm:$0x1]
  %v3226 = vld [vmem:[#allocation4 + $0xb6] sm:$0x1]
  %v3227 = vmax.f32 %v3211, %v3219
  %v3228 = vmax.f32 %v3212, %v3220
  %v3229 = vmax.f32 %v3213, %v3221
  %v3230 = vmax.f32 %v3214, %v3222
  %v3231 = vmax.f32 %v3215, %v3223
  %v3232 = vmax.f32 %v3216, %v3224
  %v3233 = vmax.f32 %v3217, %v3225
  %v3234 = vmax.f32 %v3218, %v3226
  %v3235 = vld [vmem:[#allocation3 + $0xf] sm:$0x1]
  %v3236 = vld [vmem:[#allocation3 + $0x27] sm:$0x1]
  %v3237 = vld [vmem:[#allocation3 + $0x3f] sm:$0x1]
  %v3238 = vld [vmem:[#allocation3 + $0x57] sm:$0x1]
  %v3239 = vld [vmem:[#allocation3 + $0x6f] sm:$0x1]
  %v3240 = vld [vmem:[#allocation3 + $0x87] sm:$0x1]
  %v3241 = vld [vmem:[#allocation3 + $0x9f] sm:$0x1]
  %v3242 = vld [vmem:[#allocation3 + $0xb7] sm:$0x1]
  %v3243 = vld [vmem:[#allocation4 + $0xf] sm:$0x1]
  %v3244 = vld [vmem:[#allocation4 + $0x27] sm:$0x1]
  %v3245 = vld [vmem:[#allocation4 + $0x3f] sm:$0x1]
  %v3246 = vld [vmem:[#allocation4 + $0x57] sm:$0x1]
  %v3247 = vld [vmem:[#allocation4 + $0x6f] sm:$0x1]
  %v3248 = vld [vmem:[#allocation4 + $0x87] sm:$0x1]
  %v3249 = vld [vmem:[#allocation4 + $0x9f] sm:$0x1]
  %v3250 = vld [vmem:[#allocation4 + $0xb7] sm:$0x1]
  %v3251 = vmax.f32 %v3235, %v3243
  %v3252 = vmax.f32 %v3236, %v3244
  %v3253 = vmax.f32 %v3237, %v3245
  %v3254 = vmax.f32 %v3238, %v3246
  %v3255 = vmax.f32 %v3239, %v3247
  %v3256 = vmax.f32 %v3240, %v3248
  %v3257 = vmax.f32 %v3241, %v3249
  %v3258 = vmax.f32 %v3242, %v3250
  %v3259 = vmax.f32 %v3227, %v3251
  %v3260 = vmax.f32 %v3228, %v3252
  %v3261 = vmax.f32 %v3229, %v3253
  %v3262 = vmax.f32 %v3230, %v3254
  %v3263 = vmax.f32 %v3231, %v3255
  %v3264 = vmax.f32 %v3232, %v3256
  %v3265 = vmax.f32 %v3233, %v3257
  %v3266 = vmax.f32 %v3234, %v3258
  %v3267 = vld [vmem:[%s3] sm:$0x1]
  %v3269 = vlaneseq
  %v3270 = vshrl.u32 %v3269, 7
  %v3271 = vsub.s32 0, %v3270
  %v3272 = vrot.slane %v3267, %v3271
  %v3274 = vadd.f32 %v3259, %v3272
  %v3275 = vadd.f32 %v3260, %v3272
  %v3276 = vadd.f32 %v3261, %v3272
  %v3277 = vadd.f32 %v3262, %v3272
  %v3278 = vadd.f32 %v3263, %v3272
  %v3279 = vadd.f32 %v3264, %v3272
  %v3280 = vadd.f32 %v3265, %v3272
  %v3281 = vadd.f32 %v3266, %v3272
  %v3282 = vmax.f32 %v3274, 0.0
  %v3283 = vmax.f32 %v3275, 0.0
  %v3284 = vmax.f32 %v3276, 0.0
  %v3285 = vmax.f32 %v3277, 0.0
  %v3286 = vmax.f32 %v3278, 0.0
  %v3287 = vmax.f32 %v3279, 0.0
  %v3288 = vmax.f32 %v3280, 0.0
  %v3289 = vmax.f32 %v3281, 0.0
  %3290 = vst.msk [vmem:[#allocation5 + $0x7] sm:$0x1] %vm2680, %v3282
  %3291 = vst.msk [vmem:[#allocation5 + $0x17] sm:$0x1] %vm2680, %v3283
  %3292 = vst.msk [vmem:[#allocation5 + $0x27] sm:$0x1] %vm2680, %v3284
  %3293 = vst.msk [vmem:[#allocation5 + $0x37] sm:$0x1] %vm2680, %v3285
  %3294 = vst.msk [vmem:[#allocation5 + $0x47] sm:$0x1] %vm2680, %v3286
  %3295 = vst.msk [vmem:[#allocation5 + $0x57] sm:$0x1] %vm2680, %v3287
  %3296 = vst.msk [vmem:[#allocation5 + $0x67] sm:$0x1] %vm2680, %v3288
  %3297 = vst.msk [vmem:[#allocation5 + $0x77] sm:$0x1] %vm2680, %v3289
  %v3298 = vld [vmem:[#allocation3 + $0x10] sm:$0x1]
  %v3299 = vld [vmem:[#allocation3 + $0x28] sm:$0x1]
  %v3300 = vld [vmem:[#allocation3 + $0x40] sm:$0x1]
  %v3301 = vld [vmem:[#allocation3 + $0x58] sm:$0x1]
  %v3302 = vld [vmem:[#allocation3 + $0x70] sm:$0x1]
  %v3303 = vld [vmem:[#allocation3 + $0x88] sm:$0x1]
  %v3304 = vld [vmem:[#allocation3 + $0xa0] sm:$0x1]
  %v3305 = vld [vmem:[#allocation3 + $0xb8] sm:$0x1]
  %v3306 = vld [vmem:[#allocation4 + $0x10] sm:$0x1]
  %v3307 = vld [vmem:[#allocation4 + $0x28] sm:$0x1]
  %v3308 = vld [vmem:[#allocation4 + $0x40] sm:$0x1]
  %v3309 = vld [vmem:[#allocation4 + $0x58] sm:$0x1]
  %v3310 = vld [vmem:[#allocation4 + $0x70] sm:$0x1]
  %v3311 = vld [vmem:[#allocation4 + $0x88] sm:$0x1]
  %v3312 = vld [vmem:[#allocation4 + $0xa0] sm:$0x1]
  %v3313 = vld [vmem:[#allocation4 + $0xb8] sm:$0x1]
  %v3314 = vmax.f32 %v3298, %v3306
  %v3315 = vmax.f32 %v3299, %v3307
  %v3316 = vmax.f32 %v3300, %v3308
  %v3317 = vmax.f32 %v3301, %v3309
  %v3318 = vmax.f32 %v3302, %v3310
  %v3319 = vmax.f32 %v3303, %v3311
  %v3320 = vmax.f32 %v3304, %v3312
  %v3321 = vmax.f32 %v3305, %v3313
  %v3322 = vld [vmem:[#allocation3 + $0x11] sm:$0x1]
  %v3323 = vld [vmem:[#allocation3 + $0x29] sm:$0x1]
  %v3324 = vld [vmem:[#allocation3 + $0x41] sm:$0x1]
  %v3325 = vld [vmem:[#allocation3 + $0x59] sm:$0x1]
  %v3326 = vld [vmem:[#allocation3 + $0x71] sm:$0x1]
  %v3327 = vld [vmem:[#allocation3 + $0x89] sm:$0x1]
  %v3328 = vld [vmem:[#allocation3 + $0xa1] sm:$0x1]
  %v3329 = vld [vmem:[#allocation3 + $0xb9] sm:$0x1]
  %v3330 = vld [vmem:[#allocation4 + $0x11] sm:$0x1]
  %v3331 = vld [vmem:[#allocation4 + $0x29] sm:$0x1]
  %v3332 = vld [vmem:[#allocation4 + $0x41] sm:$0x1]
  %v3333 = vld [vmem:[#allocation4 + $0x59] sm:$0x1]
  %v3334 = vld [vmem:[#allocation4 + $0x71] sm:$0x1]
  %v3335 = vld [vmem:[#allocation4 + $0x89] sm:$0x1]
  %v3336 = vld [vmem:[#allocation4 + $0xa1] sm:$0x1]
  %v3337 = vld [vmem:[#allocation4 + $0xb9] sm:$0x1]
  %v3338 = vmax.f32 %v3322, %v3330
  %v3339 = vmax.f32 %v3323, %v3331
  %v3340 = vmax.f32 %v3324, %v3332
  %v3341 = vmax.f32 %v3325, %v3333
  %v3342 = vmax.f32 %v3326, %v3334
  %v3343 = vmax.f32 %v3327, %v3335
  %v3344 = vmax.f32 %v3328, %v3336
  %v3345 = vmax.f32 %v3329, %v3337
  %v3346 = vmax.f32 %v3314, %v3338
  %v3347 = vmax.f32 %v3315, %v3339
  %v3348 = vmax.f32 %v3316, %v3340
  %v3349 = vmax.f32 %v3317, %v3341
  %v3350 = vmax.f32 %v3318, %v3342
  %v3351 = vmax.f32 %v3319, %v3343
  %v3352 = vmax.f32 %v3320, %v3344
  %v3353 = vmax.f32 %v3321, %v3345
  %v3354 = vld [vmem:[%s3] sm:$0x1]
  %v3356 = vlaneseq
  %v3357 = vshrl.u32 %v3356, 7
  %v3358 = vsub.s32 0, %v3357
  %v3359 = vrot.slane %v3354, %v3358
  %v3361 = vadd.f32 %v3346, %v3359
  %v3362 = vadd.f32 %v3347, %v3359
  %v3363 = vadd.f32 %v3348, %v3359
  %v3364 = vadd.f32 %v3349, %v3359
  %v3365 = vadd.f32 %v3350, %v3359
  %v3366 = vadd.f32 %v3351, %v3359
  %v3367 = vadd.f32 %v3352, %v3359
  %v3368 = vadd.f32 %v3353, %v3359
  %v3369 = vmax.f32 %v3361, 0.0
  %v3370 = vmax.f32 %v3362, 0.0
  %v3371 = vmax.f32 %v3363, 0.0
  %v3372 = vmax.f32 %v3364, 0.0
  %v3373 = vmax.f32 %v3365, 0.0
  %v3374 = vmax.f32 %v3366, 0.0
  %v3375 = vmax.f32 %v3367, 0.0
  %v3376 = vmax.f32 %v3368, 0.0
  %3377 = vst.msk [vmem:[#allocation5 + $0x8] sm:$0x1] %vm2680, %v3369
  %3378 = vst.msk [vmem:[#allocation5 + $0x18] sm:$0x1] %vm2680, %v3370
  %3379 = vst.msk [vmem:[#allocation5 + $0x28] sm:$0x1] %vm2680, %v3371
  %3380 = vst.msk [vmem:[#allocation5 + $0x38] sm:$0x1] %vm2680, %v3372
  %3381 = vst.msk [vmem:[#allocation5 + $0x48] sm:$0x1] %vm2680, %v3373
  %3382 = vst.msk [vmem:[#allocation5 + $0x58] sm:$0x1] %vm2680, %v3374
  %3383 = vst.msk [vmem:[#allocation5 + $0x68] sm:$0x1] %vm2680, %v3375
  %3384 = vst.msk [vmem:[#allocation5 + $0x78] sm:$0x1] %vm2680, %v3376
  %v3385 = vld [vmem:[#allocation3 + $0x12] sm:$0x1]
  %v3386 = vld [vmem:[#allocation3 + $0x2a] sm:$0x1]
  %v3387 = vld [vmem:[#allocation3 + $0x42] sm:$0x1]
  %v3388 = vld [vmem:[#allocation3 + $0x5a] sm:$0x1]
  %v3389 = vld [vmem:[#allocation3 + $0x72] sm:$0x1]
  %v3390 = vld [vmem:[#allocation3 + $0x8a] sm:$0x1]
  %v3391 = vld [vmem:[#allocation3 + $0xa2] sm:$0x1]
  %v3392 = vld [vmem:[#allocation3 + $0xba] sm:$0x1]
  %v3393 = vld [vmem:[#allocation4 + $0x12] sm:$0x1]
  %v3394 = vld [vmem:[#allocation4 + $0x2a] sm:$0x1]
  %v3395 = vld [vmem:[#allocation4 + $0x42] sm:$0x1]
  %v3396 = vld [vmem:[#allocation4 + $0x5a] sm:$0x1]
  %v3397 = vld [vmem:[#allocation4 + $0x72] sm:$0x1]
  %v3398 = vld [vmem:[#allocation4 + $0x8a] sm:$0x1]
  %v3399 = vld [vmem:[#allocation4 + $0xa2] sm:$0x1]
  %v3400 = vld [vmem:[#allocation4 + $0xba] sm:$0x1]
  %v3401 = vmax.f32 %v3385, %v3393
  %v3402 = vmax.f32 %v3386, %v3394
  %v3403 = vmax.f32 %v3387, %v3395
  %v3404 = vmax.f32 %v3388, %v3396
  %v3405 = vmax.f32 %v3389, %v3397
  %v3406 = vmax.f32 %v3390, %v3398
  %v3407 = vmax.f32 %v3391, %v3399
  %v3408 = vmax.f32 %v3392, %v3400
  %v3409 = vld [vmem:[#allocation3 + $0x13] sm:$0x1]
  %v3410 = vld [vmem:[#allocation3 + $0x2b] sm:$0x1]
  %v3411 = vld [vmem:[#allocation3 + $0x43] sm:$0x1]
  %v3412 = vld [vmem:[#allocation3 + $0x5b] sm:$0x1]
  %v3413 = vld [vmem:[#allocation3 + $0x73] sm:$0x1]
  %v3414 = vld [vmem:[#allocation3 + $0x8b] sm:$0x1]
  %v3415 = vld [vmem:[#allocation3 + $0xa3] sm:$0x1]
  %v3416 = vld [vmem:[#allocation3 + $0xbb] sm:$0x1]
  %v3417 = vld [vmem:[#allocation4 + $0x13] sm:$0x1]
  %v3418 = vld [vmem:[#allocation4 + $0x2b] sm:$0x1]
  %v3419 = vld [vmem:[#allocation4 + $0x43] sm:$0x1]
  %v3420 = vld [vmem:[#allocation4 + $0x5b] sm:$0x1]
  %v3421 = vld [vmem:[#allocation4 + $0x73] sm:$0x1]
  %v3422 = vld [vmem:[#allocation4 + $0x8b] sm:$0x1]
  %v3423 = vld [vmem:[#allocation4 + $0xa3] sm:$0x1]
  %v3424 = vld [vmem:[#allocation4 + $0xbb] sm:$0x1]
  %v3425 = vmax.f32 %v3409, %v3417
  %v3426 = vmax.f32 %v3410, %v3418
  %v3427 = vmax.f32 %v3411, %v3419
  %v3428 = vmax.f32 %v3412, %v3420
  %v3429 = vmax.f32 %v3413, %v3421
  %v3430 = vmax.f32 %v3414, %v3422
  %v3431 = vmax.f32 %v3415, %v3423
  %v3432 = vmax.f32 %v3416, %v3424
  %v3433 = vmax.f32 %v3401, %v3425
  %v3434 = vmax.f32 %v3402, %v3426
  %v3435 = vmax.f32 %v3403, %v3427
  %v3436 = vmax.f32 %v3404, %v3428
  %v3437 = vmax.f32 %v3405, %v3429
  %v3438 = vmax.f32 %v3406, %v3430
  %v3439 = vmax.f32 %v3407, %v3431
  %v3440 = vmax.f32 %v3408, %v3432
  %v3441 = vld [vmem:[%s3] sm:$0x1]
  %v3443 = vlaneseq
  %v3444 = vshrl.u32 %v3443, 7
  %v3445 = vsub.s32 0, %v3444
  %v3446 = vrot.slane %v3441, %v3445
  %v3448 = vadd.f32 %v3433, %v3446
  %v3449 = vadd.f32 %v3434, %v3446
  %v3450 = vadd.f32 %v3435, %v3446
  %v3451 = vadd.f32 %v3436, %v3446
  %v3452 = vadd.f32 %v3437, %v3446
  %v3453 = vadd.f32 %v3438, %v3446
  %v3454 = vadd.f32 %v3439, %v3446
  %v3455 = vadd.f32 %v3440, %v3446
  %v3456 = vmax.f32 %v3448, 0.0
  %v3457 = vmax.f32 %v3449, 0.0
  %v3458 = vmax.f32 %v3450, 0.0
  %v3459 = vmax.f32 %v3451, 0.0
  %v3460 = vmax.f32 %v3452, 0.0
  %v3461 = vmax.f32 %v3453, 0.0
  %v3462 = vmax.f32 %v3454, 0.0
  %v3463 = vmax.f32 %v3455, 0.0
  %3464 = vst.msk [vmem:[#allocation5 + $0x9] sm:$0x1] %vm2680, %v3456
  %3465 = vst.msk [vmem:[#allocation5 + $0x19] sm:$0x1] %vm2680, %v3457
  %3466 = vst.msk [vmem:[#allocation5 + $0x29] sm:$0x1] %vm2680, %v3458
  %3467 = vst.msk [vmem:[#allocation5 + $0x39] sm:$0x1] %vm2680, %v3459
  %3468 = vst.msk [vmem:[#allocation5 + $0x49] sm:$0x1] %vm2680, %v3460
  %3469 = vst.msk [vmem:[#allocation5 + $0x59] sm:$0x1] %vm2680, %v3461
  %3470 = vst.msk [vmem:[#allocation5 + $0x69] sm:$0x1] %vm2680, %v3462
  %3471 = vst.msk [vmem:[#allocation5 + $0x79] sm:$0x1] %vm2680, %v3463
  %v3472 = vld [vmem:[#allocation3 + $0x14] sm:$0x1]
  %v3473 = vld [vmem:[#allocation3 + $0x2c] sm:$0x1]
  %v3474 = vld [vmem:[#allocation3 + $0x44] sm:$0x1]
  %v3475 = vld [vmem:[#allocation3 + $0x5c] sm:$0x1]
  %v3476 = vld [vmem:[#allocation3 + $0x74] sm:$0x1]
  %v3477 = vld [vmem:[#allocation3 + $0x8c] sm:$0x1]
  %v3478 = vld [vmem:[#allocation3 + $0xa4] sm:$0x1]
  %v3479 = vld [vmem:[#allocation3 + $0xbc] sm:$0x1]
  %v3480 = vld [vmem:[#allocation4 + $0x14] sm:$0x1]
  %v3481 = vld [vmem:[#allocation4 + $0x2c] sm:$0x1]
  %v3482 = vld [vmem:[#allocation4 + $0x44] sm:$0x1]
  %v3483 = vld [vmem:[#allocation4 + $0x5c] sm:$0x1]
  %v3484 = vld [vmem:[#allocation4 + $0x74] sm:$0x1]
  %v3485 = vld [vmem:[#allocation4 + $0x8c] sm:$0x1]
  %v3486 = vld [vmem:[#allocation4 + $0xa4] sm:$0x1]
  %v3487 = vld [vmem:[#allocation4 + $0xbc] sm:$0x1]
  %v3488 = vmax.f32 %v3472, %v3480
  %v3489 = vmax.f32 %v3473, %v3481
  %v3490 = vmax.f32 %v3474, %v3482
  %v3491 = vmax.f32 %v3475, %v3483
  %v3492 = vmax.f32 %v3476, %v3484
  %v3493 = vmax.f32 %v3477, %v3485
  %v3494 = vmax.f32 %v3478, %v3486
  %v3495 = vmax.f32 %v3479, %v3487
  %v3496 = vld [vmem:[#allocation3 + $0x15] sm:$0x1]
  %v3497 = vld [vmem:[#allocation3 + $0x2d] sm:$0x1]
  %v3498 = vld [vmem:[#allocation3 + $0x45] sm:$0x1]
  %v3499 = vld [vmem:[#allocation3 + $0x5d] sm:$0x1]
  %v3500 = vld [vmem:[#allocation3 + $0x75] sm:$0x1]
  %v3501 = vld [vmem:[#allocation3 + $0x8d] sm:$0x1]
  %v3502 = vld [vmem:[#allocation3 + $0xa5] sm:$0x1]
  %v3503 = vld [vmem:[#allocation3 + $0xbd] sm:$0x1]
  %v3504 = vld [vmem:[#allocation4 + $0x15] sm:$0x1]
  %v3505 = vld [vmem:[#allocation4 + $0x2d] sm:$0x1]
  %v3506 = vld [vmem:[#allocation4 + $0x45] sm:$0x1]
  %v3507 = vld [vmem:[#allocation4 + $0x5d] sm:$0x1]
  %v3508 = vld [vmem:[#allocation4 + $0x75] sm:$0x1]
  %v3509 = vld [vmem:[#allocation4 + $0x8d] sm:$0x1]
  %v3510 = vld [vmem:[#allocation4 + $0xa5] sm:$0x1]
  %v3511 = vld [vmem:[#allocation4 + $0xbd] sm:$0x1]
  %v3512 = vmax.f32 %v3496, %v3504
  %v3513 = vmax.f32 %v3497, %v3505
  %v3514 = vmax.f32 %v3498, %v3506
  %v3515 = vmax.f32 %v3499, %v3507
  %v3516 = vmax.f32 %v3500, %v3508
  %v3517 = vmax.f32 %v3501, %v3509
  %v3518 = vmax.f32 %v3502, %v3510
  %v3519 = vmax.f32 %v3503, %v3511
  %v3520 = vmax.f32 %v3488, %v3512
  %v3521 = vmax.f32 %v3489, %v3513
  %v3522 = vmax.f32 %v3490, %v3514
  %v3523 = vmax.f32 %v3491, %v3515
  %v3524 = vmax.f32 %v3492, %v3516
  %v3525 = vmax.f32 %v3493, %v3517
  %v3526 = vmax.f32 %v3494, %v3518
  %v3527 = vmax.f32 %v3495, %v3519
  %v3528 = vld [vmem:[%s3] sm:$0x1]
  %v3530 = vlaneseq
  %v3531 = vshrl.u32 %v3530, 7
  %v3532 = vsub.s32 0, %v3531
  %v3533 = vrot.slane %v3528, %v3532
  %v3535 = vadd.f32 %v3520, %v3533
  %v3536 = vadd.f32 %v3521, %v3533
  %v3537 = vadd.f32 %v3522, %v3533
  %v3538 = vadd.f32 %v3523, %v3533
  %v3539 = vadd.f32 %v3524, %v3533
  %v3540 = vadd.f32 %v3525, %v3533
  %v3541 = vadd.f32 %v3526, %v3533
  %v3542 = vadd.f32 %v3527, %v3533
  %v3543 = vmax.f32 %v3535, 0.0
  %v3544 = vmax.f32 %v3536, 0.0
  %v3545 = vmax.f32 %v3537, 0.0
  %v3546 = vmax.f32 %v3538, 0.0
  %v3547 = vmax.f32 %v3539, 0.0
  %v3548 = vmax.f32 %v3540, 0.0
  %v3549 = vmax.f32 %v3541, 0.0
  %v3550 = vmax.f32 %v3542, 0.0
  %3551 = vst.msk [vmem:[#allocation5 + $0xa] sm:$0x1] %vm2680, %v3543
  %3552 = vst.msk [vmem:[#allocation5 + $0x1a] sm:$0x1] %vm2680, %v3544
  %3553 = vst.msk [vmem:[#allocation5 + $0x2a] sm:$0x1] %vm2680, %v3545
  %3554 = vst.msk [vmem:[#allocation5 + $0x3a] sm:$0x1] %vm2680, %v3546
  %3555 = vst.msk [vmem:[#allocation5 + $0x4a] sm:$0x1] %vm2680, %v3547
  %3556 = vst.msk [vmem:[#allocation5 + $0x5a] sm:$0x1] %vm2680, %v3548
  %3557 = vst.msk [vmem:[#allocation5 + $0x6a] sm:$0x1] %vm2680, %v3549
  %3558 = vst.msk [vmem:[#allocation5 + $0x7a] sm:$0x1] %vm2680, %v3550
  %v3559 = vld [vmem:[#allocation3 + $0x16] sm:$0x1]
  %v3560 = vld [vmem:[#allocation3 + $0x2e] sm:$0x1]
  %v3561 = vld [vmem:[#allocation3 + $0x46] sm:$0x1]
  %v3562 = vld [vmem:[#allocation3 + $0x5e] sm:$0x1]
  %v3563 = vld [vmem:[#allocation3 + $0x76] sm:$0x1]
  %v3564 = vld [vmem:[#allocation3 + $0x8e] sm:$0x1]
  %v3565 = vld [vmem:[#allocation3 + $0xa6] sm:$0x1]
  %v3566 = vld [vmem:[#allocation3 + $0xbe] sm:$0x1]
  %v3567 = vld [vmem:[#allocation4 + $0x16] sm:$0x1]
  %v3568 = vld [vmem:[#allocation4 + $0x2e] sm:$0x1]
  %v3569 = vld [vmem:[#allocation4 + $0x46] sm:$0x1]
  %v3570 = vld [vmem:[#allocation4 + $0x5e] sm:$0x1]
  %v3571 = vld [vmem:[#allocation4 + $0x76] sm:$0x1]
  %v3572 = vld [vmem:[#allocation4 + $0x8e] sm:$0x1]
  %v3573 = vld [vmem:[#allocation4 + $0xa6] sm:$0x1]
  %v3574 = vld [vmem:[#allocation4 + $0xbe] sm:$0x1]
  %v3575 = vmax.f32 %v3559, %v3567
  %v3576 = vmax.f32 %v3560, %v3568
  %v3577 = vmax.f32 %v3561, %v3569
  %v3578 = vmax.f32 %v3562, %v3570
  %v3579 = vmax.f32 %v3563, %v3571
  %v3580 = vmax.f32 %v3564, %v3572
  %v3581 = vmax.f32 %v3565, %v3573
  %v3582 = vmax.f32 %v3566, %v3574
  %v3583 = vld [vmem:[#allocation3 + $0x17] sm:$0x1]
  %v3584 = vld [vmem:[#allocation3 + $0x2f] sm:$0x1]
  %v3585 = vld [vmem:[#allocation3 + $0x47] sm:$0x1]
  %v3586 = vld [vmem:[#allocation3 + $0x5f] sm:$0x1]
  %v3587 = vld [vmem:[#allocation3 + $0x77] sm:$0x1]
  %v3588 = vld [vmem:[#allocation3 + $0x8f] sm:$0x1]
  %v3589 = vld [vmem:[#allocation3 + $0xa7] sm:$0x1]
  %v3590 = vld [vmem:[#allocation3 + $0xbf] sm:$0x1]
  %v3591 = vld [vmem:[#allocation4 + $0x17] sm:$0x1]
  %v3592 = vld [vmem:[#allocation4 + $0x2f] sm:$0x1]
  %v3593 = vld [vmem:[#allocation4 + $0x47] sm:$0x1]
  %v3594 = vld [vmem:[#allocation4 + $0x5f] sm:$0x1]
  %v3595 = vld [vmem:[#allocation4 + $0x77] sm:$0x1]
  %v3596 = vld [vmem:[#allocation4 + $0x8f] sm:$0x1]
  %v3597 = vld [vmem:[#allocation4 + $0xa7] sm:$0x1]
  %v3598 = vld [vmem:[#allocation4 + $0xbf] sm:$0x1]
  %v3599 = vmax.f32 %v3583, %v3591
  %v3600 = vmax.f32 %v3584, %v3592
  %v3601 = vmax.f32 %v3585, %v3593
  %v3602 = vmax.f32 %v3586, %v3594
  %v3603 = vmax.f32 %v3587, %v3595
  %v3604 = vmax.f32 %v3588, %v3596
  %v3605 = vmax.f32 %v3589, %v3597
  %v3606 = vmax.f32 %v3590, %v3598
  %v3607 = vmax.f32 %v3575, %v3599
  %v3608 = vmax.f32 %v3576, %v3600
  %v3609 = vmax.f32 %v3577, %v3601
  %v3610 = vmax.f32 %v3578, %v3602
  %v3611 = vmax.f32 %v3579, %v3603
  %v3612 = vmax.f32 %v3580, %v3604
  %v3613 = vmax.f32 %v3581, %v3605
  %v3614 = vmax.f32 %v3582, %v3606
  %v3615 = vld [vmem:[%s3] sm:$0x1]
  %v3617 = vlaneseq
  %v3618 = vshrl.u32 %v3617, 7
  %v3619 = vsub.s32 0, %v3618
  %v3620 = vrot.slane %v3615, %v3619
  %v3622 = vadd.f32 %v3607, %v3620
  %v3623 = vadd.f32 %v3608, %v3620
  %v3624 = vadd.f32 %v3609, %v3620
  %v3625 = vadd.f32 %v3610, %v3620
  %v3626 = vadd.f32 %v3611, %v3620
  %v3627 = vadd.f32 %v3612, %v3620
  %v3628 = vadd.f32 %v3613, %v3620
  %v3629 = vadd.f32 %v3614, %v3620
  %v3630 = vmax.f32 %v3622, 0.0
  %v3631 = vmax.f32 %v3623, 0.0
  %v3632 = vmax.f32 %v3624, 0.0
  %v3633 = vmax.f32 %v3625, 0.0
  %v3634 = vmax.f32 %v3626, 0.0
  %v3635 = vmax.f32 %v3627, 0.0
  %v3636 = vmax.f32 %v3628, 0.0
  %v3637 = vmax.f32 %v3629, 0.0
  %3638 = vst.msk [vmem:[#allocation5 + $0xb] sm:$0x1] %vm2680, %v3630
  %3639 = vst.msk [vmem:[#allocation5 + $0x1b] sm:$0x1] %vm2680, %v3631
  %3640 = vst.msk [vmem:[#allocation5 + $0x2b] sm:$0x1] %vm2680, %v3632
  %3641 = vst.msk [vmem:[#allocation5 + $0x3b] sm:$0x1] %vm2680, %v3633
  %3642 = vst.msk [vmem:[#allocation5 + $0x4b] sm:$0x1] %vm2680, %v3634
  %3643 = vst.msk [vmem:[#allocation5 + $0x5b] sm:$0x1] %vm2680, %v3635
  %3644 = vst.msk [vmem:[#allocation5 + $0x6b] sm:$0x1] %vm2680, %v3636
  %3645 = vst.msk [vmem:[#allocation5 + $0x7b] sm:$0x1] %vm2680, %v3637
  %v3646 = vld [vmem:[#allocation5] sm:$0xff]
  %v3647 = vld [vmem:[#allocation5 + $0x10] sm:$0xff]
  %v3648 = vld [vmem:[#allocation5 + $0x20] sm:$0xff]
  %v3649 = vld [vmem:[#allocation5 + $0x30] sm:$0xff]
  %v3650 = vld [vmem:[#allocation5 + $0x40] sm:$0xff]
  %v3651 = vld [vmem:[#allocation5 + $0x50] sm:$0xff]
  %v3652 = vld [vmem:[#allocation5 + $0x60] sm:$0xff]
  %v3653 = vld [vmem:[#allocation5 + $0x70] sm:$0xff]
  %v3654 = vpack.c.bf16 %v3647, %v3646
  %v3655 = vpack.c.bf16 %v3649, %v3648
  %v3656 = vpack.c.bf16 %v3651, %v3650
  %v3657 = vpack.c.bf16 %v3653, %v3652
  %v3658 = vld [vmem:[%s4] sm:$0xf]
  %v3659 = vld [vmem:[%s4 + $0x4] sm:$0xf]
  %v3660 = vld [vmem:[%s4 + $0x8] sm:$0xf]
  %v3661 = vld [vmem:[%s4 + $0xc] sm:$0xf]
  %v3662 = vld [vmem:[%s4 + $0x10] sm:$0xf]
  %v3663 = vld [vmem:[%s4 + $0x14] sm:$0xf]
  %v3664 = vld [vmem:[%s4 + $0x18] sm:$0xf]
  %v3665 = vld [vmem:[%s4 + $0x1c] sm:$0xf]
  %v3666 = vld [vmem:[%s4 + $0x20] sm:$0xf]
  %v3667 = vld [vmem:[%s4 + $0x24] sm:$0xf]
  %v3668 = vld [vmem:[%s4 + $0x28] sm:$0xf]
  %v3669 = vld [vmem:[%s4 + $0x2c] sm:$0xf]
  %v3670 = vld [vmem:[%s4 + $0x30] sm:$0xf]
  %v3671 = vld [vmem:[%s4 + $0x34] sm:$0xf]
  %v3672 = vld [vmem:[%s4 + $0x38] sm:$0xf]
  %v3688 = vunpack.c.l.b16 %v3658
  %v3689 = vunpack.c.l.b16 %v3659
  %v3690 = vunpack.c.l.b16 %v3660
  %v3691 = vunpack.c.l.b16 %v3661
  %v3692 = vunpack.c.l.b16 %v3662
  %v3693 = vunpack.c.l.b16 %v3663
  %v3694 = vunpack.c.l.b16 %v3664
  %v3695 = vunpack.c.l.b16 %v3665
  %v3696 = vunpack.c.l.b16 %v3666
  %v3697 = vunpack.c.l.b16 %v3667
  %v3698 = vunpack.c.l.b16 %v3668
  %v3699 = vunpack.c.l.b16 %v3669
  %v3700 = vunpack.c.l.b16 %v3670
  %v3701 = vunpack.c.l.b16 %v3671
  %v3702 = vunpack.c.l.b16 %v3672
  %v3703 = vpack.c.b16 %v3689, %v3688
  %v3704 = vpack.c.b16 %v3691, %v3690
  %v3705 = vpack.c.b16 %v3693, %v3692
  %v3706 = vpack.c.b16 %v3695, %v3694
  %v3707 = vpack.c.b16 %v3697, %v3696
  %v3708 = vpack.c.b16 %v3699, %v3698
  %v3709 = vpack.c.b16 %v3701, %v3700
  %v3710 = vpack.c.b16 %v3702, %v3702
  %v3719 = vsel %vm504, %v3654, 0
  %v3722 = vsel %vm504, %v3655, 0
  %v3725 = vsel %vm504, %v3656, 0
  %v3728 = vsel %vm504, %v3657, 0
  %vm3730 = vcmask 1043456
  %v3732 = vsel %vm3730, %v3710, 0
  %3734 = vmatprep.subr.bf16.mxu0 0
  %3735 = vmatpush1.bf16.msra.mxu0 %v3703
  %3736 = vmatprep.subr.bf16.mxu0 0
  %3737 = vmatpush1.bf16.msra.mxu0 %v3704
  %3738 = vmatprep.subr.bf16.mxu0 0
  %3739 = vmatpush1.bf16.msra.mxu0 %v3705
  %3740 = vmatprep.subr.bf16.mxu0 0
  %3741 = vmatpush1.bf16.msra.mxu0 %v3706
  %3742 = vmatprep.subr.bf16.mxu0 0
  %3743 = vmatpush1.bf16.msra.mxu0 %v3707
  %3744 = vmatprep.subr.bf16.mxu0 0
  %3745 = vmatpush1.bf16.msra.mxu0 %v3708
  %3746 = vmatprep.subr.bf16.mxu0 0
  %3747 = vmatpush1.bf16.msra.mxu0 %v3709
  %3748 = vmatprep.subr.bf16.mxu0 0
  %3749 = vmatpush1.bf16.msra.mxu0 %v3732
  %3750 = vmatprep.subr.bf16.mxu0 0
  %3751 = vmatpush1.bf16.msra.mxu0 0
  %3752 = vmatprep.subr.bf16.mxu0 0
  %3753 = vmatpush1.bf16.msra.mxu0 0
  %3754 = vmatprep.subr.bf16.mxu0 0
  %3755 = vmatpush1.bf16.msra.mxu0 0
  %3756 = vmatprep.subr.bf16.mxu0 0
  %3757 = vmatpush1.bf16.msra.mxu0 0
  %3758 = vmatprep.subr.bf16.mxu0 0
  %3759 = vmatpush1.bf16.msra.mxu0 0
  %3760 = vmatprep.subr.bf16.mxu0 0
  %3761 = vmatpush1.bf16.msra.mxu0 0
  %3762 = vmatprep.subr.bf16.mxu0 0
  %3763 = vmatpush1.bf16.msra.mxu0 0
  %3764 = vmatprep.subr.bf16.mxu0 0
  %3765 = vmatpush1.bf16.msra.mxu0 0
  %3766 = vmatprep.mubr.bf16.mxu0 0
  %3767 = vmatmul.mubr.bf16.gmra.mrb[0].mxu0 %v3719
  %v3768 = vpop.f32.mrb[0].mxu0
  %v3769 = vadd.f32 0.0, %v3768
  %v3770 = vpop.f32.mrb[0].mxu0
  %v3771 = vpop.f32.mrb[0].mxu0
  %v3772 = vadd.f32 0.0, %v3771
  %v3773 = vpop.f32.mrb[0].mxu0
  %3774 = vmatprep.mubr.bf16.mxu0 0
  %3775 = vmatmul.mubr.bf16.gmra.mrb[0].mxu0 %v3722
  %v3776 = vpop.f32.mrb[0].mxu0
  %v3777 = vadd.f32 0.0, %v3776
  %v3778 = vpop.f32.mrb[0].mxu0
  %v3779 = vpop.f32.mrb[0].mxu0
  %v3780 = vadd.f32 0.0, %v3779
  %v3781 = vpop.f32.mrb[0].mxu0
  %3782 = vmatprep.mubr.bf16.mxu0 0
  %3783 = vmatmul.mubr.bf16.gmra.mrb[0].mxu0 %v3725
  %v3784 = vpop.f32.mrb[0].mxu0
  %v3785 = vadd.f32 0.0, %v3784
  %v3786 = vpop.f32.mrb[0].mxu0
  %v3787 = vpop.f32.mrb[0].mxu0
  %v3788 = vadd.f32 0.0, %v3787
  %v3789 = vpop.f32.mrb[0].mxu0
  %3790 = vmatprep.mubr.bf16.mxu0 0
  %3791 = vmatmul.mubr.bf16.gmra.mrb[0].mxu0 %v3728
  %v3792 = vpop.f32.mrb[0].mxu0
  %v3793 = vadd.f32 0.0, %v3792
  %v3794 = vpop.f32.mrb[0].mxu0
  %v3795 = vpop.f32.mrb[0].mxu0
  %v3796 = vadd.f32 0.0, %v3795
  %v3797 = vpop.f32.mrb[0].mxu0
  %3798 = vdwg.mxu0
  %v3799 = vld [vmem:[%s5] sm:$0xf]
  %v3800 = vld [vmem:[%s5 + $0x4] sm:$0xf]
  %v3801 = vld [vmem:[%s5 + $0x8] sm:$0xf]
  %v3802 = vld [vmem:[%s5 + $0xc] sm:$0xf]
  %v3803 = vld [vmem:[%s5 + $0x10] sm:$0xf]
  %v3804 = vld [vmem:[%s5 + $0x14] sm:$0xf]
  %v3805 = vld [vmem:[%s5 + $0x18] sm:$0xf]
  %v3806 = vld [vmem:[%s5 + $0x1c] sm:$0xf]
  %v3807 = vld [vmem:[%s5 + $0x20] sm:$0xf]
  %v3808 = vld [vmem:[%s5 + $0x24] sm:$0xf]
  %v3809 = vld [vmem:[%s5 + $0x28] sm:$0xf]
  %v3810 = vld [vmem:[%s5 + $0x2c] sm:$0xf]
  %v3811 = vld [vmem:[%s5 + $0x30] sm:$0xf]
  %v3812 = vld [vmem:[%s5 + $0x34] sm:$0xf]
  %v3813 = vld [vmem:[%s5 + $0x38] sm:$0xf]
  %v3829 = vunpack.c.l.b16 %v3799
  %v3830 = vunpack.c.l.b16 %v3800
  %v3831 = vunpack.c.l.b16 %v3801
  %v3832 = vunpack.c.l.b16 %v3802
  %v3833 = vunpack.c.l.b16 %v3803
  %v3834 = vunpack.c.l.b16 %v3804
  %v3835 = vunpack.c.l.b16 %v3805
  %v3836 = vunpack.c.l.b16 %v3806
  %v3837 = vunpack.c.l.b16 %v3807
  %v3838 = vunpack.c.l.b16 %v3808
  %v3839 = vunpack.c.l.b16 %v3809
  %v3840 = vunpack.c.l.b16 %v3810
  %v3841 = vunpack.c.l.b16 %v3811
  %v3842 = vunpack.c.l.b16 %v3812
  %v3843 = vunpack.c.l.b16 %v3813
  %v3844 = vpack.c.b16 %v3830, %v3829
  %v3845 = vpack.c.b16 %v3832, %v3831
  %v3846 = vpack.c.b16 %v3834, %v3833
  %v3847 = vpack.c.b16 %v3836, %v3835
  %v3848 = vpack.c.b16 %v3838, %v3837
  %v3849 = vpack.c.b16 %v3840, %v3839
  %v3850 = vpack.c.b16 %v3842, %v3841
  %v3851 = vpack.c.b16 %v3843, %v3843
  %v3860 = vsel %vm3730, %v3851, 0
  %3862 = vmatprep.subr.bf16.mxu0 0
  %3863 = vmatpush1.bf16.msra.mxu0 %v3844
  %3864 = vmatprep.subr.bf16.mxu0 0
  %3865 = vmatpush1.bf16.msra.mxu0 %v3845
  %3866 = vmatprep.subr.bf16.mxu0 0
  %3867 = vmatpush1.bf16.msra.mxu0 %v3846
  %3868 = vmatprep.subr.bf16.mxu0 0
  %3869 = vmatpush1.bf16.msra.mxu0 %v3847
  %3870 = vmatprep.subr.bf16.mxu0 0
  %3871 = vmatpush1.bf16.msra.mxu0 %v3848
  %3872 = vmatprep.subr.bf16.mxu0 0
  %3873 = vmatpush1.bf16.msra.mxu0 %v3849
  %3874 = vmatprep.subr.bf16.mxu0 0
  %3875 = vmatpush1.bf16.msra.mxu0 %v3850
  %3876 = vmatprep.subr.bf16.mxu0 0
  %3877 = vmatpush1.bf16.msra.mxu0 %v3860
  %3878 = vmatprep.subr.bf16.mxu0 0
  %3879 = vmatpush1.bf16.msra.mxu0 0
  %3880 = vmatprep.subr.bf16.mxu0 0
  %3881 = vmatpush1.bf16.msra.mxu0 0
  %3882 = vmatprep.subr.bf16.mxu0 0
  %3883 = vmatpush1.bf16.msra.mxu0 0
  %3884 = vmatprep.subr.bf16.mxu0 0
  %3885 = vmatpush1.bf16.msra.mxu0 0
  %3886 = vmatprep.subr.bf16.mxu0 0
  %3887 = vmatpush1.bf16.msra.mxu0 0
  %3888 = vmatprep.subr.bf16.mxu0 0
  %3889 = vmatpush1.bf16.msra.mxu0 0
  %3890 = vmatprep.subr.bf16.mxu0 0
  %3891 = vmatpush1.bf16.msra.mxu0 0
  %3892 = vmatprep.subr.bf16.mxu0 0
  %3893 = vmatpush1.bf16.msra.mxu0 0
  %3894 = vmatprep.mubr.bf16.mxu0 0
  %3895 = vmatmul.mubr.bf16.gmra.mrb[0].mxu0 %v3719
  %v3896 = vpop.f32.mrb[0].mxu0
  %v3897 = vadd.f32 0.0, %v3896
  %v3898 = vpop.f32.mrb[0].mxu0
  %v3899 = vpop.f32.mrb[0].mxu0
  %v3900 = vadd.f32 0.0, %v3899
  %v3901 = vpop.f32.mrb[0].mxu0
  %3902 = vmatprep.mubr.bf16.mxu0 0
  %3903 = vmatmul.mubr.bf16.gmra.mrb[0].mxu0 %v3722
  %v3904 = vpop.f32.mrb[0].mxu0
  %v3905 = vadd.f32 0.0, %v3904
  %v3906 = vpop.f32.mrb[0].mxu0
  %v3907 = vpop.f32.mrb[0].mxu0
  %v3908 = vadd.f32 0.0, %v3907
  %v3909 = vpop.f32.mrb[0].mxu0
  %3910 = vmatprep.mubr.bf16.mxu0 0
  %3911 = vmatmul.mubr.bf16.gmra.mrb[0].mxu0 %v3725
  %v3912 = vpop.f32.mrb[0].mxu0
  %v3913 = vadd.f32 0.0, %v3912
  %v3914 = vpop.f32.mrb[0].mxu0
  %v3915 = vpop.f32.mrb[0].mxu0
  %v3916 = vadd.f32 0.0, %v3915
  %v3917 = vpop.f32.mrb[0].mxu0
  %3918 = vmatprep.mubr.bf16.mxu0 0
  %3919 = vmatmul.mubr.bf16.gmra.mrb[0].mxu0 %v3728
  %v3920 = vpop.f32.mrb[0].mxu0
  %v3921 = vadd.f32 0.0, %v3920
  %v3922 = vpop.f32.mrb[0].mxu0
  %v3923 = vpop.f32.mrb[0].mxu0
  %v3924 = vadd.f32 0.0, %v3923
  %v3925 = vpop.f32.mrb[0].mxu0
  %3926 = vdwg.mxu0
  %vm3927 = vcmask 654336
  %3928 = vst.msk [vmem:[#allocation6] sm:$0xff] %vm3927, %v3769
  %3929 = vst.msk [vmem:[#allocation6 + $0x8] sm:$0xff] %vm3927, %v3772
  %3930 = vst.msk [vmem:[#allocation6 + $0x10] sm:$0xff] %vm3927, %v3777
  %3931 = vst.msk [vmem:[#allocation6 + $0x18] sm:$0xff] %vm3927, %v3780
  %3932 = vst.msk [vmem:[#allocation6 + $0x20] sm:$0xff] %vm3927, %v3785
  %3933 = vst.msk [vmem:[#allocation6 + $0x28] sm:$0xff] %vm3927, %v3788
  %3934 = vst.msk [vmem:[#allocation6 + $0x30] sm:$0xff] %vm3927, %v3793
  %3935 = vst.msk [vmem:[#allocation6 + $0x38] sm:$0xff] %vm3927, %v3796
  %3936 = vst.msk [vmem:[#allocation7] sm:$0xff] %vm3927, %v3897
  %3937 = vst.msk [vmem:[#allocation7 + $0x8] sm:$0xff] %vm3927, %v3900
  %3938 = vst.msk [vmem:[#allocation7 + $0x10] sm:$0xff] %vm3927, %v3905
  %3939 = vst.msk [vmem:[#allocation7 + $0x18] sm:$0xff] %vm3927, %v3908
  %3940 = vst.msk [vmem:[#allocation7 + $0x20] sm:$0xff] %vm3927, %v3913
  %3941 = vst.msk [vmem:[#allocation7 + $0x28] sm:$0xff] %vm3927, %v3916
  %3942 = vst.msk [vmem:[#allocation7 + $0x30] sm:$0xff] %vm3927, %v3921
  %3943 = vst.msk [vmem:[#allocation7 + $0x38] sm:$0xff] %vm3927, %v3924
  %v3944 = vld [vmem:[#allocation5 + $0x1] sm:$0xff]
  %v3945 = vld [vmem:[#allocation5 + $0x11] sm:$0xff]
  %v3946 = vld [vmem:[#allocation5 + $0x21] sm:$0xff]
  %v3947 = vld [vmem:[#allocation5 + $0x31] sm:$0xff]
  %v3948 = vld [vmem:[#allocation5 + $0x41] sm:$0xff]
  %v3949 = vld [vmem:[#allocation5 + $0x51] sm:$0xff]
  %v3950 = vld [vmem:[#allocation5 + $0x61] sm:$0xff]
  %v3951 = vld [vmem:[#allocation5 + $0x71] sm:$0xff]
  %v3952 = vpack.c.bf16 %v3945, %v3944
  %v3953 = vpack.c.bf16 %v3947, %v3946
  %v3954 = vpack.c.bf16 %v3949, %v3948
  %v3955 = vpack.c.bf16 %v3951, %v3950
  %s3956 = scalar_lea.vmem %s4, 60
  %v3957 = vld [vmem:[%s3956] sm:$0xf]
  %v3958 = vld [vmem:[%s3956 + $0x4] sm:$0xf]
  %v3959 = vld [vmem:[%s3956 + $0x8] sm:$0xf]
  %v3960 = vld [vmem:[%s3956 + $0xc] sm:$0xf]
  %v3961 = vld [vmem:[%s3956 + $0x10] sm:$0xf]
  %v3962 = vld [vmem:[%s3956 + $0x14] sm:$0xf]
  %v3963 = vld [vmem:[%s3956 + $0x18] sm:$0xf]
  %v3964 = vld [vmem:[%s3956 + $0x1c] sm:$0xf]
  %v3965 = vld [vmem:[%s3956 + $0x20] sm:$0xf]
  %v3966 = vld [vmem:[%s3956 + $0x24] sm:$0xf]
  %v3967 = vld [vmem:[%s3956 + $0x28] sm:$0xf]
  %v3968 = vld [vmem:[%s3956 + $0x2c] sm:$0xf]
  %v3969 = vld [vmem:[%s3956 + $0x30] sm:$0xf]
  %v3970 = vld [vmem:[%s3956 + $0x34] sm:$0xf]
  %v3971 = vld [vmem:[%s3956 + $0x38] sm:$0xf]
  %v3987 = vunpack.c.l.b16 %v3957
  %v3988 = vunpack.c.l.b16 %v3958
  %v3989 = vunpack.c.l.b16 %v3959
  %v3990 = vunpack.c.l.b16 %v3960
  %v3991 = vunpack.c.l.b16 %v3961
  %v3992 = vunpack.c.l.b16 %v3962
  %v3993 = vunpack.c.l.b16 %v3963
  %v3994 = vunpack.c.l.b16 %v3964
  %v3995 = vunpack.c.l.b16 %v3965
  %v3996 = vunpack.c.l.b16 %v3966
  %v3997 = vunpack.c.l.b16 %v3967
  %v3998 = vunpack.c.l.b16 %v3968
  %v3999 = vunpack.c.l.b16 %v3969
  %v4000 = vunpack.c.l.b16 %v3970
  %v4001 = vunpack.c.l.b16 %v3971
  %v4002 = vpack.c.b16 %v3988, %v3987
  %v4003 = vpack.c.b16 %v3990, %v3989
  %v4004 = vpack.c.b16 %v3992, %v3991
  %v4005 = vpack.c.b16 %v3994, %v3993
  %v4006 = vpack.c.b16 %v3996, %v3995
  %v4007 = vpack.c.b16 %v3998, %v3997
  %v4008 = vpack.c.b16 %v4000, %v3999
  %v4009 = vpack.c.b16 %v4001, %v4001
  %v4018 = vsel %vm504, %v3952, 0
  %v4021 = vsel %vm504, %v3953, 0
  %v4024 = vsel %vm504, %v3954, 0
  %v4027 = vsel %vm504, %v3955, 0
  %v4030 = vsel %vm3730, %v4009, 0
  %4032 = vmatprep.subr.bf16.mxu0 0
  %4033 = vmatpush1.bf16.msra.mxu0 %v4002
  %4034 = vmatprep.subr.bf16.mxu0 0
  %4035 = vmatpush1.bf16.msra.mxu0 %v4003
  %4036 = vmatprep.subr.bf16.mxu0 0
  %4037 = vmatpush1.bf16.msra.mxu0 %v4004
  %4038 = vmatprep.subr.bf16.mxu0 0
  %4039 = vmatpush1.bf16.msra.mxu0 %v4005
  %4040 = vmatprep.subr.bf16.mxu0 0
  %4041 = vmatpush1.bf16.msra.mxu0 %v4006
  %4042 = vmatprep.subr.bf16.mxu0 0
  %4043 = vmatpush1.bf16.msra.mxu0 %v4007
  %4044 = vmatprep.subr.bf16.mxu0 0
  %4045 = vmatpush1.bf16.msra.mxu0 %v4008
  %4046 = vmatprep.subr.bf16.mxu0 0
  %4047 = vmatpush1.bf16.msra.mxu0 %v4030
  %4048 = vmatprep.subr.bf16.mxu0 0
  %4049 = vmatpush1.bf16.msra.mxu0 0
  %4050 = vmatprep.subr.bf16.mxu0 0
  %4051 = vmatpush1.bf16.msra.mxu0 0
  %4052 = vmatprep.subr.bf16.mxu0 0
  %4053 = vmatpush1.bf16.msra.mxu0 0
  %4054 = vmatprep.subr.bf16.mxu0 0
  %4055 = vmatpush1.bf16.msra.mxu0 0
  %4056 = vmatprep.subr.bf16.mxu0 0
  %4057 = vmatpush1.bf16.msra.mxu0 0
  %4058 = vmatprep.subr.bf16.mxu0 0
  %4059 = vmatpush1.bf16.msra.mxu0 0
  %4060 = vmatprep.subr.bf16.mxu0 0
  %4061 = vmatpush1.bf16.msra.mxu0 0
  %4062 = vmatprep.subr.bf16.mxu0 0
  %4063 = vmatpush1.bf16.msra.mxu0 0
  %4064 = vmatprep.mubr.bf16.mxu0 0
  %4065 = vmatmul.mubr.bf16.gmra.mrb[0].mxu0 %v4018
  %v4066 = vpop.f32.mrb[0].mxu0
  %v4067 = vadd.f32 0.0, %v4066
  %v4068 = vpop.f32.mrb[0].mxu0
  %v4069 = vpop.f32.mrb[0].mxu0
  %v4070 = vadd.f32 0.0, %v4069
  %v4071 = vpop.f32.mrb[0].mxu0
  %4072 = vmatprep.mubr.bf16.mxu0 0
  %4073 = vmatmul.mubr.bf16.gmra.mrb[0].mxu0 %v4021
  %v4074 = vpop.f32.mrb[0].mxu0
  %v4075 = vadd.f32 0.0, %v4074
  %v4076 = vpop.f32.mrb[0].mxu0
  %v4077 = vpop.f32.mrb[0].mxu0
  %v4078 = vadd.f32 0.0, %v4077
  %v4079 = vpop.f32.mrb[0].mxu0
  %4080 = vmatprep.mubr.bf16.mxu0 0
  %4081 = vmatmul.mubr.bf16.gmra.mrb[0].mxu0 %v4024
  %v4082 = vpop.f32.mrb[0].mxu0
  %v4083 = vadd.f32 0.0, %v4082
  %v4084 = vpop.f32.mrb[0].mxu0
  %v4085 = vpop.f32.mrb[0].mxu0
  %v4086 = vadd.f32 0.0, %v4085
  %v4087 = vpop.f32.mrb[0].mxu0
  %4088 = vmatprep.mubr.bf16.mxu0 0
  %4089 = vmatmul.mubr.bf16.gmra.mrb[0].mxu0 %v4027
  %v4090 = vpop.f32.mrb[0].mxu0
  %v4091 = vadd.f32 0.0, %v4090
  %v4092 = vpop.f32.mrb[0].mxu0
  %v4093 = vpop.f32.mrb[0].mxu0
  %v4094 = vadd.f32 0.0, %v4093
  %v4095 = vpop.f32.mrb[0].mxu0
  %4096 = vdwg.mxu0
  %s4097 = scalar_lea.vmem %s5, 60
  %v4098 = vld [vmem:[%s4097] sm:$0xf]
  %v4099 = vld [vmem:[%s4097 + $0x4] sm:$0xf]
  %v4100 = vld [vmem:[%s4097 + $0x8] sm:$0xf]
  %v4101 = vld [vmem:[%s4097 + $0xc] sm:$0xf]
  %v4102 = vld [vmem:[%s4097 + $0x10] sm:$0xf]
  %v4103 = vld [vmem:[%s4097 + $0x14] sm:$0xf]
  %v4104 = vld [vmem:[%s4097 + $0x18] sm:$0xf]
  %v4105 = vld [vmem:[%s4097 + $0x1c] sm:$0xf]
  %v4106 = vld [vmem:[%s4097 + $0x20] sm:$0xf]
  %v4107 = vld [vmem:[%s4097 + $0x24] sm:$0xf]
  %v4108 = vld [vmem:[%s4097 + $0x28] sm:$0xf]
  %v4109 = vld [vmem:[%s4097 + $0x2c] sm:$0xf]
  %v4110 = vld [vmem:[%s4097 + $0x30] sm:$0xf]
  %v4111 = vld [vmem:[%s4097 + $0x34] sm:$0xf]
  %v4112 = vld [vmem:[%s4097 + $0x38] sm:$0xf]
  %v4128 = vunpack.c.l.b16 %v4098
  %v4129 = vunpack.c.l.b16 %v4099
  %v4130 = vunpack.c.l.b16 %v4100
  %v4131 = vunpack.c.l.b16 %v4101
  %v4132 = vunpack.c.l.b16 %v4102
  %v4133 = vunpack.c.l.b16 %v4103
  %v4134 = vunpack.c.l.b16 %v4104
  %v4135 = vunpack.c.l.b16 %v4105
  %v4136 = vunpack.c.l.b16 %v4106
  %v4137 = vunpack.c.l.b16 %v4107
  %v4138 = vunpack.c.l.b16 %v4108
  %v4139 = vunpack.c.l.b16 %v4109
  %v4140 = vunpack.c.l.b16 %v4110
  %v4141 = vunpack.c.l.b16 %v4111
  %v4142 = vunpack.c.l.b16 %v4112
  %v4143 = vpack.c.b16 %v4129, %v4128
  %v4144 = vpack.c.b16 %v4131, %v4130
  %v4145 = vpack.c.b16 %v4133, %v4132
  %v4146 = vpack.c.b16 %v4135, %v4134
  %v4147 = vpack.c.b16 %v4137, %v4136
  %v4148 = vpack.c.b16 %v4139, %v4138
  %v4149 = vpack.c.b16 %v4141, %v4140
  %v4150 = vpack.c.b16 %v4142, %v4142
  %v4159 = vsel %vm3730, %v4150, 0
  %4161 = vmatprep.subr.bf16.mxu0 0
  %4162 = vmatpush1.bf16.msra.mxu0 %v4143
  %4163 = vmatprep.subr.bf16.mxu0 0
  %4164 = vmatpush1.bf16.msra.mxu0 %v4144
  %4165 = vmatprep.subr.bf16.mxu0 0
  %4166 = vmatpush1.bf16.msra.mxu0 %v4145
  %4167 = vmatprep.subr.bf16.mxu0 0
  %4168 = vmatpush1.bf16.msra.mxu0 %v4146
  %4169 = vmatprep.subr.bf16.mxu0 0
  %4170 = vmatpush1.bf16.msra.mxu0 %v4147
  %4171 = vmatprep.subr.bf16.mxu0 0
  %4172 = vmatpush1.bf16.msra.mxu0 %v4148
  %4173 = vmatprep.subr.bf16.mxu0 0
  %4174 = vmatpush1.bf16.msra.mxu0 %v4149
  %4175 = vmatprep.subr.bf16.mxu0 0
  %4176 = vmatpush1.bf16.msra.mxu0 %v4159
  %4177 = vmatprep.subr.bf16.mxu0 0
  %4178 = vmatpush1.bf16.msra.mxu0 0
  %4179 = vmatprep.subr.bf16.mxu0 0
  %4180 = vmatpush1.bf16.msra.mxu0 0
  %4181 = vmatprep.subr.bf16.mxu0 0
  %4182 = vmatpush1.bf16.msra.mxu0 0
  %4183 = vmatprep.subr.bf16.mxu0 0
  %4184 = vmatpush1.bf16.msra.mxu0 0
  %4185 = vmatprep.subr.bf16.mxu0 0
  %4186 = vmatpush1.bf16.msra.mxu0 0
  %4187 = vmatprep.subr.bf16.mxu0 0
  %4188 = vmatpush1.bf16.msra.mxu0 0
  %4189 = vmatprep.subr.bf16.mxu0 0
  %4190 = vmatpush1.bf16.msra.mxu0 0
  %4191 = vmatprep.subr.bf16.mxu0 0
  %4192 = vmatpush1.bf16.msra.mxu0 0
  %4193 = vmatprep.mubr.bf16.mxu0 0
  %4194 = vmatmul.mubr.bf16.gmra.mrb[0].mxu0 %v4018
  %v4195 = vpop.f32.mrb[0].mxu0
  %v4196 = vadd.f32 0.0, %v4195
  %v4197 = vpop.f32.mrb[0].mxu0
  %v4198 = vpop.f32.mrb[0].mxu0
  %v4199 = vadd.f32 0.0, %v4198
  %v4200 = vpop.f32.mrb[0].mxu0
  %4201 = vmatprep.mubr.bf16.mxu0 0
  %4202 = vmatmul.mubr.bf16.gmra.mrb[0].mxu0 %v4021
  %v4203 = vpop.f32.mrb[0].mxu0
  %v4204 = vadd.f32 0.0, %v4203
  %v4205 = vpop.f32.mrb[0].mxu0
  %v4206 = vpop.f32.mrb[0].mxu0
  %v4207 = vadd.f32 0.0, %v4206
  %v4208 = vpop.f32.mrb[0].mxu0
  %4209 = vmatprep.mubr.bf16.mxu0 0
  %4210 = vmatmul.mubr.bf16.gmra.mrb[0].mxu0 %v4024
  %v4211 = vpop.f32.mrb[0].mxu0
  %v4212 = vadd.f32 0.0, %v4211
  %v4213 = vpop.f32.mrb[0].mxu0
  %v4214 = vpop.f32.mrb[0].mxu0
  %v4215 = vadd.f32 0.0, %v4214
  %v4216 = vpop.f32.mrb[0].mxu0
  %4217 = vmatprep.mubr.bf16.mxu0 0
  %4218 = vmatmul.mubr.bf16.gmra.mrb[0].mxu0 %v4027
  %v4219 = vpop.f32.mrb[0].mxu0
  %v4220 = vadd.f32 0.0, %v4219
  %v4221 = vpop.f32.mrb[0].mxu0
  %v4222 = vpop.f32.mrb[0].mxu0
  %v4223 = vadd.f32 0.0, %v4222
  %v4224 = vpop.f32.mrb[0].mxu0
  %4225 = vdwg.mxu0
  %v4226 = vld [vmem:[#allocation6] sm:$0xff]
  %v4227 = vld [vmem:[#allocation6 + $0x8] sm:$0xff]
  %v4228 = vld [vmem:[#allocation6 + $0x10] sm:$0xff]
  %v4229 = vld [vmem:[#allocation6 + $0x18] sm:$0xff]
  %v4230 = vld [vmem:[#allocation6 + $0x20] sm:$0xff]
  %v4231 = vld [vmem:[#allocation6 + $0x28] sm:$0xff]
  %v4232 = vld [vmem:[#allocation6 + $0x30] sm:$0xff]
  %v4233 = vld [vmem:[#allocation6 + $0x38] sm:$0xff]
  %v4234 = vadd.f32 %v4226, %v4067
  %v4235 = vadd.f32 %v4227, %v4070
  %v4236 = vadd.f32 %v4228, %v4075
  %v4237 = vadd.f32 %v4229, %v4078
  %v4238 = vadd.f32 %v4230, %v4083
  %v4239 = vadd.f32 %v4231, %v4086
  %v4240 = vadd.f32 %v4232, %v4091
  %v4241 = vadd.f32 %v4233, %v4094
  %4242 = vst.msk [vmem:[#allocation6] sm:$0xff] %vm3927, %v4234
  %4243 = vst.msk [vmem:[#allocation6 + $0x8] sm:$0xff] %vm3927, %v4235
  %4244 = vst.msk [vmem:[#allocation6 + $0x10] sm:$0xff] %vm3927, %v4236
  %4245 = vst.msk [vmem:[#allocation6 + $0x18] sm:$0xff] %vm3927, %v4237
  %4246 = vst.msk [vmem:[#allocation6 + $0x20] sm:$0xff] %vm3927, %v4238
  %4247 = vst.msk [vmem:[#allocation6 + $0x28] sm:$0xff] %vm3927, %v4239
  %4248 = vst.msk [vmem:[#allocation6 + $0x30] sm:$0xff] %vm3927, %v4240
  %4249 = vst.msk [vmem:[#allocation6 + $0x38] sm:$0xff] %vm3927, %v4241
  %v4250 = vld [vmem:[#allocation7] sm:$0xff]
  %v4251 = vld [vmem:[#allocation7 + $0x8] sm:$0xff]
  %v4252 = vld [vmem:[#allocation7 + $0x10] sm:$0xff]
  %v4253 = vld [vmem:[#allocation7 + $0x18] sm:$0xff]
  %v4254 = vld [vmem:[#allocation7 + $0x20] sm:$0xff]
  %v4255 = vld [vmem:[#allocation7 + $0x28] sm:$0xff]
  %v4256 = vld [vmem:[#allocation7 + $0x30] sm:$0xff]
  %v4257 = vld [vmem:[#allocation7 + $0x38] sm:$0xff]
  %v4258 = vadd.f32 %v4250, %v4196
  %v4259 = vadd.f32 %v4251, %v4199
  %v4260 = vadd.f32 %v4252, %v4204
  %v4261 = vadd.f32 %v4253, %v4207
  %v4262 = vadd.f32 %v4254, %v4212
  %v4263 = vadd.f32 %v4255, %v4215
  %v4264 = vadd.f32 %v4256, %v4220
  %v4265 = vadd.f32 %v4257, %v4223
  %4266 = vst.msk [vmem:[#allocation7] sm:$0xff] %vm3927, %v4258
  %4267 = vst.msk [vmem:[#allocation7 + $0x8] sm:$0xff] %vm3927, %v4259
  %4268 = vst.msk [vmem:[#allocation7 + $0x10] sm:$0xff] %vm3927, %v4260
  %4269 = vst.msk [vmem:[#allocation7 + $0x18] sm:$0xff] %vm3927, %v4261
  %4270 = vst.msk [vmem:[#allocation7 + $0x20] sm:$0xff] %vm3927, %v4262
  %4271 = vst.msk [vmem:[#allocation7 + $0x28] sm:$0xff] %vm3927, %v4263
  %4272 = vst.msk [vmem:[#allocation7 + $0x30] sm:$0xff] %vm3927, %v4264
  %4273 = vst.msk [vmem:[#allocation7 + $0x38] sm:$0xff] %vm3927, %v4265
  %v4274 = vld [vmem:[#allocation5 + $0x2] sm:$0xff]
  %v4275 = vld [vmem:[#allocation5 + $0x12] sm:$0xff]
  %v4276 = vld [vmem:[#allocation5 + $0x22] sm:$0xff]
  %v4277 = vld [vmem:[#allocation5 + $0x32] sm:$0xff]
  %v4278 = vld [vmem:[#allocation5 + $0x42] sm:$0xff]
  %v4279 = vld [vmem:[#allocation5 + $0x52] sm:$0xff]
  %v4280 = vld [vmem:[#allocation5 + $0x62] sm:$0xff]
  %v4281 = vld [vmem:[#allocation5 + $0x72] sm:$0xff]
  %v4282 = vpack.c.bf16 %v4275, %v4274
  %v4283 = vpack.c.bf16 %v4277, %v4276
  %v4284 = vpack.c.bf16 %v4279, %v4278
  %v4285 = vpack.c.bf16 %v4281, %v4280
  %s4286 = scalar_lea.vmem %s4, 120
  %v4287 = vld [vmem:[%s4286] sm:$0xf]
  %v4288 = vld [vmem:[%s4286 + $0x4] sm:$0xf]
  %v4289 = vld [vmem:[%s4286 + $0x8] sm:$0xf]
  %v4290 = vld [vmem:[%s4286 + $0xc] sm:$0xf]
  %v4291 = vld [vmem:[%s4286 + $0x10] sm:$0xf]
  %v4292 = vld [vmem:[%s4286 + $0x14] sm:$0xf]
  %v4293 = vld [vmem:[%s4286 + $0x18] sm:$0xf]
  %v4294 = vld [vmem:[%s4286 + $0x1c] sm:$0xf]
  %v4295 = vld [vmem:[%s4286 + $0x20] sm:$0xf]
  %v4296 = vld [vmem:[%s4286 + $0x24] sm:$0xf]
  %v4297 = vld [vmem:[%s4286 + $0x28] sm:$0xf]
  %v4298 = vld [vmem:[%s4286 + $0x2c] sm:$0xf]
  %v4299 = vld [vmem:[%s4286 + $0x30] sm:$0xf]
  %v4300 = vld [vmem:[%s4286 + $0x34] sm:$0xf]
  %v4301 = vld [vmem:[%s4286 + $0x38] sm:$0xf]
  %v4317 = vunpack.c.l.b16 %v4287
  %v4318 = vunpack.c.l.b16 %v4288
  %v4319 = vunpack.c.l.b16 %v4289
  %v4320 = vunpack.c.l.b16 %v4290
  %v4321 = vunpack.c.l.b16 %v4291
  %v4322 = vunpack.c.l.b16 %v4292
  %v4323 = vunpack.c.l.b16 %v4293
  %v4324 = vunpack.c.l.b16 %v4294
  %v4325 = vunpack.c.l.b16 %v4295
  %v4326 = vunpack.c.l.b16 %v4296
  %v4327 = vunpack.c.l.b16 %v4297
  %v4328 = vunpack.c.l.b16 %v4298
  %v4329 = vunpack.c.l.b16 %v4299
  %v4330 = vunpack.c.l.b16 %v4300
  %v4331 = vunpack.c.l.b16 %v4301
  %v4332 = vpack.c.b16 %v4318, %v4317
  %v4333 = vpack.c.b16 %v4320, %v4319
  %v4334 = vpack.c.b16 %v4322, %v4321
  %v4335 = vpack.c.b16 %v4324, %v4323
  %v4336 = vpack.c.b16 %v4326, %v4325
  %v4337 = vpack.c.b16 %v4328, %v4327
  %v4338 = vpack.c.b16 %v4330, %v4329
  %v4339 = vpack.c.b16 %v4331, %v4331
  %v4348 = vsel %vm504, %v4282, 0
  %v4351 = vsel %vm504, %v4283, 0
  %v4354 = vsel %vm504, %v4284, 0
  %v4357 = vsel %vm504, %v4285, 0
  %v4360 = vsel %vm3730, %v4339, 0
  %4362 = vmatprep.subr.bf16.mxu0 0
  %4363 = vmatpush1.bf16.msra.mxu0 %v4332
  %4364 = vmatprep.subr.bf16.mxu0 0
  %4365 = vmatpush1.bf16.msra.mxu0 %v4333
  %4366 = vmatprep.subr.bf16.mxu0 0
  %4367 = vmatpush1.bf16.msra.mxu0 %v4334
  %4368 = vmatprep.subr.bf16.mxu0 0
  %4369 = vmatpush1.bf16.msra.mxu0 %v4335
  %4370 = vmatprep.subr.bf16.mxu0 0
  %4371 = vmatpush1.bf16.msra.mxu0 %v4336
  %4372 = vmatprep.subr.bf16.mxu0 0
  %4373 = vmatpush1.bf16.msra.mxu0 %v4337
  %4374 = vmatprep.subr.bf16.mxu0 0
  %4375 = vmatpush1.bf16.msra.mxu0 %v4338
  %4376 = vmatprep.subr.bf16.mxu0 0
  %4377 = vmatpush1.bf16.msra.mxu0 %v4360
  %4378 = vmatprep.subr.bf16.mxu0 0
  %4379 = vmatpush1.bf16.msra.mxu0 0
  %4380 = vmatprep.subr.bf16.mxu0 0
  %4381 = vmatpush1.bf16.msra.mxu0 0
  %4382 = vmatprep.subr.bf16.mxu0 0
  %4383 = vmatpush1.bf16.msra.mxu0 0
  %4384 = vmatprep.subr.bf16.mxu0 0
  %4385 = vmatpush1.bf16.msra.mxu0 0
  %4386 = vmatprep.subr.bf16.mxu0 0
  %4387 = vmatpush1.bf16.msra.mxu0 0
  %4388 = vmatprep.subr.bf16.mxu0 0
  %4389 = vmatpush1.bf16.msra.mxu0 0
  %4390 = vmatprep.subr.bf16.mxu0 0
  %4391 = vmatpush1.bf16.msra.mxu0 0
  %4392 = vmatprep.subr.bf16.mxu0 0
  %4393 = vmatpush1.bf16.msra.mxu0 0
  %4394 = vmatprep.mubr.bf16.mxu0 0
  %4395 = vmatmul.mubr.bf16.gmra.mrb[0].mxu0 %v4348
  %v4396 = vpop.f32.mrb[0].mxu0
  %v4397 = vadd.f32 0.0, %v4396
  %v4398 = vpop.f32.mrb[0].mxu0
  %v4399 = vpop.f32.mrb[0].mxu0
  %v4400 = vadd.f32 0.0, %v4399
  %v4401 = vpop.f32.mrb[0].mxu0
  %4402 = vmatprep.mubr.bf16.mxu0 0
  %4403 = vmatmul.mubr.bf16.gmra.mrb[0].mxu0 %v4351
  %v4404 = vpop.f32.mrb[0].mxu0
  %v4405 = vadd.f32 0.0, %v4404
  %v4406 = vpop.f32.mrb[0].mxu0
  %v4407 = vpop.f32.mrb[0].mxu0
  %v4408 = vadd.f32 0.0, %v4407
  %v4409 = vpop.f32.mrb[0].mxu0
  %4410 = vmatprep.mubr.bf16.mxu0 0
  %4411 = vmatmul.mubr.bf16.gmra.mrb[0].mxu0 %v4354
  %v4412 = vpop.f32.mrb[0].mxu0
  %v4413 = vadd.f32 0.0, %v4412
  %v4414 = vpop.f32.mrb[0].mxu0
  %v4415 = vpop.f32.mrb[0].mxu0
  %v4416 = vadd.f32 0.0, %v4415
  %v4417 = vpop.f32.mrb[0].mxu0
  %4418 = vmatprep.mubr.bf16.mxu0 0
  %4419 = vmatmul.mubr.bf16.gmra.mrb[0].mxu0 %v4357
  %v4420 = vpop.f32.mrb[0].mxu0
  %v4421 = vadd.f32 0.0, %v4420
  %v4422 = vpop.f32.mrb[0].mxu0
  %v4423 = vpop.f32.mrb[0].mxu0
  %v4424 = vadd.f32 0.0, %v4423
  %v4425 = vpop.f32.mrb[0].mxu0
  %4426 = vdwg.mxu0
  %s4427 = scalar_lea.vmem %s5, 120
  %v4428 = vld [vmem:[%s4427] sm:$0xf]
  %v4429 = vld [vmem:[%s4427 + $0x4] sm:$0xf]
  %v4430 = vld [vmem:[%s4427 + $0x8] sm:$0xf]
  %v4431 = vld [vmem:[%s4427 + $0xc] sm:$0xf]
  %v4432 = vld [vmem:[%s4427 + $0x10] sm:$0xf]
  %v4433 = vld [vmem:[%s4427 + $0x14] sm:$0xf]
  %v4434 = vld [vmem:[%s4427 + $0x18] sm:$0xf]
  %v4435 = vld [vmem:[%s4427 + $0x1c] sm:$0xf]
  %v4436 = vld [vmem:[%s4427 + $0x20] sm:$0xf]
  %v4437 = vld [vmem:[%s4427 + $0x24] sm:$0xf]
  %v4438 = vld [vmem:[%s4427 + $0x28] sm:$0xf]
  %v4439 = vld [vmem:[%s4427 + $0x2c] sm:$0xf]
  %v4440 = vld [vmem:[%s4427 + $0x30] sm:$0xf]
  %v4441 = vld [vmem:[%s4427 + $0x34] sm:$0xf]
  %v4442 = vld [vmem:[%s4427 + $0x38] sm:$0xf]
  %v4458 = vunpack.c.l.b16 %v4428
  %v4459 = vunpack.c.l.b16 %v4429
  %v4460 = vunpack.c.l.b16 %v4430
  %v4461 = vunpack.c.l.b16 %v4431
  %v4462 = vunpack.c.l.b16 %v4432
  %v4463 = vunpack.c.l.b16 %v4433
  %v4464 = vunpack.c.l.b16 %v4434
  %v4465 = vunpack.c.l.b16 %v4435
  %v4466 = vunpack.c.l.b16 %v4436
  %v4467 = vunpack.c.l.b16 %v4437
  %v4468 = vunpack.c.l.b16 %v4438
  %v4469 = vunpack.c.l.b16 %v4439
  %v4470 = vunpack.c.l.b16 %v4440
  %v4471 = vunpack.c.l.b16 %v4441
  %v4472 = vunpack.c.l.b16 %v4442
  %v4473 = vpack.c.b16 %v4459, %v4458
  %v4474 = vpack.c.b16 %v4461, %v4460
  %v4475 = vpack.c.b16 %v4463, %v4462
  %v4476 = vpack.c.b16 %v4465, %v4464
  %v4477 = vpack.c.b16 %v4467, %v4466
  %v4478 = vpack.c.b16 %v4469, %v4468
  %v4479 = vpack.c.b16 %v4471, %v4470
  %v4480 = vpack.c.b16 %v4472, %v4472
  %v4489 = vsel %vm3730, %v4480, 0
  %4491 = vmatprep.subr.bf16.mxu0 0
  %4492 = vmatpush1.bf16.msra.mxu0 %v4473
  %4493 = vmatprep.subr.bf16.mxu0 0
  %4494 = vmatpush1.bf16.msra.mxu0 %v4474
  %4495 = vmatprep.subr.bf16.mxu0 0
  %4496 = vmatpush1.bf16.msra.mxu0 %v4475
  %4497 = vmatprep.subr.bf16.mxu0 0
  %4498 = vmatpush1.bf16.msra.mxu0 %v4476
  %4499 = vmatprep.subr.bf16.mxu0 0
  %4500 = vmatpush1.bf16.msra.mxu0 %v4477
  %4501 = vmatprep.subr.bf16.mxu0 0
  %4502 = vmatpush1.bf16.msra.mxu0 %v4478
  %4503 = vmatprep.subr.bf16.mxu0 0
  %4504 = vmatpush1.bf16.msra.mxu0 %v4479
  %4505 = vmatprep.subr.bf16.mxu0 0
  %4506 = vmatpush1.bf16.msra.mxu0 %v4489
  %4507 = vmatprep.subr.bf16.mxu0 0
  %4508 = vmatpush1.bf16.msra.mxu0 0
  %4509 = vmatprep.subr.bf16.mxu0 0
  %4510 = vmatpush1.bf16.msra.mxu0 0
  %4511 = vmatprep.subr.bf16.mxu0 0
  %4512 = vmatpush1.bf16.msra.mxu0 0
  %4513 = vmatprep.subr.bf16.mxu0 0
  %4514 = vmatpush1.bf16.msra.mxu0 0
  %4515 = vmatprep.subr.bf16.mxu0 0
  %4516 = vmatpush1.bf16.msra.mxu0 0
  %4517 = vmatprep.subr.bf16.mxu0 0
  %4518 = vmatpush1.bf16.msra.mxu0 0
  %4519 = vmatprep.subr.bf16.mxu0 0
  %4520 = vmatpush1.bf16.msra.mxu0 0
  %4521 = vmatprep.subr.bf16.mxu0 0
  %4522 = vmatpush1.bf16.msra.mxu0 0
  %4523 = vmatprep.mubr.bf16.mxu0 0
  %4524 = vmatmul.mubr.bf16.gmra.mrb[0].mxu0 %v4348
  %v4525 = vpop.f32.mrb[0].mxu0
  %v4526 = vadd.f32 0.0, %v4525
  %v4527 = vpop.f32.mrb[0].mxu0
  %v4528 = vpop.f32.mrb[0].mxu0
  %v4529 = vadd.f32 0.0, %v4528
  %v4530 = vpop.f32.mrb[0].mxu0
  %4531 = vmatprep.mubr.bf16.mxu0 0
  %4532 = vmatmul.mubr.bf16.gmra.mrb[0].mxu0 %v4351
  %v4533 = vpop.f32.mrb[0].mxu0
  %v4534 = vadd.f32 0.0, %v4533
  %v4535 = vpop.f32.mrb[0].mxu0
  %v4536 = vpop.f32.mrb[0].mxu0
  %v4537 = vadd.f32 0.0, %v4536
  %v4538 = vpop.f32.mrb[0].mxu0
  %4539 = vmatprep.mubr.bf16.mxu0 0
  %4540 = vmatmul.mubr.bf16.gmra.mrb[0].mxu0 %v4354
  %v4541 = vpop.f32.mrb[0].mxu0
  %v4542 = vadd.f32 0.0, %v4541
  %v4543 = vpop.f32.mrb[0].mxu0
  %v4544 = vpop.f32.mrb[0].mxu0
  %v4545 = vadd.f32 0.0, %v4544
  %v4546 = vpop.f32.mrb[0].mxu0
  %4547 = vmatprep.mubr.bf16.mxu0 0
  %4548 = vmatmul.mubr.bf16.gmra.mrb[0].mxu0 %v4357
  %v4549 = vpop.f32.mrb[0].mxu0
  %v4550 = vadd.f32 0.0, %v4549
  %v4551 = vpop.f32.mrb[0].mxu0
  %v4552 = vpop.f32.mrb[0].mxu0
  %v4553 = vadd.f32 0.0, %v4552
  %v4554 = vpop.f32.mrb[0].mxu0
  %4555 = vdwg.mxu0
  %v4556 = vld [vmem:[#allocation6] sm:$0xff]
  %v4557 = vld [vmem:[#allocation6 + $0x8] sm:$0xff]
  %v4558 = vld [vmem:[#allocation6 + $0x10] sm:$0xff]
  %v4559 = vld [vmem:[#allocation6 + $0x18] sm:$0xff]
  %v4560 = vld [vmem:[#allocation6 + $0x20] sm:$0xff]
  %v4561 = vld [vmem:[#allocation6 + $0x28] sm:$0xff]
  %v4562 = vld [vmem:[#allocation6 + $0x30] sm:$0xff]
  %v4563 = vld [vmem:[#allocation6 + $0x38] sm:$0xff]
  %v4564 = vadd.f32 %v4556, %v4397
  %v4565 = vadd.f32 %v4557, %v4400
  %v4566 = vadd.f32 %v4558, %v4405
  %v4567 = vadd.f32 %v4559, %v4408
  %v4568 = vadd.f32 %v4560, %v4413
  %v4569 = vadd.f32 %v4561, %v4416
  %v4570 = vadd.f32 %v4562, %v4421
  %v4571 = vadd.f32 %v4563, %v4424
  %4572 = vst.msk [vmem:[#allocation6] sm:$0xff] %vm3927, %v4564
  %4573 = vst.msk [vmem:[#allocation6 + $0x8] sm:$0xff] %vm3927, %v4565
  %4574 = vst.msk [vmem:[#allocation6 + $0x10] sm:$0xff] %vm3927, %v4566
  %4575 = vst.msk [vmem:[#allocation6 + $0x18] sm:$0xff] %vm3927, %v4567
  %4576 = vst.msk [vmem:[#allocation6 + $0x20] sm:$0xff] %vm3927, %v4568
  %4577 = vst.msk [vmem:[#allocation6 + $0x28] sm:$0xff] %vm3927, %v4569
  %4578 = vst.msk [vmem:[#allocation6 + $0x30] sm:$0xff] %vm3927, %v4570
  %4579 = vst.msk [vmem:[#allocation6 + $0x38] sm:$0xff] %vm3927, %v4571
  %v4580 = vld [vmem:[#allocation7] sm:$0xff]
  %v4581 = vld [vmem:[#allocation7 + $0x8] sm:$0xff]
  %v4582 = vld [vmem:[#allocation7 + $0x10] sm:$0xff]
  %v4583 = vld [vmem:[#allocation7 + $0x18] sm:$0xff]
  %v4584 = vld [vmem:[#allocation7 + $0x20] sm:$0xff]
  %v4585 = vld [vmem:[#allocation7 + $0x28] sm:$0xff]
  %v4586 = vld [vmem:[#allocation7 + $0x30] sm:$0xff]
  %v4587 = vld [vmem:[#allocation7 + $0x38] sm:$0xff]
  %v4588 = vadd.f32 %v4580, %v4526
  %v4589 = vadd.f32 %v4581, %v4529
  %v4590 = vadd.f32 %v4582, %v4534
  %v4591 = vadd.f32 %v4583, %v4537
  %v4592 = vadd.f32 %v4584, %v4542
  %v4593 = vadd.f32 %v4585, %v4545
  %v4594 = vadd.f32 %v4586, %v4550
  %v4595 = vadd.f32 %v4587, %v4553
  %4596 = vst.msk [vmem:[#allocation7] sm:$0xff] %vm3927, %v4588
  %4597 = vst.msk [vmem:[#allocation7 + $0x8] sm:$0xff] %vm3927, %v4589
  %4598 = vst.msk [vmem:[#allocation7 + $0x10] sm:$0xff] %vm3927, %v4590
  %4599 = vst.msk [vmem:[#allocation7 + $0x18] sm:$0xff] %vm3927, %v4591
  %4600 = vst.msk [vmem:[#allocation7 + $0x20] sm:$0xff] %vm3927, %v4592
  %4601 = vst.msk [vmem:[#allocation7 + $0x28] sm:$0xff] %vm3927, %v4593
  %4602 = vst.msk [vmem:[#allocation7 + $0x30] sm:$0xff] %vm3927, %v4594
  %4603 = vst.msk [vmem:[#allocation7 + $0x38] sm:$0xff] %vm3927, %v4595
  %v4604 = vld [vmem:[#allocation5 + $0x3] sm:$0xff]
  %v4605 = vld [vmem:[#allocation5 + $0x13] sm:$0xff]
  %v4606 = vld [vmem:[#allocation5 + $0x23] sm:$0xff]
  %v4607 = vld [vmem:[#allocation5 + $0x33] sm:$0xff]
  %v4608 = vld [vmem:[#allocation5 + $0x43] sm:$0xff]
  %v4609 = vld [vmem:[#allocation5 + $0x53] sm:$0xff]
  %v4610 = vld [vmem:[#allocation5 + $0x63] sm:$0xff]
  %v4611 = vld [vmem:[#allocation5 + $0x73] sm:$0xff]
  %v4612 = vpack.c.bf16 %v4605, %v4604
  %v4613 = vpack.c.bf16 %v4607, %v4606
  %v4614 = vpack.c.bf16 %v4609, %v4608
  %v4615 = vpack.c.bf16 %v4611, %v4610
  %s4616 = scalar_lea.vmem %s4, 180
  %v4617 = vld [vmem:[%s4616] sm:$0xf]
  %v4618 = vld [vmem:[%s4616 + $0x4] sm:$0xf]
  %v4619 = vld [vmem:[%s4616 + $0x8] sm:$0xf]
  %v4620 = vld [vmem:[%s4616 + $0xc] sm:$0xf]
  %v4621 = vld [vmem:[%s4616 + $0x10] sm:$0xf]
  %v4622 = vld [vmem:[%s4616 + $0x14] sm:$0xf]
  %v4623 = vld [vmem:[%s4616 + $0x18] sm:$0xf]
  %v4624 = vld [vmem:[%s4616 + $0x1c] sm:$0xf]
  %v4625 = vld [vmem:[%s4616 + $0x20] sm:$0xf]
  %v4626 = vld [vmem:[%s4616 + $0x24] sm:$0xf]
  %v4627 = vld [vmem:[%s4616 + $0x28] sm:$0xf]
  %v4628 = vld [vmem:[%s4616 + $0x2c] sm:$0xf]
  %v4629 = vld [vmem:[%s4616 + $0x30] sm:$0xf]
  %v4630 = vld [vmem:[%s4616 + $0x34] sm:$0xf]
  %v4631 = vld [vmem:[%s4616 + $0x38] sm:$0xf]
  %v4647 = vunpack.c.l.b16 %v4617
  %v4648 = vunpack.c.l.b16 %v4618
  %v4649 = vunpack.c.l.b16 %v4619
  %v4650 = vunpack.c.l.b16 %v4620
  %v4651 = vunpack.c.l.b16 %v4621
  %v4652 = vunpack.c.l.b16 %v4622
  %v4653 = vunpack.c.l.b16 %v4623
  %v4654 = vunpack.c.l.b16 %v4624
  %v4655 = vunpack.c.l.b16 %v4625
  %v4656 = vunpack.c.l.b16 %v4626
  %v4657 = vunpack.c.l.b16 %v4627
  %v4658 = vunpack.c.l.b16 %v4628
  %v4659 = vunpack.c.l.b16 %v4629
  %v4660 = vunpack.c.l.b16 %v4630
  %v4661 = vunpack.c.l.b16 %v4631
  %v4662 = vpack.c.b16 %v4648, %v4647
  %v4663 = vpack.c.b16 %v4650, %v4649
  %v4664 = vpack.c.b16 %v4652, %v4651
  %v4665 = vpack.c.b16 %v4654, %v4653
  %v4666 = vpack.c.b16 %v4656, %v4655
  %v4667 = vpack.c.b16 %v4658, %v4657
  %v4668 = vpack.c.b16 %v4660, %v4659
  %v4669 = vpack.c.b16 %v4661, %v4661
  %v4678 = vsel %vm504, %v4612, 0
  %v4681 = vsel %vm504, %v4613, 0
  %v4684 = vsel %vm504, %v4614, 0
  %v4687 = vsel %vm504, %v4615, 0
  %v4690 = vsel %vm3730, %v4669, 0
  %4692 = vmatprep.subr.bf16.mxu0 0
  %4693 = vmatpush1.bf16.msra.mxu0 %v4662
  %4694 = vmatprep.subr.bf16.mxu0 0
  %4695 = vmatpush1.bf16.msra.mxu0 %v4663
  %4696 = vmatprep.subr.bf16.mxu0 0
  %4697 = vmatpush1.bf16.msra.mxu0 %v4664
  %4698 = vmatprep.subr.bf16.mxu0 0
  %4699 = vmatpush1.bf16.msra.mxu0 %v4665
  %4700 = vmatprep.subr.bf16.mxu0 0
  %4701 = vmatpush1.bf16.msra.mxu0 %v4666
  %4702 = vmatprep.subr.bf16.mxu0 0
  %4703 = vmatpush1.bf16.msra.mxu0 %v4667
  %4704 = vmatprep.subr.bf16.mxu0 0
  %4705 = vmatpush1.bf16.msra.mxu0 %v4668
  %4706 = vmatprep.subr.bf16.mxu0 0
  %4707 = vmatpush1.bf16.msra.mxu0 %v4690
  %4708 = vmatprep.subr.bf16.mxu0 0
  %4709 = vmatpush1.bf16.msra.mxu0 0
  %4710 = vmatprep.subr.bf16.mxu0 0
  %4711 = vmatpush1.bf16.msra.mxu0 0
  %4712 = vmatprep.subr.bf16.mxu0 0
  %4713 = vmatpush1.bf16.msra.mxu0 0
  %4714 = vmatprep.subr.bf16.mxu0 0
  %4715 = vmatpush1.bf16.msra.mxu0 0
  %4716 = vmatprep.subr.bf16.mxu0 0
  %4717 = vmatpush1.bf16.msra.mxu0 0
  %4718 = vmatprep.subr.bf16.mxu0 0
  %4719 = vmatpush1.bf16.msra.mxu0 0
  %4720 = vmatprep.subr.bf16.mxu0 0
  %4721 = vmatpush1.bf16.msra.mxu0 0
  %4722 = vmatprep.subr.bf16.mxu0 0
  %4723 = vmatpush1.bf16.msra.mxu0 0
  %4724 = vmatprep.mubr.bf16.mxu0 0
  %4725 = vmatmul.mubr.bf16.gmra.mrb[0].mxu0 %v4678
  %v4726 = vpop.f32.mrb[0].mxu0
  %v4727 = vadd.f32 0.0, %v4726
  %v4728 = vpop.f32.mrb[0].mxu0
  %v4729 = vpop.f32.mrb[0].mxu0
  %v4730 = vadd.f32 0.0, %v4729
  %v4731 = vpop.f32.mrb[0].mxu0
  %4732 = vmatprep.mubr.bf16.mxu0 0
  %4733 = vmatmul.mubr.bf16.gmra.mrb[0].mxu0 %v4681
  %v4734 = vpop.f32.mrb[0].mxu0
  %v4735 = vadd.f32 0.0, %v4734
  %v4736 = vpop.f32.mrb[0].mxu0
  %v4737 = vpop.f32.mrb[0].mxu0
  %v4738 = vadd.f32 0.0, %v4737
  %v4739 = vpop.f32.mrb[0].mxu0
  %4740 = vmatprep.mubr.bf16.mxu0 0
  %4741 = vmatmul.mubr.bf16.gmra.mrb[0].mxu0 %v4684
  %v4742 = vpop.f32.mrb[0].mxu0
  %v4743 = vadd.f32 0.0, %v4742
  %v4744 = vpop.f32.mrb[0].mxu0
  %v4745 = vpop.f32.mrb[0].mxu0
  %v4746 = vadd.f32 0.0, %v4745
  %v4747 = vpop.f32.mrb[0].mxu0
  %4748 = vmatprep.mubr.bf16.mxu0 0
  %4749 = vmatmul.mubr.bf16.gmra.mrb[0].mxu0 %v4687
  %v4750 = vpop.f32.mrb[0].mxu0
  %v4751 = vadd.f32 0.0, %v4750
  %v4752 = vpop.f32.mrb[0].mxu0
  %v4753 = vpop.f32.mrb[0].mxu0
  %v4754 = vadd.f32 0.0, %v4753
  %v4755 = vpop.f32.mrb[0].mxu0
  %4756 = vdwg.mxu0
  %s4757 = scalar_lea.vmem %s5, 180
  %v4758 = vld [vmem:[%s4757] sm:$0xf]
  %v4759 = vld [vmem:[%s4757 + $0x4] sm:$0xf]
  %v4760 = vld [vmem:[%s4757 + $0x8] sm:$0xf]
  %v4761 = vld [vmem:[%s4757 + $0xc] sm:$0xf]
  %v4762 = vld [vmem:[%s4757 + $0x10] sm:$0xf]
  %v4763 = vld [vmem:[%s4757 + $0x14] sm:$0xf]
  %v4764 = vld [vmem:[%s4757 + $0x18] sm:$0xf]
  %v4765 = vld [vmem:[%s4757 + $0x1c] sm:$0xf]
  %v4766 = vld [vmem:[%s4757 + $0x20] sm:$0xf]
  %v4767 = vld [vmem:[%s4757 + $0x24] sm:$0xf]
  %v4768 = vld [vmem:[%s4757 + $0x28] sm:$0xf]
  %v4769 = vld [vmem:[%s4757 + $0x2c] sm:$0xf]
  %v4770 = vld [vmem:[%s4757 + $0x30] sm:$0xf]
  %v4771 = vld [vmem:[%s4757 + $0x34] sm:$0xf]
  %v4772 = vld [vmem:[%s4757 + $0x38] sm:$0xf]
  %v4788 = vunpack.c.l.b16 %v4758
  %v4789 = vunpack.c.l.b16 %v4759
  %v4790 = vunpack.c.l.b16 %v4760
  %v4791 = vunpack.c.l.b16 %v4761
  %v4792 = vunpack.c.l.b16 %v4762
  %v4793 = vunpack.c.l.b16 %v4763
  %v4794 = vunpack.c.l.b16 %v4764
  %v4795 = vunpack.c.l.b16 %v4765
  %v4796 = vunpack.c.l.b16 %v4766
  %v4797 = vunpack.c.l.b16 %v4767
  %v4798 = vunpack.c.l.b16 %v4768
  %v4799 = vunpack.c.l.b16 %v4769
  %v4800 = vunpack.c.l.b16 %v4770
  %v4801 = vunpack.c.l.b16 %v4771
  %v4802 = vunpack.c.l.b16 %v4772
  %v4803 = vpack.c.b16 %v4789, %v4788
  %v4804 = vpack.c.b16 %v4791, %v4790
  %v4805 = vpack.c.b16 %v4793, %v4792
  %v4806 = vpack.c.b16 %v4795, %v4794
  %v4807 = vpack.c.b16 %v4797, %v4796
  %v4808 = vpack.c.b16 %v4799, %v4798
  %v4809 = vpack.c.b16 %v4801, %v4800
  %v4810 = vpack.c.b16 %v4802, %v4802
  %v4819 = vsel %vm3730, %v4810, 0
  %4821 = vmatprep.subr.bf16.mxu0 0
  %4822 = vmatpush1.bf16.msra.mxu0 %v4803
  %4823 = vmatprep.subr.bf16.mxu0 0
  %4824 = vmatpush1.bf16.msra.mxu0 %v4804
  %4825 = vmatprep.subr.bf16.mxu0 0
  %4826 = vmatpush1.bf16.msra.mxu0 %v4805
  %4827 = vmatprep.subr.bf16.mxu0 0
  %4828 = vmatpush1.bf16.msra.mxu0 %v4806
  %4829 = vmatprep.subr.bf16.mxu0 0
  %4830 = vmatpush1.bf16.msra.mxu0 %v4807
  %4831 = vmatprep.subr.bf16.mxu0 0
  %4832 = vmatpush1.bf16.msra.mxu0 %v4808
  %4833 = vmatprep.subr.bf16.mxu0 0
  %4834 = vmatpush1.bf16.msra.mxu0 %v4809
  %4835 = vmatprep.subr.bf16.mxu0 0
  %4836 = vmatpush1.bf16.msra.mxu0 %v4819
  %4837 = vmatprep.subr.bf16.mxu0 0
  %4838 = vmatpush1.bf16.msra.mxu0 0
  %4839 = vmatprep.subr.bf16.mxu0 0
  %4840 = vmatpush1.bf16.msra.mxu0 0
  %4841 = vmatprep.subr.bf16.mxu0 0
  %4842 = vmatpush1.bf16.msra.mxu0 0
  %4843 = vmatprep.subr.bf16.mxu0 0
  %4844 = vmatpush1.bf16.msra.mxu0 0
  %4845 = vmatprep.subr.bf16.mxu0 0
  %4846 = vmatpush1.bf16.msra.mxu0 0
  %4847 = vmatprep.subr.bf16.mxu0 0
  %4848 = vmatpush1.bf16.msra.mxu0 0
  %4849 = vmatprep.subr.bf16.mxu0 0
  %4850 = vmatpush1.bf16.msra.mxu0 0
  %4851 = vmatprep.subr.bf16.mxu0 0
  %4852 = vmatpush1.bf16.msra.mxu0 0
  %4853 = vmatprep.mubr.bf16.mxu0 0
  %4854 = vmatmul.mubr.bf16.gmra.mrb[0].mxu0 %v4678
  %v4855 = vpop.f32.mrb[0].mxu0
  %v4856 = vadd.f32 0.0, %v4855
  %v4857 = vpop.f32.mrb[0].mxu0
  %v4858 = vpop.f32.mrb[0].mxu0
  %v4859 = vadd.f32 0.0, %v4858
  %v4860 = vpop.f32.mrb[0].mxu0
  %4861 = vmatprep.mubr.bf16.mxu0 0
  %4862 = vmatmul.mubr.bf16.gmra.mrb[0].mxu0 %v4681
  %v4863 = vpop.f32.mrb[0].mxu0
  %v4864 = vadd.f32 0.0, %v4863
  %v4865 = vpop.f32.mrb[0].mxu0
  %v4866 = vpop.f32.mrb[0].mxu0
  %v4867 = vadd.f32 0.0, %v4866
  %v4868 = vpop.f32.mrb[0].mxu0
  %4869 = vmatprep.mubr.bf16.mxu0 0
  %4870 = vmatmul.mubr.bf16.gmra.mrb[0].mxu0 %v4684
  %v4871 = vpop.f32.mrb[0].mxu0
  %v4872 = vadd.f32 0.0, %v4871
  %v4873 = vpop.f32.mrb[0].mxu0
  %v4874 = vpop.f32.mrb[0].mxu0
  %v4875 = vadd.f32 0.0, %v4874
  %v4876 = vpop.f32.mrb[0].mxu0
  %4877 = vmatprep.mubr.bf16.mxu0 0
  %4878 = vmatmul.mubr.bf16.gmra.mrb[0].mxu0 %v4687
  %v4879 = vpop.f32.mrb[0].mxu0
  %v4880 = vadd.f32 0.0, %v4879
  %v4881 = vpop.f32.mrb[0].mxu0
  %v4882 = vpop.f32.mrb[0].mxu0
  %v4883 = vadd.f32 0.0, %v4882
  %v4884 = vpop.f32.mrb[0].mxu0
  %4885 = vdwg.mxu0
  %v4886 = vld [vmem:[#allocation6] sm:$0xff]
  %v4887 = vld [vmem:[#allocation6 + $0x8] sm:$0xff]
  %v4888 = vld [vmem:[#allocation6 + $0x10] sm:$0xff]
  %v4889 = vld [vmem:[#allocation6 + $0x18] sm:$0xff]
  %v4890 = vld [vmem:[#allocation6 + $0x20] sm:$0xff]
  %v4891 = vld [vmem:[#allocation6 + $0x28] sm:$0xff]
  %v4892 = vld [vmem:[#allocation6 + $0x30] sm:$0xff]
  %v4893 = vld [vmem:[#allocation6 + $0x38] sm:$0xff]
  %v4894 = vadd.f32 %v4886, %v4727
  %v4895 = vadd.f32 %v4887, %v4730
  %v4896 = vadd.f32 %v4888, %v4735
  %v4897 = vadd.f32 %v4889, %v4738
  %v4898 = vadd.f32 %v4890, %v4743
  %v4899 = vadd.f32 %v4891, %v4746
  %v4900 = vadd.f32 %v4892, %v4751
  %v4901 = vadd.f32 %v4893, %v4754
  %4902 = vst.msk [vmem:[#allocation6] sm:$0xff] %vm3927, %v4894
  %4903 = vst.msk [vmem:[#allocation6 + $0x8] sm:$0xff] %vm3927, %v4895
  %4904 = vst.msk [vmem:[#allocation6 + $0x10] sm:$0xff] %vm3927, %v4896
  %4905 = vst.msk [vmem:[#allocation6 + $0x18] sm:$0xff] %vm3927, %v4897
  %4906 = vst.msk [vmem:[#allocation6 + $0x20] sm:$0xff] %vm3927, %v4898
  %4907 = vst.msk [vmem:[#allocation6 + $0x28] sm:$0xff] %vm3927, %v4899
  %4908 = vst.msk [vmem:[#allocation6 + $0x30] sm:$0xff] %vm3927, %v4900
  %4909 = vst.msk [vmem:[#allocation6 + $0x38] sm:$0xff] %vm3927, %v4901
  %v4910 = vld [vmem:[#allocation7] sm:$0xff]
  %v4911 = vld [vmem:[#allocation7 + $0x8] sm:$0xff]
  %v4912 = vld [vmem:[#allocation7 + $0x10] sm:$0xff]
  %v4913 = vld [vmem:[#allocation7 + $0x18] sm:$0xff]
  %v4914 = vld [vmem:[#allocation7 + $0x20] sm:$0xff]
  %v4915 = vld [vmem:[#allocation7 + $0x28] sm:$0xff]
  %v4916 = vld [vmem:[#allocation7 + $0x30] sm:$0xff]
  %v4917 = vld [vmem:[#allocation7 + $0x38] sm:$0xff]
  %v4918 = vadd.f32 %v4910, %v4856
  %v4919 = vadd.f32 %v4911, %v4859
  %v4920 = vadd.f32 %v4912, %v4864
  %v4921 = vadd.f32 %v4913, %v4867
  %v4922 = vadd.f32 %v4914, %v4872
  %v4923 = vadd.f32 %v4915, %v4875
  %v4924 = vadd.f32 %v4916, %v4880
  %v4925 = vadd.f32 %v4917, %v4883
  %4926 = vst.msk [vmem:[#allocation7] sm:$0xff] %vm3927, %v4918
  %4927 = vst.msk [vmem:[#allocation7 + $0x8] sm:$0xff] %vm3927, %v4919
  %4928 = vst.msk [vmem:[#allocation7 + $0x10] sm:$0xff] %vm3927, %v4920
  %4929 = vst.msk [vmem:[#allocation7 + $0x18] sm:$0xff] %vm3927, %v4921
  %4930 = vst.msk [vmem:[#allocation7 + $0x20] sm:$0xff] %vm3927, %v4922
  %4931 = vst.msk [vmem:[#allocation7 + $0x28] sm:$0xff] %vm3927, %v4923
  %4932 = vst.msk [vmem:[#allocation7 + $0x30] sm:$0xff] %vm3927, %v4924
  %4933 = vst.msk [vmem:[#allocation7 + $0x38] sm:$0xff] %vm3927, %v4925
  %v4934 = vld [vmem:[#allocation5 + $0x4] sm:$0xff]
  %v4935 = vld [vmem:[#allocation5 + $0x14] sm:$0xff]
  %v4936 = vld [vmem:[#allocation5 + $0x24] sm:$0xff]
  %v4937 = vld [vmem:[#allocation5 + $0x34] sm:$0xff]
  %v4938 = vld [vmem:[#allocation5 + $0x44] sm:$0xff]
  %v4939 = vld [vmem:[#allocation5 + $0x54] sm:$0xff]
  %v4940 = vld [vmem:[#allocation5 + $0x64] sm:$0xff]
  %v4941 = vld [vmem:[#allocation5 + $0x74] sm:$0xff]
  %v4942 = vpack.c.bf16 %v4935, %v4934
  %v4943 = vpack.c.bf16 %v4937, %v4936
  %v4944 = vpack.c.bf16 %v4939, %v4938
  %v4945 = vpack.c.bf16 %v4941, %v4940
  %s4946 = scalar_lea.vmem %s4, 240
  %v4947 = vld [vmem:[%s4946] sm:$0xf]
  %v4948 = vld [vmem:[%s4946 + $0x4] sm:$0xf]
  %v4949 = vld [vmem:[%s4946 + $0x8] sm:$0xf]
  %v4950 = vld [vmem:[%s4946 + $0xc] sm:$0xf]
  %v4951 = vld [vmem:[%s4946 + $0x10] sm:$0xf]
  %v4952 = vld [vmem:[%s4946 + $0x14] sm:$0xf]
  %v4953 = vld [vmem:[%s4946 + $0x18] sm:$0xf]
  %v4954 = vld [vmem:[%s4946 + $0x1c] sm:$0xf]
  %v4955 = vld [vmem:[%s4946 + $0x20] sm:$0xf]
  %v4956 = vld [vmem:[%s4946 + $0x24] sm:$0xf]
  %v4957 = vld [vmem:[%s4946 + $0x28] sm:$0xf]
  %v4958 = vld [vmem:[%s4946 + $0x2c] sm:$0xf]
  %v4959 = vld [vmem:[%s4946 + $0x30] sm:$0xf]
  %v4960 = vld [vmem:[%s4946 + $0x34] sm:$0xf]
  %v4961 = vld [vmem:[%s4946 + $0x38] sm:$0xf]
  %v4977 = vunpack.c.l.b16 %v4947
  %v4978 = vunpack.c.l.b16 %v4948
  %v4979 = vunpack.c.l.b16 %v4949
  %v4980 = vunpack.c.l.b16 %v4950
  %v4981 = vunpack.c.l.b16 %v4951
  %v4982 = vunpack.c.l.b16 %v4952
  %v4983 = vunpack.c.l.b16 %v4953
  %v4984 = vunpack.c.l.b16 %v4954
  %v4985 = vunpack.c.l.b16 %v4955
  %v4986 = vunpack.c.l.b16 %v4956
  %v4987 = vunpack.c.l.b16 %v4957
  %v4988 = vunpack.c.l.b16 %v4958
  %v4989 = vunpack.c.l.b16 %v4959
  %v4990 = vunpack.c.l.b16 %v4960
  %v4991 = vunpack.c.l.b16 %v4961
  %v4992 = vpack.c.b16 %v4978, %v4977
  %v4993 = vpack.c.b16 %v4980, %v4979
  %v4994 = vpack.c.b16 %v4982, %v4981
  %v4995 = vpack.c.b16 %v4984, %v4983
  %v4996 = vpack.c.b16 %v4986, %v4985
  %v4997 = vpack.c.b16 %v4988, %v4987
  %v4998 = vpack.c.b16 %v4990, %v4989
  %v4999 = vpack.c.b16 %v4991, %v4991
  %v5008 = vsel %vm504, %v4942, 0
  %v5011 = vsel %vm504, %v4943, 0
  %v5014 = vsel %vm504, %v4944, 0
  %v5017 = vsel %vm504, %v4945, 0
  %v5020 = vsel %vm3730, %v4999, 0
  %5022 = vmatprep.subr.bf16.mxu0 0
  %5023 = vmatpush1.bf16.msra.mxu0 %v4992
  %5024 = vmatprep.subr.bf16.mxu0 0
  %5025 = vmatpush1.bf16.msra.mxu0 %v4993
  %5026 = vmatprep.subr.bf16.mxu0 0
  %5027 = vmatpush1.bf16.msra.mxu0 %v4994
  %5028 = vmatprep.subr.bf16.mxu0 0
  %5029 = vmatpush1.bf16.msra.mxu0 %v4995
  %5030 = vmatprep.subr.bf16.mxu0 0
  %5031 = vmatpush1.bf16.msra.mxu0 %v4996
  %5032 = vmatprep.subr.bf16.mxu0 0
  %5033 = vmatpush1.bf16.msra.mxu0 %v4997
  %5034 = vmatprep.subr.bf16.mxu0 0
  %5035 = vmatpush1.bf16.msra.mxu0 %v4998
  %5036 = vmatprep.subr.bf16.mxu0 0
  %5037 = vmatpush1.bf16.msra.mxu0 %v5020
  %5038 = vmatprep.subr.bf16.mxu0 0
  %5039 = vmatpush1.bf16.msra.mxu0 0
  %5040 = vmatprep.subr.bf16.mxu0 0
  %5041 = vmatpush1.bf16.msra.mxu0 0
  %5042 = vmatprep.subr.bf16.mxu0 0
  %5043 = vmatpush1.bf16.msra.mxu0 0
  %5044 = vmatprep.subr.bf16.mxu0 0
  %5045 = vmatpush1.bf16.msra.mxu0 0
  %5046 = vmatprep.subr.bf16.mxu0 0
  %5047 = vmatpush1.bf16.msra.mxu0 0
  %5048 = vmatprep.subr.bf16.mxu0 0
  %5049 = vmatpush1.bf16.msra.mxu0 0
  %5050 = vmatprep.subr.bf16.mxu0 0
  %5051 = vmatpush1.bf16.msra.mxu0 0
  %5052 = vmatprep.subr.bf16.mxu0 0
  %5053 = vmatpush1.bf16.msra.mxu0 0
  %5054 = vmatprep.mubr.bf16.mxu0 0
  %5055 = vmatmul.mubr.bf16.gmra.mrb[0].mxu0 %v5008
  %v5056 = vpop.f32.mrb[0].mxu0
  %v5057 = vadd.f32 0.0, %v5056
  %v5058 = vpop.f32.mrb[0].mxu0
  %v5059 = vpop.f32.mrb[0].mxu0
  %v5060 = vadd.f32 0.0, %v5059
  %v5061 = vpop.f32.mrb[0].mxu0
  %5062 = vmatprep.mubr.bf16.mxu0 0
  %5063 = vmatmul.mubr.bf16.gmra.mrb[0].mxu0 %v5011
  %v5064 = vpop.f32.mrb[0].mxu0
  %v5065 = vadd.f32 0.0, %v5064
  %v5066 = vpop.f32.mrb[0].mxu0
  %v5067 = vpop.f32.mrb[0].mxu0
  %v5068 = vadd.f32 0.0, %v5067
  %v5069 = vpop.f32.mrb[0].mxu0
  %5070 = vmatprep.mubr.bf16.mxu0 0
  %5071 = vmatmul.mubr.bf16.gmra.mrb[0].mxu0 %v5014
  %v5072 = vpop.f32.mrb[0].mxu0
  %v5073 = vadd.f32 0.0, %v5072
  %v5074 = vpop.f32.mrb[0].mxu0
  %v5075 = vpop.f32.mrb[0].mxu0
  %v5076 = vadd.f32 0.0, %v5075
  %v5077 = vpop.f32.mrb[0].mxu0
  %5078 = vmatprep.mubr.bf16.mxu0 0
  %5079 = vmatmul.mubr.bf16.gmra.mrb[0].mxu0 %v5017
  %v5080 = vpop.f32.mrb[0].mxu0
  %v5081 = vadd.f32 0.0, %v5080
  %v5082 = vpop.f32.mrb[0].mxu0
  %v5083 = vpop.f32.mrb[0].mxu0
  %v5084 = vadd.f32 0.0, %v5083
  %v5085 = vpop.f32.mrb[0].mxu0
  %5086 = vdwg.mxu0
  %s5087 = scalar_lea.vmem %s5, 240
  %v5088 = vld [vmem:[%s5087] sm:$0xf]
  %v5089 = vld [vmem:[%s5087 + $0x4] sm:$0xf]
  %v5090 = vld [vmem:[%s5087 + $0x8] sm:$0xf]
  %v5091 = vld [vmem:[%s5087 + $0xc] sm:$0xf]
  %v5092 = vld [vmem:[%s5087 + $0x10] sm:$0xf]
  %v5093 = vld [vmem:[%s5087 + $0x14] sm:$0xf]
  %v5094 = vld [vmem:[%s5087 + $0x18] sm:$0xf]
  %v5095 = vld [vmem:[%s5087 + $0x1c] sm:$0xf]
  %v5096 = vld [vmem:[%s5087 + $0x20] sm:$0xf]
  %v5097 = vld [vmem:[%s5087 + $0x24] sm:$0xf]
  %v5098 = vld [vmem:[%s5087 + $0x28] sm:$0xf]
  %v5099 = vld [vmem:[%s5087 + $0x2c] sm:$0xf]
  %v5100 = vld [vmem:[%s5087 + $0x30] sm:$0xf]
  %v5101 = vld [vmem:[%s5087 + $0x34] sm:$0xf]
  %v5102 = vld [vmem:[%s5087 + $0x38] sm:$0xf]
  %v5118 = vunpack.c.l.b16 %v5088
  %v5119 = vunpack.c.l.b16 %v5089
  %v5120 = vunpack.c.l.b16 %v5090
  %v5121 = vunpack.c.l.b16 %v5091
  %v5122 = vunpack.c.l.b16 %v5092
  %v5123 = vunpack.c.l.b16 %v5093
  %v5124 = vunpack.c.l.b16 %v5094
  %v5125 = vunpack.c.l.b16 %v5095
  %v5126 = vunpack.c.l.b16 %v5096
  %v5127 = vunpack.c.l.b16 %v5097
  %v5128 = vunpack.c.l.b16 %v5098
  %v5129 = vunpack.c.l.b16 %v5099
  %v5130 = vunpack.c.l.b16 %v5100
  %v5131 = vunpack.c.l.b16 %v5101
  %v5132 = vunpack.c.l.b16 %v5102
  %v5133 = vpack.c.b16 %v5119, %v5118
  %v5134 = vpack.c.b16 %v5121, %v5120
  %v5135 = vpack.c.b16 %v5123, %v5122
  %v5136 = vpack.c.b16 %v5125, %v5124
  %v5137 = vpack.c.b16 %v5127, %v5126
  %v5138 = vpack.c.b16 %v5129, %v5128
  %v5139 = vpack.c.b16 %v5131, %v5130
  %v5140 = vpack.c.b16 %v5132, %v5132
  %v5149 = vsel %vm3730, %v5140, 0
  %5151 = vmatprep.subr.bf16.mxu0 0
  %5152 = vmatpush1.bf16.msra.mxu0 %v5133
  %5153 = vmatprep.subr.bf16.mxu0 0
  %5154 = vmatpush1.bf16.msra.mxu0 %v5134
  %5155 = vmatprep.subr.bf16.mxu0 0
  %5156 = vmatpush1.bf16.msra.mxu0 %v5135
  %5157 = vmatprep.subr.bf16.mxu0 0
  %5158 = vmatpush1.bf16.msra.mxu0 %v5136
  %5159 = vmatprep.subr.bf16.mxu0 0
  %5160 = vmatpush1.bf16.msra.mxu0 %v5137
  %5161 = vmatprep.subr.bf16.mxu0 0
  %5162 = vmatpush1.bf16.msra.mxu0 %v5138
  %5163 = vmatprep.subr.bf16.mxu0 0
  %5164 = vmatpush1.bf16.msra.mxu0 %v5139
  %5165 = vmatprep.subr.bf16.mxu0 0
  %5166 = vmatpush1.bf16.msra.mxu0 %v5149
  %5167 = vmatprep.subr.bf16.mxu0 0
  %5168 = vmatpush1.bf16.msra.mxu0 0
  %5169 = vmatprep.subr.bf16.mxu0 0
  %5170 = vmatpush1.bf16.msra.mxu0 0
  %5171 = vmatprep.subr.bf16.mxu0 0
  %5172 = vmatpush1.bf16.msra.mxu0 0
  %5173 = vmatprep.subr.bf16.mxu0 0
  %5174 = vmatpush1.bf16.msra.mxu0 0
  %5175 = vmatprep.subr.bf16.mxu0 0
  %5176 = vmatpush1.bf16.msra.mxu0 0
  %5177 = vmatprep.subr.bf16.mxu0 0
  %5178 = vmatpush1.bf16.msra.mxu0 0
  %5179 = vmatprep.subr.bf16.mxu0 0
  %5180 = vmatpush1.bf16.msra.mxu0 0
  %5181 = vmatprep.subr.bf16.mxu0 0
  %5182 = vmatpush1.bf16.msra.mxu0 0
  %5183 = vmatprep.mubr.bf16.mxu0 0
  %5184 = vmatmul.mubr.bf16.gmra.mrb[0].mxu0 %v5008
  %v5185 = vpop.f32.mrb[0].mxu0
  %v5186 = vadd.f32 0.0, %v5185
  %v5187 = vpop.f32.mrb[0].mxu0
  %v5188 = vpop.f32.mrb[0].mxu0
  %v5189 = vadd.f32 0.0, %v5188
  %v5190 = vpop.f32.mrb[0].mxu0
  %5191 = vmatprep.mubr.bf16.mxu0 0
  %5192 = vmatmul.mubr.bf16.gmra.mrb[0].mxu0 %v5011
  %v5193 = vpop.f32.mrb[0].mxu0
  %v5194 = vadd.f32 0.0, %v5193
  %v5195 = vpop.f32.mrb[0].mxu0
  %v5196 = vpop.f32.mrb[0].mxu0
  %v5197 = vadd.f32 0.0, %v5196
  %v5198 = vpop.f32.mrb[0].mxu0
  %5199 = vmatprep.mubr.bf16.mxu0 0
  %5200 = vmatmul.mubr.bf16.gmra.mrb[0].mxu0 %v5014
  %v5201 = vpop.f32.mrb[0].mxu0
  %v5202 = vadd.f32 0.0, %v5201
  %v5203 = vpop.f32.mrb[0].mxu0
  %v5204 = vpop.f32.mrb[0].mxu0
  %v5205 = vadd.f32 0.0, %v5204
  %v5206 = vpop.f32.mrb[0].mxu0
  %5207 = vmatprep.mubr.bf16.mxu0 0
  %5208 = vmatmul.mubr.bf16.gmra.mrb[0].mxu0 %v5017
  %v5209 = vpop.f32.mrb[0].mxu0
  %v5210 = vadd.f32 0.0, %v5209
  %v5211 = vpop.f32.mrb[0].mxu0
  %v5212 = vpop.f32.mrb[0].mxu0
  %v5213 = vadd.f32 0.0, %v5212
  %v5214 = vpop.f32.mrb[0].mxu0
  %5215 = vdwg.mxu0
  %v5216 = vld [vmem:[#allocation6] sm:$0xff]
  %v5217 = vld [vmem:[#allocation6 + $0x8] sm:$0xff]
  %v5218 = vld [vmem:[#allocation6 + $0x10] sm:$0xff]
  %v5219 = vld [vmem:[#allocation6 + $0x18] sm:$0xff]
  %v5220 = vld [vmem:[#allocation6 + $0x20] sm:$0xff]
  %v5221 = vld [vmem:[#allocation6 + $0x28] sm:$0xff]
  %v5222 = vld [vmem:[#allocation6 + $0x30] sm:$0xff]
  %v5223 = vld [vmem:[#allocation6 + $0x38] sm:$0xff]
  %v5224 = vadd.f32 %v5216, %v5057
  %v5225 = vadd.f32 %v5217, %v5060
  %v5226 = vadd.f32 %v5218, %v5065
  %v5227 = vadd.f32 %v5219, %v5068
  %v5228 = vadd.f32 %v5220, %v5073
  %v5229 = vadd.f32 %v5221, %v5076
  %v5230 = vadd.f32 %v5222, %v5081
  %v5231 = vadd.f32 %v5223, %v5084
  %5232 = vst.msk [vmem:[#allocation6] sm:$0xff] %vm3927, %v5224
  %5233 = vst.msk [vmem:[#allocation6 + $0x8] sm:$0xff] %vm3927, %v5225
  %5234 = vst.msk [vmem:[#allocation6 + $0x10] sm:$0xff] %vm3927, %v5226
  %5235 = vst.msk [vmem:[#allocation6 + $0x18] sm:$0xff] %vm3927, %v5227
  %5236 = vst.msk [vmem:[#allocation6 + $0x20] sm:$0xff] %vm3927, %v5228
  %5237 = vst.msk [vmem:[#allocation6 + $0x28] sm:$0xff] %vm3927, %v5229
  %5238 = vst.msk [vmem:[#allocation6 + $0x30] sm:$0xff] %vm3927, %v5230
  %5239 = vst.msk [vmem:[#allocation6 + $0x38] sm:$0xff] %vm3927, %v5231
  %v5240 = vld [vmem:[#allocation7] sm:$0xff]
  %v5241 = vld [vmem:[#allocation7 + $0x8] sm:$0xff]
  %v5242 = vld [vmem:[#allocation7 + $0x10] sm:$0xff]
  %v5243 = vld [vmem:[#allocation7 + $0x18] sm:$0xff]
  %v5244 = vld [vmem:[#allocation7 + $0x20] sm:$0xff]
  %v5245 = vld [vmem:[#allocation7 + $0x28] sm:$0xff]
  %v5246 = vld [vmem:[#allocation7 + $0x30] sm:$0xff]
  %v5247 = vld [vmem:[#allocation7 + $0x38] sm:$0xff]
  %v5248 = vadd.f32 %v5240, %v5186
  %v5249 = vadd.f32 %v5241, %v5189
  %v5250 = vadd.f32 %v5242, %v5194
  %v5251 = vadd.f32 %v5243, %v5197
  %v5252 = vadd.f32 %v5244, %v5202
  %v5253 = vadd.f32 %v5245, %v5205
  %v5254 = vadd.f32 %v5246, %v5210
  %v5255 = vadd.f32 %v5247, %v5213
  %5256 = vst.msk [vmem:[#allocation7] sm:$0xff] %vm3927, %v5248
  %5257 = vst.msk [vmem:[#allocation7 + $0x8] sm:$0xff] %vm3927, %v5249
  %5258 = vst.msk [vmem:[#allocation7 + $0x10] sm:$0xff] %vm3927, %v5250
  %5259 = vst.msk [vmem:[#allocation7 + $0x18] sm:$0xff] %vm3927, %v5251
  %5260 = vst.msk [vmem:[#allocation7 + $0x20] sm:$0xff] %vm3927, %v5252
  %5261 = vst.msk [vmem:[#allocation7 + $0x28] sm:$0xff] %vm3927, %v5253
  %5262 = vst.msk [vmem:[#allocation7 + $0x30] sm:$0xff] %vm3927, %v5254
  %5263 = vst.msk [vmem:[#allocation7 + $0x38] sm:$0xff] %vm3927, %v5255
  %v5264 = vld [vmem:[#allocation6] sm:$0x1]
  %v5265 = vld [vmem:[#allocation6 + $0x8] sm:$0x1]
  %v5266 = vld [vmem:[#allocation6 + $0x10] sm:$0x1]
  %v5267 = vld [vmem:[#allocation6 + $0x18] sm:$0x1]
  %v5268 = vld [vmem:[#allocation6 + $0x20] sm:$0x1]
  %v5269 = vld [vmem:[#allocation6 + $0x28] sm:$0x1]
  %v5270 = vld [vmem:[#allocation6 + $0x30] sm:$0x1]
  %v5271 = vld [vmem:[#allocation6 + $0x38] sm:$0x1]
  %v5272 = vld [vmem:[#allocation7] sm:$0x1]
  %v5273 = vld [vmem:[#allocation7 + $0x8] sm:$0x1]
  %v5274 = vld [vmem:[#allocation7 + $0x10] sm:$0x1]
  %v5275 = vld [vmem:[#allocation7 + $0x18] sm:$0x1]
  %v5276 = vld [vmem:[#allocation7 + $0x20] sm:$0x1]
  %v5277 = vld [vmem:[#allocation7 + $0x28] sm:$0x1]
  %v5278 = vld [vmem:[#allocation7 + $0x30] sm:$0x1]
  %v5279 = vld [vmem:[#allocation7 + $0x38] sm:$0x1]
  %v5280 = vmax.f32 %v5264, %v5272
  %v5281 = vmax.f32 %v5265, %v5273
  %v5282 = vmax.f32 %v5266, %v5274
  %v5283 = vmax.f32 %v5267, %v5275
  %v5284 = vmax.f32 %v5268, %v5276
  %v5285 = vmax.f32 %v5269, %v5277
  %v5286 = vmax.f32 %v5270, %v5278
  %v5287 = vmax.f32 %v5271, %v5279
  %v5288 = vld [vmem:[#allocation6 + $0x1] sm:$0x1]
  %v5289 = vld [vmem:[#allocation6 + $0x9] sm:$0x1]
  %v5290 = vld [vmem:[#allocation6 + $0x11] sm:$0x1]
  %v5291 = vld [vmem:[#allocation6 + $0x19] sm:$0x1]
  %v5292 = vld [vmem:[#allocation6 + $0x21] sm:$0x1]
  %v5293 = vld [vmem:[#allocation6 + $0x29] sm:$0x1]
  %v5294 = vld [vmem:[#allocation6 + $0x31] sm:$0x1]
  %v5295 = vld [vmem:[#allocation6 + $0x39] sm:$0x1]
  %v5296 = vld [vmem:[#allocation7 + $0x1] sm:$0x1]
  %v5297 = vld [vmem:[#allocation7 + $0x9] sm:$0x1]
  %v5298 = vld [vmem:[#allocation7 + $0x11] sm:$0x1]
  %v5299 = vld [vmem:[#allocation7 + $0x19] sm:$0x1]
  %v5300 = vld [vmem:[#allocation7 + $0x21] sm:$0x1]
  %v5301 = vld [vmem:[#allocation7 + $0x29] sm:$0x1]
  %v5302 = vld [vmem:[#allocation7 + $0x31] sm:$0x1]
  %v5303 = vld [vmem:[#allocation7 + $0x39] sm:$0x1]
  %v5304 = vmax.f32 %v5288, %v5296
  %v5305 = vmax.f32 %v5289, %v5297
  %v5306 = vmax.f32 %v5290, %v5298
  %v5307 = vmax.f32 %v5291, %v5299
  %v5308 = vmax.f32 %v5292, %v5300
  %v5309 = vmax.f32 %v5293, %v5301
  %v5310 = vmax.f32 %v5294, %v5302
  %v5311 = vmax.f32 %v5295, %v5303
  %v5312 = vmax.f32 %v5280, %v5304
  %v5313 = vmax.f32 %v5281, %v5305
  %v5314 = vmax.f32 %v5282, %v5306
  %v5315 = vmax.f32 %v5283, %v5307
  %v5316 = vmax.f32 %v5284, %v5308
  %v5317 = vmax.f32 %v5285, %v5309
  %v5318 = vmax.f32 %v5286, %v5310
  %v5319 = vmax.f32 %v5287, %v5311
  %v5320 = vld [vmem:[%s6] sm:$0x1]
  %v5322 = vlaneseq
  %v5323 = vshrl.u32 %v5322, 7
  %v5324 = vsub.s32 0, %v5323
  %v5325 = vrot.slane %v5320, %v5324
  %v5327 = vadd.f32 %v5312, %v5325
  %v5328 = vadd.f32 %v5313, %v5325
  %v5329 = vadd.f32 %v5314, %v5325
  %v5330 = vadd.f32 %v5315, %v5325
  %v5331 = vadd.f32 %v5316, %v5325
  %v5332 = vadd.f32 %v5317, %v5325
  %v5333 = vadd.f32 %v5318, %v5325
  %v5334 = vadd.f32 %v5319, %v5325
  %v5335 = vmax.f32 %v5327, 0.0
  %v5336 = vmax.f32 %v5328, 0.0
  %v5337 = vmax.f32 %v5329, 0.0
  %v5338 = vmax.f32 %v5330, 0.0
  %v5339 = vmax.f32 %v5331, 0.0
  %v5340 = vmax.f32 %v5332, 0.0
  %v5341 = vmax.f32 %v5333, 0.0
  %v5342 = vmax.f32 %v5334, 0.0
  %v5343 = vpack.c.bf16 %v5335, %v5335
  %v5344 = vpack.c.bf16 %v5336, %v5336
  %v5345 = vpack.c.bf16 %v5337, %v5337
  %v5346 = vpack.c.bf16 %v5338, %v5338
  %v5347 = vpack.c.bf16 %v5339, %v5339
  %v5348 = vpack.c.bf16 %v5340, %v5340
  %v5349 = vpack.c.bf16 %v5341, %v5341
  %v5350 = vpack.c.bf16 %v5342, %v5342
  %v5351 = vld [vmem:[%s7] sm:$0xf]
  %v5352 = vld [vmem:[%s7 + $0x4] sm:$0xf]
  %v5353 = vld [vmem:[%s7 + $0x8] sm:$0xf]
  %v5354 = vld [vmem:[%s7 + $0xc] sm:$0xf]
  %v5355 = vld [vmem:[%s7 + $0x10] sm:$0xf]
  %v5356 = vld [vmem:[%s7 + $0x14] sm:$0xf]
  %v5357 = vld [vmem:[%s7 + $0x18] sm:$0xf]
  %v5358 = vld [vmem:[%s7 + $0x1c] sm:$0xf]
  %v5359 = vld [vmem:[%s7 + $0x20] sm:$0xf]
  %v5360 = vld [vmem:[%s7 + $0x24] sm:$0xf]
  %v5369 = vunpack.c.l.b16 %v5343
  %v5370 = vunpack.c.l.b16 %v5344
  %v5371 = vunpack.c.l.b16 %v5345
  %v5372 = vunpack.c.l.b16 %v5346
  %v5373 = vunpack.c.l.b16 %v5347
  %v5374 = vunpack.c.l.b16 %v5348
  %v5375 = vunpack.c.l.b16 %v5349
  %v5376 = vunpack.c.l.b16 %v5350
  %v5377 = vrot.slane %v5370, 7
  %vm5378 = vcmask 1041409
  %v5379 = vsel %vm5378, %v5377, %v5369
  %v5380 = vrot.slane %v5371, 6
  %vm5381 = vcmask 1042434
  %v5382 = vsel %vm5381, %v5380, %v5379
  %v5383 = vrot.slane %v5372, 5
  %vm5384 = vcmask 1043459
  %v5385 = vsel %vm5384, %v5383, %v5382
  %v5386 = vrot.slane %v5373, 4
  %vm5387 = vcmask 1044484
  %v5388 = vsel %vm5387, %v5386, %v5385
  %v5389 = vrot.slane %v5374, 3
  %vm5390 = vcmask 1045509
  %v5391 = vsel %vm5390, %v5389, %v5388
  %v5392 = vrot.slane %v5375, 2
  %vm5393 = vcmask 1046534
  %v5394 = vsel %vm5393, %v5392, %v5391
  %v5395 = vrot.slane %v5376, 1
  %vm5396 = vcmask 1047559
  %v5397 = vsel %vm5396, %v5395, %v5394
  %v5398 = vpack.c.b16 %v5397, %v5397
  %v5409 = vunpack.c.l.b16 %v5351
  %v5410 = vunpack.c.l.b16 %v5352
  %v5411 = vunpack.c.l.b16 %v5353
  %v5412 = vunpack.c.l.b16 %v5354
  %v5413 = vunpack.c.l.b16 %v5355
  %v5414 = vunpack.c.l.b16 %v5356
  %v5415 = vunpack.c.l.b16 %v5357
  %v5416 = vunpack.c.l.b16 %v5358
  %v5417 = vunpack.c.l.b16 %v5359
  %v5418 = vunpack.c.l.b16 %v5360
  %v5419 = vpack.c.b16 %v5410, %v5409
  %v5420 = vpack.c.b16 %v5412, %v5411
  %v5421 = vpack.c.b16 %v5414, %v5413
  %v5422 = vpack.c.b16 %v5416, %v5415
  %v5423 = vpack.c.b16 %v5418, %v5417
  %v5430 = vsel %vm3927, %v5398, 0
  %5432 = vmatprep.subr.bf16.mxu0 0
  %5433 = vmatpush1.bf16.msra.mxu0 %v5419
  %5434 = vmatprep.subr.bf16.mxu0 0
  %5435 = vmatpush1.bf16.msra.mxu0 %v5420
  %5436 = vmatprep.subr.bf16.mxu0 0
  %5437 = vmatpush1.bf16.msra.mxu0 %v5421
  %5438 = vmatprep.subr.bf16.mxu0 0
  %5439 = vmatpush1.bf16.msra.mxu0 %v5422
  %5440 = vmatprep.subr.bf16.mxu0 0
  %5441 = vmatpush1.bf16.msra.mxu0 %v5423
  %5442 = vmatprep.subr.bf16.mxu0 0
  %5443 = vmatpush1.bf16.msra.mxu0 0
  %5444 = vmatprep.subr.bf16.mxu0 0
  %5445 = vmatpush1.bf16.msra.mxu0 0
  %5446 = vmatprep.subr.bf16.mxu0 0
  %5447 = vmatpush1.bf16.msra.mxu0 0
  %5448 = vmatprep.subr.bf16.mxu0 0
  %5449 = vmatpush1.bf16.msra.mxu0 0
  %5450 = vmatprep.subr.bf16.mxu0 0
  %5451 = vmatpush1.bf16.msra.mxu0 0
  %5452 = vmatprep.subr.bf16.mxu0 0
  %5453 = vmatpush1.bf16.msra.mxu0 0
  %5454 = vmatprep.subr.bf16.mxu0 0
  %5455 = vmatpush1.bf16.msra.mxu0 0
  %5456 = vmatprep.subr.bf16.mxu0 0
  %5457 = vmatpush1.bf16.msra.mxu0 0
  %5458 = vmatprep.subr.bf16.mxu0 0
  %5459 = vmatpush1.bf16.msra.mxu0 0
  %5460 = vmatprep.subr.bf16.mxu0 0
  %5461 = vmatpush1.bf16.msra.mxu0 0
  %5462 = vmatprep.subr.bf16.mxu0 0
  %5463 = vmatpush1.bf16.msra.mxu0 0
  %5464 = vmatprep.mubr.bf16.mxu0 0
  %5465 = vmatmul.mubr.bf16.gmra.mrb[0].mxu0 %v5430
  %v5466 = vpop.f32.mrb[0].mxu0
  %v5467 = vadd.f32 0.0, %v5466
  %v5468 = vpop.f32.mrb[0].mxu0
  %v5469 = vpop.f32.mrb[0].mxu0
  %v5470 = vpop.f32.mrb[0].mxu0
  %5471 = vdwg.mxu0
  %vm5472 = vcmask 408576
  %5473 = vst.msk [vmem:[#allocation8] sm:$0xff] %vm5472, %v5467
  %v5474 = vld [vmem:[#allocation6 + $0x2] sm:$0x1]
  %v5475 = vld [vmem:[#allocation6 + $0xa] sm:$0x1]
  %v5476 = vld [vmem:[#allocation6 + $0x12] sm:$0x1]
  %v5477 = vld [vmem:[#allocation6 + $0x1a] sm:$0x1]
  %v5478 = vld [vmem:[#allocation6 + $0x22] sm:$0x1]
  %v5479 = vld [vmem:[#allocation6 + $0x2a] sm:$0x1]
  %v5480 = vld [vmem:[#allocation6 + $0x32] sm:$0x1]
  %v5481 = vld [vmem:[#allocation6 + $0x3a] sm:$0x1]
  %v5482 = vld [vmem:[#allocation7 + $0x2] sm:$0x1]
  %v5483 = vld [vmem:[#allocation7 + $0xa] sm:$0x1]
  %v5484 = vld [vmem:[#allocation7 + $0x12] sm:$0x1]
  %v5485 = vld [vmem:[#allocation7 + $0x1a] sm:$0x1]
  %v5486 = vld [vmem:[#allocation7 + $0x22] sm:$0x1]
  %v5487 = vld [vmem:[#allocation7 + $0x2a] sm:$0x1]
  %v5488 = vld [vmem:[#allocation7 + $0x32] sm:$0x1]
  %v5489 = vld [vmem:[#allocation7 + $0x3a] sm:$0x1]
  %v5490 = vmax.f32 %v5474, %v5482
  %v5491 = vmax.f32 %v5475, %v5483
  %v5492 = vmax.f32 %v5476, %v5484
  %v5493 = vmax.f32 %v5477, %v5485
  %v5494 = vmax.f32 %v5478, %v5486
  %v5495 = vmax.f32 %v5479, %v5487
  %v5496 = vmax.f32 %v5480, %v5488
  %v5497 = vmax.f32 %v5481, %v5489
  %v5498 = vld [vmem:[#allocation6 + $0x3] sm:$0x1]
  %v5499 = vld [vmem:[#allocation6 + $0xb] sm:$0x1]
  %v5500 = vld [vmem:[#allocation6 + $0x13] sm:$0x1]
  %v5501 = vld [vmem:[#allocation6 + $0x1b] sm:$0x1]
  %v5502 = vld [vmem:[#allocation6 + $0x23] sm:$0x1]
  %v5503 = vld [vmem:[#allocation6 + $0x2b] sm:$0x1]
  %v5504 = vld [vmem:[#allocation6 + $0x33] sm:$0x1]
  %v5505 = vld [vmem:[#allocation6 + $0x3b] sm:$0x1]
  %v5506 = vld [vmem:[#allocation7 + $0x3] sm:$0x1]
  %v5507 = vld [vmem:[#allocation7 + $0xb] sm:$0x1]
  %v5508 = vld [vmem:[#allocation7 + $0x13] sm:$0x1]
  %v5509 = vld [vmem:[#allocation7 + $0x1b] sm:$0x1]
  %v5510 = vld [vmem:[#allocation7 + $0x23] sm:$0x1]
  %v5511 = vld [vmem:[#allocation7 + $0x2b] sm:$0x1]
  %v5512 = vld [vmem:[#allocation7 + $0x33] sm:$0x1]
  %v5513 = vld [vmem:[#allocation7 + $0x3b] sm:$0x1]
  %v5514 = vmax.f32 %v5498, %v5506
  %v5515 = vmax.f32 %v5499, %v5507
  %v5516 = vmax.f32 %v5500, %v5508
  %v5517 = vmax.f32 %v5501, %v5509
  %v5518 = vmax.f32 %v5502, %v5510
  %v5519 = vmax.f32 %v5503, %v5511
  %v5520 = vmax.f32 %v5504, %v5512
  %v5521 = vmax.f32 %v5505, %v5513
  %v5522 = vmax.f32 %v5490, %v5514
  %v5523 = vmax.f32 %v5491, %v5515
  %v5524 = vmax.f32 %v5492, %v5516
  %v5525 = vmax.f32 %v5493, %v5517
  %v5526 = vmax.f32 %v5494, %v5518
  %v5527 = vmax.f32 %v5495, %v5519
  %v5528 = vmax.f32 %v5496, %v5520
  %v5529 = vmax.f32 %v5497, %v5521
  %v5530 = vld [vmem:[%s6] sm:$0x1]
  %v5532 = vlaneseq
  %v5533 = vshrl.u32 %v5532, 7
  %v5534 = vsub.s32 0, %v5533
  %v5535 = vrot.slane %v5530, %v5534
  %v5537 = vadd.f32 %v5522, %v5535
  %v5538 = vadd.f32 %v5523, %v5535
  %v5539 = vadd.f32 %v5524, %v5535
  %v5540 = vadd.f32 %v5525, %v5535
  %v5541 = vadd.f32 %v5526, %v5535
  %v5542 = vadd.f32 %v5527, %v5535
  %v5543 = vadd.f32 %v5528, %v5535
  %v5544 = vadd.f32 %v5529, %v5535
  %v5545 = vmax.f32 %v5537, 0.0
  %v5546 = vmax.f32 %v5538, 0.0
  %v5547 = vmax.f32 %v5539, 0.0
  %v5548 = vmax.f32 %v5540, 0.0
  %v5549 = vmax.f32 %v5541, 0.0
  %v5550 = vmax.f32 %v5542, 0.0
  %v5551 = vmax.f32 %v5543, 0.0
  %v5552 = vmax.f32 %v5544, 0.0
  %v5553 = vpack.c.bf16 %v5545, %v5545
  %v5554 = vpack.c.bf16 %v5546, %v5546
  %v5555 = vpack.c.bf16 %v5547, %v5547
  %v5556 = vpack.c.bf16 %v5548, %v5548
  %v5557 = vpack.c.bf16 %v5549, %v5549
  %v5558 = vpack.c.bf16 %v5550, %v5550
  %v5559 = vpack.c.bf16 %v5551, %v5551
  %v5560 = vpack.c.bf16 %v5552, %v5552
  %s5561 = scalar_lea.vmem %s7, 40
  %v5562 = vld [vmem:[%s5561] sm:$0xf]
  %v5563 = vld [vmem:[%s5561 + $0x4] sm:$0xf]
  %v5564 = vld [vmem:[%s5561 + $0x8] sm:$0xf]
  %v5565 = vld [vmem:[%s5561 + $0xc] sm:$0xf]
  %v5566 = vld [vmem:[%s5561 + $0x10] sm:$0xf]
  %v5567 = vld [vmem:[%s5561 + $0x14] sm:$0xf]
  %v5568 = vld [vmem:[%s5561 + $0x18] sm:$0xf]
  %v5569 = vld [vmem:[%s5561 + $0x1c] sm:$0xf]
  %v5570 = vld [vmem:[%s5561 + $0x20] sm:$0xf]
  %v5571 = vld [vmem:[%s5561 + $0x24] sm:$0xf]
  %v5580 = vunpack.c.l.b16 %v5553
  %v5581 = vunpack.c.l.b16 %v5554
  %v5582 = vunpack.c.l.b16 %v5555
  %v5583 = vunpack.c.l.b16 %v5556
  %v5584 = vunpack.c.l.b16 %v5557
  %v5585 = vunpack.c.l.b16 %v5558
  %v5586 = vunpack.c.l.b16 %v5559
  %v5587 = vunpack.c.l.b16 %v5560
  %v5588 = vrot.slane %v5581, 7
  %v5589 = vsel %vm5378, %v5588, %v5580
  %v5590 = vrot.slane %v5582, 6
  %v5591 = vsel %vm5381, %v5590, %v5589
  %v5592 = vrot.slane %v5583, 5
  %v5593 = vsel %vm5384, %v5592, %v5591
  %v5594 = vrot.slane %v5584, 4
  %v5595 = vsel %vm5387, %v5594, %v5593
  %v5596 = vrot.slane %v5585, 3
  %v5597 = vsel %vm5390, %v5596, %v5595
  %v5598 = vrot.slane %v5586, 2
  %v5599 = vsel %vm5393, %v5598, %v5597
  %v5600 = vrot.slane %v5587, 1
  %v5601 = vsel %vm5396, %v5600, %v5599
  %v5602 = vpack.c.b16 %v5601, %v5601
  %v5613 = vunpack.c.l.b16 %v5562
  %v5614 = vunpack.c.l.b16 %v5563
  %v5615 = vunpack.c.l.b16 %v5564
  %v5616 = vunpack.c.l.b16 %v5565
  %v5617 = vunpack.c.l.b16 %v5566
  %v5618 = vunpack.c.l.b16 %v5567
  %v5619 = vunpack.c.l.b16 %v5568
  %v5620 = vunpack.c.l.b16 %v5569
  %v5621 = vunpack.c.l.b16 %v5570
  %v5622 = vunpack.c.l.b16 %v5571
  %v5623 = vpack.c.b16 %v5614, %v5613
  %v5624 = vpack.c.b16 %v5616, %v5615
  %v5625 = vpack.c.b16 %v5618, %v5617
  %v5626 = vpack.c.b16 %v5620, %v5619
  %v5627 = vpack.c.b16 %v5622, %v5621
  %v5634 = vsel %vm3927, %v5602, 0
  %5636 = vmatprep.subr.bf16.mxu0 0
  %5637 = vmatpush1.bf16.msra.mxu0 %v5623
  %5638 = vmatprep.subr.bf16.mxu0 0
  %5639 = vmatpush1.bf16.msra.mxu0 %v5624
  %5640 = vmatprep.subr.bf16.mxu0 0
  %5641 = vmatpush1.bf16.msra.mxu0 %v5625
  %5642 = vmatprep.subr.bf16.mxu0 0
  %5643 = vmatpush1.bf16.msra.mxu0 %v5626
  %5644 = vmatprep.subr.bf16.mxu0 0
  %5645 = vmatpush1.bf16.msra.mxu0 %v5627
  %5646 = vmatprep.subr.bf16.mxu0 0
  %5647 = vmatpush1.bf16.msra.mxu0 0
  %5648 = vmatprep.subr.bf16.mxu0 0
  %5649 = vmatpush1.bf16.msra.mxu0 0
  %5650 = vmatprep.subr.bf16.mxu0 0
  %5651 = vmatpush1.bf16.msra.mxu0 0
  %5652 = vmatprep.subr.bf16.mxu0 0
  %5653 = vmatpush1.bf16.msra.mxu0 0
  %5654 = vmatprep.subr.bf16.mxu0 0
  %5655 = vmatpush1.bf16.msra.mxu0 0
  %5656 = vmatprep.subr.bf16.mxu0 0
  %5657 = vmatpush1.bf16.msra.mxu0 0
  %5658 = vmatprep.subr.bf16.mxu0 0
  %5659 = vmatpush1.bf16.msra.mxu0 0
  %5660 = vmatprep.subr.bf16.mxu0 0
  %5661 = vmatpush1.bf16.msra.mxu0 0
  %5662 = vmatprep.subr.bf16.mxu0 0
  %5663 = vmatpush1.bf16.msra.mxu0 0
  %5664 = vmatprep.subr.bf16.mxu0 0
  %5665 = vmatpush1.bf16.msra.mxu0 0
  %5666 = vmatprep.subr.bf16.mxu0 0
  %5667 = vmatpush1.bf16.msra.mxu0 0
  %5668 = vmatprep.mubr.bf16.mxu0 0
  %5669 = vmatmul.mubr.bf16.gmra.mrb[0].mxu0 %v5634
  %v5670 = vpop.f32.mrb[0].mxu0
  %v5671 = vadd.f32 0.0, %v5670
  %v5672 = vpop.f32.mrb[0].mxu0
  %v5673 = vpop.f32.mrb[0].mxu0
  %v5674 = vpop.f32.mrb[0].mxu0
  %5675 = vdwg.mxu0
  %v5676 = vld [vmem:[#allocation8] sm:$0xff]
  %v5677 = vadd.f32 %v5676, %v5671
  %5678 = vst.msk [vmem:[#allocation8] sm:$0xff] %vm5472, %v5677
  %v5679 = vld [vmem:[#allocation6 + $0x4] sm:$0x1]
  %v5680 = vld [vmem:[#allocation6 + $0xc] sm:$0x1]
  %v5681 = vld [vmem:[#allocation6 + $0x14] sm:$0x1]
  %v5682 = vld [vmem:[#allocation6 + $0x1c] sm:$0x1]
  %v5683 = vld [vmem:[#allocation6 + $0x24] sm:$0x1]
  %v5684 = vld [vmem:[#allocation6 + $0x2c] sm:$0x1]
  %v5685 = vld [vmem:[#allocation6 + $0x34] sm:$0x1]
  %v5686 = vld [vmem:[#allocation6 + $0x3c] sm:$0x1]
  %v5687 = vld [vmem:[#allocation7 + $0x4] sm:$0x1]
  %v5688 = vld [vmem:[#allocation7 + $0xc] sm:$0x1]
  %v5689 = vld [vmem:[#allocation7 + $0x14] sm:$0x1]
  %v5690 = vld [vmem:[#allocation7 + $0x1c] sm:$0x1]
  %v5691 = vld [vmem:[#allocation7 + $0x24] sm:$0x1]
  %v5692 = vld [vmem:[#allocation7 + $0x2c] sm:$0x1]
  %v5693 = vld [vmem:[#allocation7 + $0x34] sm:$0x1]
  %v5694 = vld [vmem:[#allocation7 + $0x3c] sm:$0x1]
  %v5695 = vmax.f32 %v5679, %v5687
  %v5696 = vmax.f32 %v5680, %v5688
  %v5697 = vmax.f32 %v5681, %v5689
  %v5698 = vmax.f32 %v5682, %v5690
  %v5699 = vmax.f32 %v5683, %v5691
  %v5700 = vmax.f32 %v5684, %v5692
  %v5701 = vmax.f32 %v5685, %v5693
  %v5702 = vmax.f32 %v5686, %v5694
  %v5703 = vld [vmem:[#allocation6 + $0x5] sm:$0x1]
  %v5704 = vld [vmem:[#allocation6 + $0xd] sm:$0x1]
  %v5705 = vld [vmem:[#allocation6 + $0x15] sm:$0x1]
  %v5706 = vld [vmem:[#allocation6 + $0x1d] sm:$0x1]
  %v5707 = vld [vmem:[#allocation6 + $0x25] sm:$0x1]
  %v5708 = vld [vmem:[#allocation6 + $0x2d] sm:$0x1]
  %v5709 = vld [vmem:[#allocation6 + $0x35] sm:$0x1]
  %v5710 = vld [vmem:[#allocation6 + $0x3d] sm:$0x1]
  %v5711 = vld [vmem:[#allocation7 + $0x5] sm:$0x1]
  %v5712 = vld [vmem:[#allocation7 + $0xd] sm:$0x1]
  %v5713 = vld [vmem:[#allocation7 + $0x15] sm:$0x1]
  %v5714 = vld [vmem:[#allocation7 + $0x1d] sm:$0x1]
  %v5715 = vld [vmem:[#allocation7 + $0x25] sm:$0x1]
  %v5716 = vld [vmem:[#allocation7 + $0x2d] sm:$0x1]
  %v5717 = vld [vmem:[#allocation7 + $0x35] sm:$0x1]
  %v5718 = vld [vmem:[#allocation7 + $0x3d] sm:$0x1]
  %v5719 = vmax.f32 %v5703, %v5711
  %v5720 = vmax.f32 %v5704, %v5712
  %v5721 = vmax.f32 %v5705, %v5713
  %v5722 = vmax.f32 %v5706, %v5714
  %v5723 = vmax.f32 %v5707, %v5715
  %v5724 = vmax.f32 %v5708, %v5716
  %v5725 = vmax.f32 %v5709, %v5717
  %v5726 = vmax.f32 %v5710, %v5718
  %v5727 = vmax.f32 %v5695, %v5719
  %v5728 = vmax.f32 %v5696, %v5720
  %v5729 = vmax.f32 %v5697, %v5721
  %v5730 = vmax.f32 %v5698, %v5722
  %v5731 = vmax.f32 %v5699, %v5723
  %v5732 = vmax.f32 %v5700, %v5724
  %v5733 = vmax.f32 %v5701, %v5725
  %v5734 = vmax.f32 %v5702, %v5726
  %v5735 = vld [vmem:[%s6] sm:$0x1]
  %v5737 = vlaneseq
  %v5738 = vshrl.u32 %v5737, 7
  %v5739 = vsub.s32 0, %v5738
  %v5740 = vrot.slane %v5735, %v5739
  %v5742 = vadd.f32 %v5727, %v5740
  %v5743 = vadd.f32 %v5728, %v5740
  %v5744 = vadd.f32 %v5729, %v5740
  %v5745 = vadd.f32 %v5730, %v5740
  %v5746 = vadd.f32 %v5731, %v5740
  %v5747 = vadd.f32 %v5732, %v5740
  %v5748 = vadd.f32 %v5733, %v5740
  %v5749 = vadd.f32 %v5734, %v5740
  %v5750 = vmax.f32 %v5742, 0.0
  %v5751 = vmax.f32 %v5743, 0.0
  %v5752 = vmax.f32 %v5744, 0.0
  %v5753 = vmax.f32 %v5745, 0.0
  %v5754 = vmax.f32 %v5746, 0.0
  %v5755 = vmax.f32 %v5747, 0.0
  %v5756 = vmax.f32 %v5748, 0.0
  %v5757 = vmax.f32 %v5749, 0.0
  %v5758 = vpack.c.bf16 %v5750, %v5750
  %v5759 = vpack.c.bf16 %v5751, %v5751
  %v5760 = vpack.c.bf16 %v5752, %v5752
  %v5761 = vpack.c.bf16 %v5753, %v5753
  %v5762 = vpack.c.bf16 %v5754, %v5754
  %v5763 = vpack.c.bf16 %v5755, %v5755
  %v5764 = vpack.c.bf16 %v5756, %v5756
  %v5765 = vpack.c.bf16 %v5757, %v5757
  %s5766 = scalar_lea.vmem %s7, 80
  %v5767 = vld [vmem:[%s5766] sm:$0xf]
  %v5768 = vld [vmem:[%s5766 + $0x4] sm:$0xf]
  %v5769 = vld [vmem:[%s5766 + $0x8] sm:$0xf]
  %v5770 = vld [vmem:[%s5766 + $0xc] sm:$0xf]
  %v5771 = vld [vmem:[%s5766 + $0x10] sm:$0xf]
  %v5772 = vld [vmem:[%s5766 + $0x14] sm:$0xf]
  %v5773 = vld [vmem:[%s5766 + $0x18] sm:$0xf]
  %v5774 = vld [vmem:[%s5766 + $0x1c] sm:$0xf]
  %v5775 = vld [vmem:[%s5766 + $0x20] sm:$0xf]
  %v5776 = vld [vmem:[%s5766 + $0x24] sm:$0xf]
  %v5785 = vunpack.c.l.b16 %v5758
  %v5786 = vunpack.c.l.b16 %v5759
  %v5787 = vunpack.c.l.b16 %v5760
  %v5788 = vunpack.c.l.b16 %v5761
  %v5789 = vunpack.c.l.b16 %v5762
  %v5790 = vunpack.c.l.b16 %v5763
  %v5791 = vunpack.c.l.b16 %v5764
  %v5792 = vunpack.c.l.b16 %v5765
  %v5793 = vrot.slane %v5786, 7
  %v5794 = vsel %vm5378, %v5793, %v5785
  %v5795 = vrot.slane %v5787, 6
  %v5796 = vsel %vm5381, %v5795, %v5794
  %v5797 = vrot.slane %v5788, 5
  %v5798 = vsel %vm5384, %v5797, %v5796
  %v5799 = vrot.slane %v5789, 4
  %v5800 = vsel %vm5387, %v5799, %v5798
  %v5801 = vrot.slane %v5790, 3
  %v5802 = vsel %vm5390, %v5801, %v5800
  %v5803 = vrot.slane %v5791, 2
  %v5804 = vsel %vm5393, %v5803, %v5802
  %v5805 = vrot.slane %v5792, 1
  %v5806 = vsel %vm5396, %v5805, %v5804
  %v5807 = vpack.c.b16 %v5806, %v5806
  %v5818 = vunpack.c.l.b16 %v5767
  %v5819 = vunpack.c.l.b16 %v5768
  %v5820 = vunpack.c.l.b16 %v5769
  %v5821 = vunpack.c.l.b16 %v5770
  %v5822 = vunpack.c.l.b16 %v5771
  %v5823 = vunpack.c.l.b16 %v5772
  %v5824 = vunpack.c.l.b16 %v5773
  %v5825 = vunpack.c.l.b16 %v5774
  %v5826 = vunpack.c.l.b16 %v5775
  %v5827 = vunpack.c.l.b16 %v5776
  %v5828 = vpack.c.b16 %v5819, %v5818
  %v5829 = vpack.c.b16 %v5821, %v5820
  %v5830 = vpack.c.b16 %v5823, %v5822
  %v5831 = vpack.c.b16 %v5825, %v5824
  %v5832 = vpack.c.b16 %v5827, %v5826
  %v5839 = vsel %vm3927, %v5807, 0
  %5841 = vmatprep.subr.bf16.mxu0 0
  %5842 = vmatpush1.bf16.msra.mxu0 %v5828
  %5843 = vmatprep.subr.bf16.mxu0 0
  %5844 = vmatpush1.bf16.msra.mxu0 %v5829
  %5845 = vmatprep.subr.bf16.mxu0 0
  %5846 = vmatpush1.bf16.msra.mxu0 %v5830
  %5847 = vmatprep.subr.bf16.mxu0 0
  %5848 = vmatpush1.bf16.msra.mxu0 %v5831
  %5849 = vmatprep.subr.bf16.mxu0 0
  %5850 = vmatpush1.bf16.msra.mxu0 %v5832
  %5851 = vmatprep.subr.bf16.mxu0 0
  %5852 = vmatpush1.bf16.msra.mxu0 0
  %5853 = vmatprep.subr.bf16.mxu0 0
  %5854 = vmatpush1.bf16.msra.mxu0 0
  %5855 = vmatprep.subr.bf16.mxu0 0
  %5856 = vmatpush1.bf16.msra.mxu0 0
  %5857 = vmatprep.subr.bf16.mxu0 0
  %5858 = vmatpush1.bf16.msra.mxu0 0
  %5859 = vmatprep.subr.bf16.mxu0 0
  %5860 = vmatpush1.bf16.msra.mxu0 0
  %5861 = vmatprep.subr.bf16.mxu0 0
  %5862 = vmatpush1.bf16.msra.mxu0 0
  %5863 = vmatprep.subr.bf16.mxu0 0
  %5864 = vmatpush1.bf16.msra.mxu0 0
  %5865 = vmatprep.subr.bf16.mxu0 0
  %5866 = vmatpush1.bf16.msra.mxu0 0
  %5867 = vmatprep.subr.bf16.mxu0 0
  %5868 = vmatpush1.bf16.msra.mxu0 0
  %5869 = vmatprep.subr.bf16.mxu0 0
  %5870 = vmatpush1.bf16.msra.mxu0 0
  %5871 = vmatprep.subr.bf16.mxu0 0
  %5872 = vmatpush1.bf16.msra.mxu0 0
  %5873 = vmatprep.mubr.bf16.mxu0 0
  %5874 = vmatmul.mubr.bf16.gmra.mrb[0].mxu0 %v5839
  %v5875 = vpop.f32.mrb[0].mxu0
  %v5876 = vadd.f32 0.0, %v5875
  %v5877 = vpop.f32.mrb[0].mxu0
  %v5878 = vpop.f32.mrb[0].mxu0
  %v5879 = vpop.f32.mrb[0].mxu0
  %5880 = vdwg.mxu0
  %v5881 = vld [vmem:[#allocation8] sm:$0xff]
  %v5882 = vadd.f32 %v5881, %v5876
  %5883 = vst.msk [vmem:[#allocation8] sm:$0xff] %vm5472, %v5882
  %v5884 = vld [vmem:[#allocation6 + $0x6] sm:$0x1]
  %v5885 = vld [vmem:[#allocation6 + $0xe] sm:$0x1]
  %v5886 = vld [vmem:[#allocation6 + $0x16] sm:$0x1]
  %v5887 = vld [vmem:[#allocation6 + $0x1e] sm:$0x1]
  %v5888 = vld [vmem:[#allocation6 + $0x26] sm:$0x1]
  %v5889 = vld [vmem:[#allocation6 + $0x2e] sm:$0x1]
  %v5890 = vld [vmem:[#allocation6 + $0x36] sm:$0x1]
  %v5891 = vld [vmem:[#allocation6 + $0x3e] sm:$0x1]
  %v5892 = vld [vmem:[#allocation7 + $0x6] sm:$0x1]
  %v5893 = vld [vmem:[#allocation7 + $0xe] sm:$0x1]
  %v5894 = vld [vmem:[#allocation7 + $0x16] sm:$0x1]
  %v5895 = vld [vmem:[#allocation7 + $0x1e] sm:$0x1]
  %v5896 = vld [vmem:[#allocation7 + $0x26] sm:$0x1]
  %v5897 = vld [vmem:[#allocation7 + $0x2e] sm:$0x1]
  %v5898 = vld [vmem:[#allocation7 + $0x36] sm:$0x1]
  %v5899 = vld [vmem:[#allocation7 + $0x3e] sm:$0x1]
  %v5900 = vmax.f32 %v5884, %v5892
  %v5901 = vmax.f32 %v5885, %v5893
  %v5902 = vmax.f32 %v5886, %v5894
  %v5903 = vmax.f32 %v5887, %v5895
  %v5904 = vmax.f32 %v5888, %v5896
  %v5905 = vmax.f32 %v5889, %v5897
  %v5906 = vmax.f32 %v5890, %v5898
  %v5907 = vmax.f32 %v5891, %v5899
  %v5908 = vld [vmem:[#allocation6 + $0x7] sm:$0x1]
  %v5909 = vld [vmem:[#allocation6 + $0xf] sm:$0x1]
  %v5910 = vld [vmem:[#allocation6 + $0x17] sm:$0x1]
  %v5911 = vld [vmem:[#allocation6 + $0x1f] sm:$0x1]
  %v5912 = vld [vmem:[#allocation6 + $0x27] sm:$0x1]
  %v5913 = vld [vmem:[#allocation6 + $0x2f] sm:$0x1]
  %v5914 = vld [vmem:[#allocation6 + $0x37] sm:$0x1]
  %v5915 = vld [vmem:[#allocation6 + $0x3f] sm:$0x1]
  %v5916 = vld [vmem:[#allocation7 + $0x7] sm:$0x1]
  %v5917 = vld [vmem:[#allocation7 + $0xf] sm:$0x1]
  %v5918 = vld [vmem:[#allocation7 + $0x17] sm:$0x1]
  %v5919 = vld [vmem:[#allocation7 + $0x1f] sm:$0x1]
  %v5920 = vld [vmem:[#allocation7 + $0x27] sm:$0x1]
  %v5921 = vld [vmem:[#allocation7 + $0x2f] sm:$0x1]
  %v5922 = vld [vmem:[#allocation7 + $0x37] sm:$0x1]
  %v5923 = vld [vmem:[#allocation7 + $0x3f] sm:$0x1]
  %v5924 = vmax.f32 %v5908, %v5916
  %v5925 = vmax.f32 %v5909, %v5917
  %v5926 = vmax.f32 %v5910, %v5918
  %v5927 = vmax.f32 %v5911, %v5919
  %v5928 = vmax.f32 %v5912, %v5920
  %v5929 = vmax.f32 %v5913, %v5921
  %v5930 = vmax.f32 %v5914, %v5922
  %v5931 = vmax.f32 %v5915, %v5923
  %v5932 = vmax.f32 %v5900, %v5924
  %v5933 = vmax.f32 %v5901, %v5925
  %v5934 = vmax.f32 %v5902, %v5926
  %v5935 = vmax.f32 %v5903, %v5927
  %v5936 = vmax.f32 %v5904, %v5928
  %v5937 = vmax.f32 %v5905, %v5929
  %v5938 = vmax.f32 %v5906, %v5930
  %v5939 = vmax.f32 %v5907, %v5931
  %v5940 = vld [vmem:[%s6] sm:$0x1]
  %v5942 = vlaneseq
  %v5943 = vshrl.u32 %v5942, 7
  %v5944 = vsub.s32 0, %v5943
  %v5945 = vrot.slane %v5940, %v5944
  %v5947 = vadd.f32 %v5932, %v5945
  %v5948 = vadd.f32 %v5933, %v5945
  %v5949 = vadd.f32 %v5934, %v5945
  %v5950 = vadd.f32 %v5935, %v5945
  %v5951 = vadd.f32 %v5936, %v5945
  %v5952 = vadd.f32 %v5937, %v5945
  %v5953 = vadd.f32 %v5938, %v5945
  %v5954 = vadd.f32 %v5939, %v5945
  %v5955 = vmax.f32 %v5947, 0.0
  %v5956 = vmax.f32 %v5948, 0.0
  %v5957 = vmax.f32 %v5949, 0.0
  %v5958 = vmax.f32 %v5950, 0.0
  %v5959 = vmax.f32 %v5951, 0.0
  %v5960 = vmax.f32 %v5952, 0.0
  %v5961 = vmax.f32 %v5953, 0.0
  %v5962 = vmax.f32 %v5954, 0.0
  %v5963 = vpack.c.bf16 %v5955, %v5955
  %v5964 = vpack.c.bf16 %v5956, %v5956
  %v5965 = vpack.c.bf16 %v5957, %v5957
  %v5966 = vpack.c.bf16 %v5958, %v5958
  %v5967 = vpack.c.bf16 %v5959, %v5959
  %v5968 = vpack.c.bf16 %v5960, %v5960
  %v5969 = vpack.c.bf16 %v5961, %v5961
  %v5970 = vpack.c.bf16 %v5962, %v5962
  %s5971 = scalar_lea.vmem %s7, 120
  %v5972 = vld [vmem:[%s5971] sm:$0xf]
  %v5973 = vld [vmem:[%s5971 + $0x4] sm:$0xf]
  %v5974 = vld [vmem:[%s5971 + $0x8] sm:$0xf]
  %v5975 = vld [vmem:[%s5971 + $0xc] sm:$0xf]
  %v5976 = vld [vmem:[%s5971 + $0x10] sm:$0xf]
  %v5977 = vld [vmem:[%s5971 + $0x14] sm:$0xf]
  %v5978 = vld [vmem:[%s5971 + $0x18] sm:$0xf]
  %v5979 = vld [vmem:[%s5971 + $0x1c] sm:$0xf]
  %v5980 = vld [vmem:[%s5971 + $0x20] sm:$0xf]
  %v5981 = vld [vmem:[%s5971 + $0x24] sm:$0xf]
  %v5990 = vunpack.c.l.b16 %v5963
  %v5991 = vunpack.c.l.b16 %v5964
  %v5992 = vunpack.c.l.b16 %v5965
  %v5993 = vunpack.c.l.b16 %v5966
  %v5994 = vunpack.c.l.b16 %v5967
  %v5995 = vunpack.c.l.b16 %v5968
  %v5996 = vunpack.c.l.b16 %v5969
  %v5997 = vunpack.c.l.b16 %v5970
  %v5998 = vrot.slane %v5991, 7
  %v5999 = vsel %vm5378, %v5998, %v5990
  %v6000 = vrot.slane %v5992, 6
  %v6001 = vsel %vm5381, %v6000, %v5999
  %v6002 = vrot.slane %v5993, 5
  %v6003 = vsel %vm5384, %v6002, %v6001
  %v6004 = vrot.slane %v5994, 4
  %v6005 = vsel %vm5387, %v6004, %v6003
  %v6006 = vrot.slane %v5995, 3
  %v6007 = vsel %vm5390, %v6006, %v6005
  %v6008 = vrot.slane %v5996, 2
  %v6009 = vsel %vm5393, %v6008, %v6007
  %v6010 = vrot.slane %v5997, 1
  %v6011 = vsel %vm5396, %v6010, %v6009
  %v6012 = vpack.c.b16 %v6011, %v6011
  %v6023 = vunpack.c.l.b16 %v5972
  %v6024 = vunpack.c.l.b16 %v5973
  %v6025 = vunpack.c.l.b16 %v5974
  %v6026 = vunpack.c.l.b16 %v5975
  %v6027 = vunpack.c.l.b16 %v5976
  %v6028 = vunpack.c.l.b16 %v5977
  %v6029 = vunpack.c.l.b16 %v5978
  %v6030 = vunpack.c.l.b16 %v5979
  %v6031 = vunpack.c.l.b16 %v5980
  %v6032 = vunpack.c.l.b16 %v5981
  %v6033 = vpack.c.b16 %v6024, %v6023
  %v6034 = vpack.c.b16 %v6026, %v6025
  %v6035 = vpack.c.b16 %v6028, %v6027
  %v6036 = vpack.c.b16 %v6030, %v6029
  %v6037 = vpack.c.b16 %v6032, %v6031
  %v6044 = vsel %vm3927, %v6012, 0
  %6046 = vmatprep.subr.bf16.mxu0 0
  %6047 = vmatpush1.bf16.msra.mxu0 %v6033
  %6048 = vmatprep.subr.bf16.mxu0 0
  %6049 = vmatpush1.bf16.msra.mxu0 %v6034
  %6050 = vmatprep.subr.bf16.mxu0 0
  %6051 = vmatpush1.bf16.msra.mxu0 %v6035
  %6052 = vmatprep.subr.bf16.mxu0 0
  %6053 = vmatpush1.bf16.msra.mxu0 %v6036
  %6054 = vmatprep.subr.bf16.mxu0 0
  %6055 = vmatpush1.bf16.msra.mxu0 %v6037
  %6056 = vmatprep.subr.bf16.mxu0 0
  %6057 = vmatpush1.bf16.msra.mxu0 0
  %6058 = vmatprep.subr.bf16.mxu0 0
  %6059 = vmatpush1.bf16.msra.mxu0 0
  %6060 = vmatprep.subr.bf16.mxu0 0
  %6061 = vmatpush1.bf16.msra.mxu0 0
  %6062 = vmatprep.subr.bf16.mxu0 0
  %6063 = vmatpush1.bf16.msra.mxu0 0
  %6064 = vmatprep.subr.bf16.mxu0 0
  %6065 = vmatpush1.bf16.msra.mxu0 0
  %6066 = vmatprep.subr.bf16.mxu0 0
  %6067 = vmatpush1.bf16.msra.mxu0 0
  %6068 = vmatprep.subr.bf16.mxu0 0
  %6069 = vmatpush1.bf16.msra.mxu0 0
  %6070 = vmatprep.subr.bf16.mxu0 0
  %6071 = vmatpush1.bf16.msra.mxu0 0
  %6072 = vmatprep.subr.bf16.mxu0 0
  %6073 = vmatpush1.bf16.msra.mxu0 0
  %6074 = vmatprep.subr.bf16.mxu0 0
  %6075 = vmatpush1.bf16.msra.mxu0 0
  %6076 = vmatprep.subr.bf16.mxu0 0
  %6077 = vmatpush1.bf16.msra.mxu0 0
  %6078 = vmatprep.mubr.bf16.mxu0 0
  %6079 = vmatmul.mubr.bf16.gmra.mrb[0].mxu0 %v6044
  %v6080 = vpop.f32.mrb[0].mxu0
  %v6081 = vadd.f32 0.0, %v6080
  %v6082 = vpop.f32.mrb[0].mxu0
  %v6083 = vpop.f32.mrb[0].mxu0
  %v6084 = vpop.f32.mrb[0].mxu0
  %6085 = vdwg.mxu0
  %v6086 = vld [vmem:[#allocation8] sm:$0xff]
  %v6087 = vadd.f32 %v6086, %v6081
  %6088 = vst.msk [vmem:[#allocation8] sm:$0xff] %vm5472, %v6087
  %v6089 = vld [vmem:[#allocation8] sm:$0xff]
  %v6090 = vld [vmem:[%s8] sm:$0x1]
  %v6092 = vlaneseq
  %v6093 = vshrl.u32 %v6092, 7
  %v6094 = vsub.s32 0, %v6093
  %v6095 = vrot.slane %v6090, %v6094
  %v6097 = vadd.f32 %v6089, %v6095
  %v6098 = vmax.f32 %v6097, 0.0
  %v6099 = vpack.c.bf16 %v6098, %v6098
  %v6100 = vld [vmem:[%s9] sm:$0xf]
  %v6101 = vld [vmem:[%s9 + $0x4] sm:$0xf]
  %v6102 = vld [vmem:[%s9 + $0x8] sm:$0xf]
  %v6103 = vld [vmem:[%s9 + $0xc] sm:$0xf]
  %v6104 = vld [vmem:[%s9 + $0x10] sm:$0xf]
  %v6105 = vld [vmem:[%s9 + $0x14] sm:$0xf]
  %v6106 = vld [vmem:[%s9 + $0x18] sm:$0x1]
  %v6107 = vld [vmem:[%s10] sm:$0x1]
  %v6109 = vlaneseq
  %v6110 = vshrl.u32 %v6109, 7
  %v6111 = vsub.s32 0, %v6110
  %v6112 = vrot.slane %v6107, %v6111
  %v6121 = vunpack.c.l.b16 %v6100
  %v6122 = vunpack.c.l.b16 %v6101
  %v6123 = vunpack.c.l.b16 %v6102
  %v6124 = vunpack.c.l.b16 %v6103
  %v6125 = vunpack.c.l.b16 %v6104
  %v6126 = vunpack.c.l.b16 %v6105
  %v6127 = vunpack.c.l.b16 %v6106
  %v6128 = vpack.c.b16 %v6122, %v6121
  %v6129 = vpack.c.b16 %v6124, %v6123
  %v6130 = vpack.c.b16 %v6126, %v6125
  %v6131 = vpack.c.b16 %v6127, %v6127
  %v6136 = vsel %vm5472, %v6099, 0
  %vm6138 = vcmask 1040384
  %v6140 = vsel %vm6138, %v6131, 0
  %6142 = vmatprep.subr.bf16.mxu0 0
  %6143 = vmatpush1.bf16.msra.mxu0 %v6128
  %6144 = vmatprep.subr.bf16.mxu0 0
  %6145 = vmatpush1.bf16.msra.mxu0 %v6129
  %6146 = vmatprep.subr.bf16.mxu0 0
  %6147 = vmatpush1.bf16.msra.mxu0 %v6130
  %6148 = vmatprep.subr.bf16.mxu0 0
  %6149 = vmatpush1.bf16.msra.mxu0 %v6140
  %6150 = vmatprep.subr.bf16.mxu0 0
  %6151 = vmatpush1.bf16.msra.mxu0 0
  %6152 = vmatprep.subr.bf16.mxu0 0
  %6153 = vmatpush1.bf16.msra.mxu0 0
  %6154 = vmatprep.subr.bf16.mxu0 0
  %6155 = vmatpush1.bf16.msra.mxu0 0
  %6156 = vmatprep.subr.bf16.mxu0 0
  %6157 = vmatpush1.bf16.msra.mxu0 0
  %6158 = vmatprep.subr.bf16.mxu0 0
  %6159 = vmatpush1.bf16.msra.mxu0 0
  %6160 = vmatprep.subr.bf16.mxu0 0
  %6161 = vmatpush1.bf16.msra.mxu0 0
  %6162 = vmatprep.subr.bf16.mxu0 0
  %6163 = vmatpush1.bf16.msra.mxu0 0
  %6164 = vmatprep.subr.bf16.mxu0 0
  %6165 = vmatpush1.bf16.msra.mxu0 0
  %6166 = vmatprep.subr.bf16.mxu0 0
  %6167 = vmatpush1.bf16.msra.mxu0 0
  %6168 = vmatprep.subr.bf16.mxu0 0
  %6169 = vmatpush1.bf16.msra.mxu0 0
  %6170 = vmatprep.subr.bf16.mxu0 0
  %6171 = vmatpush1.bf16.msra.mxu0 0
  %6172 = vmatprep.subr.bf16.mxu0 0
  %6173 = vmatpush1.bf16.msra.mxu0 0
  %6174 = vmatprep.mubr.bf16.mxu0 0
  %6175 = vmatmul.mubr.bf16.gmra.mrb[0].mxu0 %v6136
  %v6176 = vpop.f32.mrb[0].mxu0
  %v6177 = vadd.f32 %v6112, %v6176
  %v6178 = vpop.f32.mrb[0].mxu0
  %v6179 = vpop.f32.mrb[0].mxu0
  %v6180 = vpop.f32.mrb[0].mxu0
  %6181 = vdwg.mxu0
  %vm6182 = vcmask 80896
  %v6183 = vsel %vm6182, %v6177, -inf
  %6184 = vmax.xlane.f32.xlu0 %v6183
  %v6185 = vpop.xlane.xlu0 %6184
  %v6186 = vsub.f32 %v6177, %v6185
  %v6187 = vmul.f32 %v6186, 1.442695
  %v6188 = vpow.pop %v6187
  %v6189 = vsel %vm6182, %v6188, 0.0
  %6190 = vadd.xlane.f32.xlu0 %v6189
  %v6191 = vpop.xlane.xlu0 %6190
  %v6192 = vlog2.pop %v6191
  %v6193 = vmul.f32 %v6192, 0.6931472
  %v6194 = vsub.f32 %v6186, %v6193
  %6195 = vst.msk [vmem:[%s11] sm:$0xff] %vm6182, %v6194
  // Predicated region
  $region46: #{net_forward_packed.1} parent=0 // pred_check
    _
  $region47: #{net_forward_packed.1} parent=0 // pred_check_branch
    %6197 = sbr.rel (0) target = $region49
  $region48: #{net_forward_packed.1} parent=0 // pred_region
    _
  $region49: #{net_forward_packed.1} parent=0 // pred_fallthru
    _
  // Predicated region
  $region50: #{net_forward_packed.1} parent=0 // pred_check
    _
  $region51: #{net_forward_packed.1} parent=0 // pred_check_branch
    %6199 = sbr.rel (0) target = $region53
  $region52: #{net_forward_packed.1} parent=0 // pred_region
    _
  $region53: #{net_forward_packed.1} parent=0 // pred_fallthru
    _

</llo_original>
